<compile_context>
chip_gen: v7x
topology: tpu7x:2x2x1
jax: 0.10.0
libtpu: 0.0.40
codegen_flags: <defaults>
</compile_context>

<pallas_src>
import jax
import jax.numpy as jnp
from jax.experimental import pallas as pl
from jax.experimental.pallas import tpu as pltpu


def _linear_kernel(x_ref, w_ref, b_ref, o_ref):
    """o[B, tn] = x[B, K] @ w[K, tn] + b, accumulated over the K grid axis.

    The f32 output block is the accumulator (same block index for every k);
    the bias is folded in at k == 0, so no scratch buffer / epilogue is needed.
    """
    k = pl.program_id(1)

    @pl.when(k == 0)
    def _():
        o_ref[...] = jnp.broadcast_to(b_ref[...].astype(jnp.float32), o_ref.shape)

    # bf16 x bf16 -> f32 accumulate: native single-pass MXU; the weight tile
    # (the big HBM stream) is consumed directly in its stored bf16 form.
    o_ref[...] += jnp.dot(
        x_ref[...].astype(w_ref.dtype),
        w_ref[...],
        preferred_element_type=jnp.float32,
    )


def _vmem_capacity_bytes():
    try:
        return int(pltpu.get_tpu_info().vmem_capacity_bytes)
    except Exception:
        return 64 * 1024 * 1024  # conservative fallback (v7x physical VMEM)


def _pick_tiles(K, FEAT, weight_itemsize, weight_budget_bytes):
    """Lane-dense FEAT tile + largest K tile fitting the VMEM budget."""
    if FEAT % 128 != 0:
        tn = FEAT            # full-dim lane block is always legal
    elif FEAT <= 256:
        tn = FEAT
    else:
        tn = 256             # >=2 "parallel" FEAT tiles for megacore when FEAT grows

    if K % 128 != 0:
        return K, tn         # full-dim K block (legal under the (8,128) rule)

    candidates = sorted(
        (d for d in range(128, K + 1, 128) if K % d == 0), reverse=True
    )
    for tk in candidates:
        if tk * tn * weight_itemsize * 2 <= weight_budget_bytes:
            return tk, tn
    return candidates[-1], tn


def pallas_linear(x_flat, weight, bias):
    """x_flat: (B, K) f32, weight: (K, FEAT) bf16 (or f32), bias: (1, FEAT) f32."""
    B, K = x_flat.shape
    Kw, FEAT = weight.shape
    assert K == Kw

    vmem_cap = _vmem_capacity_bytes()
    weight_budget = vmem_cap // 4                        # double-buffered weight tile
    vmem_limit = min(vmem_cap // 2, 96 * 1024 * 1024)    # generation-aware headroom

    itemsize = jnp.dtype(weight.dtype).itemsize
    tk, tn = _pick_tiles(K, FEAT, itemsize, weight_budget)
    n_j = FEAT // tn
    n_k = K // tk

    # If the budget forces several K steps, deepen the weight pipeline so the
    # (compute-free) grid steps keep the weight DMA stream back-to-back.
    if n_k > 1 and tk * tn * itemsize * 3 <= weight_budget:
        w_spec = pl.BlockSpec((tk, tn), lambda j, k: (k, j),
                              pipeline_mode=pl.Buffered(3))
    else:
        w_spec = pl.BlockSpec((tk, tn), lambda j, k: (k, j))

    bias2d = jnp.reshape(bias, (1, FEAT)).astype(jnp.float32)

    cost = pl.CostEstimate(
        flops=2 * B * K * FEAT,
        transcendentals=0,
        bytes_accessed=(B * K * x_flat.dtype.itemsize
                        + K * FEAT * itemsize
                        + FEAT * 4
                        + B * FEAT * 4),
    )

    out = pl.pallas_call(
        _linear_kernel,
        out_shape=jax.ShapeDtypeStruct((B, FEAT), jnp.float32),
        grid_spec=pltpu.PrefetchScalarGridSpec(
            num_scalar_prefetch=0,
            grid=(n_j, n_k),
            in_specs=[
                pl.BlockSpec((B, tk), lambda j, k: (0, k)),   # activation K-slab
                w_spec,                                       # streamed bf16 weight
                pl.BlockSpec((1, tn), lambda j, k: (0, j)),   # bias slice
            ],
            out_specs=pl.BlockSpec((B, tn), lambda j, k: (0, j)),
        ),
        compiler_params=pltpu.CompilerParams(
            dimension_semantics=("parallel", "arbitrary"),
            vmem_limit_bytes=vmem_limit,
        ),
        cost_estimate=cost,
    )(x_flat, weight, bias2d)
    return out


def fold_permute_into_weight(weight, C, D, H, W):
    """One-time offline reordering of the Linear head's K axis.

    The module permutes the activation (B,C,D,H,W) -> (B,D,C,H,W) before
    flattening; reordering weight rows from (d,c,h,w)-major to (c,d,h,w)-major
    lets the activation be flattened directly from its native layout with no
    transpose / extra HBM pass.
    """
    FEAT = weight.shape[-1]
    w = weight.reshape(D, C, H, W, FEAT)
    w = jnp.transpose(w, (1, 0, 2, 3, 4))
    return w.reshape(C * D * H * W, FEAT)


def multidim_stacking_forward(mvimages, weight_folded, bias):
    """Pallas implementation of MultidimStacking.forward.

    mvimages: (B, V, C, D, H, W) float32
    weight_folded: (K, FEAT) bf16 with the permute folded in (see above).
    Returns (pooled_view.squeeze(), aux); no size-1 dims at these shapes,
    matching torch .squeeze() semantics.
    """
    B, V, C, D, H, W = mvimages.shape
    # mvimages[:, 0] -> (B, C, D, H, W); the permute(0,2,1,3,4) is folded into
    # the weight, so flatten the native layout directly (no activation copy).
    x_flat = mvimages[:, 0].reshape(B, C * D * H * W)
    aux = pallas_linear(x_flat, weight_folded, bias)
    # `lifting_net` is the default identity (empty nn.Sequential)
    pooled_view = aux
    return jnp.squeeze(pooled_view), aux


if __name__ == "__main__":
    # Small shapes consistent with the forward: (B, V, C, D, H, W)
    B, V, C, D, H, W = 2, 2, 4, 8, 16, 16
    FEAT = 128
    K = C * D * H * W  # 8192

    key = jax.random.PRNGKey(0)
    k_x, k_w, k_b = jax.random.split(key, 3)

    mvimages = jax.random.normal(k_x, (B, V, C, D, H, W), dtype=jnp.float32)
    # Deterministic synthetic parameters for the Linear head of `model`.
    weight = jax.random.normal(k_w, (K, FEAT), dtype=jnp.float32) * 0.02
    bias = jax.random.normal(k_b, (1, FEAT), dtype=jnp.float32) * 0.02

    # One-time offline weight prep: fold the activation permute into the K
    # axis and store as bf16 (halves the HBM-bound weight stream).
    weight_folded = fold_permute_into_weight(weight, C, D, H, W).astype(jnp.bfloat16)

    fwd = jax.jit(multidim_stacking_forward)
    pooled, aux = fwd(mvimages, weight_folded, bias)
    jax.block_until_ready((pooled, aux))

    # Reference: the module's true semantics (slice view 0, permute, flatten,
    # Linear with the *original* weight), with params/activation rounded to
    # bf16 to mirror the kernel's intentional bf16 weight stream (the
    # accumulator stays f32 in both paths).
    x_ref = jnp.transpose(mvimages[:, 0], (0, 2, 1, 3, 4)).reshape(B, K)
    x_bf = x_ref.astype(jnp.bfloat16).astype(jnp.float32)
    w_bf = weight.astype(jnp.bfloat16).astype(jnp.float32)
    ref = x_bf @ w_bf + bias

    assert jnp.allclose(aux, ref, atol=2e-3, rtol=2e-3), float(
        jnp.max(jnp.abs(aux - ref)))
    assert pooled.shape == (B, FEAT) and aux.shape == (B, FEAT)

    print("KERNEL_OK")
</pallas_src>

<mosaic_0001>
module attributes {stable_mosaic.version = 11 : i64} {
  func.func @_linear_kernel(%arg0: i32, %arg1: i32, %arg2: memref<2x8192xf32, #tpu.memory_space<vmem>>, %arg3: memref<8192x128xbf16, #tpu.memory_space<vmem>>, %arg4: memref<1x128xf32, #tpu.memory_space<vmem>>, %arg5: memref<2x128xf32, #tpu.memory_space<vmem>>) attributes {dimension_semantics = [#tpu.dimension_semantics<parallel>, #tpu.dimension_semantics<arbitrary>], iteration_bounds = array<i64: 1, 1>, scalar_prefetch = 0 : i64, scratch_operands = 0 : i64, tpu.core_type = #tpu.core_type<tc>, window_params = [{transform_indices = @transform_0, window_bounds = array<i64: 2, 8192>}, {transform_indices = @transform_1, window_bounds = array<i64: 8192, 128>}, {transform_indices = @transform_2, window_bounds = array<i64: 1, 128>}, {transform_indices = @transform_3, window_bounds = array<i64: 2, 128>}]} {
    %c0_i32 = arith.constant 0 : i32
    %0 = arith.cmpi eq, %arg1, %c0_i32 : i32
    %1 = arith.extui %0 : i1 to i32
    %c0_i32_0 = arith.constant 0 : i32
    %2 = arith.cmpi ne, %1, %c0_i32_0 : i32
    scf.if %2 {
      %c0_8 = arith.constant 0 : index
      %c0_9 = arith.constant 0 : index
      %10 = vector.load %arg4[%c0_8, %c0_9] : memref<1x128xf32, #tpu.memory_space<vmem>>, vector<1x128xf32>
      %11 = vector.shape_cast %10 : vector<1x128xf32> to vector<1x128xf32>
      %12 = vector.broadcast %11 : vector<1x128xf32> to vector<2x128xf32>
      %c0_10 = arith.constant 0 : index
      %c0_11 = arith.constant 0 : index
      %13 = vector.load %arg5[%c0_10, %c0_11] : memref<2x128xf32, #tpu.memory_space<vmem>>, vector<2x128xf32>
      tpu.vector_store %arg5[%c0_10, %c0_11], %12 {strides = array<i32>} : memref<2x128xf32, #tpu.memory_space<vmem>>, vector<2x128xf32>,
    } else {
    }
    %c0 = arith.constant 0 : index
    %c0_1 = arith.constant 0 : index
    %3 = vector.load %arg5[%c0, %c0_1] : memref<2x128xf32, #tpu.memory_space<vmem>>, vector<2x128xf32>
    %c0_2 = arith.constant 0 : index
    %c0_3 = arith.constant 0 : index
    %4 = vector.load %arg2[%c0_2, %c0_3] : memref<2x8192xf32, #tpu.memory_space<vmem>>, vector<2x8192xf32>
    %5 = arith.truncf %4 : vector<2x8192xf32> to vector<2x8192xbf16>
    %c0_4 = arith.constant 0 : index
    %c0_5 = arith.constant 0 : index
    %6 = vector.load %arg3[%c0_4, %c0_5] : memref<8192x128xbf16, #tpu.memory_space<vmem>>, vector<8192x128xbf16>
    %cst = arith.constant dense<0.000000e+00> : vector<2x128xf32>
    %7 = tpu.matmul %5, %6, %cst {dimension_numbers = #tpu.dot_dimension_numbers<[1], [0], [0], [1], [0, 0, 1, 1], [], []>} : vector<2x8192xbf16>, vector<8192x128xbf16>, vector<2x128xf32> -> vector<2x128xf32>
    %8 = arith.addf %3, %7 : vector<2x128xf32>
    %c0_6 = arith.constant 0 : index
    %c0_7 = arith.constant 0 : index
    %9 = vector.load %arg5[%c0_6, %c0_7] : memref<2x128xf32, #tpu.memory_space<vmem>>, vector<2x128xf32>
    tpu.vector_store %arg5[%c0_6, %c0_7], %8 {strides = array<i32>} : memref<2x128xf32, #tpu.memory_space<vmem>>, vector<2x128xf32>,
    return
  }
  func.func @transform_0(%arg0: i32, %arg1: i32) -> (i32, i32) {
    %c0_i32 = arith.constant 0 : i32
    %c0_i32_0 = arith.constant 0 : i32
    return %c0_i32, %arg1 : i32, i32
  }
  func.func @transform_1(%arg0: i32, %arg1: i32) -> (i32, i32) {
    %c0_i32 = arith.constant 0 : i32
    return %arg1, %arg0 : i32, i32
  }
  func.func @transform_2(%arg0: i32, %arg1: i32) -> (i32, i32) {
    %c0_i32 = arith.constant 0 : i32
    %c0_i32_0 = arith.constant 0 : i32
    return %c0_i32, %arg0 : i32, i32
  }
  func.func @transform_3(%arg0: i32, %arg1: i32) -> (i32, i32) {
    %c0_i32 = arith.constant 0 : i32
    %c0_i32_0 = arith.constant 0 : i32
    return %c0_i32, %arg0 : i32, i32
  }
}

</mosaic_0001>

<llo_original>
// kernel: squeeze.1
$region0: #{squeeze.1}
  %s0 = inlined_call_operand.vmem [shape: f32[2,1,4,8,16,16], index: 0, kind: input, shape index: {}]
  %s1 = inlined_call_operand.vmem [shape: f32[2,8192], index: 1, kind: output, shape index: {}]
  $region1: #{squeeze.1} parent=0
    #allocation0 [shape = 'u8[262144]{0}', space=vmem, size = 0x40000, scoped, tag = 'scoped mem for output reshape']
    %v2 = vld [vmem:[%s0] ss:$8 sm:$0xf]
    %v3 = vld [vmem:[%s0] ss:$8 sm:$0xf0]
    %vm4 = vcmask 1047556
    %v5 = vsel %vm4, %v3, %v2
    %vm6 = vcmask 130048
    %7 = vst.msk [vmem:[#allocation0] ss:$8 sm:$0xf] %vm6, %v5
    %8 = vst.msk [vmem:[#allocation0] ss:$8 sm:$0xf0] %vm6, %v5
    %s9 = scalar_lea.vmem %s0, 64
    %v10 = vld [vmem:[%s9] ss:$8 sm:$0xf]
    %s11 = scalar_lea.vmem %s0, 64
    %v12 = vld [vmem:[%s11] ss:$8 sm:$0xf0]
    %vm13 = vcmask 1047556
    %v14 = vsel %vm13, %v12, %v10
    %vm15 = vcmask 130048
    %s16 = scalar_lea.vmem [#allocation0], 64
    %17 = vst.msk [vmem:[%s16] ss:$8 sm:$0xf] %vm15, %v14
    %s18 = scalar_lea.vmem [#allocation0], 64
    %19 = vst.msk [vmem:[%s18] ss:$8 sm:$0xf0] %vm15, %v14
    %s20 = scalar_lea.vmem %s0, 128
    %v21 = vld [vmem:[%s20] ss:$8 sm:$0xf]
    %s22 = scalar_lea.vmem %s0, 128
    %v23 = vld [vmem:[%s22] ss:$8 sm:$0xf0]
    %vm24 = vcmask 1047556
    %v25 = vsel %vm24, %v23, %v21
    %vm26 = vcmask 130048
    %s27 = scalar_lea.vmem [#allocation0], 128
    %28 = vst.msk [vmem:[%s27] ss:$8 sm:$0xf] %vm26, %v25
    %s29 = scalar_lea.vmem [#allocation0], 128
    %30 = vst.msk [vmem:[%s29] ss:$8 sm:$0xf0] %vm26, %v25
    %s31 = scalar_lea.vmem %s0, 192
    %v32 = vld [vmem:[%s31] ss:$8 sm:$0xf]
    %s33 = scalar_lea.vmem %s0, 192
    %v34 = vld [vmem:[%s33] ss:$8 sm:$0xf0]
    %vm35 = vcmask 1047556
    %v36 = vsel %vm35, %v34, %v32
    %vm37 = vcmask 130048
    %s38 = scalar_lea.vmem [#allocation0], 192
    %39 = vst.msk [vmem:[%s38] ss:$8 sm:$0xf] %vm37, %v36
    %s40 = scalar_lea.vmem [#allocation0], 192
    %41 = vst.msk [vmem:[%s40] ss:$8 sm:$0xf0] %vm37, %v36
    %s42 = scalar_lea.vmem %s0, 256
    %v43 = vld [vmem:[%s42] ss:$8 sm:$0xf]
    %s44 = scalar_lea.vmem %s0, 256
    %v45 = vld [vmem:[%s44] ss:$8 sm:$0xf0]
    %vm46 = vcmask 1047556
    %v47 = vsel %vm46, %v45, %v43
    %vm48 = vcmask 130048
    %s49 = scalar_lea.vmem [#allocation0], 256
    %50 = vst.msk [vmem:[%s49] ss:$8 sm:$0xf] %vm48, %v47
    %s51 = scalar_lea.vmem [#allocation0], 256
    %52 = vst.msk [vmem:[%s51] ss:$8 sm:$0xf0] %vm48, %v47
    %s53 = scalar_lea.vmem %s0, 320
    %v54 = vld [vmem:[%s53] ss:$8 sm:$0xf]
    %s55 = scalar_lea.vmem %s0, 320
    %v56 = vld [vmem:[%s55] ss:$8 sm:$0xf0]
    %vm57 = vcmask 1047556
    %v58 = vsel %vm57, %v56, %v54
    %vm59 = vcmask 130048
    %s60 = scalar_lea.vmem [#allocation0], 320
    %61 = vst.msk [vmem:[%s60] ss:$8 sm:$0xf] %vm59, %v58
    %s62 = scalar_lea.vmem [#allocation0], 320
    %63 = vst.msk [vmem:[%s62] ss:$8 sm:$0xf0] %vm59, %v58
    %s64 = scalar_lea.vmem %s0, 384
    %v65 = vld [vmem:[%s64] ss:$8 sm:$0xf]
    %s66 = scalar_lea.vmem %s0, 384
    %v67 = vld [vmem:[%s66] ss:$8 sm:$0xf0]
    %vm68 = vcmask 1047556
    %v69 = vsel %vm68, %v67, %v65
    %vm70 = vcmask 130048
    %s71 = scalar_lea.vmem [#allocation0], 384
    %72 = vst.msk [vmem:[%s71] ss:$8 sm:$0xf] %vm70, %v69
    %s73 = scalar_lea.vmem [#allocation0], 384
    %74 = vst.msk [vmem:[%s73] ss:$8 sm:$0xf0] %vm70, %v69
    %s75 = scalar_lea.vmem %s0, 448
    %v76 = vld [vmem:[%s75] ss:$8 sm:$0xf]
    %s77 = scalar_lea.vmem %s0, 448
    %v78 = vld [vmem:[%s77] ss:$8 sm:$0xf0]
    %vm79 = vcmask 1047556
    %v80 = vsel %vm79, %v78, %v76
    %vm81 = vcmask 130048
    %s82 = scalar_lea.vmem [#allocation0], 448
    %83 = vst.msk [vmem:[%s82] ss:$8 sm:$0xf] %vm81, %v80
    %s84 = scalar_lea.vmem [#allocation0], 448
    %85 = vst.msk [vmem:[%s84] ss:$8 sm:$0xf0] %vm81, %v80
    %s86 = scalar_lea.vmem %s0, 512
    %v87 = vld [vmem:[%s86] ss:$8 sm:$0xf]
    %s88 = scalar_lea.vmem %s0, 512
    %v89 = vld [vmem:[%s88] ss:$8 sm:$0xf0]
    %vm90 = vcmask 1047556
    %v91 = vsel %vm90, %v89, %v87
    %vm92 = vcmask 130048
    %s93 = scalar_lea.vmem [#allocation0], 1
    %94 = vst.msk [vmem:[%s93] ss:$8 sm:$0xf] %vm92, %v91
    %s95 = scalar_lea.vmem [#allocation0], 1
    %96 = vst.msk [vmem:[%s95] ss:$8 sm:$0xf0] %vm92, %v91
    %s97 = scalar_lea.vmem %s0, 576
    %v98 = vld [vmem:[%s97] ss:$8 sm:$0xf]
    %s99 = scalar_lea.vmem %s0, 576
    %v100 = vld [vmem:[%s99] ss:$8 sm:$0xf0]
    %vm101 = vcmask 1047556
    %v102 = vsel %vm101, %v100, %v98
    %vm103 = vcmask 130048
    %s104 = scalar_lea.vmem [#allocation0], 65
    %105 = vst.msk [vmem:[%s104] ss:$8 sm:$0xf] %vm103, %v102
    %s106 = scalar_lea.vmem [#allocation0], 65
    %107 = vst.msk [vmem:[%s106] ss:$8 sm:$0xf0] %vm103, %v102
    %s108 = scalar_lea.vmem %s0, 640
    %v109 = vld [vmem:[%s108] ss:$8 sm:$0xf]
    %s110 = scalar_lea.vmem %s0, 640
    %v111 = vld [vmem:[%s110] ss:$8 sm:$0xf0]
    %vm112 = vcmask 1047556
    %v113 = vsel %vm112, %v111, %v109
    %vm114 = vcmask 130048
    %s115 = scalar_lea.vmem [#allocation0], 129
    %116 = vst.msk [vmem:[%s115] ss:$8 sm:$0xf] %vm114, %v113
    %s117 = scalar_lea.vmem [#allocation0], 129
    %118 = vst.msk [vmem:[%s117] ss:$8 sm:$0xf0] %vm114, %v113
    %s119 = scalar_lea.vmem %s0, 704
    %v120 = vld [vmem:[%s119] ss:$8 sm:$0xf]
    %s121 = scalar_lea.vmem %s0, 704
    %v122 = vld [vmem:[%s121] ss:$8 sm:$0xf0]
    %vm123 = vcmask 1047556
    %v124 = vsel %vm123, %v122, %v120
    %vm125 = vcmask 130048
    %s126 = scalar_lea.vmem [#allocation0], 193
    %127 = vst.msk [vmem:[%s126] ss:$8 sm:$0xf] %vm125, %v124
    %s128 = scalar_lea.vmem [#allocation0], 193
    %129 = vst.msk [vmem:[%s128] ss:$8 sm:$0xf0] %vm125, %v124
    %s130 = scalar_lea.vmem %s0, 768
    %v131 = vld [vmem:[%s130] ss:$8 sm:$0xf]
    %s132 = scalar_lea.vmem %s0, 768
    %v133 = vld [vmem:[%s132] ss:$8 sm:$0xf0]
    %vm134 = vcmask 1047556
    %v135 = vsel %vm134, %v133, %v131
    %vm136 = vcmask 130048
    %s137 = scalar_lea.vmem [#allocation0], 257
    %138 = vst.msk [vmem:[%s137] ss:$8 sm:$0xf] %vm136, %v135
    %s139 = scalar_lea.vmem [#allocation0], 257
    %140 = vst.msk [vmem:[%s139] ss:$8 sm:$0xf0] %vm136, %v135
    %s141 = scalar_lea.vmem %s0, 832
    %v142 = vld [vmem:[%s141] ss:$8 sm:$0xf]
    %s143 = scalar_lea.vmem %s0, 832
    %v144 = vld [vmem:[%s143] ss:$8 sm:$0xf0]
    %vm145 = vcmask 1047556
    %v146 = vsel %vm145, %v144, %v142
    %vm147 = vcmask 130048
    %s148 = scalar_lea.vmem [#allocation0], 321
    %149 = vst.msk [vmem:[%s148] ss:$8 sm:$0xf] %vm147, %v146
    %s150 = scalar_lea.vmem [#allocation0], 321
    %151 = vst.msk [vmem:[%s150] ss:$8 sm:$0xf0] %vm147, %v146
    %s152 = scalar_lea.vmem %s0, 896
    %v153 = vld [vmem:[%s152] ss:$8 sm:$0xf]
    %s154 = scalar_lea.vmem %s0, 896
    %v155 = vld [vmem:[%s154] ss:$8 sm:$0xf0]
    %vm156 = vcmask 1047556
    %v157 = vsel %vm156, %v155, %v153
    %vm158 = vcmask 130048
    %s159 = scalar_lea.vmem [#allocation0], 385
    %160 = vst.msk [vmem:[%s159] ss:$8 sm:$0xf] %vm158, %v157
    %s161 = scalar_lea.vmem [#allocation0], 385
    %162 = vst.msk [vmem:[%s161] ss:$8 sm:$0xf0] %vm158, %v157
    %s163 = scalar_lea.vmem %s0, 960
    %v164 = vld [vmem:[%s163] ss:$8 sm:$0xf]
    %s165 = scalar_lea.vmem %s0, 960
    %v166 = vld [vmem:[%s165] ss:$8 sm:$0xf0]
    %vm167 = vcmask 1047556
    %v168 = vsel %vm167, %v166, %v164
    %vm169 = vcmask 130048
    %s170 = scalar_lea.vmem [#allocation0], 449
    %171 = vst.msk [vmem:[%s170] ss:$8 sm:$0xf] %vm169, %v168
    %s172 = scalar_lea.vmem [#allocation0], 449
    %173 = vst.msk [vmem:[%s172] ss:$8 sm:$0xf0] %vm169, %v168
    %s174 = scalar_lea.vmem %s0, 7
    %v175 = vld [vmem:[%s174] sm:$0x1]
    %s176 = scalar_lea.vmem %s0, 1023
    %s177 = smov 6
    %v178 = vld [vmem:[%s176] ss:$-504 sm:%s177]
    %vm179 = vcmask 1042433
    %v180 = vsel %vm179, %v178, %v175
    %s181 = scalar_lea.vmem %s0, 2039
    %s182 = smov 24
    %v183 = vld [vmem:[%s181] ss:$-504 sm:%s182]
    %vm184 = vcmask 1044483
    %v185 = vsel %vm184, %v183, %v180
    %s186 = scalar_lea.vmem %s0, 3055
    %s187 = smov 96
    %v188 = vld [vmem:[%s186] ss:$-504 sm:%s187]
    %vm189 = vcmask 1046533
    %v190 = vsel %vm189, %v188, %v185
    %s191 = scalar_lea.vmem %s0, 536
    %v192 = vld [vmem:[%s191] sm:$0x80]
    %vm193 = vcmask 1047559
    %v194 = vsel %vm193, %v192, %v190
    %195 = vrot.lane.b32.xlu0 %v194, 112
    %v196 = vpop.permute.xlu0 %195
    %vm197 = vcmask 1048448
    %198 = vst.msk [vmem:[#allocation0] sm:$0x3] %vm197, %v196
    %s199 = scalar_lea.vmem [#allocation0], 6
    %200 = vst.msk [vmem:[%s199] sm:$0xc] %vm197, %v196
    %s201 = scalar_lea.vmem [#allocation0], 12
    %202 = vst.msk [vmem:[%s201] sm:$0x30] %vm197, %v196
    %s203 = scalar_lea.vmem [#allocation0], 18
    %204 = vst.msk [vmem:[%s203] sm:$0xc0] %vm197, %v196
    %s205 = scalar_lea.vmem %s0, 39
    %v206 = vld [vmem:[%s205] sm:$0x1]
    %s207 = scalar_lea.vmem %s0, 1055
    %s208 = smov 6
    %v209 = vld [vmem:[%s207] ss:$-504 sm:%s208]
    %vm210 = vcmask 1042433
    %v211 = vsel %vm210, %v209, %v206
    %s212 = scalar_lea.vmem %s0, 2071
    %s213 = smov 24
    %v214 = vld [vmem:[%s212] ss:$-504 sm:%s213]
    %vm215 = vcmask 1044483
    %v216 = vsel %vm215, %v214, %v211
    %s217 = scalar_lea.vmem %s0, 3087
    %s218 = smov 96
    %v219 = vld [vmem:[%s217] ss:$-504 sm:%s218]
    %vm220 = vcmask 1046533
    %v221 = vsel %vm220, %v219, %v216
    %s222 = scalar_lea.vmem %s0, 568
    %v223 = vld [vmem:[%s222] sm:$0x80]
    %vm224 = vcmask 1047559
    %v225 = vsel %vm224, %v223, %v221
    %226 = vrot.lane.b32.xlu0 %v225, 112
    %v227 = vpop.permute.xlu0 %226
    %vm228 = vcmask 1048448
    %s229 = scalar_lea.vmem [#allocation0], 32
    %230 = vst.msk [vmem:[%s229] sm:$0x3] %vm228, %v227
    %s231 = scalar_lea.vmem [#allocation0], 38
    %232 = vst.msk [vmem:[%s231] sm:$0xc] %vm228, %v227
    %s233 = scalar_lea.vmem [#allocation0], 44
    %234 = vst.msk [vmem:[%s233] sm:$0x30] %vm228, %v227
    %s235 = scalar_lea.vmem [#allocation0], 50
    %236 = vst.msk [vmem:[%s235] sm:$0xc0] %vm228, %v227
    %s237 = scalar_lea.vmem %s0, 71
    %v238 = vld [vmem:[%s237] sm:$0x1]
    %s239 = scalar_lea.vmem %s0, 1087
    %s240 = smov 6
    %v241 = vld [vmem:[%s239] ss:$-504 sm:%s240]
    %vm242 = vcmask 1042433
    %v243 = vsel %vm242, %v241, %v238
    %s244 = scalar_lea.vmem %s0, 2103
    %s245 = smov 24
    %v246 = vld [vmem:[%s244] ss:$-504 sm:%s245]
    %vm247 = vcmask 1044483
    %v248 = vsel %vm247, %v246, %v243
    %s249 = scalar_lea.vmem %s0, 3119
    %s250 = smov 96
    %v251 = vld [vmem:[%s249] ss:$-504 sm:%s250]
    %vm252 = vcmask 1046533
    %v253 = vsel %vm252, %v251, %v248
    %s254 = scalar_lea.vmem %s0, 600
    %v255 = vld [vmem:[%s254] sm:$0x80]
    %vm256 = vcmask 1047559
    %v257 = vsel %vm256, %v255, %v253
    %258 = vrot.lane.b32.xlu0 %v257, 112
    %v259 = vpop.permute.xlu0 %258
    %vm260 = vcmask 1048448
    %s261 = scalar_lea.vmem [#allocation0], 64
    %262 = vst.msk [vmem:[%s261] sm:$0x3] %vm260, %v259
    %s263 = scalar_lea.vmem [#allocation0], 70
    %264 = vst.msk [vmem:[%s263] sm:$0xc] %vm260, %v259
    %s265 = scalar_lea.vmem [#allocation0], 76
    %266 = vst.msk [vmem:[%s265] sm:$0x30] %vm260, %v259
    %s267 = scalar_lea.vmem [#allocation0], 82
    %268 = vst.msk [vmem:[%s267] sm:$0xc0] %vm260, %v259
    %s269 = scalar_lea.vmem %s0, 103
    %v270 = vld [vmem:[%s269] sm:$0x1]
    %s271 = scalar_lea.vmem %s0, 1119
    %s272 = smov 6
    %v273 = vld [vmem:[%s271] ss:$-504 sm:%s272]
    %vm274 = vcmask 1042433
    %v275 = vsel %vm274, %v273, %v270
    %s276 = scalar_lea.vmem %s0, 2135
    %s277 = smov 24
    %v278 = vld [vmem:[%s276] ss:$-504 sm:%s277]
    %vm279 = vcmask 1044483
    %v280 = vsel %vm279, %v278, %v275
    %s281 = scalar_lea.vmem %s0, 3151
    %s282 = smov 96
    %v283 = vld [vmem:[%s281] ss:$-504 sm:%s282]
    %vm284 = vcmask 1046533
    %v285 = vsel %vm284, %v283, %v280
    %s286 = scalar_lea.vmem %s0, 632
    %v287 = vld [vmem:[%s286] sm:$0x80]
    %vm288 = vcmask 1047559
    %v289 = vsel %vm288, %v287, %v285
    %290 = vrot.lane.b32.xlu0 %v289, 112
    %v291 = vpop.permute.xlu0 %290
    %vm292 = vcmask 1048448
    %s293 = scalar_lea.vmem [#allocation0], 96
    %294 = vst.msk [vmem:[%s293] sm:$0x3] %vm292, %v291
    %s295 = scalar_lea.vmem [#allocation0], 102
    %296 = vst.msk [vmem:[%s295] sm:$0xc] %vm292, %v291
    %s297 = scalar_lea.vmem [#allocation0], 108
    %298 = vst.msk [vmem:[%s297] sm:$0x30] %vm292, %v291
    %s299 = scalar_lea.vmem [#allocation0], 114
    %300 = vst.msk [vmem:[%s299] sm:$0xc0] %vm292, %v291
    %s301 = scalar_lea.vmem %s0, 135
    %v302 = vld [vmem:[%s301] sm:$0x1]
    %s303 = scalar_lea.vmem %s0, 1151
    %s304 = smov 6
    %v305 = vld [vmem:[%s303] ss:$-504 sm:%s304]
    %vm306 = vcmask 1042433
    %v307 = vsel %vm306, %v305, %v302
    %s308 = scalar_lea.vmem %s0, 2167
    %s309 = smov 24
    %v310 = vld [vmem:[%s308] ss:$-504 sm:%s309]
    %vm311 = vcmask 1044483
    %v312 = vsel %vm311, %v310, %v307
    %s313 = scalar_lea.vmem %s0, 3183
    %s314 = smov 96
    %v315 = vld [vmem:[%s313] ss:$-504 sm:%s314]
    %vm316 = vcmask 1046533
    %v317 = vsel %vm316, %v315, %v312
    %s318 = scalar_lea.vmem %s0, 664
    %v319 = vld [vmem:[%s318] sm:$0x80]
    %vm320 = vcmask 1047559
    %v321 = vsel %vm320, %v319, %v317
    %322 = vrot.lane.b32.xlu0 %v321, 112
    %v323 = vpop.permute.xlu0 %322
    %vm324 = vcmask 1048448
    %s325 = scalar_lea.vmem [#allocation0], 128
    %326 = vst.msk [vmem:[%s325] sm:$0x3] %vm324, %v323
    %s327 = scalar_lea.vmem [#allocation0], 134
    %328 = vst.msk [vmem:[%s327] sm:$0xc] %vm324, %v323
    %s329 = scalar_lea.vmem [#allocation0], 140
    %330 = vst.msk [vmem:[%s329] sm:$0x30] %vm324, %v323
    %s331 = scalar_lea.vmem [#allocation0], 146
    %332 = vst.msk [vmem:[%s331] sm:$0xc0] %vm324, %v323
    %s333 = scalar_lea.vmem %s0, 167
    %v334 = vld [vmem:[%s333] sm:$0x1]
    %s335 = scalar_lea.vmem %s0, 1183
    %s336 = smov 6
    %v337 = vld [vmem:[%s335] ss:$-504 sm:%s336]
    %vm338 = vcmask 1042433
    %v339 = vsel %vm338, %v337, %v334
    %s340 = scalar_lea.vmem %s0, 2199
    %s341 = smov 24
    %v342 = vld [vmem:[%s340] ss:$-504 sm:%s341]
    %vm343 = vcmask 1044483
    %v344 = vsel %vm343, %v342, %v339
    %s345 = scalar_lea.vmem %s0, 3215
    %s346 = smov 96
    %v347 = vld [vmem:[%s345] ss:$-504 sm:%s346]
    %vm348 = vcmask 1046533
    %v349 = vsel %vm348, %v347, %v344
    %s350 = scalar_lea.vmem %s0, 696
    %v351 = vld [vmem:[%s350] sm:$0x80]
    %vm352 = vcmask 1047559
    %v353 = vsel %vm352, %v351, %v349
    %354 = vrot.lane.b32.xlu0 %v353, 112
    %v355 = vpop.permute.xlu0 %354
    %vm356 = vcmask 1048448
    %s357 = scalar_lea.vmem [#allocation0], 160
    %358 = vst.msk [vmem:[%s357] sm:$0x3] %vm356, %v355
    %s359 = scalar_lea.vmem [#allocation0], 166
    %360 = vst.msk [vmem:[%s359] sm:$0xc] %vm356, %v355
    %s361 = scalar_lea.vmem [#allocation0], 172
    %362 = vst.msk [vmem:[%s361] sm:$0x30] %vm356, %v355
    %s363 = scalar_lea.vmem [#allocation0], 178
    %364 = vst.msk [vmem:[%s363] sm:$0xc0] %vm356, %v355
    %s365 = scalar_lea.vmem %s0, 199
    %v366 = vld [vmem:[%s365] sm:$0x1]
    %s367 = scalar_lea.vmem %s0, 1215
    %s368 = smov 6
    %v369 = vld [vmem:[%s367] ss:$-504 sm:%s368]
    %vm370 = vcmask 1042433
    %v371 = vsel %vm370, %v369, %v366
    %s372 = scalar_lea.vmem %s0, 2231
    %s373 = smov 24
    %v374 = vld [vmem:[%s372] ss:$-504 sm:%s373]
    %vm375 = vcmask 1044483
    %v376 = vsel %vm375, %v374, %v371
    %s377 = scalar_lea.vmem %s0, 3247
    %s378 = smov 96
    %v379 = vld [vmem:[%s377] ss:$-504 sm:%s378]
    %vm380 = vcmask 1046533
    %v381 = vsel %vm380, %v379, %v376
    %s382 = scalar_lea.vmem %s0, 728
    %v383 = vld [vmem:[%s382] sm:$0x80]
    %vm384 = vcmask 1047559
    %v385 = vsel %vm384, %v383, %v381
    %386 = vrot.lane.b32.xlu0 %v385, 112
    %v387 = vpop.permute.xlu0 %386
    %vm388 = vcmask 1048448
    %s389 = scalar_lea.vmem [#allocation0], 192
    %390 = vst.msk [vmem:[%s389] sm:$0x3] %vm388, %v387
    %s391 = scalar_lea.vmem [#allocation0], 198
    %392 = vst.msk [vmem:[%s391] sm:$0xc] %vm388, %v387
    %s393 = scalar_lea.vmem [#allocation0], 204
    %394 = vst.msk [vmem:[%s393] sm:$0x30] %vm388, %v387
    %s395 = scalar_lea.vmem [#allocation0], 210
    %396 = vst.msk [vmem:[%s395] sm:$0xc0] %vm388, %v387
    %s397 = scalar_lea.vmem %s0, 231
    %v398 = vld [vmem:[%s397] sm:$0x1]
    %s399 = scalar_lea.vmem %s0, 1247
    %s400 = smov 6
    %v401 = vld [vmem:[%s399] ss:$-504 sm:%s400]
    %vm402 = vcmask 1042433
    %v403 = vsel %vm402, %v401, %v398
    %s404 = scalar_lea.vmem %s0, 2263
    %s405 = smov 24
    %v406 = vld [vmem:[%s404] ss:$-504 sm:%s405]
    %vm407 = vcmask 1044483
    %v408 = vsel %vm407, %v406, %v403
    %s409 = scalar_lea.vmem %s0, 3279
    %s410 = smov 96
    %v411 = vld [vmem:[%s409] ss:$-504 sm:%s410]
    %vm412 = vcmask 1046533
    %v413 = vsel %vm412, %v411, %v408
    %s414 = scalar_lea.vmem %s0, 760
    %v415 = vld [vmem:[%s414] sm:$0x80]
    %vm416 = vcmask 1047559
    %v417 = vsel %vm416, %v415, %v413
    %418 = vrot.lane.b32.xlu0 %v417, 112
    %v419 = vpop.permute.xlu0 %418
    %vm420 = vcmask 1048448
    %s421 = scalar_lea.vmem [#allocation0], 224
    %422 = vst.msk [vmem:[%s421] sm:$0x3] %vm420, %v419
    %s423 = scalar_lea.vmem [#allocation0], 230
    %424 = vst.msk [vmem:[%s423] sm:$0xc] %vm420, %v419
    %s425 = scalar_lea.vmem [#allocation0], 236
    %426 = vst.msk [vmem:[%s425] sm:$0x30] %vm420, %v419
    %s427 = scalar_lea.vmem [#allocation0], 242
    %428 = vst.msk [vmem:[%s427] sm:$0xc0] %vm420, %v419
    %s429 = scalar_lea.vmem %s0, 263
    %v430 = vld [vmem:[%s429] sm:$0x1]
    %s431 = scalar_lea.vmem %s0, 1279
    %s432 = smov 6
    %v433 = vld [vmem:[%s431] ss:$-504 sm:%s432]
    %vm434 = vcmask 1042433
    %v435 = vsel %vm434, %v433, %v430
    %s436 = scalar_lea.vmem %s0, 2295
    %s437 = smov 24
    %v438 = vld [vmem:[%s436] ss:$-504 sm:%s437]
    %vm439 = vcmask 1044483
    %v440 = vsel %vm439, %v438, %v435
    %s441 = scalar_lea.vmem %s0, 3311
    %s442 = smov 96
    %v443 = vld [vmem:[%s441] ss:$-504 sm:%s442]
    %vm444 = vcmask 1046533
    %v445 = vsel %vm444, %v443, %v440
    %s446 = scalar_lea.vmem %s0, 792
    %v447 = vld [vmem:[%s446] sm:$0x80]
    %vm448 = vcmask 1047559
    %v449 = vsel %vm448, %v447, %v445
    %450 = vrot.lane.b32.xlu0 %v449, 112
    %v451 = vpop.permute.xlu0 %450
    %vm452 = vcmask 1048448
    %s453 = scalar_lea.vmem [#allocation0], 256
    %454 = vst.msk [vmem:[%s453] sm:$0x3] %vm452, %v451
    %s455 = scalar_lea.vmem [#allocation0], 262
    %456 = vst.msk [vmem:[%s455] sm:$0xc] %vm452, %v451
    %s457 = scalar_lea.vmem [#allocation0], 268
    %458 = vst.msk [vmem:[%s457] sm:$0x30] %vm452, %v451
    %s459 = scalar_lea.vmem [#allocation0], 274
    %460 = vst.msk [vmem:[%s459] sm:$0xc0] %vm452, %v451
    %s461 = scalar_lea.vmem %s0, 295
    %v462 = vld [vmem:[%s461] sm:$0x1]
    %s463 = scalar_lea.vmem %s0, 1311
    %s464 = smov 6
    %v465 = vld [vmem:[%s463] ss:$-504 sm:%s464]
    %vm466 = vcmask 1042433
    %v467 = vsel %vm466, %v465, %v462
    %s468 = scalar_lea.vmem %s0, 2327
    %s469 = smov 24
    %v470 = vld [vmem:[%s468] ss:$-504 sm:%s469]
    %vm471 = vcmask 1044483
    %v472 = vsel %vm471, %v470, %v467
    %s473 = scalar_lea.vmem %s0, 3343
    %s474 = smov 96
    %v475 = vld [vmem:[%s473] ss:$-504 sm:%s474]
    %vm476 = vcmask 1046533
    %v477 = vsel %vm476, %v475, %v472
    %s478 = scalar_lea.vmem %s0, 824
    %v479 = vld [vmem:[%s478] sm:$0x80]
    %vm480 = vcmask 1047559
    %v481 = vsel %vm480, %v479, %v477
    %482 = vrot.lane.b32.xlu0 %v481, 112
    %v483 = vpop.permute.xlu0 %482
    %vm484 = vcmask 1048448
    %s485 = scalar_lea.vmem [#allocation0], 288
    %486 = vst.msk [vmem:[%s485] sm:$0x3] %vm484, %v483
    %s487 = scalar_lea.vmem [#allocation0], 294
    %488 = vst.msk [vmem:[%s487] sm:$0xc] %vm484, %v483
    %s489 = scalar_lea.vmem [#allocation0], 300
    %490 = vst.msk [vmem:[%s489] sm:$0x30] %vm484, %v483
    %s491 = scalar_lea.vmem [#allocation0], 306
    %492 = vst.msk [vmem:[%s491] sm:$0xc0] %vm484, %v483
    %s493 = scalar_lea.vmem %s0, 327
    %v494 = vld [vmem:[%s493] sm:$0x1]
    %s495 = scalar_lea.vmem %s0, 1343
    %s496 = smov 6
    %v497 = vld [vmem:[%s495] ss:$-504 sm:%s496]
    %vm498 = vcmask 1042433
    %v499 = vsel %vm498, %v497, %v494
    %s500 = scalar_lea.vmem %s0, 2359
    %s501 = smov 24
    %v502 = vld [vmem:[%s500] ss:$-504 sm:%s501]
    %vm503 = vcmask 1044483
    %v504 = vsel %vm503, %v502, %v499
    %s505 = scalar_lea.vmem %s0, 3375
    %s506 = smov 96
    %v507 = vld [vmem:[%s505] ss:$-504 sm:%s506]
    %vm508 = vcmask 1046533
    %v509 = vsel %vm508, %v507, %v504
    %s510 = scalar_lea.vmem %s0, 856
    %v511 = vld [vmem:[%s510] sm:$0x80]
    %vm512 = vcmask 1047559
    %v513 = vsel %vm512, %v511, %v509
    %514 = vrot.lane.b32.xlu0 %v513, 112
    %v515 = vpop.permute.xlu0 %514
    %vm516 = vcmask 1048448
    %s517 = scalar_lea.vmem [#allocation0], 320
    %518 = vst.msk [vmem:[%s517] sm:$0x3] %vm516, %v515
    %s519 = scalar_lea.vmem [#allocation0], 326
    %520 = vst.msk [vmem:[%s519] sm:$0xc] %vm516, %v515
    %s521 = scalar_lea.vmem [#allocation0], 332
    %522 = vst.msk [vmem:[%s521] sm:$0x30] %vm516, %v515
    %s523 = scalar_lea.vmem [#allocation0], 338
    %524 = vst.msk [vmem:[%s523] sm:$0xc0] %vm516, %v515
    %s525 = scalar_lea.vmem %s0, 359
    %v526 = vld [vmem:[%s525] sm:$0x1]
    %s527 = scalar_lea.vmem %s0, 1375
    %s528 = smov 6
    %v529 = vld [vmem:[%s527] ss:$-504 sm:%s528]
    %vm530 = vcmask 1042433
    %v531 = vsel %vm530, %v529, %v526
    %s532 = scalar_lea.vmem %s0, 2391
    %s533 = smov 24
    %v534 = vld [vmem:[%s532] ss:$-504 sm:%s533]
    %vm535 = vcmask 1044483
    %v536 = vsel %vm535, %v534, %v531
    %s537 = scalar_lea.vmem %s0, 3407
    %s538 = smov 96
    %v539 = vld [vmem:[%s537] ss:$-504 sm:%s538]
    %vm540 = vcmask 1046533
    %v541 = vsel %vm540, %v539, %v536
    %s542 = scalar_lea.vmem %s0, 888
    %v543 = vld [vmem:[%s542] sm:$0x80]
    %vm544 = vcmask 1047559
    %v545 = vsel %vm544, %v543, %v541
    %546 = vrot.lane.b32.xlu0 %v545, 112
    %v547 = vpop.permute.xlu0 %546
    %vm548 = vcmask 1048448
    %s549 = scalar_lea.vmem [#allocation0], 352
    %550 = vst.msk [vmem:[%s549] sm:$0x3] %vm548, %v547
    %s551 = scalar_lea.vmem [#allocation0], 358
    %552 = vst.msk [vmem:[%s551] sm:$0xc] %vm548, %v547
    %s553 = scalar_lea.vmem [#allocation0], 364
    %554 = vst.msk [vmem:[%s553] sm:$0x30] %vm548, %v547
    %s555 = scalar_lea.vmem [#allocation0], 370
    %556 = vst.msk [vmem:[%s555] sm:$0xc0] %vm548, %v547
    %s557 = scalar_lea.vmem %s0, 391
    %v558 = vld [vmem:[%s557] sm:$0x1]
    %s559 = scalar_lea.vmem %s0, 1407
    %s560 = smov 6
    %v561 = vld [vmem:[%s559] ss:$-504 sm:%s560]
    %vm562 = vcmask 1042433
    %v563 = vsel %vm562, %v561, %v558
    %s564 = scalar_lea.vmem %s0, 2423
    %s565 = smov 24
    %v566 = vld [vmem:[%s564] ss:$-504 sm:%s565]
    %vm567 = vcmask 1044483
    %v568 = vsel %vm567, %v566, %v563
    %s569 = scalar_lea.vmem %s0, 3439
    %s570 = smov 96
    %v571 = vld [vmem:[%s569] ss:$-504 sm:%s570]
    %vm572 = vcmask 1046533
    %v573 = vsel %vm572, %v571, %v568
    %s574 = scalar_lea.vmem %s0, 920
    %v575 = vld [vmem:[%s574] sm:$0x80]
    %vm576 = vcmask 1047559
    %v577 = vsel %vm576, %v575, %v573
    %578 = vrot.lane.b32.xlu0 %v577, 112
    %v579 = vpop.permute.xlu0 %578
    %vm580 = vcmask 1048448
    %s581 = scalar_lea.vmem [#allocation0], 384
    %582 = vst.msk [vmem:[%s581] sm:$0x3] %vm580, %v579
    %s583 = scalar_lea.vmem [#allocation0], 390
    %584 = vst.msk [vmem:[%s583] sm:$0xc] %vm580, %v579
    %s585 = scalar_lea.vmem [#allocation0], 396
    %586 = vst.msk [vmem:[%s585] sm:$0x30] %vm580, %v579
    %s587 = scalar_lea.vmem [#allocation0], 402
    %588 = vst.msk [vmem:[%s587] sm:$0xc0] %vm580, %v579
    %s589 = scalar_lea.vmem %s0, 423
    %v590 = vld [vmem:[%s589] sm:$0x1]
    %s591 = scalar_lea.vmem %s0, 1439
    %s592 = smov 6
    %v593 = vld [vmem:[%s591] ss:$-504 sm:%s592]
    %vm594 = vcmask 1042433
    %v595 = vsel %vm594, %v593, %v590
    %s596 = scalar_lea.vmem %s0, 2455
    %s597 = smov 24
    %v598 = vld [vmem:[%s596] ss:$-504 sm:%s597]
    %vm599 = vcmask 1044483
    %v600 = vsel %vm599, %v598, %v595
    %s601 = scalar_lea.vmem %s0, 3471
    %s602 = smov 96
    %v603 = vld [vmem:[%s601] ss:$-504 sm:%s602]
    %vm604 = vcmask 1046533
    %v605 = vsel %vm604, %v603, %v600
    %s606 = scalar_lea.vmem %s0, 952
    %v607 = vld [vmem:[%s606] sm:$0x80]
    %vm608 = vcmask 1047559
    %v609 = vsel %vm608, %v607, %v605
    %610 = vrot.lane.b32.xlu0 %v609, 112
    %v611 = vpop.permute.xlu0 %610
    %vm612 = vcmask 1048448
    %s613 = scalar_lea.vmem [#allocation0], 416
    %614 = vst.msk [vmem:[%s613] sm:$0x3] %vm612, %v611
    %s615 = scalar_lea.vmem [#allocation0], 422
    %616 = vst.msk [vmem:[%s615] sm:$0xc] %vm612, %v611
    %s617 = scalar_lea.vmem [#allocation0], 428
    %618 = vst.msk [vmem:[%s617] sm:$0x30] %vm612, %v611
    %s619 = scalar_lea.vmem [#allocation0], 434
    %620 = vst.msk [vmem:[%s619] sm:$0xc0] %vm612, %v611
    %s621 = scalar_lea.vmem %s0, 455
    %v622 = vld [vmem:[%s621] sm:$0x1]
    %s623 = scalar_lea.vmem %s0, 1471
    %s624 = smov 6
    %v625 = vld [vmem:[%s623] ss:$-504 sm:%s624]
    %vm626 = vcmask 1042433
    %v627 = vsel %vm626, %v625, %v622
    %s628 = scalar_lea.vmem %s0, 2487
    %s629 = smov 24
    %v630 = vld [vmem:[%s628] ss:$-504 sm:%s629]
    %vm631 = vcmask 1044483
    %v632 = vsel %vm631, %v630, %v627
    %s633 = scalar_lea.vmem %s0, 3503
    %s634 = smov 96
    %v635 = vld [vmem:[%s633] ss:$-504 sm:%s634]
    %vm636 = vcmask 1046533
    %v637 = vsel %vm636, %v635, %v632
    %s638 = scalar_lea.vmem %s0, 984
    %v639 = vld [vmem:[%s638] sm:$0x80]
    %vm640 = vcmask 1047559
    %v641 = vsel %vm640, %v639, %v637
    %642 = vrot.lane.b32.xlu0 %v641, 112
    %v643 = vpop.permute.xlu0 %642
    %vm644 = vcmask 1048448
    %s645 = scalar_lea.vmem [#allocation0], 448
    %646 = vst.msk [vmem:[%s645] sm:$0x3] %vm644, %v643
    %s647 = scalar_lea.vmem [#allocation0], 454
    %648 = vst.msk [vmem:[%s647] sm:$0xc] %vm644, %v643
    %s649 = scalar_lea.vmem [#allocation0], 460
    %650 = vst.msk [vmem:[%s649] sm:$0x30] %vm644, %v643
    %s651 = scalar_lea.vmem [#allocation0], 466
    %652 = vst.msk [vmem:[%s651] sm:$0xc0] %vm644, %v643
    %s653 = scalar_lea.vmem %s0, 487
    %v654 = vld [vmem:[%s653] sm:$0x1]
    %s655 = scalar_lea.vmem %s0, 1503
    %s656 = smov 6
    %v657 = vld [vmem:[%s655] ss:$-504 sm:%s656]
    %vm658 = vcmask 1042433
    %v659 = vsel %vm658, %v657, %v654
    %s660 = scalar_lea.vmem %s0, 2519
    %s661 = smov 24
    %v662 = vld [vmem:[%s660] ss:$-504 sm:%s661]
    %vm663 = vcmask 1044483
    %v664 = vsel %vm663, %v662, %v659
    %s665 = scalar_lea.vmem %s0, 3535
    %s666 = smov 96
    %v667 = vld [vmem:[%s665] ss:$-504 sm:%s666]
    %vm668 = vcmask 1046533
    %v669 = vsel %vm668, %v667, %v664
    %s670 = scalar_lea.vmem %s0, 1016
    %v671 = vld [vmem:[%s670] sm:$0x80]
    %vm672 = vcmask 1047559
    %v673 = vsel %vm672, %v671, %v669
    %674 = vrot.lane.b32.xlu0 %v673, 112
    %v675 = vpop.permute.xlu0 %674
    %vm676 = vcmask 1048448
    %s677 = scalar_lea.vmem [#allocation0], 480
    %678 = vst.msk [vmem:[%s677] sm:$0x3] %vm676, %v675
    %s679 = scalar_lea.vmem [#allocation0], 486
    %680 = vst.msk [vmem:[%s679] sm:$0xc] %vm676, %v675
    %s681 = scalar_lea.vmem [#allocation0], 492
    %682 = vst.msk [vmem:[%s681] sm:$0x30] %vm676, %v675
    %s683 = scalar_lea.vmem [#allocation0], 498
    %684 = vst.msk [vmem:[%s683] sm:$0xc0] %vm676, %v675
    %s685 = scalar_lea.vmem %s0, 6
    %v686 = vld [vmem:[%s685] sm:$0x1]
    %s687 = scalar_lea.vmem %s0, 1022
    %s688 = smov 6
    %v689 = vld [vmem:[%s687] ss:$-504 sm:%s688]
    %vm690 = vcmask 1042433
    %v691 = vsel %vm690, %v689, %v686
    %s692 = scalar_lea.vmem %s0, 2038
    %s693 = smov 24
    %v694 = vld [vmem:[%s692] ss:$-504 sm:%s693]
    %vm695 = vcmask 1044483
    %v696 = vsel %vm695, %v694, %v691
    %s697 = scalar_lea.vmem %s0, 3054
    %s698 = smov 96
    %v699 = vld [vmem:[%s697] ss:$-504 sm:%s698]
    %vm700 = vcmask 1046533
    %v701 = vsel %vm700, %v699, %v696
    %s702 = scalar_lea.vmem %s0, 535
    %v703 = vld [vmem:[%s702] sm:$0x80]
    %vm704 = vcmask 1047559
    %v705 = vsel %vm704, %v703, %v701
    %706 = vrot.lane.b32.xlu0 %v705, 96
    %v707 = vpop.permute.xlu0 %706
    %vm708 = vcmask 917248
    %709 = vst.msk [vmem:[#allocation0] sm:$0x3] %vm708, %v707
    %s710 = scalar_lea.vmem [#allocation0], 6
    %711 = vst.msk [vmem:[%s710] sm:$0xc] %vm708, %v707
    %s712 = scalar_lea.vmem [#allocation0], 12
    %713 = vst.msk [vmem:[%s712] sm:$0x30] %vm708, %v707
    %s714 = scalar_lea.vmem [#allocation0], 18
    %715 = vst.msk [vmem:[%s714] sm:$0xc0] %vm708, %v707
    %s716 = scalar_lea.vmem %s0, 38
    %v717 = vld [vmem:[%s716] sm:$0x1]
    %s718 = scalar_lea.vmem %s0, 1054
    %s719 = smov 6
    %v720 = vld [vmem:[%s718] ss:$-504 sm:%s719]
    %vm721 = vcmask 1042433
    %v722 = vsel %vm721, %v720, %v717
    %s723 = scalar_lea.vmem %s0, 2070
    %s724 = smov 24
    %v725 = vld [vmem:[%s723] ss:$-504 sm:%s724]
    %vm726 = vcmask 1044483
    %v727 = vsel %vm726, %v725, %v722
    %s728 = scalar_lea.vmem %s0, 3086
    %s729 = smov 96
    %v730 = vld [vmem:[%s728] ss:$-504 sm:%s729]
    %vm731 = vcmask 1046533
    %v732 = vsel %vm731, %v730, %v727
    %s733 = scalar_lea.vmem %s0, 567
    %v734 = vld [vmem:[%s733] sm:$0x80]
    %vm735 = vcmask 1047559
    %v736 = vsel %vm735, %v734, %v732
    %737 = vrot.lane.b32.xlu0 %v736, 96
    %v738 = vpop.permute.xlu0 %737
    %vm739 = vcmask 917248
    %s740 = scalar_lea.vmem [#allocation0], 32
    %741 = vst.msk [vmem:[%s740] sm:$0x3] %vm739, %v738
    %s742 = scalar_lea.vmem [#allocation0], 38
    %743 = vst.msk [vmem:[%s742] sm:$0xc] %vm739, %v738
    %s744 = scalar_lea.vmem [#allocation0], 44
    %745 = vst.msk [vmem:[%s744] sm:$0x30] %vm739, %v738
    %s746 = scalar_lea.vmem [#allocation0], 50
    %747 = vst.msk [vmem:[%s746] sm:$0xc0] %vm739, %v738
    %s748 = scalar_lea.vmem %s0, 70
    %v749 = vld [vmem:[%s748] sm:$0x1]
    %s750 = scalar_lea.vmem %s0, 1086
    %s751 = smov 6
    %v752 = vld [vmem:[%s750] ss:$-504 sm:%s751]
    %vm753 = vcmask 1042433
    %v754 = vsel %vm753, %v752, %v749
    %s755 = scalar_lea.vmem %s0, 2102
    %s756 = smov 24
    %v757 = vld [vmem:[%s755] ss:$-504 sm:%s756]
    %vm758 = vcmask 1044483
    %v759 = vsel %vm758, %v757, %v754
    %s760 = scalar_lea.vmem %s0, 3118
    %s761 = smov 96
    %v762 = vld [vmem:[%s760] ss:$-504 sm:%s761]
    %vm763 = vcmask 1046533
    %v764 = vsel %vm763, %v762, %v759
    %s765 = scalar_lea.vmem %s0, 599
    %v766 = vld [vmem:[%s765] sm:$0x80]
    %vm767 = vcmask 1047559
    %v768 = vsel %vm767, %v766, %v764
    %769 = vrot.lane.b32.xlu0 %v768, 96
    %v770 = vpop.permute.xlu0 %769
    %vm771 = vcmask 917248
    %s772 = scalar_lea.vmem [#allocation0], 64
    %773 = vst.msk [vmem:[%s772] sm:$0x3] %vm771, %v770
    %s774 = scalar_lea.vmem [#allocation0], 70
    %775 = vst.msk [vmem:[%s774] sm:$0xc] %vm771, %v770
    %s776 = scalar_lea.vmem [#allocation0], 76
    %777 = vst.msk [vmem:[%s776] sm:$0x30] %vm771, %v770
    %s778 = scalar_lea.vmem [#allocation0], 82
    %779 = vst.msk [vmem:[%s778] sm:$0xc0] %vm771, %v770
    %s780 = scalar_lea.vmem %s0, 102
    %v781 = vld [vmem:[%s780] sm:$0x1]
    %s782 = scalar_lea.vmem %s0, 1118
    %s783 = smov 6
    %v784 = vld [vmem:[%s782] ss:$-504 sm:%s783]
    %vm785 = vcmask 1042433
    %v786 = vsel %vm785, %v784, %v781
    %s787 = scalar_lea.vmem %s0, 2134
    %s788 = smov 24
    %v789 = vld [vmem:[%s787] ss:$-504 sm:%s788]
    %vm790 = vcmask 1044483
    %v791 = vsel %vm790, %v789, %v786
    %s792 = scalar_lea.vmem %s0, 3150
    %s793 = smov 96
    %v794 = vld [vmem:[%s792] ss:$-504 sm:%s793]
    %vm795 = vcmask 1046533
    %v796 = vsel %vm795, %v794, %v791
    %s797 = scalar_lea.vmem %s0, 631
    %v798 = vld [vmem:[%s797] sm:$0x80]
    %vm799 = vcmask 1047559
    %v800 = vsel %vm799, %v798, %v796
    %801 = vrot.lane.b32.xlu0 %v800, 96
    %v802 = vpop.permute.xlu0 %801
    %vm803 = vcmask 917248
    %s804 = scalar_lea.vmem [#allocation0], 96
    %805 = vst.msk [vmem:[%s804] sm:$0x3] %vm803, %v802
    %s806 = scalar_lea.vmem [#allocation0], 102
    %807 = vst.msk [vmem:[%s806] sm:$0xc] %vm803, %v802
    %s808 = scalar_lea.vmem [#allocation0], 108
    %809 = vst.msk [vmem:[%s808] sm:$0x30] %vm803, %v802
    %s810 = scalar_lea.vmem [#allocation0], 114
    %811 = vst.msk [vmem:[%s810] sm:$0xc0] %vm803, %v802
    %s812 = scalar_lea.vmem %s0, 134
    %v813 = vld [vmem:[%s812] sm:$0x1]
    %s814 = scalar_lea.vmem %s0, 1150
    %s815 = smov 6
    %v816 = vld [vmem:[%s814] ss:$-504 sm:%s815]
    %vm817 = vcmask 1042433
    %v818 = vsel %vm817, %v816, %v813
    %s819 = scalar_lea.vmem %s0, 2166
    %s820 = smov 24
    %v821 = vld [vmem:[%s819] ss:$-504 sm:%s820]
    %vm822 = vcmask 1044483
    %v823 = vsel %vm822, %v821, %v818
    %s824 = scalar_lea.vmem %s0, 3182
    %s825 = smov 96
    %v826 = vld [vmem:[%s824] ss:$-504 sm:%s825]
    %vm827 = vcmask 1046533
    %v828 = vsel %vm827, %v826, %v823
    %s829 = scalar_lea.vmem %s0, 663
    %v830 = vld [vmem:[%s829] sm:$0x80]
    %vm831 = vcmask 1047559
    %v832 = vsel %vm831, %v830, %v828
    %833 = vrot.lane.b32.xlu0 %v832, 96
    %v834 = vpop.permute.xlu0 %833
    %vm835 = vcmask 917248
    %s836 = scalar_lea.vmem [#allocation0], 128
    %837 = vst.msk [vmem:[%s836] sm:$0x3] %vm835, %v834
    %s838 = scalar_lea.vmem [#allocation0], 134
    %839 = vst.msk [vmem:[%s838] sm:$0xc] %vm835, %v834
    %s840 = scalar_lea.vmem [#allocation0], 140
    %841 = vst.msk [vmem:[%s840] sm:$0x30] %vm835, %v834
    %s842 = scalar_lea.vmem [#allocation0], 146
    %843 = vst.msk [vmem:[%s842] sm:$0xc0] %vm835, %v834
    %s844 = scalar_lea.vmem %s0, 166
    %v845 = vld [vmem:[%s844] sm:$0x1]
    %s846 = scalar_lea.vmem %s0, 1182
    %s847 = smov 6
    %v848 = vld [vmem:[%s846] ss:$-504 sm:%s847]
    %vm849 = vcmask 1042433
    %v850 = vsel %vm849, %v848, %v845
    %s851 = scalar_lea.vmem %s0, 2198
    %s852 = smov 24
    %v853 = vld [vmem:[%s851] ss:$-504 sm:%s852]
    %vm854 = vcmask 1044483
    %v855 = vsel %vm854, %v853, %v850
    %s856 = scalar_lea.vmem %s0, 3214
    %s857 = smov 96
    %v858 = vld [vmem:[%s856] ss:$-504 sm:%s857]
    %vm859 = vcmask 1046533
    %v860 = vsel %vm859, %v858, %v855
    %s861 = scalar_lea.vmem %s0, 695
    %v862 = vld [vmem:[%s861] sm:$0x80]
    %vm863 = vcmask 1047559
    %v864 = vsel %vm863, %v862, %v860
    %865 = vrot.lane.b32.xlu0 %v864, 96
    %v866 = vpop.permute.xlu0 %865
    %vm867 = vcmask 917248
    %s868 = scalar_lea.vmem [#allocation0], 160
    %869 = vst.msk [vmem:[%s868] sm:$0x3] %vm867, %v866
    %s870 = scalar_lea.vmem [#allocation0], 166
    %871 = vst.msk [vmem:[%s870] sm:$0xc] %vm867, %v866
    %s872 = scalar_lea.vmem [#allocation0], 172
    %873 = vst.msk [vmem:[%s872] sm:$0x30] %vm867, %v866
    %s874 = scalar_lea.vmem [#allocation0], 178
    %875 = vst.msk [vmem:[%s874] sm:$0xc0] %vm867, %v866
    %s876 = scalar_lea.vmem %s0, 198
    %v877 = vld [vmem:[%s876] sm:$0x1]
    %s878 = scalar_lea.vmem %s0, 1214
    %s879 = smov 6
    %v880 = vld [vmem:[%s878] ss:$-504 sm:%s879]
    %vm881 = vcmask 1042433
    %v882 = vsel %vm881, %v880, %v877
    %s883 = scalar_lea.vmem %s0, 2230
    %s884 = smov 24
    %v885 = vld [vmem:[%s883] ss:$-504 sm:%s884]
    %vm886 = vcmask 1044483
    %v887 = vsel %vm886, %v885, %v882
    %s888 = scalar_lea.vmem %s0, 3246
    %s889 = smov 96
    %v890 = vld [vmem:[%s888] ss:$-504 sm:%s889]
    %vm891 = vcmask 1046533
    %v892 = vsel %vm891, %v890, %v887
    %s893 = scalar_lea.vmem %s0, 727
    %v894 = vld [vmem:[%s893] sm:$0x80]
    %vm895 = vcmask 1047559
    %v896 = vsel %vm895, %v894, %v892
    %897 = vrot.lane.b32.xlu0 %v896, 96
    %v898 = vpop.permute.xlu0 %897
    %vm899 = vcmask 917248
    %s900 = scalar_lea.vmem [#allocation0], 192
    %901 = vst.msk [vmem:[%s900] sm:$0x3] %vm899, %v898
    %s902 = scalar_lea.vmem [#allocation0], 198
    %903 = vst.msk [vmem:[%s902] sm:$0xc] %vm899, %v898
    %s904 = scalar_lea.vmem [#allocation0], 204
    %905 = vst.msk [vmem:[%s904] sm:$0x30] %vm899, %v898
    %s906 = scalar_lea.vmem [#allocation0], 210
    %907 = vst.msk [vmem:[%s906] sm:$0xc0] %vm899, %v898
    %s908 = scalar_lea.vmem %s0, 230
    %v909 = vld [vmem:[%s908] sm:$0x1]
    %s910 = scalar_lea.vmem %s0, 1246
    %s911 = smov 6
    %v912 = vld [vmem:[%s910] ss:$-504 sm:%s911]
    %vm913 = vcmask 1042433
    %v914 = vsel %vm913, %v912, %v909
    %s915 = scalar_lea.vmem %s0, 2262
    %s916 = smov 24
    %v917 = vld [vmem:[%s915] ss:$-504 sm:%s916]
    %vm918 = vcmask 1044483
    %v919 = vsel %vm918, %v917, %v914
    %s920 = scalar_lea.vmem %s0, 3278
    %s921 = smov 96
    %v922 = vld [vmem:[%s920] ss:$-504 sm:%s921]
    %vm923 = vcmask 1046533
    %v924 = vsel %vm923, %v922, %v919
    %s925 = scalar_lea.vmem %s0, 759
    %v926 = vld [vmem:[%s925] sm:$0x80]
    %vm927 = vcmask 1047559
    %v928 = vsel %vm927, %v926, %v924
    %929 = vrot.lane.b32.xlu0 %v928, 96
    %v930 = vpop.permute.xlu0 %929
    %vm931 = vcmask 917248
    %s932 = scalar_lea.vmem [#allocation0], 224
    %933 = vst.msk [vmem:[%s932] sm:$0x3] %vm931, %v930
    %s934 = scalar_lea.vmem [#allocation0], 230
    %935 = vst.msk [vmem:[%s934] sm:$0xc] %vm931, %v930
    %s936 = scalar_lea.vmem [#allocation0], 236
    %937 = vst.msk [vmem:[%s936] sm:$0x30] %vm931, %v930
    %s938 = scalar_lea.vmem [#allocation0], 242
    %939 = vst.msk [vmem:[%s938] sm:$0xc0] %vm931, %v930
    %s940 = scalar_lea.vmem %s0, 262
    %v941 = vld [vmem:[%s940] sm:$0x1]
    %s942 = scalar_lea.vmem %s0, 1278
    %s943 = smov 6
    %v944 = vld [vmem:[%s942] ss:$-504 sm:%s943]
    %vm945 = vcmask 1042433
    %v946 = vsel %vm945, %v944, %v941
    %s947 = scalar_lea.vmem %s0, 2294
    %s948 = smov 24
    %v949 = vld [vmem:[%s947] ss:$-504 sm:%s948]
    %vm950 = vcmask 1044483
    %v951 = vsel %vm950, %v949, %v946
    %s952 = scalar_lea.vmem %s0, 3310
    %s953 = smov 96
    %v954 = vld [vmem:[%s952] ss:$-504 sm:%s953]
    %vm955 = vcmask 1046533
    %v956 = vsel %vm955, %v954, %v951
    %s957 = scalar_lea.vmem %s0, 791
    %v958 = vld [vmem:[%s957] sm:$0x80]
    %vm959 = vcmask 1047559
    %v960 = vsel %vm959, %v958, %v956
    %961 = vrot.lane.b32.xlu0 %v960, 96
    %v962 = vpop.permute.xlu0 %961
    %vm963 = vcmask 917248
    %s964 = scalar_lea.vmem [#allocation0], 256
    %965 = vst.msk [vmem:[%s964] sm:$0x3] %vm963, %v962
    %s966 = scalar_lea.vmem [#allocation0], 262
    %967 = vst.msk [vmem:[%s966] sm:$0xc] %vm963, %v962
    %s968 = scalar_lea.vmem [#allocation0], 268
    %969 = vst.msk [vmem:[%s968] sm:$0x30] %vm963, %v962
    %s970 = scalar_lea.vmem [#allocation0], 274
    %971 = vst.msk [vmem:[%s970] sm:$0xc0] %vm963, %v962
    %s972 = scalar_lea.vmem %s0, 294
    %v973 = vld [vmem:[%s972] sm:$0x1]
    %s974 = scalar_lea.vmem %s0, 1310
    %s975 = smov 6
    %v976 = vld [vmem:[%s974] ss:$-504 sm:%s975]
    %vm977 = vcmask 1042433
    %v978 = vsel %vm977, %v976, %v973
    %s979 = scalar_lea.vmem %s0, 2326
    %s980 = smov 24
    %v981 = vld [vmem:[%s979] ss:$-504 sm:%s980]
    %vm982 = vcmask 1044483
    %v983 = vsel %vm982, %v981, %v978
    %s984 = scalar_lea.vmem %s0, 3342
    %s985 = smov 96
    %v986 = vld [vmem:[%s984] ss:$-504 sm:%s985]
    %vm987 = vcmask 1046533
    %v988 = vsel %vm987, %v986, %v983
    %s989 = scalar_lea.vmem %s0, 823
    %v990 = vld [vmem:[%s989] sm:$0x80]
    %vm991 = vcmask 1047559
    %v992 = vsel %vm991, %v990, %v988
    %993 = vrot.lane.b32.xlu0 %v992, 96
    %v994 = vpop.permute.xlu0 %993
    %vm995 = vcmask 917248
    %s996 = scalar_lea.vmem [#allocation0], 288
    %997 = vst.msk [vmem:[%s996] sm:$0x3] %vm995, %v994
    %s998 = scalar_lea.vmem [#allocation0], 294
    %999 = vst.msk [vmem:[%s998] sm:$0xc] %vm995, %v994
    %s1000 = scalar_lea.vmem [#allocation0], 300
    %1001 = vst.msk [vmem:[%s1000] sm:$0x30] %vm995, %v994
    %s1002 = scalar_lea.vmem [#allocation0], 306
    %1003 = vst.msk [vmem:[%s1002] sm:$0xc0] %vm995, %v994
    %s1004 = scalar_lea.vmem %s0, 326
    %v1005 = vld [vmem:[%s1004] sm:$0x1]
    %s1006 = scalar_lea.vmem %s0, 1342
    %s1007 = smov 6
    %v1008 = vld [vmem:[%s1006] ss:$-504 sm:%s1007]
    %vm1009 = vcmask 1042433
    %v1010 = vsel %vm1009, %v1008, %v1005
    %s1011 = scalar_lea.vmem %s0, 2358
    %s1012 = smov 24
    %v1013 = vld [vmem:[%s1011] ss:$-504 sm:%s1012]
    %vm1014 = vcmask 1044483
    %v1015 = vsel %vm1014, %v1013, %v1010
    %s1016 = scalar_lea.vmem %s0, 3374
    %s1017 = smov 96
    %v1018 = vld [vmem:[%s1016] ss:$-504 sm:%s1017]
    %vm1019 = vcmask 1046533
    %v1020 = vsel %vm1019, %v1018, %v1015
    %s1021 = scalar_lea.vmem %s0, 855
    %v1022 = vld [vmem:[%s1021] sm:$0x80]
    %vm1023 = vcmask 1047559
    %v1024 = vsel %vm1023, %v1022, %v1020
    %1025 = vrot.lane.b32.xlu0 %v1024, 96
    %v1026 = vpop.permute.xlu0 %1025
    %vm1027 = vcmask 917248
    %s1028 = scalar_lea.vmem [#allocation0], 320
    %1029 = vst.msk [vmem:[%s1028] sm:$0x3] %vm1027, %v1026
    %s1030 = scalar_lea.vmem [#allocation0], 326
    %1031 = vst.msk [vmem:[%s1030] sm:$0xc] %vm1027, %v1026
    %s1032 = scalar_lea.vmem [#allocation0], 332
    %1033 = vst.msk [vmem:[%s1032] sm:$0x30] %vm1027, %v1026
    %s1034 = scalar_lea.vmem [#allocation0], 338
    %1035 = vst.msk [vmem:[%s1034] sm:$0xc0] %vm1027, %v1026
    %s1036 = scalar_lea.vmem %s0, 358
    %v1037 = vld [vmem:[%s1036] sm:$0x1]
    %s1038 = scalar_lea.vmem %s0, 1374
    %s1039 = smov 6
    %v1040 = vld [vmem:[%s1038] ss:$-504 sm:%s1039]
    %vm1041 = vcmask 1042433
    %v1042 = vsel %vm1041, %v1040, %v1037
    %s1043 = scalar_lea.vmem %s0, 2390
    %s1044 = smov 24
    %v1045 = vld [vmem:[%s1043] ss:$-504 sm:%s1044]
    %vm1046 = vcmask 1044483
    %v1047 = vsel %vm1046, %v1045, %v1042
    %s1048 = scalar_lea.vmem %s0, 3406
    %s1049 = smov 96
    %v1050 = vld [vmem:[%s1048] ss:$-504 sm:%s1049]
    %vm1051 = vcmask 1046533
    %v1052 = vsel %vm1051, %v1050, %v1047
    %s1053 = scalar_lea.vmem %s0, 887
    %v1054 = vld [vmem:[%s1053] sm:$0x80]
    %vm1055 = vcmask 1047559
    %v1056 = vsel %vm1055, %v1054, %v1052
    %1057 = vrot.lane.b32.xlu0 %v1056, 96
    %v1058 = vpop.permute.xlu0 %1057
    %vm1059 = vcmask 917248
    %s1060 = scalar_lea.vmem [#allocation0], 352
    %1061 = vst.msk [vmem:[%s1060] sm:$0x3] %vm1059, %v1058
    %s1062 = scalar_lea.vmem [#allocation0], 358
    %1063 = vst.msk [vmem:[%s1062] sm:$0xc] %vm1059, %v1058
    %s1064 = scalar_lea.vmem [#allocation0], 364
    %1065 = vst.msk [vmem:[%s1064] sm:$0x30] %vm1059, %v1058
    %s1066 = scalar_lea.vmem [#allocation0], 370
    %1067 = vst.msk [vmem:[%s1066] sm:$0xc0] %vm1059, %v1058
    %s1068 = scalar_lea.vmem %s0, 390
    %v1069 = vld [vmem:[%s1068] sm:$0x1]
    %s1070 = scalar_lea.vmem %s0, 1406
    %s1071 = smov 6
    %v1072 = vld [vmem:[%s1070] ss:$-504 sm:%s1071]
    %vm1073 = vcmask 1042433
    %v1074 = vsel %vm1073, %v1072, %v1069
    %s1075 = scalar_lea.vmem %s0, 2422
    %s1076 = smov 24
    %v1077 = vld [vmem:[%s1075] ss:$-504 sm:%s1076]
    %vm1078 = vcmask 1044483
    %v1079 = vsel %vm1078, %v1077, %v1074
    %s1080 = scalar_lea.vmem %s0, 3438
    %s1081 = smov 96
    %v1082 = vld [vmem:[%s1080] ss:$-504 sm:%s1081]
    %vm1083 = vcmask 1046533
    %v1084 = vsel %vm1083, %v1082, %v1079
    %s1085 = scalar_lea.vmem %s0, 919
    %v1086 = vld [vmem:[%s1085] sm:$0x80]
    %vm1087 = vcmask 1047559
    %v1088 = vsel %vm1087, %v1086, %v1084
    %1089 = vrot.lane.b32.xlu0 %v1088, 96
    %v1090 = vpop.permute.xlu0 %1089
    %vm1091 = vcmask 917248
    %s1092 = scalar_lea.vmem [#allocation0], 384
    %1093 = vst.msk [vmem:[%s1092] sm:$0x3] %vm1091, %v1090
    %s1094 = scalar_lea.vmem [#allocation0], 390
    %1095 = vst.msk [vmem:[%s1094] sm:$0xc] %vm1091, %v1090
    %s1096 = scalar_lea.vmem [#allocation0], 396
    %1097 = vst.msk [vmem:[%s1096] sm:$0x30] %vm1091, %v1090
    %s1098 = scalar_lea.vmem [#allocation0], 402
    %1099 = vst.msk [vmem:[%s1098] sm:$0xc0] %vm1091, %v1090
    %s1100 = scalar_lea.vmem %s0, 422
    %v1101 = vld [vmem:[%s1100] sm:$0x1]
    %s1102 = scalar_lea.vmem %s0, 1438
    %s1103 = smov 6
    %v1104 = vld [vmem:[%s1102] ss:$-504 sm:%s1103]
    %vm1105 = vcmask 1042433
    %v1106 = vsel %vm1105, %v1104, %v1101
    %s1107 = scalar_lea.vmem %s0, 2454
    %s1108 = smov 24
    %v1109 = vld [vmem:[%s1107] ss:$-504 sm:%s1108]
    %vm1110 = vcmask 1044483
    %v1111 = vsel %vm1110, %v1109, %v1106
    %s1112 = scalar_lea.vmem %s0, 3470
    %s1113 = smov 96
    %v1114 = vld [vmem:[%s1112] ss:$-504 sm:%s1113]
    %vm1115 = vcmask 1046533
    %v1116 = vsel %vm1115, %v1114, %v1111
    %s1117 = scalar_lea.vmem %s0, 951
    %v1118 = vld [vmem:[%s1117] sm:$0x80]
    %vm1119 = vcmask 1047559
    %v1120 = vsel %vm1119, %v1118, %v1116
    %1121 = vrot.lane.b32.xlu0 %v1120, 96
    %v1122 = vpop.permute.xlu0 %1121
    %vm1123 = vcmask 917248
    %s1124 = scalar_lea.vmem [#allocation0], 416
    %1125 = vst.msk [vmem:[%s1124] sm:$0x3] %vm1123, %v1122
    %s1126 = scalar_lea.vmem [#allocation0], 422
    %1127 = vst.msk [vmem:[%s1126] sm:$0xc] %vm1123, %v1122
    %s1128 = scalar_lea.vmem [#allocation0], 428
    %1129 = vst.msk [vmem:[%s1128] sm:$0x30] %vm1123, %v1122
    %s1130 = scalar_lea.vmem [#allocation0], 434
    %1131 = vst.msk [vmem:[%s1130] sm:$0xc0] %vm1123, %v1122
    %s1132 = scalar_lea.vmem %s0, 454
    %v1133 = vld [vmem:[%s1132] sm:$0x1]
    %s1134 = scalar_lea.vmem %s0, 1470
    %s1135 = smov 6
    %v1136 = vld [vmem:[%s1134] ss:$-504 sm:%s1135]
    %vm1137 = vcmask 1042433
    %v1138 = vsel %vm1137, %v1136, %v1133
    %s1139 = scalar_lea.vmem %s0, 2486
    %s1140 = smov 24
    %v1141 = vld [vmem:[%s1139] ss:$-504 sm:%s1140]
    %vm1142 = vcmask 1044483
    %v1143 = vsel %vm1142, %v1141, %v1138
    %s1144 = scalar_lea.vmem %s0, 3502
    %s1145 = smov 96
    %v1146 = vld [vmem:[%s1144] ss:$-504 sm:%s1145]
    %vm1147 = vcmask 1046533
    %v1148 = vsel %vm1147, %v1146, %v1143
    %s1149 = scalar_lea.vmem %s0, 983
    %v1150 = vld [vmem:[%s1149] sm:$0x80]
    %vm1151 = vcmask 1047559
    %v1152 = vsel %vm1151, %v1150, %v1148
    %1153 = vrot.lane.b32.xlu0 %v1152, 96
    %v1154 = vpop.permute.xlu0 %1153
    %vm1155 = vcmask 917248
    %s1156 = scalar_lea.vmem [#allocation0], 448
    %1157 = vst.msk [vmem:[%s1156] sm:$0x3] %vm1155, %v1154
    %s1158 = scalar_lea.vmem [#allocation0], 454
    %1159 = vst.msk [vmem:[%s1158] sm:$0xc] %vm1155, %v1154
    %s1160 = scalar_lea.vmem [#allocation0], 460
    %1161 = vst.msk [vmem:[%s1160] sm:$0x30] %vm1155, %v1154
    %s1162 = scalar_lea.vmem [#allocation0], 466
    %1163 = vst.msk [vmem:[%s1162] sm:$0xc0] %vm1155, %v1154
    %s1164 = scalar_lea.vmem %s0, 486
    %v1165 = vld [vmem:[%s1164] sm:$0x1]
    %s1166 = scalar_lea.vmem %s0, 1502
    %s1167 = smov 6
    %v1168 = vld [vmem:[%s1166] ss:$-504 sm:%s1167]
    %vm1169 = vcmask 1042433
    %v1170 = vsel %vm1169, %v1168, %v1165
    %s1171 = scalar_lea.vmem %s0, 2518
    %s1172 = smov 24
    %v1173 = vld [vmem:[%s1171] ss:$-504 sm:%s1172]
    %vm1174 = vcmask 1044483
    %v1175 = vsel %vm1174, %v1173, %v1170
    %s1176 = scalar_lea.vmem %s0, 3534
    %s1177 = smov 96
    %v1178 = vld [vmem:[%s1176] ss:$-504 sm:%s1177]
    %vm1179 = vcmask 1046533
    %v1180 = vsel %vm1179, %v1178, %v1175
    %s1181 = scalar_lea.vmem %s0, 1015
    %v1182 = vld [vmem:[%s1181] sm:$0x80]
    %vm1183 = vcmask 1047559
    %v1184 = vsel %vm1183, %v1182, %v1180
    %1185 = vrot.lane.b32.xlu0 %v1184, 96
    %v1186 = vpop.permute.xlu0 %1185
    %vm1187 = vcmask 917248
    %s1188 = scalar_lea.vmem [#allocation0], 480
    %1189 = vst.msk [vmem:[%s1188] sm:$0x3] %vm1187, %v1186
    %s1190 = scalar_lea.vmem [#allocation0], 486
    %1191 = vst.msk [vmem:[%s1190] sm:$0xc] %vm1187, %v1186
    %s1192 = scalar_lea.vmem [#allocation0], 492
    %1193 = vst.msk [vmem:[%s1192] sm:$0x30] %vm1187, %v1186
    %s1194 = scalar_lea.vmem [#allocation0], 498
    %1195 = vst.msk [vmem:[%s1194] sm:$0xc0] %vm1187, %v1186
    %s1196 = scalar_lea.vmem %s0, 5
    %v1197 = vld [vmem:[%s1196] sm:$0x1]
    %s1198 = scalar_lea.vmem %s0, 1021
    %s1199 = smov 6
    %v1200 = vld [vmem:[%s1198] ss:$-504 sm:%s1199]
    %vm1201 = vcmask 1042433
    %v1202 = vsel %vm1201, %v1200, %v1197
    %s1203 = scalar_lea.vmem %s0, 2037
    %s1204 = smov 24
    %v1205 = vld [vmem:[%s1203] ss:$-504 sm:%s1204]
    %vm1206 = vcmask 1044483
    %v1207 = vsel %vm1206, %v1205, %v1202
    %s1208 = scalar_lea.vmem %s0, 3053
    %s1209 = smov 96
    %v1210 = vld [vmem:[%s1208] ss:$-504 sm:%s1209]
    %vm1211 = vcmask 1046533
    %v1212 = vsel %vm1211, %v1210, %v1207
    %s1213 = scalar_lea.vmem %s0, 534
    %v1214 = vld [vmem:[%s1213] sm:$0x80]
    %vm1215 = vcmask 1047559
    %v1216 = vsel %vm1215, %v1214, %v1212
    %1217 = vrot.lane.b32.xlu0 %v1216, 80
    %v1218 = vpop.permute.xlu0 %1217
    %vm1219 = vcmask 786048
    %1220 = vst.msk [vmem:[#allocation0] sm:$0x3] %vm1219, %v1218
    %s1221 = scalar_lea.vmem [#allocation0], 6
    %1222 = vst.msk [vmem:[%s1221] sm:$0xc] %vm1219, %v1218
    %s1223 = scalar_lea.vmem [#allocation0], 12
    %1224 = vst.msk [vmem:[%s1223] sm:$0x30] %vm1219, %v1218
    %s1225 = scalar_lea.vmem [#allocation0], 18
    %1226 = vst.msk [vmem:[%s1225] sm:$0xc0] %vm1219, %v1218
    %s1227 = scalar_lea.vmem %s0, 37
    %v1228 = vld [vmem:[%s1227] sm:$0x1]
    %s1229 = scalar_lea.vmem %s0, 1053
    %s1230 = smov 6
    %v1231 = vld [vmem:[%s1229] ss:$-504 sm:%s1230]
    %vm1232 = vcmask 1042433
    %v1233 = vsel %vm1232, %v1231, %v1228
    %s1234 = scalar_lea.vmem %s0, 2069
    %s1235 = smov 24
    %v1236 = vld [vmem:[%s1234] ss:$-504 sm:%s1235]
    %vm1237 = vcmask 1044483
    %v1238 = vsel %vm1237, %v1236, %v1233
    %s1239 = scalar_lea.vmem %s0, 3085
    %s1240 = smov 96
    %v1241 = vld [vmem:[%s1239] ss:$-504 sm:%s1240]
    %vm1242 = vcmask 1046533
    %v1243 = vsel %vm1242, %v1241, %v1238
    %s1244 = scalar_lea.vmem %s0, 566
    %v1245 = vld [vmem:[%s1244] sm:$0x80]
    %vm1246 = vcmask 1047559
    %v1247 = vsel %vm1246, %v1245, %v1243
    %1248 = vrot.lane.b32.xlu0 %v1247, 80
    %v1249 = vpop.permute.xlu0 %1248
    %vm1250 = vcmask 786048
    %s1251 = scalar_lea.vmem [#allocation0], 32
    %1252 = vst.msk [vmem:[%s1251] sm:$0x3] %vm1250, %v1249
    %s1253 = scalar_lea.vmem [#allocation0], 38
    %1254 = vst.msk [vmem:[%s1253] sm:$0xc] %vm1250, %v1249
    %s1255 = scalar_lea.vmem [#allocation0], 44
    %1256 = vst.msk [vmem:[%s1255] sm:$0x30] %vm1250, %v1249
    %s1257 = scalar_lea.vmem [#allocation0], 50
    %1258 = vst.msk [vmem:[%s1257] sm:$0xc0] %vm1250, %v1249
    %s1259 = scalar_lea.vmem %s0, 69
    %v1260 = vld [vmem:[%s1259] sm:$0x1]
    %s1261 = scalar_lea.vmem %s0, 1085
    %s1262 = smov 6
    %v1263 = vld [vmem:[%s1261] ss:$-504 sm:%s1262]
    %vm1264 = vcmask 1042433
    %v1265 = vsel %vm1264, %v1263, %v1260
    %s1266 = scalar_lea.vmem %s0, 2101
    %s1267 = smov 24
    %v1268 = vld [vmem:[%s1266] ss:$-504 sm:%s1267]
    %vm1269 = vcmask 1044483
    %v1270 = vsel %vm1269, %v1268, %v1265
    %s1271 = scalar_lea.vmem %s0, 3117
    %s1272 = smov 96
    %v1273 = vld [vmem:[%s1271] ss:$-504 sm:%s1272]
    %vm1274 = vcmask 1046533
    %v1275 = vsel %vm1274, %v1273, %v1270
    %s1276 = scalar_lea.vmem %s0, 598
    %v1277 = vld [vmem:[%s1276] sm:$0x80]
    %vm1278 = vcmask 1047559
    %v1279 = vsel %vm1278, %v1277, %v1275
    %1280 = vrot.lane.b32.xlu0 %v1279, 80
    %v1281 = vpop.permute.xlu0 %1280
    %vm1282 = vcmask 786048
    %s1283 = scalar_lea.vmem [#allocation0], 64
    %1284 = vst.msk [vmem:[%s1283] sm:$0x3] %vm1282, %v1281
    %s1285 = scalar_lea.vmem [#allocation0], 70
    %1286 = vst.msk [vmem:[%s1285] sm:$0xc] %vm1282, %v1281
    %s1287 = scalar_lea.vmem [#allocation0], 76
    %1288 = vst.msk [vmem:[%s1287] sm:$0x30] %vm1282, %v1281
    %s1289 = scalar_lea.vmem [#allocation0], 82
    %1290 = vst.msk [vmem:[%s1289] sm:$0xc0] %vm1282, %v1281
    %s1291 = scalar_lea.vmem %s0, 101
    %v1292 = vld [vmem:[%s1291] sm:$0x1]
    %s1293 = scalar_lea.vmem %s0, 1117
    %s1294 = smov 6
    %v1295 = vld [vmem:[%s1293] ss:$-504 sm:%s1294]
    %vm1296 = vcmask 1042433
    %v1297 = vsel %vm1296, %v1295, %v1292
    %s1298 = scalar_lea.vmem %s0, 2133
    %s1299 = smov 24
    %v1300 = vld [vmem:[%s1298] ss:$-504 sm:%s1299]
    %vm1301 = vcmask 1044483
    %v1302 = vsel %vm1301, %v1300, %v1297
    %s1303 = scalar_lea.vmem %s0, 3149
    %s1304 = smov 96
    %v1305 = vld [vmem:[%s1303] ss:$-504 sm:%s1304]
    %vm1306 = vcmask 1046533
    %v1307 = vsel %vm1306, %v1305, %v1302
    %s1308 = scalar_lea.vmem %s0, 630
    %v1309 = vld [vmem:[%s1308] sm:$0x80]
    %vm1310 = vcmask 1047559
    %v1311 = vsel %vm1310, %v1309, %v1307
    %1312 = vrot.lane.b32.xlu0 %v1311, 80
    %v1313 = vpop.permute.xlu0 %1312
    %vm1314 = vcmask 786048
    %s1315 = scalar_lea.vmem [#allocation0], 96
    %1316 = vst.msk [vmem:[%s1315] sm:$0x3] %vm1314, %v1313
    %s1317 = scalar_lea.vmem [#allocation0], 102
    %1318 = vst.msk [vmem:[%s1317] sm:$0xc] %vm1314, %v1313
    %s1319 = scalar_lea.vmem [#allocation0], 108
    %1320 = vst.msk [vmem:[%s1319] sm:$0x30] %vm1314, %v1313
    %s1321 = scalar_lea.vmem [#allocation0], 114
    %1322 = vst.msk [vmem:[%s1321] sm:$0xc0] %vm1314, %v1313
    %s1323 = scalar_lea.vmem %s0, 133
    %v1324 = vld [vmem:[%s1323] sm:$0x1]
    %s1325 = scalar_lea.vmem %s0, 1149
    %s1326 = smov 6
    %v1327 = vld [vmem:[%s1325] ss:$-504 sm:%s1326]
    %vm1328 = vcmask 1042433
    %v1329 = vsel %vm1328, %v1327, %v1324
    %s1330 = scalar_lea.vmem %s0, 2165
    %s1331 = smov 24
    %v1332 = vld [vmem:[%s1330] ss:$-504 sm:%s1331]
    %vm1333 = vcmask 1044483
    %v1334 = vsel %vm1333, %v1332, %v1329
    %s1335 = scalar_lea.vmem %s0, 3181
    %s1336 = smov 96
    %v1337 = vld [vmem:[%s1335] ss:$-504 sm:%s1336]
    %vm1338 = vcmask 1046533
    %v1339 = vsel %vm1338, %v1337, %v1334
    %s1340 = scalar_lea.vmem %s0, 662
    %v1341 = vld [vmem:[%s1340] sm:$0x80]
    %vm1342 = vcmask 1047559
    %v1343 = vsel %vm1342, %v1341, %v1339
    %1344 = vrot.lane.b32.xlu0 %v1343, 80
    %v1345 = vpop.permute.xlu0 %1344
    %vm1346 = vcmask 786048
    %s1347 = scalar_lea.vmem [#allocation0], 128
    %1348 = vst.msk [vmem:[%s1347] sm:$0x3] %vm1346, %v1345
    %s1349 = scalar_lea.vmem [#allocation0], 134
    %1350 = vst.msk [vmem:[%s1349] sm:$0xc] %vm1346, %v1345
    %s1351 = scalar_lea.vmem [#allocation0], 140
    %1352 = vst.msk [vmem:[%s1351] sm:$0x30] %vm1346, %v1345
    %s1353 = scalar_lea.vmem [#allocation0], 146
    %1354 = vst.msk [vmem:[%s1353] sm:$0xc0] %vm1346, %v1345
    %s1355 = scalar_lea.vmem %s0, 165
    %v1356 = vld [vmem:[%s1355] sm:$0x1]
    %s1357 = scalar_lea.vmem %s0, 1181
    %s1358 = smov 6
    %v1359 = vld [vmem:[%s1357] ss:$-504 sm:%s1358]
    %vm1360 = vcmask 1042433
    %v1361 = vsel %vm1360, %v1359, %v1356
    %s1362 = scalar_lea.vmem %s0, 2197
    %s1363 = smov 24
    %v1364 = vld [vmem:[%s1362] ss:$-504 sm:%s1363]
    %vm1365 = vcmask 1044483
    %v1366 = vsel %vm1365, %v1364, %v1361
    %s1367 = scalar_lea.vmem %s0, 3213
    %s1368 = smov 96
    %v1369 = vld [vmem:[%s1367] ss:$-504 sm:%s1368]
    %vm1370 = vcmask 1046533
    %v1371 = vsel %vm1370, %v1369, %v1366
    %s1372 = scalar_lea.vmem %s0, 694
    %v1373 = vld [vmem:[%s1372] sm:$0x80]
    %vm1374 = vcmask 1047559
    %v1375 = vsel %vm1374, %v1373, %v1371
    %1376 = vrot.lane.b32.xlu0 %v1375, 80
    %v1377 = vpop.permute.xlu0 %1376
    %vm1378 = vcmask 786048
    %s1379 = scalar_lea.vmem [#allocation0], 160
    %1380 = vst.msk [vmem:[%s1379] sm:$0x3] %vm1378, %v1377
    %s1381 = scalar_lea.vmem [#allocation0], 166
    %1382 = vst.msk [vmem:[%s1381] sm:$0xc] %vm1378, %v1377
    %s1383 = scalar_lea.vmem [#allocation0], 172
    %1384 = vst.msk [vmem:[%s1383] sm:$0x30] %vm1378, %v1377
    %s1385 = scalar_lea.vmem [#allocation0], 178
    %1386 = vst.msk [vmem:[%s1385] sm:$0xc0] %vm1378, %v1377
    %s1387 = scalar_lea.vmem %s0, 197
    %v1388 = vld [vmem:[%s1387] sm:$0x1]
    %s1389 = scalar_lea.vmem %s0, 1213
    %s1390 = smov 6
    %v1391 = vld [vmem:[%s1389] ss:$-504 sm:%s1390]
    %vm1392 = vcmask 1042433
    %v1393 = vsel %vm1392, %v1391, %v1388
    %s1394 = scalar_lea.vmem %s0, 2229
    %s1395 = smov 24
    %v1396 = vld [vmem:[%s1394] ss:$-504 sm:%s1395]
    %vm1397 = vcmask 1044483
    %v1398 = vsel %vm1397, %v1396, %v1393
    %s1399 = scalar_lea.vmem %s0, 3245
    %s1400 = smov 96
    %v1401 = vld [vmem:[%s1399] ss:$-504 sm:%s1400]
    %vm1402 = vcmask 1046533
    %v1403 = vsel %vm1402, %v1401, %v1398
    %s1404 = scalar_lea.vmem %s0, 726
    %v1405 = vld [vmem:[%s1404] sm:$0x80]
    %vm1406 = vcmask 1047559
    %v1407 = vsel %vm1406, %v1405, %v1403
    %1408 = vrot.lane.b32.xlu0 %v1407, 80
    %v1409 = vpop.permute.xlu0 %1408
    %vm1410 = vcmask 786048
    %s1411 = scalar_lea.vmem [#allocation0], 192
    %1412 = vst.msk [vmem:[%s1411] sm:$0x3] %vm1410, %v1409
    %s1413 = scalar_lea.vmem [#allocation0], 198
    %1414 = vst.msk [vmem:[%s1413] sm:$0xc] %vm1410, %v1409
    %s1415 = scalar_lea.vmem [#allocation0], 204
    %1416 = vst.msk [vmem:[%s1415] sm:$0x30] %vm1410, %v1409
    %s1417 = scalar_lea.vmem [#allocation0], 210
    %1418 = vst.msk [vmem:[%s1417] sm:$0xc0] %vm1410, %v1409
    %s1419 = scalar_lea.vmem %s0, 229
    %v1420 = vld [vmem:[%s1419] sm:$0x1]
    %s1421 = scalar_lea.vmem %s0, 1245
    %s1422 = smov 6
    %v1423 = vld [vmem:[%s1421] ss:$-504 sm:%s1422]
    %vm1424 = vcmask 1042433
    %v1425 = vsel %vm1424, %v1423, %v1420
    %s1426 = scalar_lea.vmem %s0, 2261
    %s1427 = smov 24
    %v1428 = vld [vmem:[%s1426] ss:$-504 sm:%s1427]
    %vm1429 = vcmask 1044483
    %v1430 = vsel %vm1429, %v1428, %v1425
    %s1431 = scalar_lea.vmem %s0, 3277
    %s1432 = smov 96
    %v1433 = vld [vmem:[%s1431] ss:$-504 sm:%s1432]
    %vm1434 = vcmask 1046533
    %v1435 = vsel %vm1434, %v1433, %v1430
    %s1436 = scalar_lea.vmem %s0, 758
    %v1437 = vld [vmem:[%s1436] sm:$0x80]
    %vm1438 = vcmask 1047559
    %v1439 = vsel %vm1438, %v1437, %v1435
    %1440 = vrot.lane.b32.xlu0 %v1439, 80
    %v1441 = vpop.permute.xlu0 %1440
    %vm1442 = vcmask 786048
    %s1443 = scalar_lea.vmem [#allocation0], 224
    %1444 = vst.msk [vmem:[%s1443] sm:$0x3] %vm1442, %v1441
    %s1445 = scalar_lea.vmem [#allocation0], 230
    %1446 = vst.msk [vmem:[%s1445] sm:$0xc] %vm1442, %v1441
    %s1447 = scalar_lea.vmem [#allocation0], 236
    %1448 = vst.msk [vmem:[%s1447] sm:$0x30] %vm1442, %v1441
    %s1449 = scalar_lea.vmem [#allocation0], 242
    %1450 = vst.msk [vmem:[%s1449] sm:$0xc0] %vm1442, %v1441
    %s1451 = scalar_lea.vmem %s0, 261
    %v1452 = vld [vmem:[%s1451] sm:$0x1]
    %s1453 = scalar_lea.vmem %s0, 1277
    %s1454 = smov 6
    %v1455 = vld [vmem:[%s1453] ss:$-504 sm:%s1454]
    %vm1456 = vcmask 1042433
    %v1457 = vsel %vm1456, %v1455, %v1452
    %s1458 = scalar_lea.vmem %s0, 2293
    %s1459 = smov 24
    %v1460 = vld [vmem:[%s1458] ss:$-504 sm:%s1459]
    %vm1461 = vcmask 1044483
    %v1462 = vsel %vm1461, %v1460, %v1457
    %s1463 = scalar_lea.vmem %s0, 3309
    %s1464 = smov 96
    %v1465 = vld [vmem:[%s1463] ss:$-504 sm:%s1464]
    %vm1466 = vcmask 1046533
    %v1467 = vsel %vm1466, %v1465, %v1462
    %s1468 = scalar_lea.vmem %s0, 790
    %v1469 = vld [vmem:[%s1468] sm:$0x80]
    %vm1470 = vcmask 1047559
    %v1471 = vsel %vm1470, %v1469, %v1467
    %1472 = vrot.lane.b32.xlu0 %v1471, 80
    %v1473 = vpop.permute.xlu0 %1472
    %vm1474 = vcmask 786048
    %s1475 = scalar_lea.vmem [#allocation0], 256
    %1476 = vst.msk [vmem:[%s1475] sm:$0x3] %vm1474, %v1473
    %s1477 = scalar_lea.vmem [#allocation0], 262
    %1478 = vst.msk [vmem:[%s1477] sm:$0xc] %vm1474, %v1473
    %s1479 = scalar_lea.vmem [#allocation0], 268
    %1480 = vst.msk [vmem:[%s1479] sm:$0x30] %vm1474, %v1473
    %s1481 = scalar_lea.vmem [#allocation0], 274
    %1482 = vst.msk [vmem:[%s1481] sm:$0xc0] %vm1474, %v1473
    %s1483 = scalar_lea.vmem %s0, 293
    %v1484 = vld [vmem:[%s1483] sm:$0x1]
    %s1485 = scalar_lea.vmem %s0, 1309
    %s1486 = smov 6
    %v1487 = vld [vmem:[%s1485] ss:$-504 sm:%s1486]
    %vm1488 = vcmask 1042433
    %v1489 = vsel %vm1488, %v1487, %v1484
    %s1490 = scalar_lea.vmem %s0, 2325
    %s1491 = smov 24
    %v1492 = vld [vmem:[%s1490] ss:$-504 sm:%s1491]
    %vm1493 = vcmask 1044483
    %v1494 = vsel %vm1493, %v1492, %v1489
    %s1495 = scalar_lea.vmem %s0, 3341
    %s1496 = smov 96
    %v1497 = vld [vmem:[%s1495] ss:$-504 sm:%s1496]
    %vm1498 = vcmask 1046533
    %v1499 = vsel %vm1498, %v1497, %v1494
    %s1500 = scalar_lea.vmem %s0, 822
    %v1501 = vld [vmem:[%s1500] sm:$0x80]
    %vm1502 = vcmask 1047559
    %v1503 = vsel %vm1502, %v1501, %v1499
    %1504 = vrot.lane.b32.xlu0 %v1503, 80
    %v1505 = vpop.permute.xlu0 %1504
    %vm1506 = vcmask 786048
    %s1507 = scalar_lea.vmem [#allocation0], 288
    %1508 = vst.msk [vmem:[%s1507] sm:$0x3] %vm1506, %v1505
    %s1509 = scalar_lea.vmem [#allocation0], 294
    %1510 = vst.msk [vmem:[%s1509] sm:$0xc] %vm1506, %v1505
    %s1511 = scalar_lea.vmem [#allocation0], 300
    %1512 = vst.msk [vmem:[%s1511] sm:$0x30] %vm1506, %v1505
    %s1513 = scalar_lea.vmem [#allocation0], 306
    %1514 = vst.msk [vmem:[%s1513] sm:$0xc0] %vm1506, %v1505
    %s1515 = scalar_lea.vmem %s0, 325
    %v1516 = vld [vmem:[%s1515] sm:$0x1]
    %s1517 = scalar_lea.vmem %s0, 1341
    %s1518 = smov 6
    %v1519 = vld [vmem:[%s1517] ss:$-504 sm:%s1518]
    %vm1520 = vcmask 1042433
    %v1521 = vsel %vm1520, %v1519, %v1516
    %s1522 = scalar_lea.vmem %s0, 2357
    %s1523 = smov 24
    %v1524 = vld [vmem:[%s1522] ss:$-504 sm:%s1523]
    %vm1525 = vcmask 1044483
    %v1526 = vsel %vm1525, %v1524, %v1521
    %s1527 = scalar_lea.vmem %s0, 3373
    %s1528 = smov 96
    %v1529 = vld [vmem:[%s1527] ss:$-504 sm:%s1528]
    %vm1530 = vcmask 1046533
    %v1531 = vsel %vm1530, %v1529, %v1526
    %s1532 = scalar_lea.vmem %s0, 854
    %v1533 = vld [vmem:[%s1532] sm:$0x80]
    %vm1534 = vcmask 1047559
    %v1535 = vsel %vm1534, %v1533, %v1531
    %1536 = vrot.lane.b32.xlu0 %v1535, 80
    %v1537 = vpop.permute.xlu0 %1536
    %vm1538 = vcmask 786048
    %s1539 = scalar_lea.vmem [#allocation0], 320
    %1540 = vst.msk [vmem:[%s1539] sm:$0x3] %vm1538, %v1537
    %s1541 = scalar_lea.vmem [#allocation0], 326
    %1542 = vst.msk [vmem:[%s1541] sm:$0xc] %vm1538, %v1537
    %s1543 = scalar_lea.vmem [#allocation0], 332
    %1544 = vst.msk [vmem:[%s1543] sm:$0x30] %vm1538, %v1537
    %s1545 = scalar_lea.vmem [#allocation0], 338
    %1546 = vst.msk [vmem:[%s1545] sm:$0xc0] %vm1538, %v1537
    %s1547 = scalar_lea.vmem %s0, 357
    %v1548 = vld [vmem:[%s1547] sm:$0x1]
    %s1549 = scalar_lea.vmem %s0, 1373
    %s1550 = smov 6
    %v1551 = vld [vmem:[%s1549] ss:$-504 sm:%s1550]
    %vm1552 = vcmask 1042433
    %v1553 = vsel %vm1552, %v1551, %v1548
    %s1554 = scalar_lea.vmem %s0, 2389
    %s1555 = smov 24
    %v1556 = vld [vmem:[%s1554] ss:$-504 sm:%s1555]
    %vm1557 = vcmask 1044483
    %v1558 = vsel %vm1557, %v1556, %v1553
    %s1559 = scalar_lea.vmem %s0, 3405
    %s1560 = smov 96
    %v1561 = vld [vmem:[%s1559] ss:$-504 sm:%s1560]
    %vm1562 = vcmask 1046533
    %v1563 = vsel %vm1562, %v1561, %v1558
    %s1564 = scalar_lea.vmem %s0, 886
    %v1565 = vld [vmem:[%s1564] sm:$0x80]
    %vm1566 = vcmask 1047559
    %v1567 = vsel %vm1566, %v1565, %v1563
    %1568 = vrot.lane.b32.xlu0 %v1567, 80
    %v1569 = vpop.permute.xlu0 %1568
    %vm1570 = vcmask 786048
    %s1571 = scalar_lea.vmem [#allocation0], 352
    %1572 = vst.msk [vmem:[%s1571] sm:$0x3] %vm1570, %v1569
    %s1573 = scalar_lea.vmem [#allocation0], 358
    %1574 = vst.msk [vmem:[%s1573] sm:$0xc] %vm1570, %v1569
    %s1575 = scalar_lea.vmem [#allocation0], 364
    %1576 = vst.msk [vmem:[%s1575] sm:$0x30] %vm1570, %v1569
    %s1577 = scalar_lea.vmem [#allocation0], 370
    %1578 = vst.msk [vmem:[%s1577] sm:$0xc0] %vm1570, %v1569
    %s1579 = scalar_lea.vmem %s0, 389
    %v1580 = vld [vmem:[%s1579] sm:$0x1]
    %s1581 = scalar_lea.vmem %s0, 1405
    %s1582 = smov 6
    %v1583 = vld [vmem:[%s1581] ss:$-504 sm:%s1582]
    %vm1584 = vcmask 1042433
    %v1585 = vsel %vm1584, %v1583, %v1580
    %s1586 = scalar_lea.vmem %s0, 2421
    %s1587 = smov 24
    %v1588 = vld [vmem:[%s1586] ss:$-504 sm:%s1587]
    %vm1589 = vcmask 1044483
    %v1590 = vsel %vm1589, %v1588, %v1585
    %s1591 = scalar_lea.vmem %s0, 3437
    %s1592 = smov 96
    %v1593 = vld [vmem:[%s1591] ss:$-504 sm:%s1592]
    %vm1594 = vcmask 1046533
    %v1595 = vsel %vm1594, %v1593, %v1590
    %s1596 = scalar_lea.vmem %s0, 918
    %v1597 = vld [vmem:[%s1596] sm:$0x80]
    %vm1598 = vcmask 1047559
    %v1599 = vsel %vm1598, %v1597, %v1595
    %1600 = vrot.lane.b32.xlu0 %v1599, 80
    %v1601 = vpop.permute.xlu0 %1600
    %vm1602 = vcmask 786048
    %s1603 = scalar_lea.vmem [#allocation0], 384
    %1604 = vst.msk [vmem:[%s1603] sm:$0x3] %vm1602, %v1601
    %s1605 = scalar_lea.vmem [#allocation0], 390
    %1606 = vst.msk [vmem:[%s1605] sm:$0xc] %vm1602, %v1601
    %s1607 = scalar_lea.vmem [#allocation0], 396
    %1608 = vst.msk [vmem:[%s1607] sm:$0x30] %vm1602, %v1601
    %s1609 = scalar_lea.vmem [#allocation0], 402
    %1610 = vst.msk [vmem:[%s1609] sm:$0xc0] %vm1602, %v1601
    %s1611 = scalar_lea.vmem %s0, 421
    %v1612 = vld [vmem:[%s1611] sm:$0x1]
    %s1613 = scalar_lea.vmem %s0, 1437
    %s1614 = smov 6
    %v1615 = vld [vmem:[%s1613] ss:$-504 sm:%s1614]
    %vm1616 = vcmask 1042433
    %v1617 = vsel %vm1616, %v1615, %v1612
    %s1618 = scalar_lea.vmem %s0, 2453
    %s1619 = smov 24
    %v1620 = vld [vmem:[%s1618] ss:$-504 sm:%s1619]
    %vm1621 = vcmask 1044483
    %v1622 = vsel %vm1621, %v1620, %v1617
    %s1623 = scalar_lea.vmem %s0, 3469
    %s1624 = smov 96
    %v1625 = vld [vmem:[%s1623] ss:$-504 sm:%s1624]
    %vm1626 = vcmask 1046533
    %v1627 = vsel %vm1626, %v1625, %v1622
    %s1628 = scalar_lea.vmem %s0, 950
    %v1629 = vld [vmem:[%s1628] sm:$0x80]
    %vm1630 = vcmask 1047559
    %v1631 = vsel %vm1630, %v1629, %v1627
    %1632 = vrot.lane.b32.xlu0 %v1631, 80
    %v1633 = vpop.permute.xlu0 %1632
    %vm1634 = vcmask 786048
    %s1635 = scalar_lea.vmem [#allocation0], 416
    %1636 = vst.msk [vmem:[%s1635] sm:$0x3] %vm1634, %v1633
    %s1637 = scalar_lea.vmem [#allocation0], 422
    %1638 = vst.msk [vmem:[%s1637] sm:$0xc] %vm1634, %v1633
    %s1639 = scalar_lea.vmem [#allocation0], 428
    %1640 = vst.msk [vmem:[%s1639] sm:$0x30] %vm1634, %v1633
    %s1641 = scalar_lea.vmem [#allocation0], 434
    %1642 = vst.msk [vmem:[%s1641] sm:$0xc0] %vm1634, %v1633
    %s1643 = scalar_lea.vmem %s0, 453
    %v1644 = vld [vmem:[%s1643] sm:$0x1]
    %s1645 = scalar_lea.vmem %s0, 1469
    %s1646 = smov 6
    %v1647 = vld [vmem:[%s1645] ss:$-504 sm:%s1646]
    %vm1648 = vcmask 1042433
    %v1649 = vsel %vm1648, %v1647, %v1644
    %s1650 = scalar_lea.vmem %s0, 2485
    %s1651 = smov 24
    %v1652 = vld [vmem:[%s1650] ss:$-504 sm:%s1651]
    %vm1653 = vcmask 1044483
    %v1654 = vsel %vm1653, %v1652, %v1649
    %s1655 = scalar_lea.vmem %s0, 3501
    %s1656 = smov 96
    %v1657 = vld [vmem:[%s1655] ss:$-504 sm:%s1656]
    %vm1658 = vcmask 1046533
    %v1659 = vsel %vm1658, %v1657, %v1654
    %s1660 = scalar_lea.vmem %s0, 982
    %v1661 = vld [vmem:[%s1660] sm:$0x80]
    %vm1662 = vcmask 1047559
    %v1663 = vsel %vm1662, %v1661, %v1659
    %1664 = vrot.lane.b32.xlu0 %v1663, 80
    %v1665 = vpop.permute.xlu0 %1664
    %vm1666 = vcmask 786048
    %s1667 = scalar_lea.vmem [#allocation0], 448
    %1668 = vst.msk [vmem:[%s1667] sm:$0x3] %vm1666, %v1665
    %s1669 = scalar_lea.vmem [#allocation0], 454
    %1670 = vst.msk [vmem:[%s1669] sm:$0xc] %vm1666, %v1665
    %s1671 = scalar_lea.vmem [#allocation0], 460
    %1672 = vst.msk [vmem:[%s1671] sm:$0x30] %vm1666, %v1665
    %s1673 = scalar_lea.vmem [#allocation0], 466
    %1674 = vst.msk [vmem:[%s1673] sm:$0xc0] %vm1666, %v1665
    %s1675 = scalar_lea.vmem %s0, 485
    %v1676 = vld [vmem:[%s1675] sm:$0x1]
    %s1677 = scalar_lea.vmem %s0, 1501
    %s1678 = smov 6
    %v1679 = vld [vmem:[%s1677] ss:$-504 sm:%s1678]
    %vm1680 = vcmask 1042433
    %v1681 = vsel %vm1680, %v1679, %v1676
    %s1682 = scalar_lea.vmem %s0, 2517
    %s1683 = smov 24
    %v1684 = vld [vmem:[%s1682] ss:$-504 sm:%s1683]
    %vm1685 = vcmask 1044483
    %v1686 = vsel %vm1685, %v1684, %v1681
    %s1687 = scalar_lea.vmem %s0, 3533
    %s1688 = smov 96
    %v1689 = vld [vmem:[%s1687] ss:$-504 sm:%s1688]
    %vm1690 = vcmask 1046533
    %v1691 = vsel %vm1690, %v1689, %v1686
    %s1692 = scalar_lea.vmem %s0, 1014
    %v1693 = vld [vmem:[%s1692] sm:$0x80]
    %vm1694 = vcmask 1047559
    %v1695 = vsel %vm1694, %v1693, %v1691
    %1696 = vrot.lane.b32.xlu0 %v1695, 80
    %v1697 = vpop.permute.xlu0 %1696
    %vm1698 = vcmask 786048
    %s1699 = scalar_lea.vmem [#allocation0], 480
    %1700 = vst.msk [vmem:[%s1699] sm:$0x3] %vm1698, %v1697
    %s1701 = scalar_lea.vmem [#allocation0], 486
    %1702 = vst.msk [vmem:[%s1701] sm:$0xc] %vm1698, %v1697
    %s1703 = scalar_lea.vmem [#allocation0], 492
    %1704 = vst.msk [vmem:[%s1703] sm:$0x30] %vm1698, %v1697
    %s1705 = scalar_lea.vmem [#allocation0], 498
    %1706 = vst.msk [vmem:[%s1705] sm:$0xc0] %vm1698, %v1697
    %s1707 = scalar_lea.vmem %s0, 4
    %v1708 = vld [vmem:[%s1707] sm:$0x1]
    %s1709 = scalar_lea.vmem %s0, 1020
    %s1710 = smov 6
    %v1711 = vld [vmem:[%s1709] ss:$-504 sm:%s1710]
    %vm1712 = vcmask 1042433
    %v1713 = vsel %vm1712, %v1711, %v1708
    %s1714 = scalar_lea.vmem %s0, 2036
    %s1715 = smov 24
    %v1716 = vld [vmem:[%s1714] ss:$-504 sm:%s1715]
    %vm1717 = vcmask 1044483
    %v1718 = vsel %vm1717, %v1716, %v1713
    %s1719 = scalar_lea.vmem %s0, 3052
    %s1720 = smov 96
    %v1721 = vld [vmem:[%s1719] ss:$-504 sm:%s1720]
    %vm1722 = vcmask 1046533
    %v1723 = vsel %vm1722, %v1721, %v1718
    %s1724 = scalar_lea.vmem %s0, 533
    %v1725 = vld [vmem:[%s1724] sm:$0x80]
    %vm1726 = vcmask 1047559
    %v1727 = vsel %vm1726, %v1725, %v1723
    %1728 = vrot.lane.b32.xlu0 %v1727, 64
    %v1729 = vpop.permute.xlu0 %1728
    %vm1730 = vcmask 654848
    %1731 = vst.msk [vmem:[#allocation0] sm:$0x3] %vm1730, %v1729
    %s1732 = scalar_lea.vmem [#allocation0], 6
    %1733 = vst.msk [vmem:[%s1732] sm:$0xc] %vm1730, %v1729
    %s1734 = scalar_lea.vmem [#allocation0], 12
    %1735 = vst.msk [vmem:[%s1734] sm:$0x30] %vm1730, %v1729
    %s1736 = scalar_lea.vmem [#allocation0], 18
    %1737 = vst.msk [vmem:[%s1736] sm:$0xc0] %vm1730, %v1729
    %s1738 = scalar_lea.vmem %s0, 36
    %v1739 = vld [vmem:[%s1738] sm:$0x1]
    %s1740 = scalar_lea.vmem %s0, 1052
    %s1741 = smov 6
    %v1742 = vld [vmem:[%s1740] ss:$-504 sm:%s1741]
    %vm1743 = vcmask 1042433
    %v1744 = vsel %vm1743, %v1742, %v1739
    %s1745 = scalar_lea.vmem %s0, 2068
    %s1746 = smov 24
    %v1747 = vld [vmem:[%s1745] ss:$-504 sm:%s1746]
    %vm1748 = vcmask 1044483
    %v1749 = vsel %vm1748, %v1747, %v1744
    %s1750 = scalar_lea.vmem %s0, 3084
    %s1751 = smov 96
    %v1752 = vld [vmem:[%s1750] ss:$-504 sm:%s1751]
    %vm1753 = vcmask 1046533
    %v1754 = vsel %vm1753, %v1752, %v1749
    %s1755 = scalar_lea.vmem %s0, 565
    %v1756 = vld [vmem:[%s1755] sm:$0x80]
    %vm1757 = vcmask 1047559
    %v1758 = vsel %vm1757, %v1756, %v1754
    %1759 = vrot.lane.b32.xlu0 %v1758, 64
    %v1760 = vpop.permute.xlu0 %1759
    %vm1761 = vcmask 654848
    %s1762 = scalar_lea.vmem [#allocation0], 32
    %1763 = vst.msk [vmem:[%s1762] sm:$0x3] %vm1761, %v1760
    %s1764 = scalar_lea.vmem [#allocation0], 38
    %1765 = vst.msk [vmem:[%s1764] sm:$0xc] %vm1761, %v1760
    %s1766 = scalar_lea.vmem [#allocation0], 44
    %1767 = vst.msk [vmem:[%s1766] sm:$0x30] %vm1761, %v1760
    %s1768 = scalar_lea.vmem [#allocation0], 50
    %1769 = vst.msk [vmem:[%s1768] sm:$0xc0] %vm1761, %v1760
    %s1770 = scalar_lea.vmem %s0, 68
    %v1771 = vld [vmem:[%s1770] sm:$0x1]
    %s1772 = scalar_lea.vmem %s0, 1084
    %s1773 = smov 6
    %v1774 = vld [vmem:[%s1772] ss:$-504 sm:%s1773]
    %vm1775 = vcmask 1042433
    %v1776 = vsel %vm1775, %v1774, %v1771
    %s1777 = scalar_lea.vmem %s0, 2100
    %s1778 = smov 24
    %v1779 = vld [vmem:[%s1777] ss:$-504 sm:%s1778]
    %vm1780 = vcmask 1044483
    %v1781 = vsel %vm1780, %v1779, %v1776
    %s1782 = scalar_lea.vmem %s0, 3116
    %s1783 = smov 96
    %v1784 = vld [vmem:[%s1782] ss:$-504 sm:%s1783]
    %vm1785 = vcmask 1046533
    %v1786 = vsel %vm1785, %v1784, %v1781
    %s1787 = scalar_lea.vmem %s0, 597
    %v1788 = vld [vmem:[%s1787] sm:$0x80]
    %vm1789 = vcmask 1047559
    %v1790 = vsel %vm1789, %v1788, %v1786
    %1791 = vrot.lane.b32.xlu0 %v1790, 64
    %v1792 = vpop.permute.xlu0 %1791
    %vm1793 = vcmask 654848
    %s1794 = scalar_lea.vmem [#allocation0], 64
    %1795 = vst.msk [vmem:[%s1794] sm:$0x3] %vm1793, %v1792
    %s1796 = scalar_lea.vmem [#allocation0], 70
    %1797 = vst.msk [vmem:[%s1796] sm:$0xc] %vm1793, %v1792
    %s1798 = scalar_lea.vmem [#allocation0], 76
    %1799 = vst.msk [vmem:[%s1798] sm:$0x30] %vm1793, %v1792
    %s1800 = scalar_lea.vmem [#allocation0], 82
    %1801 = vst.msk [vmem:[%s1800] sm:$0xc0] %vm1793, %v1792
    %s1802 = scalar_lea.vmem %s0, 100
    %v1803 = vld [vmem:[%s1802] sm:$0x1]
    %s1804 = scalar_lea.vmem %s0, 1116
    %s1805 = smov 6
    %v1806 = vld [vmem:[%s1804] ss:$-504 sm:%s1805]
    %vm1807 = vcmask 1042433
    %v1808 = vsel %vm1807, %v1806, %v1803
    %s1809 = scalar_lea.vmem %s0, 2132
    %s1810 = smov 24
    %v1811 = vld [vmem:[%s1809] ss:$-504 sm:%s1810]
    %vm1812 = vcmask 1044483
    %v1813 = vsel %vm1812, %v1811, %v1808
    %s1814 = scalar_lea.vmem %s0, 3148
    %s1815 = smov 96
    %v1816 = vld [vmem:[%s1814] ss:$-504 sm:%s1815]
    %vm1817 = vcmask 1046533
    %v1818 = vsel %vm1817, %v1816, %v1813
    %s1819 = scalar_lea.vmem %s0, 629
    %v1820 = vld [vmem:[%s1819] sm:$0x80]
    %vm1821 = vcmask 1047559
    %v1822 = vsel %vm1821, %v1820, %v1818
    %1823 = vrot.lane.b32.xlu0 %v1822, 64
    %v1824 = vpop.permute.xlu0 %1823
    %vm1825 = vcmask 654848
    %s1826 = scalar_lea.vmem [#allocation0], 96
    %1827 = vst.msk [vmem:[%s1826] sm:$0x3] %vm1825, %v1824
    %s1828 = scalar_lea.vmem [#allocation0], 102
    %1829 = vst.msk [vmem:[%s1828] sm:$0xc] %vm1825, %v1824
    %s1830 = scalar_lea.vmem [#allocation0], 108
    %1831 = vst.msk [vmem:[%s1830] sm:$0x30] %vm1825, %v1824
    %s1832 = scalar_lea.vmem [#allocation0], 114
    %1833 = vst.msk [vmem:[%s1832] sm:$0xc0] %vm1825, %v1824
    %s1834 = scalar_lea.vmem %s0, 132
    %v1835 = vld [vmem:[%s1834] sm:$0x1]
    %s1836 = scalar_lea.vmem %s0, 1148
    %s1837 = smov 6
    %v1838 = vld [vmem:[%s1836] ss:$-504 sm:%s1837]
    %vm1839 = vcmask 1042433
    %v1840 = vsel %vm1839, %v1838, %v1835
    %s1841 = scalar_lea.vmem %s0, 2164
    %s1842 = smov 24
    %v1843 = vld [vmem:[%s1841] ss:$-504 sm:%s1842]
    %vm1844 = vcmask 1044483
    %v1845 = vsel %vm1844, %v1843, %v1840
    %s1846 = scalar_lea.vmem %s0, 3180
    %s1847 = smov 96
    %v1848 = vld [vmem:[%s1846] ss:$-504 sm:%s1847]
    %vm1849 = vcmask 1046533
    %v1850 = vsel %vm1849, %v1848, %v1845
    %s1851 = scalar_lea.vmem %s0, 661
    %v1852 = vld [vmem:[%s1851] sm:$0x80]
    %vm1853 = vcmask 1047559
    %v1854 = vsel %vm1853, %v1852, %v1850
    %1855 = vrot.lane.b32.xlu0 %v1854, 64
    %v1856 = vpop.permute.xlu0 %1855
    %vm1857 = vcmask 654848
    %s1858 = scalar_lea.vmem [#allocation0], 128
    %1859 = vst.msk [vmem:[%s1858] sm:$0x3] %vm1857, %v1856
    %s1860 = scalar_lea.vmem [#allocation0], 134
    %1861 = vst.msk [vmem:[%s1860] sm:$0xc] %vm1857, %v1856
    %s1862 = scalar_lea.vmem [#allocation0], 140
    %1863 = vst.msk [vmem:[%s1862] sm:$0x30] %vm1857, %v1856
    %s1864 = scalar_lea.vmem [#allocation0], 146
    %1865 = vst.msk [vmem:[%s1864] sm:$0xc0] %vm1857, %v1856
    %s1866 = scalar_lea.vmem %s0, 164
    %v1867 = vld [vmem:[%s1866] sm:$0x1]
    %s1868 = scalar_lea.vmem %s0, 1180
    %s1869 = smov 6
    %v1870 = vld [vmem:[%s1868] ss:$-504 sm:%s1869]
    %vm1871 = vcmask 1042433
    %v1872 = vsel %vm1871, %v1870, %v1867
    %s1873 = scalar_lea.vmem %s0, 2196
    %s1874 = smov 24
    %v1875 = vld [vmem:[%s1873] ss:$-504 sm:%s1874]
    %vm1876 = vcmask 1044483
    %v1877 = vsel %vm1876, %v1875, %v1872
    %s1878 = scalar_lea.vmem %s0, 3212
    %s1879 = smov 96
    %v1880 = vld [vmem:[%s1878] ss:$-504 sm:%s1879]
    %vm1881 = vcmask 1046533
    %v1882 = vsel %vm1881, %v1880, %v1877
    %s1883 = scalar_lea.vmem %s0, 693
    %v1884 = vld [vmem:[%s1883] sm:$0x80]
    %vm1885 = vcmask 1047559
    %v1886 = vsel %vm1885, %v1884, %v1882
    %1887 = vrot.lane.b32.xlu0 %v1886, 64
    %v1888 = vpop.permute.xlu0 %1887
    %vm1889 = vcmask 654848
    %s1890 = scalar_lea.vmem [#allocation0], 160
    %1891 = vst.msk [vmem:[%s1890] sm:$0x3] %vm1889, %v1888
    %s1892 = scalar_lea.vmem [#allocation0], 166
    %1893 = vst.msk [vmem:[%s1892] sm:$0xc] %vm1889, %v1888
    %s1894 = scalar_lea.vmem [#allocation0], 172
    %1895 = vst.msk [vmem:[%s1894] sm:$0x30] %vm1889, %v1888
    %s1896 = scalar_lea.vmem [#allocation0], 178
    %1897 = vst.msk [vmem:[%s1896] sm:$0xc0] %vm1889, %v1888
    %s1898 = scalar_lea.vmem %s0, 196
    %v1899 = vld [vmem:[%s1898] sm:$0x1]
    %s1900 = scalar_lea.vmem %s0, 1212
    %s1901 = smov 6
    %v1902 = vld [vmem:[%s1900] ss:$-504 sm:%s1901]
    %vm1903 = vcmask 1042433
    %v1904 = vsel %vm1903, %v1902, %v1899
    %s1905 = scalar_lea.vmem %s0, 2228
    %s1906 = smov 24
    %v1907 = vld [vmem:[%s1905] ss:$-504 sm:%s1906]
    %vm1908 = vcmask 1044483
    %v1909 = vsel %vm1908, %v1907, %v1904
    %s1910 = scalar_lea.vmem %s0, 3244
    %s1911 = smov 96
    %v1912 = vld [vmem:[%s1910] ss:$-504 sm:%s1911]
    %vm1913 = vcmask 1046533
    %v1914 = vsel %vm1913, %v1912, %v1909
    %s1915 = scalar_lea.vmem %s0, 725
    %v1916 = vld [vmem:[%s1915] sm:$0x80]
    %vm1917 = vcmask 1047559
    %v1918 = vsel %vm1917, %v1916, %v1914
    %1919 = vrot.lane.b32.xlu0 %v1918, 64
    %v1920 = vpop.permute.xlu0 %1919
    %vm1921 = vcmask 654848
    %s1922 = scalar_lea.vmem [#allocation0], 192
    %1923 = vst.msk [vmem:[%s1922] sm:$0x3] %vm1921, %v1920
    %s1924 = scalar_lea.vmem [#allocation0], 198
    %1925 = vst.msk [vmem:[%s1924] sm:$0xc] %vm1921, %v1920
    %s1926 = scalar_lea.vmem [#allocation0], 204
    %1927 = vst.msk [vmem:[%s1926] sm:$0x30] %vm1921, %v1920
    %s1928 = scalar_lea.vmem [#allocation0], 210
    %1929 = vst.msk [vmem:[%s1928] sm:$0xc0] %vm1921, %v1920
    %s1930 = scalar_lea.vmem %s0, 228
    %v1931 = vld [vmem:[%s1930] sm:$0x1]
    %s1932 = scalar_lea.vmem %s0, 1244
    %s1933 = smov 6
    %v1934 = vld [vmem:[%s1932] ss:$-504 sm:%s1933]
    %vm1935 = vcmask 1042433
    %v1936 = vsel %vm1935, %v1934, %v1931
    %s1937 = scalar_lea.vmem %s0, 2260
    %s1938 = smov 24
    %v1939 = vld [vmem:[%s1937] ss:$-504 sm:%s1938]
    %vm1940 = vcmask 1044483
    %v1941 = vsel %vm1940, %v1939, %v1936
    %s1942 = scalar_lea.vmem %s0, 3276
    %s1943 = smov 96
    %v1944 = vld [vmem:[%s1942] ss:$-504 sm:%s1943]
    %vm1945 = vcmask 1046533
    %v1946 = vsel %vm1945, %v1944, %v1941
    %s1947 = scalar_lea.vmem %s0, 757
    %v1948 = vld [vmem:[%s1947] sm:$0x80]
    %vm1949 = vcmask 1047559
    %v1950 = vsel %vm1949, %v1948, %v1946
    %1951 = vrot.lane.b32.xlu0 %v1950, 64
    %v1952 = vpop.permute.xlu0 %1951
    %vm1953 = vcmask 654848
    %s1954 = scalar_lea.vmem [#allocation0], 224
    %1955 = vst.msk [vmem:[%s1954] sm:$0x3] %vm1953, %v1952
    %s1956 = scalar_lea.vmem [#allocation0], 230
    %1957 = vst.msk [vmem:[%s1956] sm:$0xc] %vm1953, %v1952
    %s1958 = scalar_lea.vmem [#allocation0], 236
    %1959 = vst.msk [vmem:[%s1958] sm:$0x30] %vm1953, %v1952
    %s1960 = scalar_lea.vmem [#allocation0], 242
    %1961 = vst.msk [vmem:[%s1960] sm:$0xc0] %vm1953, %v1952
    %s1962 = scalar_lea.vmem %s0, 260
    %v1963 = vld [vmem:[%s1962] sm:$0x1]
    %s1964 = scalar_lea.vmem %s0, 1276
    %s1965 = smov 6
    %v1966 = vld [vmem:[%s1964] ss:$-504 sm:%s1965]
    %vm1967 = vcmask 1042433
    %v1968 = vsel %vm1967, %v1966, %v1963
    %s1969 = scalar_lea.vmem %s0, 2292
    %s1970 = smov 24
    %v1971 = vld [vmem:[%s1969] ss:$-504 sm:%s1970]
    %vm1972 = vcmask 1044483
    %v1973 = vsel %vm1972, %v1971, %v1968
    %s1974 = scalar_lea.vmem %s0, 3308
    %s1975 = smov 96
    %v1976 = vld [vmem:[%s1974] ss:$-504 sm:%s1975]
    %vm1977 = vcmask 1046533
    %v1978 = vsel %vm1977, %v1976, %v1973
    %s1979 = scalar_lea.vmem %s0, 789
    %v1980 = vld [vmem:[%s1979] sm:$0x80]
    %vm1981 = vcmask 1047559
    %v1982 = vsel %vm1981, %v1980, %v1978
    %1983 = vrot.lane.b32.xlu0 %v1982, 64
    %v1984 = vpop.permute.xlu0 %1983
    %vm1985 = vcmask 654848
    %s1986 = scalar_lea.vmem [#allocation0], 256
    %1987 = vst.msk [vmem:[%s1986] sm:$0x3] %vm1985, %v1984
    %s1988 = scalar_lea.vmem [#allocation0], 262
    %1989 = vst.msk [vmem:[%s1988] sm:$0xc] %vm1985, %v1984
    %s1990 = scalar_lea.vmem [#allocation0], 268
    %1991 = vst.msk [vmem:[%s1990] sm:$0x30] %vm1985, %v1984
    %s1992 = scalar_lea.vmem [#allocation0], 274
    %1993 = vst.msk [vmem:[%s1992] sm:$0xc0] %vm1985, %v1984
    %s1994 = scalar_lea.vmem %s0, 292
    %v1995 = vld [vmem:[%s1994] sm:$0x1]
    %s1996 = scalar_lea.vmem %s0, 1308
    %s1997 = smov 6
    %v1998 = vld [vmem:[%s1996] ss:$-504 sm:%s1997]
    %vm1999 = vcmask 1042433
    %v2000 = vsel %vm1999, %v1998, %v1995
    %s2001 = scalar_lea.vmem %s0, 2324
    %s2002 = smov 24
    %v2003 = vld [vmem:[%s2001] ss:$-504 sm:%s2002]
    %vm2004 = vcmask 1044483
    %v2005 = vsel %vm2004, %v2003, %v2000
    %s2006 = scalar_lea.vmem %s0, 3340
    %s2007 = smov 96
    %v2008 = vld [vmem:[%s2006] ss:$-504 sm:%s2007]
    %vm2009 = vcmask 1046533
    %v2010 = vsel %vm2009, %v2008, %v2005
    %s2011 = scalar_lea.vmem %s0, 821
    %v2012 = vld [vmem:[%s2011] sm:$0x80]
    %vm2013 = vcmask 1047559
    %v2014 = vsel %vm2013, %v2012, %v2010
    %2015 = vrot.lane.b32.xlu0 %v2014, 64
    %v2016 = vpop.permute.xlu0 %2015
    %vm2017 = vcmask 654848
    %s2018 = scalar_lea.vmem [#allocation0], 288
    %2019 = vst.msk [vmem:[%s2018] sm:$0x3] %vm2017, %v2016
    %s2020 = scalar_lea.vmem [#allocation0], 294
    %2021 = vst.msk [vmem:[%s2020] sm:$0xc] %vm2017, %v2016
    %s2022 = scalar_lea.vmem [#allocation0], 300
    %2023 = vst.msk [vmem:[%s2022] sm:$0x30] %vm2017, %v2016
    %s2024 = scalar_lea.vmem [#allocation0], 306
    %2025 = vst.msk [vmem:[%s2024] sm:$0xc0] %vm2017, %v2016
    %s2026 = scalar_lea.vmem %s0, 324
    %v2027 = vld [vmem:[%s2026] sm:$0x1]
    %s2028 = scalar_lea.vmem %s0, 1340
    %s2029 = smov 6
    %v2030 = vld [vmem:[%s2028] ss:$-504 sm:%s2029]
    %vm2031 = vcmask 1042433
    %v2032 = vsel %vm2031, %v2030, %v2027
    %s2033 = scalar_lea.vmem %s0, 2356
    %s2034 = smov 24
    %v2035 = vld [vmem:[%s2033] ss:$-504 sm:%s2034]
    %vm2036 = vcmask 1044483
    %v2037 = vsel %vm2036, %v2035, %v2032
    %s2038 = scalar_lea.vmem %s0, 3372
    %s2039 = smov 96
    %v2040 = vld [vmem:[%s2038] ss:$-504 sm:%s2039]
    %vm2041 = vcmask 1046533
    %v2042 = vsel %vm2041, %v2040, %v2037
    %s2043 = scalar_lea.vmem %s0, 853
    %v2044 = vld [vmem:[%s2043] sm:$0x80]
    %vm2045 = vcmask 1047559
    %v2046 = vsel %vm2045, %v2044, %v2042
    %2047 = vrot.lane.b32.xlu0 %v2046, 64
    %v2048 = vpop.permute.xlu0 %2047
    %vm2049 = vcmask 654848
    %s2050 = scalar_lea.vmem [#allocation0], 320
    %2051 = vst.msk [vmem:[%s2050] sm:$0x3] %vm2049, %v2048
    %s2052 = scalar_lea.vmem [#allocation0], 326
    %2053 = vst.msk [vmem:[%s2052] sm:$0xc] %vm2049, %v2048
    %s2054 = scalar_lea.vmem [#allocation0], 332
    %2055 = vst.msk [vmem:[%s2054] sm:$0x30] %vm2049, %v2048
    %s2056 = scalar_lea.vmem [#allocation0], 338
    %2057 = vst.msk [vmem:[%s2056] sm:$0xc0] %vm2049, %v2048
    %s2058 = scalar_lea.vmem %s0, 356
    %v2059 = vld [vmem:[%s2058] sm:$0x1]
    %s2060 = scalar_lea.vmem %s0, 1372
    %s2061 = smov 6
    %v2062 = vld [vmem:[%s2060] ss:$-504 sm:%s2061]
    %vm2063 = vcmask 1042433
    %v2064 = vsel %vm2063, %v2062, %v2059
    %s2065 = scalar_lea.vmem %s0, 2388
    %s2066 = smov 24
    %v2067 = vld [vmem:[%s2065] ss:$-504 sm:%s2066]
    %vm2068 = vcmask 1044483
    %v2069 = vsel %vm2068, %v2067, %v2064
    %s2070 = scalar_lea.vmem %s0, 3404
    %s2071 = smov 96
    %v2072 = vld [vmem:[%s2070] ss:$-504 sm:%s2071]
    %vm2073 = vcmask 1046533
    %v2074 = vsel %vm2073, %v2072, %v2069
    %s2075 = scalar_lea.vmem %s0, 885
    %v2076 = vld [vmem:[%s2075] sm:$0x80]
    %vm2077 = vcmask 1047559
    %v2078 = vsel %vm2077, %v2076, %v2074
    %2079 = vrot.lane.b32.xlu0 %v2078, 64
    %v2080 = vpop.permute.xlu0 %2079
    %vm2081 = vcmask 654848
    %s2082 = scalar_lea.vmem [#allocation0], 352
    %2083 = vst.msk [vmem:[%s2082] sm:$0x3] %vm2081, %v2080
    %s2084 = scalar_lea.vmem [#allocation0], 358
    %2085 = vst.msk [vmem:[%s2084] sm:$0xc] %vm2081, %v2080
    %s2086 = scalar_lea.vmem [#allocation0], 364
    %2087 = vst.msk [vmem:[%s2086] sm:$0x30] %vm2081, %v2080
    %s2088 = scalar_lea.vmem [#allocation0], 370
    %2089 = vst.msk [vmem:[%s2088] sm:$0xc0] %vm2081, %v2080
    %s2090 = scalar_lea.vmem %s0, 388
    %v2091 = vld [vmem:[%s2090] sm:$0x1]
    %s2092 = scalar_lea.vmem %s0, 1404
    %s2093 = smov 6
    %v2094 = vld [vmem:[%s2092] ss:$-504 sm:%s2093]
    %vm2095 = vcmask 1042433
    %v2096 = vsel %vm2095, %v2094, %v2091
    %s2097 = scalar_lea.vmem %s0, 2420
    %s2098 = smov 24
    %v2099 = vld [vmem:[%s2097] ss:$-504 sm:%s2098]
    %vm2100 = vcmask 1044483
    %v2101 = vsel %vm2100, %v2099, %v2096
    %s2102 = scalar_lea.vmem %s0, 3436
    %s2103 = smov 96
    %v2104 = vld [vmem:[%s2102] ss:$-504 sm:%s2103]
    %vm2105 = vcmask 1046533
    %v2106 = vsel %vm2105, %v2104, %v2101
    %s2107 = scalar_lea.vmem %s0, 917
    %v2108 = vld [vmem:[%s2107] sm:$0x80]
    %vm2109 = vcmask 1047559
    %v2110 = vsel %vm2109, %v2108, %v2106
    %2111 = vrot.lane.b32.xlu0 %v2110, 64
    %v2112 = vpop.permute.xlu0 %2111
    %vm2113 = vcmask 654848
    %s2114 = scalar_lea.vmem [#allocation0], 384
    %2115 = vst.msk [vmem:[%s2114] sm:$0x3] %vm2113, %v2112
    %s2116 = scalar_lea.vmem [#allocation0], 390
    %2117 = vst.msk [vmem:[%s2116] sm:$0xc] %vm2113, %v2112
    %s2118 = scalar_lea.vmem [#allocation0], 396
    %2119 = vst.msk [vmem:[%s2118] sm:$0x30] %vm2113, %v2112
    %s2120 = scalar_lea.vmem [#allocation0], 402
    %2121 = vst.msk [vmem:[%s2120] sm:$0xc0] %vm2113, %v2112
    %s2122 = scalar_lea.vmem %s0, 420
    %v2123 = vld [vmem:[%s2122] sm:$0x1]
    %s2124 = scalar_lea.vmem %s0, 1436
    %s2125 = smov 6
    %v2126 = vld [vmem:[%s2124] ss:$-504 sm:%s2125]
    %vm2127 = vcmask 1042433
    %v2128 = vsel %vm2127, %v2126, %v2123
    %s2129 = scalar_lea.vmem %s0, 2452
    %s2130 = smov 24
    %v2131 = vld [vmem:[%s2129] ss:$-504 sm:%s2130]
    %vm2132 = vcmask 1044483
    %v2133 = vsel %vm2132, %v2131, %v2128
    %s2134 = scalar_lea.vmem %s0, 3468
    %s2135 = smov 96
    %v2136 = vld [vmem:[%s2134] ss:$-504 sm:%s2135]
    %vm2137 = vcmask 1046533
    %v2138 = vsel %vm2137, %v2136, %v2133
    %s2139 = scalar_lea.vmem %s0, 949
    %v2140 = vld [vmem:[%s2139] sm:$0x80]
    %vm2141 = vcmask 1047559
    %v2142 = vsel %vm2141, %v2140, %v2138
    %2143 = vrot.lane.b32.xlu0 %v2142, 64
    %v2144 = vpop.permute.xlu0 %2143
    %vm2145 = vcmask 654848
    %s2146 = scalar_lea.vmem [#allocation0], 416
    %2147 = vst.msk [vmem:[%s2146] sm:$0x3] %vm2145, %v2144
    %s2148 = scalar_lea.vmem [#allocation0], 422
    %2149 = vst.msk [vmem:[%s2148] sm:$0xc] %vm2145, %v2144
    %s2150 = scalar_lea.vmem [#allocation0], 428
    %2151 = vst.msk [vmem:[%s2150] sm:$0x30] %vm2145, %v2144
    %s2152 = scalar_lea.vmem [#allocation0], 434
    %2153 = vst.msk [vmem:[%s2152] sm:$0xc0] %vm2145, %v2144
    %s2154 = scalar_lea.vmem %s0, 452
    %v2155 = vld [vmem:[%s2154] sm:$0x1]
    %s2156 = scalar_lea.vmem %s0, 1468
    %s2157 = smov 6
    %v2158 = vld [vmem:[%s2156] ss:$-504 sm:%s2157]
    %vm2159 = vcmask 1042433
    %v2160 = vsel %vm2159, %v2158, %v2155
    %s2161 = scalar_lea.vmem %s0, 2484
    %s2162 = smov 24
    %v2163 = vld [vmem:[%s2161] ss:$-504 sm:%s2162]
    %vm2164 = vcmask 1044483
    %v2165 = vsel %vm2164, %v2163, %v2160
    %s2166 = scalar_lea.vmem %s0, 3500
    %s2167 = smov 96
    %v2168 = vld [vmem:[%s2166] ss:$-504 sm:%s2167]
    %vm2169 = vcmask 1046533
    %v2170 = vsel %vm2169, %v2168, %v2165
    %s2171 = scalar_lea.vmem %s0, 981
    %v2172 = vld [vmem:[%s2171] sm:$0x80]
    %vm2173 = vcmask 1047559
    %v2174 = vsel %vm2173, %v2172, %v2170
    %2175 = vrot.lane.b32.xlu0 %v2174, 64
    %v2176 = vpop.permute.xlu0 %2175
    %vm2177 = vcmask 654848
    %s2178 = scalar_lea.vmem [#allocation0], 448
    %2179 = vst.msk [vmem:[%s2178] sm:$0x3] %vm2177, %v2176
    %s2180 = scalar_lea.vmem [#allocation0], 454
    %2181 = vst.msk [vmem:[%s2180] sm:$0xc] %vm2177, %v2176
    %s2182 = scalar_lea.vmem [#allocation0], 460
    %2183 = vst.msk [vmem:[%s2182] sm:$0x30] %vm2177, %v2176
    %s2184 = scalar_lea.vmem [#allocation0], 466
    %2185 = vst.msk [vmem:[%s2184] sm:$0xc0] %vm2177, %v2176
    %s2186 = scalar_lea.vmem %s0, 484
    %v2187 = vld [vmem:[%s2186] sm:$0x1]
    %s2188 = scalar_lea.vmem %s0, 1500
    %s2189 = smov 6
    %v2190 = vld [vmem:[%s2188] ss:$-504 sm:%s2189]
    %vm2191 = vcmask 1042433
    %v2192 = vsel %vm2191, %v2190, %v2187
    %s2193 = scalar_lea.vmem %s0, 2516
    %s2194 = smov 24
    %v2195 = vld [vmem:[%s2193] ss:$-504 sm:%s2194]
    %vm2196 = vcmask 1044483
    %v2197 = vsel %vm2196, %v2195, %v2192
    %s2198 = scalar_lea.vmem %s0, 3532
    %s2199 = smov 96
    %v2200 = vld [vmem:[%s2198] ss:$-504 sm:%s2199]
    %vm2201 = vcmask 1046533
    %v2202 = vsel %vm2201, %v2200, %v2197
    %s2203 = scalar_lea.vmem %s0, 1013
    %v2204 = vld [vmem:[%s2203] sm:$0x80]
    %vm2205 = vcmask 1047559
    %v2206 = vsel %vm2205, %v2204, %v2202
    %2207 = vrot.lane.b32.xlu0 %v2206, 64
    %v2208 = vpop.permute.xlu0 %2207
    %vm2209 = vcmask 654848
    %s2210 = scalar_lea.vmem [#allocation0], 480
    %2211 = vst.msk [vmem:[%s2210] sm:$0x3] %vm2209, %v2208
    %s2212 = scalar_lea.vmem [#allocation0], 486
    %2213 = vst.msk [vmem:[%s2212] sm:$0xc] %vm2209, %v2208
    %s2214 = scalar_lea.vmem [#allocation0], 492
    %2215 = vst.msk [vmem:[%s2214] sm:$0x30] %vm2209, %v2208
    %s2216 = scalar_lea.vmem [#allocation0], 498
    %2217 = vst.msk [vmem:[%s2216] sm:$0xc0] %vm2209, %v2208
    %s2218 = scalar_lea.vmem %s0, 3
    %v2219 = vld [vmem:[%s2218] sm:$0x1]
    %s2220 = scalar_lea.vmem %s0, 1019
    %s2221 = smov 6
    %v2222 = vld [vmem:[%s2220] ss:$-504 sm:%s2221]
    %vm2223 = vcmask 1042433
    %v2224 = vsel %vm2223, %v2222, %v2219
    %s2225 = scalar_lea.vmem %s0, 2035
    %s2226 = smov 24
    %v2227 = vld [vmem:[%s2225] ss:$-504 sm:%s2226]
    %vm2228 = vcmask 1044483
    %v2229 = vsel %vm2228, %v2227, %v2224
    %s2230 = scalar_lea.vmem %s0, 3051
    %s2231 = smov 96
    %v2232 = vld [vmem:[%s2230] ss:$-504 sm:%s2231]
    %vm2233 = vcmask 1046533
    %v2234 = vsel %vm2233, %v2232, %v2229
    %s2235 = scalar_lea.vmem %s0, 532
    %v2236 = vld [vmem:[%s2235] sm:$0x80]
    %vm2237 = vcmask 1047559
    %v2238 = vsel %vm2237, %v2236, %v2234
    %2239 = vrot.lane.b32.xlu0 %v2238, 48
    %v2240 = vpop.permute.xlu0 %2239
    %vm2241 = vcmask 523648
    %2242 = vst.msk [vmem:[#allocation0] sm:$0x3] %vm2241, %v2240
    %s2243 = scalar_lea.vmem [#allocation0], 6
    %2244 = vst.msk [vmem:[%s2243] sm:$0xc] %vm2241, %v2240
    %s2245 = scalar_lea.vmem [#allocation0], 12
    %2246 = vst.msk [vmem:[%s2245] sm:$0x30] %vm2241, %v2240
    %s2247 = scalar_lea.vmem [#allocation0], 18
    %2248 = vst.msk [vmem:[%s2247] sm:$0xc0] %vm2241, %v2240
    %s2249 = scalar_lea.vmem %s0, 35
    %v2250 = vld [vmem:[%s2249] sm:$0x1]
    %s2251 = scalar_lea.vmem %s0, 1051
    %s2252 = smov 6
    %v2253 = vld [vmem:[%s2251] ss:$-504 sm:%s2252]
    %vm2254 = vcmask 1042433
    %v2255 = vsel %vm2254, %v2253, %v2250
    %s2256 = scalar_lea.vmem %s0, 2067
    %s2257 = smov 24
    %v2258 = vld [vmem:[%s2256] ss:$-504 sm:%s2257]
    %vm2259 = vcmask 1044483
    %v2260 = vsel %vm2259, %v2258, %v2255
    %s2261 = scalar_lea.vmem %s0, 3083
    %s2262 = smov 96
    %v2263 = vld [vmem:[%s2261] ss:$-504 sm:%s2262]
    %vm2264 = vcmask 1046533
    %v2265 = vsel %vm2264, %v2263, %v2260
    %s2266 = scalar_lea.vmem %s0, 564
    %v2267 = vld [vmem:[%s2266] sm:$0x80]
    %vm2268 = vcmask 1047559
    %v2269 = vsel %vm2268, %v2267, %v2265
    %2270 = vrot.lane.b32.xlu0 %v2269, 48
    %v2271 = vpop.permute.xlu0 %2270
    %vm2272 = vcmask 523648
    %s2273 = scalar_lea.vmem [#allocation0], 32
    %2274 = vst.msk [vmem:[%s2273] sm:$0x3] %vm2272, %v2271
    %s2275 = scalar_lea.vmem [#allocation0], 38
    %2276 = vst.msk [vmem:[%s2275] sm:$0xc] %vm2272, %v2271
    %s2277 = scalar_lea.vmem [#allocation0], 44
    %2278 = vst.msk [vmem:[%s2277] sm:$0x30] %vm2272, %v2271
    %s2279 = scalar_lea.vmem [#allocation0], 50
    %2280 = vst.msk [vmem:[%s2279] sm:$0xc0] %vm2272, %v2271
    %s2281 = scalar_lea.vmem %s0, 67
    %v2282 = vld [vmem:[%s2281] sm:$0x1]
    %s2283 = scalar_lea.vmem %s0, 1083
    %s2284 = smov 6
    %v2285 = vld [vmem:[%s2283] ss:$-504 sm:%s2284]
    %vm2286 = vcmask 1042433
    %v2287 = vsel %vm2286, %v2285, %v2282
    %s2288 = scalar_lea.vmem %s0, 2099
    %s2289 = smov 24
    %v2290 = vld [vmem:[%s2288] ss:$-504 sm:%s2289]
    %vm2291 = vcmask 1044483
    %v2292 = vsel %vm2291, %v2290, %v2287
    %s2293 = scalar_lea.vmem %s0, 3115
    %s2294 = smov 96
    %v2295 = vld [vmem:[%s2293] ss:$-504 sm:%s2294]
    %vm2296 = vcmask 1046533
    %v2297 = vsel %vm2296, %v2295, %v2292
    %s2298 = scalar_lea.vmem %s0, 596
    %v2299 = vld [vmem:[%s2298] sm:$0x80]
    %vm2300 = vcmask 1047559
    %v2301 = vsel %vm2300, %v2299, %v2297
    %2302 = vrot.lane.b32.xlu0 %v2301, 48
    %v2303 = vpop.permute.xlu0 %2302
    %vm2304 = vcmask 523648
    %s2305 = scalar_lea.vmem [#allocation0], 64
    %2306 = vst.msk [vmem:[%s2305] sm:$0x3] %vm2304, %v2303
    %s2307 = scalar_lea.vmem [#allocation0], 70
    %2308 = vst.msk [vmem:[%s2307] sm:$0xc] %vm2304, %v2303
    %s2309 = scalar_lea.vmem [#allocation0], 76
    %2310 = vst.msk [vmem:[%s2309] sm:$0x30] %vm2304, %v2303
    %s2311 = scalar_lea.vmem [#allocation0], 82
    %2312 = vst.msk [vmem:[%s2311] sm:$0xc0] %vm2304, %v2303
    %s2313 = scalar_lea.vmem %s0, 99
    %v2314 = vld [vmem:[%s2313] sm:$0x1]
    %s2315 = scalar_lea.vmem %s0, 1115
    %s2316 = smov 6
    %v2317 = vld [vmem:[%s2315] ss:$-504 sm:%s2316]
    %vm2318 = vcmask 1042433
    %v2319 = vsel %vm2318, %v2317, %v2314
    %s2320 = scalar_lea.vmem %s0, 2131
    %s2321 = smov 24
    %v2322 = vld [vmem:[%s2320] ss:$-504 sm:%s2321]
    %vm2323 = vcmask 1044483
    %v2324 = vsel %vm2323, %v2322, %v2319
    %s2325 = scalar_lea.vmem %s0, 3147
    %s2326 = smov 96
    %v2327 = vld [vmem:[%s2325] ss:$-504 sm:%s2326]
    %vm2328 = vcmask 1046533
    %v2329 = vsel %vm2328, %v2327, %v2324
    %s2330 = scalar_lea.vmem %s0, 628
    %v2331 = vld [vmem:[%s2330] sm:$0x80]
    %vm2332 = vcmask 1047559
    %v2333 = vsel %vm2332, %v2331, %v2329
    %2334 = vrot.lane.b32.xlu0 %v2333, 48
    %v2335 = vpop.permute.xlu0 %2334
    %vm2336 = vcmask 523648
    %s2337 = scalar_lea.vmem [#allocation0], 96
    %2338 = vst.msk [vmem:[%s2337] sm:$0x3] %vm2336, %v2335
    %s2339 = scalar_lea.vmem [#allocation0], 102
    %2340 = vst.msk [vmem:[%s2339] sm:$0xc] %vm2336, %v2335
    %s2341 = scalar_lea.vmem [#allocation0], 108
    %2342 = vst.msk [vmem:[%s2341] sm:$0x30] %vm2336, %v2335
    %s2343 = scalar_lea.vmem [#allocation0], 114
    %2344 = vst.msk [vmem:[%s2343] sm:$0xc0] %vm2336, %v2335
    %s2345 = scalar_lea.vmem %s0, 131
    %v2346 = vld [vmem:[%s2345] sm:$0x1]
    %s2347 = scalar_lea.vmem %s0, 1147
    %s2348 = smov 6
    %v2349 = vld [vmem:[%s2347] ss:$-504 sm:%s2348]
    %vm2350 = vcmask 1042433
    %v2351 = vsel %vm2350, %v2349, %v2346
    %s2352 = scalar_lea.vmem %s0, 2163
    %s2353 = smov 24
    %v2354 = vld [vmem:[%s2352] ss:$-504 sm:%s2353]
    %vm2355 = vcmask 1044483
    %v2356 = vsel %vm2355, %v2354, %v2351
    %s2357 = scalar_lea.vmem %s0, 3179
    %s2358 = smov 96
    %v2359 = vld [vmem:[%s2357] ss:$-504 sm:%s2358]
    %vm2360 = vcmask 1046533
    %v2361 = vsel %vm2360, %v2359, %v2356
    %s2362 = scalar_lea.vmem %s0, 660
    %v2363 = vld [vmem:[%s2362] sm:$0x80]
    %vm2364 = vcmask 1047559
    %v2365 = vsel %vm2364, %v2363, %v2361
    %2366 = vrot.lane.b32.xlu0 %v2365, 48
    %v2367 = vpop.permute.xlu0 %2366
    %vm2368 = vcmask 523648
    %s2369 = scalar_lea.vmem [#allocation0], 128
    %2370 = vst.msk [vmem:[%s2369] sm:$0x3] %vm2368, %v2367
    %s2371 = scalar_lea.vmem [#allocation0], 134
    %2372 = vst.msk [vmem:[%s2371] sm:$0xc] %vm2368, %v2367
    %s2373 = scalar_lea.vmem [#allocation0], 140
    %2374 = vst.msk [vmem:[%s2373] sm:$0x30] %vm2368, %v2367
    %s2375 = scalar_lea.vmem [#allocation0], 146
    %2376 = vst.msk [vmem:[%s2375] sm:$0xc0] %vm2368, %v2367
    %s2377 = scalar_lea.vmem %s0, 163
    %v2378 = vld [vmem:[%s2377] sm:$0x1]
    %s2379 = scalar_lea.vmem %s0, 1179
    %s2380 = smov 6
    %v2381 = vld [vmem:[%s2379] ss:$-504 sm:%s2380]
    %vm2382 = vcmask 1042433
    %v2383 = vsel %vm2382, %v2381, %v2378
    %s2384 = scalar_lea.vmem %s0, 2195
    %s2385 = smov 24
    %v2386 = vld [vmem:[%s2384] ss:$-504 sm:%s2385]
    %vm2387 = vcmask 1044483
    %v2388 = vsel %vm2387, %v2386, %v2383
    %s2389 = scalar_lea.vmem %s0, 3211
    %s2390 = smov 96
    %v2391 = vld [vmem:[%s2389] ss:$-504 sm:%s2390]
    %vm2392 = vcmask 1046533
    %v2393 = vsel %vm2392, %v2391, %v2388
    %s2394 = scalar_lea.vmem %s0, 692
    %v2395 = vld [vmem:[%s2394] sm:$0x80]
    %vm2396 = vcmask 1047559
    %v2397 = vsel %vm2396, %v2395, %v2393
    %2398 = vrot.lane.b32.xlu0 %v2397, 48
    %v2399 = vpop.permute.xlu0 %2398
    %vm2400 = vcmask 523648
    %s2401 = scalar_lea.vmem [#allocation0], 160
    %2402 = vst.msk [vmem:[%s2401] sm:$0x3] %vm2400, %v2399
    %s2403 = scalar_lea.vmem [#allocation0], 166
    %2404 = vst.msk [vmem:[%s2403] sm:$0xc] %vm2400, %v2399
    %s2405 = scalar_lea.vmem [#allocation0], 172
    %2406 = vst.msk [vmem:[%s2405] sm:$0x30] %vm2400, %v2399
    %s2407 = scalar_lea.vmem [#allocation0], 178
    %2408 = vst.msk [vmem:[%s2407] sm:$0xc0] %vm2400, %v2399
    %s2409 = scalar_lea.vmem %s0, 195
    %v2410 = vld [vmem:[%s2409] sm:$0x1]
    %s2411 = scalar_lea.vmem %s0, 1211
    %s2412 = smov 6
    %v2413 = vld [vmem:[%s2411] ss:$-504 sm:%s2412]
    %vm2414 = vcmask 1042433
    %v2415 = vsel %vm2414, %v2413, %v2410
    %s2416 = scalar_lea.vmem %s0, 2227
    %s2417 = smov 24
    %v2418 = vld [vmem:[%s2416] ss:$-504 sm:%s2417]
    %vm2419 = vcmask 1044483
    %v2420 = vsel %vm2419, %v2418, %v2415
    %s2421 = scalar_lea.vmem %s0, 3243
    %s2422 = smov 96
    %v2423 = vld [vmem:[%s2421] ss:$-504 sm:%s2422]
    %vm2424 = vcmask 1046533
    %v2425 = vsel %vm2424, %v2423, %v2420
    %s2426 = scalar_lea.vmem %s0, 724
    %v2427 = vld [vmem:[%s2426] sm:$0x80]
    %vm2428 = vcmask 1047559
    %v2429 = vsel %vm2428, %v2427, %v2425
    %2430 = vrot.lane.b32.xlu0 %v2429, 48
    %v2431 = vpop.permute.xlu0 %2430
    %vm2432 = vcmask 523648
    %s2433 = scalar_lea.vmem [#allocation0], 192
    %2434 = vst.msk [vmem:[%s2433] sm:$0x3] %vm2432, %v2431
    %s2435 = scalar_lea.vmem [#allocation0], 198
    %2436 = vst.msk [vmem:[%s2435] sm:$0xc] %vm2432, %v2431
    %s2437 = scalar_lea.vmem [#allocation0], 204
    %2438 = vst.msk [vmem:[%s2437] sm:$0x30] %vm2432, %v2431
    %s2439 = scalar_lea.vmem [#allocation0], 210
    %2440 = vst.msk [vmem:[%s2439] sm:$0xc0] %vm2432, %v2431
    %s2441 = scalar_lea.vmem %s0, 227
    %v2442 = vld [vmem:[%s2441] sm:$0x1]
    %s2443 = scalar_lea.vmem %s0, 1243
    %s2444 = smov 6
    %v2445 = vld [vmem:[%s2443] ss:$-504 sm:%s2444]
    %vm2446 = vcmask 1042433
    %v2447 = vsel %vm2446, %v2445, %v2442
    %s2448 = scalar_lea.vmem %s0, 2259
    %s2449 = smov 24
    %v2450 = vld [vmem:[%s2448] ss:$-504 sm:%s2449]
    %vm2451 = vcmask 1044483
    %v2452 = vsel %vm2451, %v2450, %v2447
    %s2453 = scalar_lea.vmem %s0, 3275
    %s2454 = smov 96
    %v2455 = vld [vmem:[%s2453] ss:$-504 sm:%s2454]
    %vm2456 = vcmask 1046533
    %v2457 = vsel %vm2456, %v2455, %v2452
    %s2458 = scalar_lea.vmem %s0, 756
    %v2459 = vld [vmem:[%s2458] sm:$0x80]
    %vm2460 = vcmask 1047559
    %v2461 = vsel %vm2460, %v2459, %v2457
    %2462 = vrot.lane.b32.xlu0 %v2461, 48
    %v2463 = vpop.permute.xlu0 %2462
    %vm2464 = vcmask 523648
    %s2465 = scalar_lea.vmem [#allocation0], 224
    %2466 = vst.msk [vmem:[%s2465] sm:$0x3] %vm2464, %v2463
    %s2467 = scalar_lea.vmem [#allocation0], 230
    %2468 = vst.msk [vmem:[%s2467] sm:$0xc] %vm2464, %v2463
    %s2469 = scalar_lea.vmem [#allocation0], 236
    %2470 = vst.msk [vmem:[%s2469] sm:$0x30] %vm2464, %v2463
    %s2471 = scalar_lea.vmem [#allocation0], 242
    %2472 = vst.msk [vmem:[%s2471] sm:$0xc0] %vm2464, %v2463
    %s2473 = scalar_lea.vmem %s0, 259
    %v2474 = vld [vmem:[%s2473] sm:$0x1]
    %s2475 = scalar_lea.vmem %s0, 1275
    %s2476 = smov 6
    %v2477 = vld [vmem:[%s2475] ss:$-504 sm:%s2476]
    %vm2478 = vcmask 1042433
    %v2479 = vsel %vm2478, %v2477, %v2474
    %s2480 = scalar_lea.vmem %s0, 2291
    %s2481 = smov 24
    %v2482 = vld [vmem:[%s2480] ss:$-504 sm:%s2481]
    %vm2483 = vcmask 1044483
    %v2484 = vsel %vm2483, %v2482, %v2479
    %s2485 = scalar_lea.vmem %s0, 3307
    %s2486 = smov 96
    %v2487 = vld [vmem:[%s2485] ss:$-504 sm:%s2486]
    %vm2488 = vcmask 1046533
    %v2489 = vsel %vm2488, %v2487, %v2484
    %s2490 = scalar_lea.vmem %s0, 788
    %v2491 = vld [vmem:[%s2490] sm:$0x80]
    %vm2492 = vcmask 1047559
    %v2493 = vsel %vm2492, %v2491, %v2489
    %2494 = vrot.lane.b32.xlu0 %v2493, 48
    %v2495 = vpop.permute.xlu0 %2494
    %vm2496 = vcmask 523648
    %s2497 = scalar_lea.vmem [#allocation0], 256
    %2498 = vst.msk [vmem:[%s2497] sm:$0x3] %vm2496, %v2495
    %s2499 = scalar_lea.vmem [#allocation0], 262
    %2500 = vst.msk [vmem:[%s2499] sm:$0xc] %vm2496, %v2495
    %s2501 = scalar_lea.vmem [#allocation0], 268
    %2502 = vst.msk [vmem:[%s2501] sm:$0x30] %vm2496, %v2495
    %s2503 = scalar_lea.vmem [#allocation0], 274
    %2504 = vst.msk [vmem:[%s2503] sm:$0xc0] %vm2496, %v2495
    %s2505 = scalar_lea.vmem %s0, 291
    %v2506 = vld [vmem:[%s2505] sm:$0x1]
    %s2507 = scalar_lea.vmem %s0, 1307
    %s2508 = smov 6
    %v2509 = vld [vmem:[%s2507] ss:$-504 sm:%s2508]
    %vm2510 = vcmask 1042433
    %v2511 = vsel %vm2510, %v2509, %v2506
    %s2512 = scalar_lea.vmem %s0, 2323
    %s2513 = smov 24
    %v2514 = vld [vmem:[%s2512] ss:$-504 sm:%s2513]
    %vm2515 = vcmask 1044483
    %v2516 = vsel %vm2515, %v2514, %v2511
    %s2517 = scalar_lea.vmem %s0, 3339
    %s2518 = smov 96
    %v2519 = vld [vmem:[%s2517] ss:$-504 sm:%s2518]
    %vm2520 = vcmask 1046533
    %v2521 = vsel %vm2520, %v2519, %v2516
    %s2522 = scalar_lea.vmem %s0, 820
    %v2523 = vld [vmem:[%s2522] sm:$0x80]
    %vm2524 = vcmask 1047559
    %v2525 = vsel %vm2524, %v2523, %v2521
    %2526 = vrot.lane.b32.xlu0 %v2525, 48
    %v2527 = vpop.permute.xlu0 %2526
    %vm2528 = vcmask 523648
    %s2529 = scalar_lea.vmem [#allocation0], 288
    %2530 = vst.msk [vmem:[%s2529] sm:$0x3] %vm2528, %v2527
    %s2531 = scalar_lea.vmem [#allocation0], 294
    %2532 = vst.msk [vmem:[%s2531] sm:$0xc] %vm2528, %v2527
    %s2533 = scalar_lea.vmem [#allocation0], 300
    %2534 = vst.msk [vmem:[%s2533] sm:$0x30] %vm2528, %v2527
    %s2535 = scalar_lea.vmem [#allocation0], 306
    %2536 = vst.msk [vmem:[%s2535] sm:$0xc0] %vm2528, %v2527
    %s2537 = scalar_lea.vmem %s0, 323
    %v2538 = vld [vmem:[%s2537] sm:$0x1]
    %s2539 = scalar_lea.vmem %s0, 1339
    %s2540 = smov 6
    %v2541 = vld [vmem:[%s2539] ss:$-504 sm:%s2540]
    %vm2542 = vcmask 1042433
    %v2543 = vsel %vm2542, %v2541, %v2538
    %s2544 = scalar_lea.vmem %s0, 2355
    %s2545 = smov 24
    %v2546 = vld [vmem:[%s2544] ss:$-504 sm:%s2545]
    %vm2547 = vcmask 1044483
    %v2548 = vsel %vm2547, %v2546, %v2543
    %s2549 = scalar_lea.vmem %s0, 3371
    %s2550 = smov 96
    %v2551 = vld [vmem:[%s2549] ss:$-504 sm:%s2550]
    %vm2552 = vcmask 1046533
    %v2553 = vsel %vm2552, %v2551, %v2548
    %s2554 = scalar_lea.vmem %s0, 852
    %v2555 = vld [vmem:[%s2554] sm:$0x80]
    %vm2556 = vcmask 1047559
    %v2557 = vsel %vm2556, %v2555, %v2553
    %2558 = vrot.lane.b32.xlu0 %v2557, 48
    %v2559 = vpop.permute.xlu0 %2558
    %vm2560 = vcmask 523648
    %s2561 = scalar_lea.vmem [#allocation0], 320
    %2562 = vst.msk [vmem:[%s2561] sm:$0x3] %vm2560, %v2559
    %s2563 = scalar_lea.vmem [#allocation0], 326
    %2564 = vst.msk [vmem:[%s2563] sm:$0xc] %vm2560, %v2559
    %s2565 = scalar_lea.vmem [#allocation0], 332
    %2566 = vst.msk [vmem:[%s2565] sm:$0x30] %vm2560, %v2559
    %s2567 = scalar_lea.vmem [#allocation0], 338
    %2568 = vst.msk [vmem:[%s2567] sm:$0xc0] %vm2560, %v2559
    %s2569 = scalar_lea.vmem %s0, 355
    %v2570 = vld [vmem:[%s2569] sm:$0x1]
    %s2571 = scalar_lea.vmem %s0, 1371
    %s2572 = smov 6
    %v2573 = vld [vmem:[%s2571] ss:$-504 sm:%s2572]
    %vm2574 = vcmask 1042433
    %v2575 = vsel %vm2574, %v2573, %v2570
    %s2576 = scalar_lea.vmem %s0, 2387
    %s2577 = smov 24
    %v2578 = vld [vmem:[%s2576] ss:$-504 sm:%s2577]
    %vm2579 = vcmask 1044483
    %v2580 = vsel %vm2579, %v2578, %v2575
    %s2581 = scalar_lea.vmem %s0, 3403
    %s2582 = smov 96
    %v2583 = vld [vmem:[%s2581] ss:$-504 sm:%s2582]
    %vm2584 = vcmask 1046533
    %v2585 = vsel %vm2584, %v2583, %v2580
    %s2586 = scalar_lea.vmem %s0, 884
    %v2587 = vld [vmem:[%s2586] sm:$0x80]
    %vm2588 = vcmask 1047559
    %v2589 = vsel %vm2588, %v2587, %v2585
    %2590 = vrot.lane.b32.xlu0 %v2589, 48
    %v2591 = vpop.permute.xlu0 %2590
    %vm2592 = vcmask 523648
    %s2593 = scalar_lea.vmem [#allocation0], 352
    %2594 = vst.msk [vmem:[%s2593] sm:$0x3] %vm2592, %v2591
    %s2595 = scalar_lea.vmem [#allocation0], 358
    %2596 = vst.msk [vmem:[%s2595] sm:$0xc] %vm2592, %v2591
    %s2597 = scalar_lea.vmem [#allocation0], 364
    %2598 = vst.msk [vmem:[%s2597] sm:$0x30] %vm2592, %v2591
    %s2599 = scalar_lea.vmem [#allocation0], 370
    %2600 = vst.msk [vmem:[%s2599] sm:$0xc0] %vm2592, %v2591
    %s2601 = scalar_lea.vmem %s0, 387
    %v2602 = vld [vmem:[%s2601] sm:$0x1]
    %s2603 = scalar_lea.vmem %s0, 1403
    %s2604 = smov 6
    %v2605 = vld [vmem:[%s2603] ss:$-504 sm:%s2604]
    %vm2606 = vcmask 1042433
    %v2607 = vsel %vm2606, %v2605, %v2602
    %s2608 = scalar_lea.vmem %s0, 2419
    %s2609 = smov 24
    %v2610 = vld [vmem:[%s2608] ss:$-504 sm:%s2609]
    %vm2611 = vcmask 1044483
    %v2612 = vsel %vm2611, %v2610, %v2607
    %s2613 = scalar_lea.vmem %s0, 3435
    %s2614 = smov 96
    %v2615 = vld [vmem:[%s2613] ss:$-504 sm:%s2614]
    %vm2616 = vcmask 1046533
    %v2617 = vsel %vm2616, %v2615, %v2612
    %s2618 = scalar_lea.vmem %s0, 916
    %v2619 = vld [vmem:[%s2618] sm:$0x80]
    %vm2620 = vcmask 1047559
    %v2621 = vsel %vm2620, %v2619, %v2617
    %2622 = vrot.lane.b32.xlu0 %v2621, 48
    %v2623 = vpop.permute.xlu0 %2622
    %vm2624 = vcmask 523648
    %s2625 = scalar_lea.vmem [#allocation0], 384
    %2626 = vst.msk [vmem:[%s2625] sm:$0x3] %vm2624, %v2623
    %s2627 = scalar_lea.vmem [#allocation0], 390
    %2628 = vst.msk [vmem:[%s2627] sm:$0xc] %vm2624, %v2623
    %s2629 = scalar_lea.vmem [#allocation0], 396
    %2630 = vst.msk [vmem:[%s2629] sm:$0x30] %vm2624, %v2623
    %s2631 = scalar_lea.vmem [#allocation0], 402
    %2632 = vst.msk [vmem:[%s2631] sm:$0xc0] %vm2624, %v2623
    %s2633 = scalar_lea.vmem %s0, 419
    %v2634 = vld [vmem:[%s2633] sm:$0x1]
    %s2635 = scalar_lea.vmem %s0, 1435
    %s2636 = smov 6
    %v2637 = vld [vmem:[%s2635] ss:$-504 sm:%s2636]
    %vm2638 = vcmask 1042433
    %v2639 = vsel %vm2638, %v2637, %v2634
    %s2640 = scalar_lea.vmem %s0, 2451
    %s2641 = smov 24
    %v2642 = vld [vmem:[%s2640] ss:$-504 sm:%s2641]
    %vm2643 = vcmask 1044483
    %v2644 = vsel %vm2643, %v2642, %v2639
    %s2645 = scalar_lea.vmem %s0, 3467
    %s2646 = smov 96
    %v2647 = vld [vmem:[%s2645] ss:$-504 sm:%s2646]
    %vm2648 = vcmask 1046533
    %v2649 = vsel %vm2648, %v2647, %v2644
    %s2650 = scalar_lea.vmem %s0, 948
    %v2651 = vld [vmem:[%s2650] sm:$0x80]
    %vm2652 = vcmask 1047559
    %v2653 = vsel %vm2652, %v2651, %v2649
    %2654 = vrot.lane.b32.xlu0 %v2653, 48
    %v2655 = vpop.permute.xlu0 %2654
    %vm2656 = vcmask 523648
    %s2657 = scalar_lea.vmem [#allocation0], 416
    %2658 = vst.msk [vmem:[%s2657] sm:$0x3] %vm2656, %v2655
    %s2659 = scalar_lea.vmem [#allocation0], 422
    %2660 = vst.msk [vmem:[%s2659] sm:$0xc] %vm2656, %v2655
    %s2661 = scalar_lea.vmem [#allocation0], 428
    %2662 = vst.msk [vmem:[%s2661] sm:$0x30] %vm2656, %v2655
    %s2663 = scalar_lea.vmem [#allocation0], 434
    %2664 = vst.msk [vmem:[%s2663] sm:$0xc0] %vm2656, %v2655
    %s2665 = scalar_lea.vmem %s0, 451
    %v2666 = vld [vmem:[%s2665] sm:$0x1]
    %s2667 = scalar_lea.vmem %s0, 1467
    %s2668 = smov 6
    %v2669 = vld [vmem:[%s2667] ss:$-504 sm:%s2668]
    %vm2670 = vcmask 1042433
    %v2671 = vsel %vm2670, %v2669, %v2666
    %s2672 = scalar_lea.vmem %s0, 2483
    %s2673 = smov 24
    %v2674 = vld [vmem:[%s2672] ss:$-504 sm:%s2673]
    %vm2675 = vcmask 1044483
    %v2676 = vsel %vm2675, %v2674, %v2671
    %s2677 = scalar_lea.vmem %s0, 3499
    %s2678 = smov 96
    %v2679 = vld [vmem:[%s2677] ss:$-504 sm:%s2678]
    %vm2680 = vcmask 1046533
    %v2681 = vsel %vm2680, %v2679, %v2676
    %s2682 = scalar_lea.vmem %s0, 980
    %v2683 = vld [vmem:[%s2682] sm:$0x80]
    %vm2684 = vcmask 1047559
    %v2685 = vsel %vm2684, %v2683, %v2681
    %2686 = vrot.lane.b32.xlu0 %v2685, 48
    %v2687 = vpop.permute.xlu0 %2686
    %vm2688 = vcmask 523648
    %s2689 = scalar_lea.vmem [#allocation0], 448
    %2690 = vst.msk [vmem:[%s2689] sm:$0x3] %vm2688, %v2687
    %s2691 = scalar_lea.vmem [#allocation0], 454
    %2692 = vst.msk [vmem:[%s2691] sm:$0xc] %vm2688, %v2687
    %s2693 = scalar_lea.vmem [#allocation0], 460
    %2694 = vst.msk [vmem:[%s2693] sm:$0x30] %vm2688, %v2687
    %s2695 = scalar_lea.vmem [#allocation0], 466
    %2696 = vst.msk [vmem:[%s2695] sm:$0xc0] %vm2688, %v2687
    %s2697 = scalar_lea.vmem %s0, 483
    %v2698 = vld [vmem:[%s2697] sm:$0x1]
    %s2699 = scalar_lea.vmem %s0, 1499
    %s2700 = smov 6
    %v2701 = vld [vmem:[%s2699] ss:$-504 sm:%s2700]
    %vm2702 = vcmask 1042433
    %v2703 = vsel %vm2702, %v2701, %v2698
    %s2704 = scalar_lea.vmem %s0, 2515
    %s2705 = smov 24
    %v2706 = vld [vmem:[%s2704] ss:$-504 sm:%s2705]
    %vm2707 = vcmask 1044483
    %v2708 = vsel %vm2707, %v2706, %v2703
    %s2709 = scalar_lea.vmem %s0, 3531
    %s2710 = smov 96
    %v2711 = vld [vmem:[%s2709] ss:$-504 sm:%s2710]
    %vm2712 = vcmask 1046533
    %v2713 = vsel %vm2712, %v2711, %v2708
    %s2714 = scalar_lea.vmem %s0, 1012
    %v2715 = vld [vmem:[%s2714] sm:$0x80]
    %vm2716 = vcmask 1047559
    %v2717 = vsel %vm2716, %v2715, %v2713
    %2718 = vrot.lane.b32.xlu0 %v2717, 48
    %v2719 = vpop.permute.xlu0 %2718
    %vm2720 = vcmask 523648
    %s2721 = scalar_lea.vmem [#allocation0], 480
    %2722 = vst.msk [vmem:[%s2721] sm:$0x3] %vm2720, %v2719
    %s2723 = scalar_lea.vmem [#allocation0], 486
    %2724 = vst.msk [vmem:[%s2723] sm:$0xc] %vm2720, %v2719
    %s2725 = scalar_lea.vmem [#allocation0], 492
    %2726 = vst.msk [vmem:[%s2725] sm:$0x30] %vm2720, %v2719
    %s2727 = scalar_lea.vmem [#allocation0], 498
    %2728 = vst.msk [vmem:[%s2727] sm:$0xc0] %vm2720, %v2719
    %s2729 = scalar_lea.vmem %s0, 2
    %v2730 = vld [vmem:[%s2729] sm:$0x1]
    %s2731 = scalar_lea.vmem %s0, 1018
    %s2732 = smov 6
    %v2733 = vld [vmem:[%s2731] ss:$-504 sm:%s2732]
    %vm2734 = vcmask 1042433
    %v2735 = vsel %vm2734, %v2733, %v2730
    %s2736 = scalar_lea.vmem %s0, 2034
    %s2737 = smov 24
    %v2738 = vld [vmem:[%s2736] ss:$-504 sm:%s2737]
    %vm2739 = vcmask 1044483
    %v2740 = vsel %vm2739, %v2738, %v2735
    %s2741 = scalar_lea.vmem %s0, 3050
    %s2742 = smov 96
    %v2743 = vld [vmem:[%s2741] ss:$-504 sm:%s2742]
    %vm2744 = vcmask 1046533
    %v2745 = vsel %vm2744, %v2743, %v2740
    %s2746 = scalar_lea.vmem %s0, 531
    %v2747 = vld [vmem:[%s2746] sm:$0x80]
    %vm2748 = vcmask 1047559
    %v2749 = vsel %vm2748, %v2747, %v2745
    %2750 = vrot.lane.b32.xlu0 %v2749, 32
    %v2751 = vpop.permute.xlu0 %2750
    %vm2752 = vcmask 392448
    %2753 = vst.msk [vmem:[#allocation0] sm:$0x3] %vm2752, %v2751
    %s2754 = scalar_lea.vmem [#allocation0], 6
    %2755 = vst.msk [vmem:[%s2754] sm:$0xc] %vm2752, %v2751
    %s2756 = scalar_lea.vmem [#allocation0], 12
    %2757 = vst.msk [vmem:[%s2756] sm:$0x30] %vm2752, %v2751
    %s2758 = scalar_lea.vmem [#allocation0], 18
    %2759 = vst.msk [vmem:[%s2758] sm:$0xc0] %vm2752, %v2751
    %s2760 = scalar_lea.vmem %s0, 34
    %v2761 = vld [vmem:[%s2760] sm:$0x1]
    %s2762 = scalar_lea.vmem %s0, 1050
    %s2763 = smov 6
    %v2764 = vld [vmem:[%s2762] ss:$-504 sm:%s2763]
    %vm2765 = vcmask 1042433
    %v2766 = vsel %vm2765, %v2764, %v2761
    %s2767 = scalar_lea.vmem %s0, 2066
    %s2768 = smov 24
    %v2769 = vld [vmem:[%s2767] ss:$-504 sm:%s2768]
    %vm2770 = vcmask 1044483
    %v2771 = vsel %vm2770, %v2769, %v2766
    %s2772 = scalar_lea.vmem %s0, 3082
    %s2773 = smov 96
    %v2774 = vld [vmem:[%s2772] ss:$-504 sm:%s2773]
    %vm2775 = vcmask 1046533
    %v2776 = vsel %vm2775, %v2774, %v2771
    %s2777 = scalar_lea.vmem %s0, 563
    %v2778 = vld [vmem:[%s2777] sm:$0x80]
    %vm2779 = vcmask 1047559
    %v2780 = vsel %vm2779, %v2778, %v2776
    %2781 = vrot.lane.b32.xlu0 %v2780, 32
    %v2782 = vpop.permute.xlu0 %2781
    %vm2783 = vcmask 392448
    %s2784 = scalar_lea.vmem [#allocation0], 32
    %2785 = vst.msk [vmem:[%s2784] sm:$0x3] %vm2783, %v2782
    %s2786 = scalar_lea.vmem [#allocation0], 38
    %2787 = vst.msk [vmem:[%s2786] sm:$0xc] %vm2783, %v2782
    %s2788 = scalar_lea.vmem [#allocation0], 44
    %2789 = vst.msk [vmem:[%s2788] sm:$0x30] %vm2783, %v2782
    %s2790 = scalar_lea.vmem [#allocation0], 50
    %2791 = vst.msk [vmem:[%s2790] sm:$0xc0] %vm2783, %v2782
    %s2792 = scalar_lea.vmem %s0, 66
    %v2793 = vld [vmem:[%s2792] sm:$0x1]
    %s2794 = scalar_lea.vmem %s0, 1082
    %s2795 = smov 6
    %v2796 = vld [vmem:[%s2794] ss:$-504 sm:%s2795]
    %vm2797 = vcmask 1042433
    %v2798 = vsel %vm2797, %v2796, %v2793
    %s2799 = scalar_lea.vmem %s0, 2098
    %s2800 = smov 24
    %v2801 = vld [vmem:[%s2799] ss:$-504 sm:%s2800]
    %vm2802 = vcmask 1044483
    %v2803 = vsel %vm2802, %v2801, %v2798
    %s2804 = scalar_lea.vmem %s0, 3114
    %s2805 = smov 96
    %v2806 = vld [vmem:[%s2804] ss:$-504 sm:%s2805]
    %vm2807 = vcmask 1046533
    %v2808 = vsel %vm2807, %v2806, %v2803
    %s2809 = scalar_lea.vmem %s0, 595
    %v2810 = vld [vmem:[%s2809] sm:$0x80]
    %vm2811 = vcmask 1047559
    %v2812 = vsel %vm2811, %v2810, %v2808
    %2813 = vrot.lane.b32.xlu0 %v2812, 32
    %v2814 = vpop.permute.xlu0 %2813
    %vm2815 = vcmask 392448
    %s2816 = scalar_lea.vmem [#allocation0], 64
    %2817 = vst.msk [vmem:[%s2816] sm:$0x3] %vm2815, %v2814
    %s2818 = scalar_lea.vmem [#allocation0], 70
    %2819 = vst.msk [vmem:[%s2818] sm:$0xc] %vm2815, %v2814
    %s2820 = scalar_lea.vmem [#allocation0], 76
    %2821 = vst.msk [vmem:[%s2820] sm:$0x30] %vm2815, %v2814
    %s2822 = scalar_lea.vmem [#allocation0], 82
    %2823 = vst.msk [vmem:[%s2822] sm:$0xc0] %vm2815, %v2814
    %s2824 = scalar_lea.vmem %s0, 98
    %v2825 = vld [vmem:[%s2824] sm:$0x1]
    %s2826 = scalar_lea.vmem %s0, 1114
    %s2827 = smov 6
    %v2828 = vld [vmem:[%s2826] ss:$-504 sm:%s2827]
    %vm2829 = vcmask 1042433
    %v2830 = vsel %vm2829, %v2828, %v2825
    %s2831 = scalar_lea.vmem %s0, 2130
    %s2832 = smov 24
    %v2833 = vld [vmem:[%s2831] ss:$-504 sm:%s2832]
    %vm2834 = vcmask 1044483
    %v2835 = vsel %vm2834, %v2833, %v2830
    %s2836 = scalar_lea.vmem %s0, 3146
    %s2837 = smov 96
    %v2838 = vld [vmem:[%s2836] ss:$-504 sm:%s2837]
    %vm2839 = vcmask 1046533
    %v2840 = vsel %vm2839, %v2838, %v2835
    %s2841 = scalar_lea.vmem %s0, 627
    %v2842 = vld [vmem:[%s2841] sm:$0x80]
    %vm2843 = vcmask 1047559
    %v2844 = vsel %vm2843, %v2842, %v2840
    %2845 = vrot.lane.b32.xlu0 %v2844, 32
    %v2846 = vpop.permute.xlu0 %2845
    %vm2847 = vcmask 392448
    %s2848 = scalar_lea.vmem [#allocation0], 96
    %2849 = vst.msk [vmem:[%s2848] sm:$0x3] %vm2847, %v2846
    %s2850 = scalar_lea.vmem [#allocation0], 102
    %2851 = vst.msk [vmem:[%s2850] sm:$0xc] %vm2847, %v2846
    %s2852 = scalar_lea.vmem [#allocation0], 108
    %2853 = vst.msk [vmem:[%s2852] sm:$0x30] %vm2847, %v2846
    %s2854 = scalar_lea.vmem [#allocation0], 114
    %2855 = vst.msk [vmem:[%s2854] sm:$0xc0] %vm2847, %v2846
    %s2856 = scalar_lea.vmem %s0, 130
    %v2857 = vld [vmem:[%s2856] sm:$0x1]
    %s2858 = scalar_lea.vmem %s0, 1146
    %s2859 = smov 6
    %v2860 = vld [vmem:[%s2858] ss:$-504 sm:%s2859]
    %vm2861 = vcmask 1042433
    %v2862 = vsel %vm2861, %v2860, %v2857
    %s2863 = scalar_lea.vmem %s0, 2162
    %s2864 = smov 24
    %v2865 = vld [vmem:[%s2863] ss:$-504 sm:%s2864]
    %vm2866 = vcmask 1044483
    %v2867 = vsel %vm2866, %v2865, %v2862
    %s2868 = scalar_lea.vmem %s0, 3178
    %s2869 = smov 96
    %v2870 = vld [vmem:[%s2868] ss:$-504 sm:%s2869]
    %vm2871 = vcmask 1046533
    %v2872 = vsel %vm2871, %v2870, %v2867
    %s2873 = scalar_lea.vmem %s0, 659
    %v2874 = vld [vmem:[%s2873] sm:$0x80]
    %vm2875 = vcmask 1047559
    %v2876 = vsel %vm2875, %v2874, %v2872
    %2877 = vrot.lane.b32.xlu0 %v2876, 32
    %v2878 = vpop.permute.xlu0 %2877
    %vm2879 = vcmask 392448
    %s2880 = scalar_lea.vmem [#allocation0], 128
    %2881 = vst.msk [vmem:[%s2880] sm:$0x3] %vm2879, %v2878
    %s2882 = scalar_lea.vmem [#allocation0], 134
    %2883 = vst.msk [vmem:[%s2882] sm:$0xc] %vm2879, %v2878
    %s2884 = scalar_lea.vmem [#allocation0], 140
    %2885 = vst.msk [vmem:[%s2884] sm:$0x30] %vm2879, %v2878
    %s2886 = scalar_lea.vmem [#allocation0], 146
    %2887 = vst.msk [vmem:[%s2886] sm:$0xc0] %vm2879, %v2878
    %s2888 = scalar_lea.vmem %s0, 162
    %v2889 = vld [vmem:[%s2888] sm:$0x1]
    %s2890 = scalar_lea.vmem %s0, 1178
    %s2891 = smov 6
    %v2892 = vld [vmem:[%s2890] ss:$-504 sm:%s2891]
    %vm2893 = vcmask 1042433
    %v2894 = vsel %vm2893, %v2892, %v2889
    %s2895 = scalar_lea.vmem %s0, 2194
    %s2896 = smov 24
    %v2897 = vld [vmem:[%s2895] ss:$-504 sm:%s2896]
    %vm2898 = vcmask 1044483
    %v2899 = vsel %vm2898, %v2897, %v2894
    %s2900 = scalar_lea.vmem %s0, 3210
    %s2901 = smov 96
    %v2902 = vld [vmem:[%s2900] ss:$-504 sm:%s2901]
    %vm2903 = vcmask 1046533
    %v2904 = vsel %vm2903, %v2902, %v2899
    %s2905 = scalar_lea.vmem %s0, 691
    %v2906 = vld [vmem:[%s2905] sm:$0x80]
    %vm2907 = vcmask 1047559
    %v2908 = vsel %vm2907, %v2906, %v2904
    %2909 = vrot.lane.b32.xlu0 %v2908, 32
    %v2910 = vpop.permute.xlu0 %2909
    %vm2911 = vcmask 392448
    %s2912 = scalar_lea.vmem [#allocation0], 160
    %2913 = vst.msk [vmem:[%s2912] sm:$0x3] %vm2911, %v2910
    %s2914 = scalar_lea.vmem [#allocation0], 166
    %2915 = vst.msk [vmem:[%s2914] sm:$0xc] %vm2911, %v2910
    %s2916 = scalar_lea.vmem [#allocation0], 172
    %2917 = vst.msk [vmem:[%s2916] sm:$0x30] %vm2911, %v2910
    %s2918 = scalar_lea.vmem [#allocation0], 178
    %2919 = vst.msk [vmem:[%s2918] sm:$0xc0] %vm2911, %v2910
    %s2920 = scalar_lea.vmem %s0, 194
    %v2921 = vld [vmem:[%s2920] sm:$0x1]
    %s2922 = scalar_lea.vmem %s0, 1210
    %s2923 = smov 6
    %v2924 = vld [vmem:[%s2922] ss:$-504 sm:%s2923]
    %vm2925 = vcmask 1042433
    %v2926 = vsel %vm2925, %v2924, %v2921
    %s2927 = scalar_lea.vmem %s0, 2226
    %s2928 = smov 24
    %v2929 = vld [vmem:[%s2927] ss:$-504 sm:%s2928]
    %vm2930 = vcmask 1044483
    %v2931 = vsel %vm2930, %v2929, %v2926
    %s2932 = scalar_lea.vmem %s0, 3242
    %s2933 = smov 96
    %v2934 = vld [vmem:[%s2932] ss:$-504 sm:%s2933]
    %vm2935 = vcmask 1046533
    %v2936 = vsel %vm2935, %v2934, %v2931
    %s2937 = scalar_lea.vmem %s0, 723
    %v2938 = vld [vmem:[%s2937] sm:$0x80]
    %vm2939 = vcmask 1047559
    %v2940 = vsel %vm2939, %v2938, %v2936
    %2941 = vrot.lane.b32.xlu0 %v2940, 32
    %v2942 = vpop.permute.xlu0 %2941
    %vm2943 = vcmask 392448
    %s2944 = scalar_lea.vmem [#allocation0], 192
    %2945 = vst.msk [vmem:[%s2944] sm:$0x3] %vm2943, %v2942
    %s2946 = scalar_lea.vmem [#allocation0], 198
    %2947 = vst.msk [vmem:[%s2946] sm:$0xc] %vm2943, %v2942
    %s2948 = scalar_lea.vmem [#allocation0], 204
    %2949 = vst.msk [vmem:[%s2948] sm:$0x30] %vm2943, %v2942
    %s2950 = scalar_lea.vmem [#allocation0], 210
    %2951 = vst.msk [vmem:[%s2950] sm:$0xc0] %vm2943, %v2942
    %s2952 = scalar_lea.vmem %s0, 226
    %v2953 = vld [vmem:[%s2952] sm:$0x1]
    %s2954 = scalar_lea.vmem %s0, 1242
    %s2955 = smov 6
    %v2956 = vld [vmem:[%s2954] ss:$-504 sm:%s2955]
    %vm2957 = vcmask 1042433
    %v2958 = vsel %vm2957, %v2956, %v2953
    %s2959 = scalar_lea.vmem %s0, 2258
    %s2960 = smov 24
    %v2961 = vld [vmem:[%s2959] ss:$-504 sm:%s2960]
    %vm2962 = vcmask 1044483
    %v2963 = vsel %vm2962, %v2961, %v2958
    %s2964 = scalar_lea.vmem %s0, 3274
    %s2965 = smov 96
    %v2966 = vld [vmem:[%s2964] ss:$-504 sm:%s2965]
    %vm2967 = vcmask 1046533
    %v2968 = vsel %vm2967, %v2966, %v2963
    %s2969 = scalar_lea.vmem %s0, 755
    %v2970 = vld [vmem:[%s2969] sm:$0x80]
    %vm2971 = vcmask 1047559
    %v2972 = vsel %vm2971, %v2970, %v2968
    %2973 = vrot.lane.b32.xlu0 %v2972, 32
    %v2974 = vpop.permute.xlu0 %2973
    %vm2975 = vcmask 392448
    %s2976 = scalar_lea.vmem [#allocation0], 224
    %2977 = vst.msk [vmem:[%s2976] sm:$0x3] %vm2975, %v2974
    %s2978 = scalar_lea.vmem [#allocation0], 230
    %2979 = vst.msk [vmem:[%s2978] sm:$0xc] %vm2975, %v2974
    %s2980 = scalar_lea.vmem [#allocation0], 236
    %2981 = vst.msk [vmem:[%s2980] sm:$0x30] %vm2975, %v2974
    %s2982 = scalar_lea.vmem [#allocation0], 242
    %2983 = vst.msk [vmem:[%s2982] sm:$0xc0] %vm2975, %v2974
    %s2984 = scalar_lea.vmem %s0, 258
    %v2985 = vld [vmem:[%s2984] sm:$0x1]
    %s2986 = scalar_lea.vmem %s0, 1274
    %s2987 = smov 6
    %v2988 = vld [vmem:[%s2986] ss:$-504 sm:%s2987]
    %vm2989 = vcmask 1042433
    %v2990 = vsel %vm2989, %v2988, %v2985
    %s2991 = scalar_lea.vmem %s0, 2290
    %s2992 = smov 24
    %v2993 = vld [vmem:[%s2991] ss:$-504 sm:%s2992]
    %vm2994 = vcmask 1044483
    %v2995 = vsel %vm2994, %v2993, %v2990
    %s2996 = scalar_lea.vmem %s0, 3306
    %s2997 = smov 96
    %v2998 = vld [vmem:[%s2996] ss:$-504 sm:%s2997]
    %vm2999 = vcmask 1046533
    %v3000 = vsel %vm2999, %v2998, %v2995
    %s3001 = scalar_lea.vmem %s0, 787
    %v3002 = vld [vmem:[%s3001] sm:$0x80]
    %vm3003 = vcmask 1047559
    %v3004 = vsel %vm3003, %v3002, %v3000
    %3005 = vrot.lane.b32.xlu0 %v3004, 32
    %v3006 = vpop.permute.xlu0 %3005
    %vm3007 = vcmask 392448
    %s3008 = scalar_lea.vmem [#allocation0], 256
    %3009 = vst.msk [vmem:[%s3008] sm:$0x3] %vm3007, %v3006
    %s3010 = scalar_lea.vmem [#allocation0], 262
    %3011 = vst.msk [vmem:[%s3010] sm:$0xc] %vm3007, %v3006
    %s3012 = scalar_lea.vmem [#allocation0], 268
    %3013 = vst.msk [vmem:[%s3012] sm:$0x30] %vm3007, %v3006
    %s3014 = scalar_lea.vmem [#allocation0], 274
    %3015 = vst.msk [vmem:[%s3014] sm:$0xc0] %vm3007, %v3006
    %s3016 = scalar_lea.vmem %s0, 290
    %v3017 = vld [vmem:[%s3016] sm:$0x1]
    %s3018 = scalar_lea.vmem %s0, 1306
    %s3019 = smov 6
    %v3020 = vld [vmem:[%s3018] ss:$-504 sm:%s3019]
    %vm3021 = vcmask 1042433
    %v3022 = vsel %vm3021, %v3020, %v3017
    %s3023 = scalar_lea.vmem %s0, 2322
    %s3024 = smov 24
    %v3025 = vld [vmem:[%s3023] ss:$-504 sm:%s3024]
    %vm3026 = vcmask 1044483
    %v3027 = vsel %vm3026, %v3025, %v3022
    %s3028 = scalar_lea.vmem %s0, 3338
    %s3029 = smov 96
    %v3030 = vld [vmem:[%s3028] ss:$-504 sm:%s3029]
    %vm3031 = vcmask 1046533
    %v3032 = vsel %vm3031, %v3030, %v3027
    %s3033 = scalar_lea.vmem %s0, 819
    %v3034 = vld [vmem:[%s3033] sm:$0x80]
    %vm3035 = vcmask 1047559
    %v3036 = vsel %vm3035, %v3034, %v3032
    %3037 = vrot.lane.b32.xlu0 %v3036, 32
    %v3038 = vpop.permute.xlu0 %3037
    %vm3039 = vcmask 392448
    %s3040 = scalar_lea.vmem [#allocation0], 288
    %3041 = vst.msk [vmem:[%s3040] sm:$0x3] %vm3039, %v3038
    %s3042 = scalar_lea.vmem [#allocation0], 294
    %3043 = vst.msk [vmem:[%s3042] sm:$0xc] %vm3039, %v3038
    %s3044 = scalar_lea.vmem [#allocation0], 300
    %3045 = vst.msk [vmem:[%s3044] sm:$0x30] %vm3039, %v3038
    %s3046 = scalar_lea.vmem [#allocation0], 306
    %3047 = vst.msk [vmem:[%s3046] sm:$0xc0] %vm3039, %v3038
    %s3048 = scalar_lea.vmem %s0, 322
    %v3049 = vld [vmem:[%s3048] sm:$0x1]
    %s3050 = scalar_lea.vmem %s0, 1338
    %s3051 = smov 6
    %v3052 = vld [vmem:[%s3050] ss:$-504 sm:%s3051]
    %vm3053 = vcmask 1042433
    %v3054 = vsel %vm3053, %v3052, %v3049
    %s3055 = scalar_lea.vmem %s0, 2354
    %s3056 = smov 24
    %v3057 = vld [vmem:[%s3055] ss:$-504 sm:%s3056]
    %vm3058 = vcmask 1044483
    %v3059 = vsel %vm3058, %v3057, %v3054
    %s3060 = scalar_lea.vmem %s0, 3370
    %s3061 = smov 96
    %v3062 = vld [vmem:[%s3060] ss:$-504 sm:%s3061]
    %vm3063 = vcmask 1046533
    %v3064 = vsel %vm3063, %v3062, %v3059
    %s3065 = scalar_lea.vmem %s0, 851
    %v3066 = vld [vmem:[%s3065] sm:$0x80]
    %vm3067 = vcmask 1047559
    %v3068 = vsel %vm3067, %v3066, %v3064
    %3069 = vrot.lane.b32.xlu0 %v3068, 32
    %v3070 = vpop.permute.xlu0 %3069
    %vm3071 = vcmask 392448
    %s3072 = scalar_lea.vmem [#allocation0], 320
    %3073 = vst.msk [vmem:[%s3072] sm:$0x3] %vm3071, %v3070
    %s3074 = scalar_lea.vmem [#allocation0], 326
    %3075 = vst.msk [vmem:[%s3074] sm:$0xc] %vm3071, %v3070
    %s3076 = scalar_lea.vmem [#allocation0], 332
    %3077 = vst.msk [vmem:[%s3076] sm:$0x30] %vm3071, %v3070
    %s3078 = scalar_lea.vmem [#allocation0], 338
    %3079 = vst.msk [vmem:[%s3078] sm:$0xc0] %vm3071, %v3070
    %s3080 = scalar_lea.vmem %s0, 354
    %v3081 = vld [vmem:[%s3080] sm:$0x1]
    %s3082 = scalar_lea.vmem %s0, 1370
    %s3083 = smov 6
    %v3084 = vld [vmem:[%s3082] ss:$-504 sm:%s3083]
    %vm3085 = vcmask 1042433
    %v3086 = vsel %vm3085, %v3084, %v3081
    %s3087 = scalar_lea.vmem %s0, 2386
    %s3088 = smov 24
    %v3089 = vld [vmem:[%s3087] ss:$-504 sm:%s3088]
    %vm3090 = vcmask 1044483
    %v3091 = vsel %vm3090, %v3089, %v3086
    %s3092 = scalar_lea.vmem %s0, 3402
    %s3093 = smov 96
    %v3094 = vld [vmem:[%s3092] ss:$-504 sm:%s3093]
    %vm3095 = vcmask 1046533
    %v3096 = vsel %vm3095, %v3094, %v3091
    %s3097 = scalar_lea.vmem %s0, 883
    %v3098 = vld [vmem:[%s3097] sm:$0x80]
    %vm3099 = vcmask 1047559
    %v3100 = vsel %vm3099, %v3098, %v3096
    %3101 = vrot.lane.b32.xlu0 %v3100, 32
    %v3102 = vpop.permute.xlu0 %3101
    %vm3103 = vcmask 392448
    %s3104 = scalar_lea.vmem [#allocation0], 352
    %3105 = vst.msk [vmem:[%s3104] sm:$0x3] %vm3103, %v3102
    %s3106 = scalar_lea.vmem [#allocation0], 358
    %3107 = vst.msk [vmem:[%s3106] sm:$0xc] %vm3103, %v3102
    %s3108 = scalar_lea.vmem [#allocation0], 364
    %3109 = vst.msk [vmem:[%s3108] sm:$0x30] %vm3103, %v3102
    %s3110 = scalar_lea.vmem [#allocation0], 370
    %3111 = vst.msk [vmem:[%s3110] sm:$0xc0] %vm3103, %v3102
    %s3112 = scalar_lea.vmem %s0, 386
    %v3113 = vld [vmem:[%s3112] sm:$0x1]
    %s3114 = scalar_lea.vmem %s0, 1402
    %s3115 = smov 6
    %v3116 = vld [vmem:[%s3114] ss:$-504 sm:%s3115]
    %vm3117 = vcmask 1042433
    %v3118 = vsel %vm3117, %v3116, %v3113
    %s3119 = scalar_lea.vmem %s0, 2418
    %s3120 = smov 24
    %v3121 = vld [vmem:[%s3119] ss:$-504 sm:%s3120]
    %vm3122 = vcmask 1044483
    %v3123 = vsel %vm3122, %v3121, %v3118
    %s3124 = scalar_lea.vmem %s0, 3434
    %s3125 = smov 96
    %v3126 = vld [vmem:[%s3124] ss:$-504 sm:%s3125]
    %vm3127 = vcmask 1046533
    %v3128 = vsel %vm3127, %v3126, %v3123
    %s3129 = scalar_lea.vmem %s0, 915
    %v3130 = vld [vmem:[%s3129] sm:$0x80]
    %vm3131 = vcmask 1047559
    %v3132 = vsel %vm3131, %v3130, %v3128
    %3133 = vrot.lane.b32.xlu0 %v3132, 32
    %v3134 = vpop.permute.xlu0 %3133
    %vm3135 = vcmask 392448
    %s3136 = scalar_lea.vmem [#allocation0], 384
    %3137 = vst.msk [vmem:[%s3136] sm:$0x3] %vm3135, %v3134
    %s3138 = scalar_lea.vmem [#allocation0], 390
    %3139 = vst.msk [vmem:[%s3138] sm:$0xc] %vm3135, %v3134
    %s3140 = scalar_lea.vmem [#allocation0], 396
    %3141 = vst.msk [vmem:[%s3140] sm:$0x30] %vm3135, %v3134
    %s3142 = scalar_lea.vmem [#allocation0], 402
    %3143 = vst.msk [vmem:[%s3142] sm:$0xc0] %vm3135, %v3134
    %s3144 = scalar_lea.vmem %s0, 418
    %v3145 = vld [vmem:[%s3144] sm:$0x1]
    %s3146 = scalar_lea.vmem %s0, 1434
    %s3147 = smov 6
    %v3148 = vld [vmem:[%s3146] ss:$-504 sm:%s3147]
    %vm3149 = vcmask 1042433
    %v3150 = vsel %vm3149, %v3148, %v3145
    %s3151 = scalar_lea.vmem %s0, 2450
    %s3152 = smov 24
    %v3153 = vld [vmem:[%s3151] ss:$-504 sm:%s3152]
    %vm3154 = vcmask 1044483
    %v3155 = vsel %vm3154, %v3153, %v3150
    %s3156 = scalar_lea.vmem %s0, 3466
    %s3157 = smov 96
    %v3158 = vld [vmem:[%s3156] ss:$-504 sm:%s3157]
    %vm3159 = vcmask 1046533
    %v3160 = vsel %vm3159, %v3158, %v3155
    %s3161 = scalar_lea.vmem %s0, 947
    %v3162 = vld [vmem:[%s3161] sm:$0x80]
    %vm3163 = vcmask 1047559
    %v3164 = vsel %vm3163, %v3162, %v3160
    %3165 = vrot.lane.b32.xlu0 %v3164, 32
    %v3166 = vpop.permute.xlu0 %3165
    %vm3167 = vcmask 392448
    %s3168 = scalar_lea.vmem [#allocation0], 416
    %3169 = vst.msk [vmem:[%s3168] sm:$0x3] %vm3167, %v3166
    %s3170 = scalar_lea.vmem [#allocation0], 422
    %3171 = vst.msk [vmem:[%s3170] sm:$0xc] %vm3167, %v3166
    %s3172 = scalar_lea.vmem [#allocation0], 428
    %3173 = vst.msk [vmem:[%s3172] sm:$0x30] %vm3167, %v3166
    %s3174 = scalar_lea.vmem [#allocation0], 434
    %3175 = vst.msk [vmem:[%s3174] sm:$0xc0] %vm3167, %v3166
    %s3176 = scalar_lea.vmem %s0, 450
    %v3177 = vld [vmem:[%s3176] sm:$0x1]
    %s3178 = scalar_lea.vmem %s0, 1466
    %s3179 = smov 6
    %v3180 = vld [vmem:[%s3178] ss:$-504 sm:%s3179]
    %vm3181 = vcmask 1042433
    %v3182 = vsel %vm3181, %v3180, %v3177
    %s3183 = scalar_lea.vmem %s0, 2482
    %s3184 = smov 24
    %v3185 = vld [vmem:[%s3183] ss:$-504 sm:%s3184]
    %vm3186 = vcmask 1044483
    %v3187 = vsel %vm3186, %v3185, %v3182
    %s3188 = scalar_lea.vmem %s0, 3498
    %s3189 = smov 96
    %v3190 = vld [vmem:[%s3188] ss:$-504 sm:%s3189]
    %vm3191 = vcmask 1046533
    %v3192 = vsel %vm3191, %v3190, %v3187
    %s3193 = scalar_lea.vmem %s0, 979
    %v3194 = vld [vmem:[%s3193] sm:$0x80]
    %vm3195 = vcmask 1047559
    %v3196 = vsel %vm3195, %v3194, %v3192
    %3197 = vrot.lane.b32.xlu0 %v3196, 32
    %v3198 = vpop.permute.xlu0 %3197
    %vm3199 = vcmask 392448
    %s3200 = scalar_lea.vmem [#allocation0], 448
    %3201 = vst.msk [vmem:[%s3200] sm:$0x3] %vm3199, %v3198
    %s3202 = scalar_lea.vmem [#allocation0], 454
    %3203 = vst.msk [vmem:[%s3202] sm:$0xc] %vm3199, %v3198
    %s3204 = scalar_lea.vmem [#allocation0], 460
    %3205 = vst.msk [vmem:[%s3204] sm:$0x30] %vm3199, %v3198
    %s3206 = scalar_lea.vmem [#allocation0], 466
    %3207 = vst.msk [vmem:[%s3206] sm:$0xc0] %vm3199, %v3198
    %s3208 = scalar_lea.vmem %s0, 482
    %v3209 = vld [vmem:[%s3208] sm:$0x1]
    %s3210 = scalar_lea.vmem %s0, 1498
    %s3211 = smov 6
    %v3212 = vld [vmem:[%s3210] ss:$-504 sm:%s3211]
    %vm3213 = vcmask 1042433
    %v3214 = vsel %vm3213, %v3212, %v3209
    %s3215 = scalar_lea.vmem %s0, 2514
    %s3216 = smov 24
    %v3217 = vld [vmem:[%s3215] ss:$-504 sm:%s3216]
    %vm3218 = vcmask 1044483
    %v3219 = vsel %vm3218, %v3217, %v3214
    %s3220 = scalar_lea.vmem %s0, 3530
    %s3221 = smov 96
    %v3222 = vld [vmem:[%s3220] ss:$-504 sm:%s3221]
    %vm3223 = vcmask 1046533
    %v3224 = vsel %vm3223, %v3222, %v3219
    %s3225 = scalar_lea.vmem %s0, 1011
    %v3226 = vld [vmem:[%s3225] sm:$0x80]
    %vm3227 = vcmask 1047559
    %v3228 = vsel %vm3227, %v3226, %v3224
    %3229 = vrot.lane.b32.xlu0 %v3228, 32
    %v3230 = vpop.permute.xlu0 %3229
    %vm3231 = vcmask 392448
    %s3232 = scalar_lea.vmem [#allocation0], 480
    %3233 = vst.msk [vmem:[%s3232] sm:$0x3] %vm3231, %v3230
    %s3234 = scalar_lea.vmem [#allocation0], 486
    %3235 = vst.msk [vmem:[%s3234] sm:$0xc] %vm3231, %v3230
    %s3236 = scalar_lea.vmem [#allocation0], 492
    %3237 = vst.msk [vmem:[%s3236] sm:$0x30] %vm3231, %v3230
    %s3238 = scalar_lea.vmem [#allocation0], 498
    %3239 = vst.msk [vmem:[%s3238] sm:$0xc0] %vm3231, %v3230
    %s3240 = scalar_lea.vmem %s0, 1
    %v3241 = vld [vmem:[%s3240] sm:$0x1]
    %s3242 = scalar_lea.vmem %s0, 1017
    %s3243 = smov 6
    %v3244 = vld [vmem:[%s3242] ss:$-504 sm:%s3243]
    %vm3245 = vcmask 1042433
    %v3246 = vsel %vm3245, %v3244, %v3241
    %s3247 = scalar_lea.vmem %s0, 2033
    %s3248 = smov 24
    %v3249 = vld [vmem:[%s3247] ss:$-504 sm:%s3248]
    %vm3250 = vcmask 1044483
    %v3251 = vsel %vm3250, %v3249, %v3246
    %s3252 = scalar_lea.vmem %s0, 3049
    %s3253 = smov 96
    %v3254 = vld [vmem:[%s3252] ss:$-504 sm:%s3253]
    %vm3255 = vcmask 1046533
    %v3256 = vsel %vm3255, %v3254, %v3251
    %s3257 = scalar_lea.vmem %s0, 530
    %v3258 = vld [vmem:[%s3257] sm:$0x80]
    %vm3259 = vcmask 1047559
    %v3260 = vsel %vm3259, %v3258, %v3256
    %3261 = vrot.lane.b32.xlu0 %v3260, 16
    %v3262 = vpop.permute.xlu0 %3261
    %vm3263 = vcmask 261248
    %3264 = vst.msk [vmem:[#allocation0] sm:$0x3] %vm3263, %v3262
    %s3265 = scalar_lea.vmem [#allocation0], 6
    %3266 = vst.msk [vmem:[%s3265] sm:$0xc] %vm3263, %v3262
    %s3267 = scalar_lea.vmem [#allocation0], 12
    %3268 = vst.msk [vmem:[%s3267] sm:$0x30] %vm3263, %v3262
    %s3269 = scalar_lea.vmem [#allocation0], 18
    %3270 = vst.msk [vmem:[%s3269] sm:$0xc0] %vm3263, %v3262
    %s3271 = scalar_lea.vmem %s0, 33
    %v3272 = vld [vmem:[%s3271] sm:$0x1]
    %s3273 = scalar_lea.vmem %s0, 1049
    %s3274 = smov 6
    %v3275 = vld [vmem:[%s3273] ss:$-504 sm:%s3274]
    %vm3276 = vcmask 1042433
    %v3277 = vsel %vm3276, %v3275, %v3272
    %s3278 = scalar_lea.vmem %s0, 2065
    %s3279 = smov 24
    %v3280 = vld [vmem:[%s3278] ss:$-504 sm:%s3279]
    %vm3281 = vcmask 1044483
    %v3282 = vsel %vm3281, %v3280, %v3277
    %s3283 = scalar_lea.vmem %s0, 3081
    %s3284 = smov 96
    %v3285 = vld [vmem:[%s3283] ss:$-504 sm:%s3284]
    %vm3286 = vcmask 1046533
    %v3287 = vsel %vm3286, %v3285, %v3282
    %s3288 = scalar_lea.vmem %s0, 562
    %v3289 = vld [vmem:[%s3288] sm:$0x80]
    %vm3290 = vcmask 1047559
    %v3291 = vsel %vm3290, %v3289, %v3287
    %3292 = vrot.lane.b32.xlu0 %v3291, 16
    %v3293 = vpop.permute.xlu0 %3292
    %vm3294 = vcmask 261248
    %s3295 = scalar_lea.vmem [#allocation0], 32
    %3296 = vst.msk [vmem:[%s3295] sm:$0x3] %vm3294, %v3293
    %s3297 = scalar_lea.vmem [#allocation0], 38
    %3298 = vst.msk [vmem:[%s3297] sm:$0xc] %vm3294, %v3293
    %s3299 = scalar_lea.vmem [#allocation0], 44
    %3300 = vst.msk [vmem:[%s3299] sm:$0x30] %vm3294, %v3293
    %s3301 = scalar_lea.vmem [#allocation0], 50
    %3302 = vst.msk [vmem:[%s3301] sm:$0xc0] %vm3294, %v3293
    %s3303 = scalar_lea.vmem %s0, 65
    %v3304 = vld [vmem:[%s3303] sm:$0x1]
    %s3305 = scalar_lea.vmem %s0, 1081
    %s3306 = smov 6
    %v3307 = vld [vmem:[%s3305] ss:$-504 sm:%s3306]
    %vm3308 = vcmask 1042433
    %v3309 = vsel %vm3308, %v3307, %v3304
    %s3310 = scalar_lea.vmem %s0, 2097
    %s3311 = smov 24
    %v3312 = vld [vmem:[%s3310] ss:$-504 sm:%s3311]
    %vm3313 = vcmask 1044483
    %v3314 = vsel %vm3313, %v3312, %v3309
    %s3315 = scalar_lea.vmem %s0, 3113
    %s3316 = smov 96
    %v3317 = vld [vmem:[%s3315] ss:$-504 sm:%s3316]
    %vm3318 = vcmask 1046533
    %v3319 = vsel %vm3318, %v3317, %v3314
    %s3320 = scalar_lea.vmem %s0, 594
    %v3321 = vld [vmem:[%s3320] sm:$0x80]
    %vm3322 = vcmask 1047559
    %v3323 = vsel %vm3322, %v3321, %v3319
    %3324 = vrot.lane.b32.xlu0 %v3323, 16
    %v3325 = vpop.permute.xlu0 %3324
    %vm3326 = vcmask 261248
    %s3327 = scalar_lea.vmem [#allocation0], 64
    %3328 = vst.msk [vmem:[%s3327] sm:$0x3] %vm3326, %v3325
    %s3329 = scalar_lea.vmem [#allocation0], 70
    %3330 = vst.msk [vmem:[%s3329] sm:$0xc] %vm3326, %v3325
    %s3331 = scalar_lea.vmem [#allocation0], 76
    %3332 = vst.msk [vmem:[%s3331] sm:$0x30] %vm3326, %v3325
    %s3333 = scalar_lea.vmem [#allocation0], 82
    %3334 = vst.msk [vmem:[%s3333] sm:$0xc0] %vm3326, %v3325
    %s3335 = scalar_lea.vmem %s0, 97
    %v3336 = vld [vmem:[%s3335] sm:$0x1]
    %s3337 = scalar_lea.vmem %s0, 1113
    %s3338 = smov 6
    %v3339 = vld [vmem:[%s3337] ss:$-504 sm:%s3338]
    %vm3340 = vcmask 1042433
    %v3341 = vsel %vm3340, %v3339, %v3336
    %s3342 = scalar_lea.vmem %s0, 2129
    %s3343 = smov 24
    %v3344 = vld [vmem:[%s3342] ss:$-504 sm:%s3343]
    %vm3345 = vcmask 1044483
    %v3346 = vsel %vm3345, %v3344, %v3341
    %s3347 = scalar_lea.vmem %s0, 3145
    %s3348 = smov 96
    %v3349 = vld [vmem:[%s3347] ss:$-504 sm:%s3348]
    %vm3350 = vcmask 1046533
    %v3351 = vsel %vm3350, %v3349, %v3346
    %s3352 = scalar_lea.vmem %s0, 626
    %v3353 = vld [vmem:[%s3352] sm:$0x80]
    %vm3354 = vcmask 1047559
    %v3355 = vsel %vm3354, %v3353, %v3351
    %3356 = vrot.lane.b32.xlu0 %v3355, 16
    %v3357 = vpop.permute.xlu0 %3356
    %vm3358 = vcmask 261248
    %s3359 = scalar_lea.vmem [#allocation0], 96
    %3360 = vst.msk [vmem:[%s3359] sm:$0x3] %vm3358, %v3357
    %s3361 = scalar_lea.vmem [#allocation0], 102
    %3362 = vst.msk [vmem:[%s3361] sm:$0xc] %vm3358, %v3357
    %s3363 = scalar_lea.vmem [#allocation0], 108
    %3364 = vst.msk [vmem:[%s3363] sm:$0x30] %vm3358, %v3357
    %s3365 = scalar_lea.vmem [#allocation0], 114
    %3366 = vst.msk [vmem:[%s3365] sm:$0xc0] %vm3358, %v3357
    %s3367 = scalar_lea.vmem %s0, 129
    %v3368 = vld [vmem:[%s3367] sm:$0x1]
    %s3369 = scalar_lea.vmem %s0, 1145
    %s3370 = smov 6
    %v3371 = vld [vmem:[%s3369] ss:$-504 sm:%s3370]
    %vm3372 = vcmask 1042433
    %v3373 = vsel %vm3372, %v3371, %v3368
    %s3374 = scalar_lea.vmem %s0, 2161
    %s3375 = smov 24
    %v3376 = vld [vmem:[%s3374] ss:$-504 sm:%s3375]
    %vm3377 = vcmask 1044483
    %v3378 = vsel %vm3377, %v3376, %v3373
    %s3379 = scalar_lea.vmem %s0, 3177
    %s3380 = smov 96
    %v3381 = vld [vmem:[%s3379] ss:$-504 sm:%s3380]
    %vm3382 = vcmask 1046533
    %v3383 = vsel %vm3382, %v3381, %v3378
    %s3384 = scalar_lea.vmem %s0, 658
    %v3385 = vld [vmem:[%s3384] sm:$0x80]
    %vm3386 = vcmask 1047559
    %v3387 = vsel %vm3386, %v3385, %v3383
    %3388 = vrot.lane.b32.xlu0 %v3387, 16
    %v3389 = vpop.permute.xlu0 %3388
    %vm3390 = vcmask 261248
    %s3391 = scalar_lea.vmem [#allocation0], 128
    %3392 = vst.msk [vmem:[%s3391] sm:$0x3] %vm3390, %v3389
    %s3393 = scalar_lea.vmem [#allocation0], 134
    %3394 = vst.msk [vmem:[%s3393] sm:$0xc] %vm3390, %v3389
    %s3395 = scalar_lea.vmem [#allocation0], 140
    %3396 = vst.msk [vmem:[%s3395] sm:$0x30] %vm3390, %v3389
    %s3397 = scalar_lea.vmem [#allocation0], 146
    %3398 = vst.msk [vmem:[%s3397] sm:$0xc0] %vm3390, %v3389
    %s3399 = scalar_lea.vmem %s0, 161
    %v3400 = vld [vmem:[%s3399] sm:$0x1]
    %s3401 = scalar_lea.vmem %s0, 1177
    %s3402 = smov 6
    %v3403 = vld [vmem:[%s3401] ss:$-504 sm:%s3402]
    %vm3404 = vcmask 1042433
    %v3405 = vsel %vm3404, %v3403, %v3400
    %s3406 = scalar_lea.vmem %s0, 2193
    %s3407 = smov 24
    %v3408 = vld [vmem:[%s3406] ss:$-504 sm:%s3407]
    %vm3409 = vcmask 1044483
    %v3410 = vsel %vm3409, %v3408, %v3405
    %s3411 = scalar_lea.vmem %s0, 3209
    %s3412 = smov 96
    %v3413 = vld [vmem:[%s3411] ss:$-504 sm:%s3412]
    %vm3414 = vcmask 1046533
    %v3415 = vsel %vm3414, %v3413, %v3410
    %s3416 = scalar_lea.vmem %s0, 690
    %v3417 = vld [vmem:[%s3416] sm:$0x80]
    %vm3418 = vcmask 1047559
    %v3419 = vsel %vm3418, %v3417, %v3415
    %3420 = vrot.lane.b32.xlu0 %v3419, 16
    %v3421 = vpop.permute.xlu0 %3420
    %vm3422 = vcmask 261248
    %s3423 = scalar_lea.vmem [#allocation0], 160
    %3424 = vst.msk [vmem:[%s3423] sm:$0x3] %vm3422, %v3421
    %s3425 = scalar_lea.vmem [#allocation0], 166
    %3426 = vst.msk [vmem:[%s3425] sm:$0xc] %vm3422, %v3421
    %s3427 = scalar_lea.vmem [#allocation0], 172
    %3428 = vst.msk [vmem:[%s3427] sm:$0x30] %vm3422, %v3421
    %s3429 = scalar_lea.vmem [#allocation0], 178
    %3430 = vst.msk [vmem:[%s3429] sm:$0xc0] %vm3422, %v3421
    %s3431 = scalar_lea.vmem %s0, 193
    %v3432 = vld [vmem:[%s3431] sm:$0x1]
    %s3433 = scalar_lea.vmem %s0, 1209
    %s3434 = smov 6
    %v3435 = vld [vmem:[%s3433] ss:$-504 sm:%s3434]
    %vm3436 = vcmask 1042433
    %v3437 = vsel %vm3436, %v3435, %v3432
    %s3438 = scalar_lea.vmem %s0, 2225
    %s3439 = smov 24
    %v3440 = vld [vmem:[%s3438] ss:$-504 sm:%s3439]
    %vm3441 = vcmask 1044483
    %v3442 = vsel %vm3441, %v3440, %v3437
    %s3443 = scalar_lea.vmem %s0, 3241
    %s3444 = smov 96
    %v3445 = vld [vmem:[%s3443] ss:$-504 sm:%s3444]
    %vm3446 = vcmask 1046533
    %v3447 = vsel %vm3446, %v3445, %v3442
    %s3448 = scalar_lea.vmem %s0, 722
    %v3449 = vld [vmem:[%s3448] sm:$0x80]
    %vm3450 = vcmask 1047559
    %v3451 = vsel %vm3450, %v3449, %v3447
    %3452 = vrot.lane.b32.xlu0 %v3451, 16
    %v3453 = vpop.permute.xlu0 %3452
    %vm3454 = vcmask 261248
    %s3455 = scalar_lea.vmem [#allocation0], 192
    %3456 = vst.msk [vmem:[%s3455] sm:$0x3] %vm3454, %v3453
    %s3457 = scalar_lea.vmem [#allocation0], 198
    %3458 = vst.msk [vmem:[%s3457] sm:$0xc] %vm3454, %v3453
    %s3459 = scalar_lea.vmem [#allocation0], 204
    %3460 = vst.msk [vmem:[%s3459] sm:$0x30] %vm3454, %v3453
    %s3461 = scalar_lea.vmem [#allocation0], 210
    %3462 = vst.msk [vmem:[%s3461] sm:$0xc0] %vm3454, %v3453
    %s3463 = scalar_lea.vmem %s0, 225
    %v3464 = vld [vmem:[%s3463] sm:$0x1]
    %s3465 = scalar_lea.vmem %s0, 1241
    %s3466 = smov 6
    %v3467 = vld [vmem:[%s3465] ss:$-504 sm:%s3466]
    %vm3468 = vcmask 1042433
    %v3469 = vsel %vm3468, %v3467, %v3464
    %s3470 = scalar_lea.vmem %s0, 2257
    %s3471 = smov 24
    %v3472 = vld [vmem:[%s3470] ss:$-504 sm:%s3471]
    %vm3473 = vcmask 1044483
    %v3474 = vsel %vm3473, %v3472, %v3469
    %s3475 = scalar_lea.vmem %s0, 3273
    %s3476 = smov 96
    %v3477 = vld [vmem:[%s3475] ss:$-504 sm:%s3476]
    %vm3478 = vcmask 1046533
    %v3479 = vsel %vm3478, %v3477, %v3474
    %s3480 = scalar_lea.vmem %s0, 754
    %v3481 = vld [vmem:[%s3480] sm:$0x80]
    %vm3482 = vcmask 1047559
    %v3483 = vsel %vm3482, %v3481, %v3479
    %3484 = vrot.lane.b32.xlu0 %v3483, 16
    %v3485 = vpop.permute.xlu0 %3484
    %vm3486 = vcmask 261248
    %s3487 = scalar_lea.vmem [#allocation0], 224
    %3488 = vst.msk [vmem:[%s3487] sm:$0x3] %vm3486, %v3485
    %s3489 = scalar_lea.vmem [#allocation0], 230
    %3490 = vst.msk [vmem:[%s3489] sm:$0xc] %vm3486, %v3485
    %s3491 = scalar_lea.vmem [#allocation0], 236
    %3492 = vst.msk [vmem:[%s3491] sm:$0x30] %vm3486, %v3485
    %s3493 = scalar_lea.vmem [#allocation0], 242
    %3494 = vst.msk [vmem:[%s3493] sm:$0xc0] %vm3486, %v3485
    %s3495 = scalar_lea.vmem %s0, 257
    %v3496 = vld [vmem:[%s3495] sm:$0x1]
    %s3497 = scalar_lea.vmem %s0, 1273
    %s3498 = smov 6
    %v3499 = vld [vmem:[%s3497] ss:$-504 sm:%s3498]
    %vm3500 = vcmask 1042433
    %v3501 = vsel %vm3500, %v3499, %v3496
    %s3502 = scalar_lea.vmem %s0, 2289
    %s3503 = smov 24
    %v3504 = vld [vmem:[%s3502] ss:$-504 sm:%s3503]
    %vm3505 = vcmask 1044483
    %v3506 = vsel %vm3505, %v3504, %v3501
    %s3507 = scalar_lea.vmem %s0, 3305
    %s3508 = smov 96
    %v3509 = vld [vmem:[%s3507] ss:$-504 sm:%s3508]
    %vm3510 = vcmask 1046533
    %v3511 = vsel %vm3510, %v3509, %v3506
    %s3512 = scalar_lea.vmem %s0, 786
    %v3513 = vld [vmem:[%s3512] sm:$0x80]
    %vm3514 = vcmask 1047559
    %v3515 = vsel %vm3514, %v3513, %v3511
    %3516 = vrot.lane.b32.xlu0 %v3515, 16
    %v3517 = vpop.permute.xlu0 %3516
    %vm3518 = vcmask 261248
    %s3519 = scalar_lea.vmem [#allocation0], 256
    %3520 = vst.msk [vmem:[%s3519] sm:$0x3] %vm3518, %v3517
    %s3521 = scalar_lea.vmem [#allocation0], 262
    %3522 = vst.msk [vmem:[%s3521] sm:$0xc] %vm3518, %v3517
    %s3523 = scalar_lea.vmem [#allocation0], 268
    %3524 = vst.msk [vmem:[%s3523] sm:$0x30] %vm3518, %v3517
    %s3525 = scalar_lea.vmem [#allocation0], 274
    %3526 = vst.msk [vmem:[%s3525] sm:$0xc0] %vm3518, %v3517
    %s3527 = scalar_lea.vmem %s0, 289
    %v3528 = vld [vmem:[%s3527] sm:$0x1]
    %s3529 = scalar_lea.vmem %s0, 1305
    %s3530 = smov 6
    %v3531 = vld [vmem:[%s3529] ss:$-504 sm:%s3530]
    %vm3532 = vcmask 1042433
    %v3533 = vsel %vm3532, %v3531, %v3528
    %s3534 = scalar_lea.vmem %s0, 2321
    %s3535 = smov 24
    %v3536 = vld [vmem:[%s3534] ss:$-504 sm:%s3535]
    %vm3537 = vcmask 1044483
    %v3538 = vsel %vm3537, %v3536, %v3533
    %s3539 = scalar_lea.vmem %s0, 3337
    %s3540 = smov 96
    %v3541 = vld [vmem:[%s3539] ss:$-504 sm:%s3540]
    %vm3542 = vcmask 1046533
    %v3543 = vsel %vm3542, %v3541, %v3538
    %s3544 = scalar_lea.vmem %s0, 818
    %v3545 = vld [vmem:[%s3544] sm:$0x80]
    %vm3546 = vcmask 1047559
    %v3547 = vsel %vm3546, %v3545, %v3543
    %3548 = vrot.lane.b32.xlu0 %v3547, 16
    %v3549 = vpop.permute.xlu0 %3548
    %vm3550 = vcmask 261248
    %s3551 = scalar_lea.vmem [#allocation0], 288
    %3552 = vst.msk [vmem:[%s3551] sm:$0x3] %vm3550, %v3549
    %s3553 = scalar_lea.vmem [#allocation0], 294
    %3554 = vst.msk [vmem:[%s3553] sm:$0xc] %vm3550, %v3549
    %s3555 = scalar_lea.vmem [#allocation0], 300
    %3556 = vst.msk [vmem:[%s3555] sm:$0x30] %vm3550, %v3549
    %s3557 = scalar_lea.vmem [#allocation0], 306
    %3558 = vst.msk [vmem:[%s3557] sm:$0xc0] %vm3550, %v3549
    %s3559 = scalar_lea.vmem %s0, 321
    %v3560 = vld [vmem:[%s3559] sm:$0x1]
    %s3561 = scalar_lea.vmem %s0, 1337
    %s3562 = smov 6
    %v3563 = vld [vmem:[%s3561] ss:$-504 sm:%s3562]
    %vm3564 = vcmask 1042433
    %v3565 = vsel %vm3564, %v3563, %v3560
    %s3566 = scalar_lea.vmem %s0, 2353
    %s3567 = smov 24
    %v3568 = vld [vmem:[%s3566] ss:$-504 sm:%s3567]
    %vm3569 = vcmask 1044483
    %v3570 = vsel %vm3569, %v3568, %v3565
    %s3571 = scalar_lea.vmem %s0, 3369
    %s3572 = smov 96
    %v3573 = vld [vmem:[%s3571] ss:$-504 sm:%s3572]
    %vm3574 = vcmask 1046533
    %v3575 = vsel %vm3574, %v3573, %v3570
    %s3576 = scalar_lea.vmem %s0, 850
    %v3577 = vld [vmem:[%s3576] sm:$0x80]
    %vm3578 = vcmask 1047559
    %v3579 = vsel %vm3578, %v3577, %v3575
    %3580 = vrot.lane.b32.xlu0 %v3579, 16
    %v3581 = vpop.permute.xlu0 %3580
    %vm3582 = vcmask 261248
    %s3583 = scalar_lea.vmem [#allocation0], 320
    %3584 = vst.msk [vmem:[%s3583] sm:$0x3] %vm3582, %v3581
    %s3585 = scalar_lea.vmem [#allocation0], 326
    %3586 = vst.msk [vmem:[%s3585] sm:$0xc] %vm3582, %v3581
    %s3587 = scalar_lea.vmem [#allocation0], 332
    %3588 = vst.msk [vmem:[%s3587] sm:$0x30] %vm3582, %v3581
    %s3589 = scalar_lea.vmem [#allocation0], 338
    %3590 = vst.msk [vmem:[%s3589] sm:$0xc0] %vm3582, %v3581
    %s3591 = scalar_lea.vmem %s0, 353
    %v3592 = vld [vmem:[%s3591] sm:$0x1]
    %s3593 = scalar_lea.vmem %s0, 1369
    %s3594 = smov 6
    %v3595 = vld [vmem:[%s3593] ss:$-504 sm:%s3594]
    %vm3596 = vcmask 1042433
    %v3597 = vsel %vm3596, %v3595, %v3592
    %s3598 = scalar_lea.vmem %s0, 2385
    %s3599 = smov 24
    %v3600 = vld [vmem:[%s3598] ss:$-504 sm:%s3599]
    %vm3601 = vcmask 1044483
    %v3602 = vsel %vm3601, %v3600, %v3597
    %s3603 = scalar_lea.vmem %s0, 3401
    %s3604 = smov 96
    %v3605 = vld [vmem:[%s3603] ss:$-504 sm:%s3604]
    %vm3606 = vcmask 1046533
    %v3607 = vsel %vm3606, %v3605, %v3602
    %s3608 = scalar_lea.vmem %s0, 882
    %v3609 = vld [vmem:[%s3608] sm:$0x80]
    %vm3610 = vcmask 1047559
    %v3611 = vsel %vm3610, %v3609, %v3607
    %3612 = vrot.lane.b32.xlu0 %v3611, 16
    %v3613 = vpop.permute.xlu0 %3612
    %vm3614 = vcmask 261248
    %s3615 = scalar_lea.vmem [#allocation0], 352
    %3616 = vst.msk [vmem:[%s3615] sm:$0x3] %vm3614, %v3613
    %s3617 = scalar_lea.vmem [#allocation0], 358
    %3618 = vst.msk [vmem:[%s3617] sm:$0xc] %vm3614, %v3613
    %s3619 = scalar_lea.vmem [#allocation0], 364
    %3620 = vst.msk [vmem:[%s3619] sm:$0x30] %vm3614, %v3613
    %s3621 = scalar_lea.vmem [#allocation0], 370
    %3622 = vst.msk [vmem:[%s3621] sm:$0xc0] %vm3614, %v3613
    %s3623 = scalar_lea.vmem %s0, 385
    %v3624 = vld [vmem:[%s3623] sm:$0x1]
    %s3625 = scalar_lea.vmem %s0, 1401
    %s3626 = smov 6
    %v3627 = vld [vmem:[%s3625] ss:$-504 sm:%s3626]
    %vm3628 = vcmask 1042433
    %v3629 = vsel %vm3628, %v3627, %v3624
    %s3630 = scalar_lea.vmem %s0, 2417
    %s3631 = smov 24
    %v3632 = vld [vmem:[%s3630] ss:$-504 sm:%s3631]
    %vm3633 = vcmask 1044483
    %v3634 = vsel %vm3633, %v3632, %v3629
    %s3635 = scalar_lea.vmem %s0, 3433
    %s3636 = smov 96
    %v3637 = vld [vmem:[%s3635] ss:$-504 sm:%s3636]
    %vm3638 = vcmask 1046533
    %v3639 = vsel %vm3638, %v3637, %v3634
    %s3640 = scalar_lea.vmem %s0, 914
    %v3641 = vld [vmem:[%s3640] sm:$0x80]
    %vm3642 = vcmask 1047559
    %v3643 = vsel %vm3642, %v3641, %v3639
    %3644 = vrot.lane.b32.xlu0 %v3643, 16
    %v3645 = vpop.permute.xlu0 %3644
    %vm3646 = vcmask 261248
    %s3647 = scalar_lea.vmem [#allocation0], 384
    %3648 = vst.msk [vmem:[%s3647] sm:$0x3] %vm3646, %v3645
    %s3649 = scalar_lea.vmem [#allocation0], 390
    %3650 = vst.msk [vmem:[%s3649] sm:$0xc] %vm3646, %v3645
    %s3651 = scalar_lea.vmem [#allocation0], 396
    %3652 = vst.msk [vmem:[%s3651] sm:$0x30] %vm3646, %v3645
    %s3653 = scalar_lea.vmem [#allocation0], 402
    %3654 = vst.msk [vmem:[%s3653] sm:$0xc0] %vm3646, %v3645
    %s3655 = scalar_lea.vmem %s0, 417
    %v3656 = vld [vmem:[%s3655] sm:$0x1]
    %s3657 = scalar_lea.vmem %s0, 1433
    %s3658 = smov 6
    %v3659 = vld [vmem:[%s3657] ss:$-504 sm:%s3658]
    %vm3660 = vcmask 1042433
    %v3661 = vsel %vm3660, %v3659, %v3656
    %s3662 = scalar_lea.vmem %s0, 2449
    %s3663 = smov 24
    %v3664 = vld [vmem:[%s3662] ss:$-504 sm:%s3663]
    %vm3665 = vcmask 1044483
    %v3666 = vsel %vm3665, %v3664, %v3661
    %s3667 = scalar_lea.vmem %s0, 3465
    %s3668 = smov 96
    %v3669 = vld [vmem:[%s3667] ss:$-504 sm:%s3668]
    %vm3670 = vcmask 1046533
    %v3671 = vsel %vm3670, %v3669, %v3666
    %s3672 = scalar_lea.vmem %s0, 946
    %v3673 = vld [vmem:[%s3672] sm:$0x80]
    %vm3674 = vcmask 1047559
    %v3675 = vsel %vm3674, %v3673, %v3671
    %3676 = vrot.lane.b32.xlu0 %v3675, 16
    %v3677 = vpop.permute.xlu0 %3676
    %vm3678 = vcmask 261248
    %s3679 = scalar_lea.vmem [#allocation0], 416
    %3680 = vst.msk [vmem:[%s3679] sm:$0x3] %vm3678, %v3677
    %s3681 = scalar_lea.vmem [#allocation0], 422
    %3682 = vst.msk [vmem:[%s3681] sm:$0xc] %vm3678, %v3677
    %s3683 = scalar_lea.vmem [#allocation0], 428
    %3684 = vst.msk [vmem:[%s3683] sm:$0x30] %vm3678, %v3677
    %s3685 = scalar_lea.vmem [#allocation0], 434
    %3686 = vst.msk [vmem:[%s3685] sm:$0xc0] %vm3678, %v3677
    %s3687 = scalar_lea.vmem %s0, 449
    %v3688 = vld [vmem:[%s3687] sm:$0x1]
    %s3689 = scalar_lea.vmem %s0, 1465
    %s3690 = smov 6
    %v3691 = vld [vmem:[%s3689] ss:$-504 sm:%s3690]
    %vm3692 = vcmask 1042433
    %v3693 = vsel %vm3692, %v3691, %v3688
    %s3694 = scalar_lea.vmem %s0, 2481
    %s3695 = smov 24
    %v3696 = vld [vmem:[%s3694] ss:$-504 sm:%s3695]
    %vm3697 = vcmask 1044483
    %v3698 = vsel %vm3697, %v3696, %v3693
    %s3699 = scalar_lea.vmem %s0, 3497
    %s3700 = smov 96
    %v3701 = vld [vmem:[%s3699] ss:$-504 sm:%s3700]
    %vm3702 = vcmask 1046533
    %v3703 = vsel %vm3702, %v3701, %v3698
    %s3704 = scalar_lea.vmem %s0, 978
    %v3705 = vld [vmem:[%s3704] sm:$0x80]
    %vm3706 = vcmask 1047559
    %v3707 = vsel %vm3706, %v3705, %v3703
    %3708 = vrot.lane.b32.xlu0 %v3707, 16
    %v3709 = vpop.permute.xlu0 %3708
    %vm3710 = vcmask 261248
    %s3711 = scalar_lea.vmem [#allocation0], 448
    %3712 = vst.msk [vmem:[%s3711] sm:$0x3] %vm3710, %v3709
    %s3713 = scalar_lea.vmem [#allocation0], 454
    %3714 = vst.msk [vmem:[%s3713] sm:$0xc] %vm3710, %v3709
    %s3715 = scalar_lea.vmem [#allocation0], 460
    %3716 = vst.msk [vmem:[%s3715] sm:$0x30] %vm3710, %v3709
    %s3717 = scalar_lea.vmem [#allocation0], 466
    %3718 = vst.msk [vmem:[%s3717] sm:$0xc0] %vm3710, %v3709
    %s3719 = scalar_lea.vmem %s0, 481
    %v3720 = vld [vmem:[%s3719] sm:$0x1]
    %s3721 = scalar_lea.vmem %s0, 1497
    %s3722 = smov 6
    %v3723 = vld [vmem:[%s3721] ss:$-504 sm:%s3722]
    %vm3724 = vcmask 1042433
    %v3725 = vsel %vm3724, %v3723, %v3720
    %s3726 = scalar_lea.vmem %s0, 2513
    %s3727 = smov 24
    %v3728 = vld [vmem:[%s3726] ss:$-504 sm:%s3727]
    %vm3729 = vcmask 1044483
    %v3730 = vsel %vm3729, %v3728, %v3725
    %s3731 = scalar_lea.vmem %s0, 3529
    %s3732 = smov 96
    %v3733 = vld [vmem:[%s3731] ss:$-504 sm:%s3732]
    %vm3734 = vcmask 1046533
    %v3735 = vsel %vm3734, %v3733, %v3730
    %s3736 = scalar_lea.vmem %s0, 1010
    %v3737 = vld [vmem:[%s3736] sm:$0x80]
    %vm3738 = vcmask 1047559
    %v3739 = vsel %vm3738, %v3737, %v3735
    %3740 = vrot.lane.b32.xlu0 %v3739, 16
    %v3741 = vpop.permute.xlu0 %3740
    %vm3742 = vcmask 261248
    %s3743 = scalar_lea.vmem [#allocation0], 480
    %3744 = vst.msk [vmem:[%s3743] sm:$0x3] %vm3742, %v3741
    %s3745 = scalar_lea.vmem [#allocation0], 486
    %3746 = vst.msk [vmem:[%s3745] sm:$0xc] %vm3742, %v3741
    %s3747 = scalar_lea.vmem [#allocation0], 492
    %3748 = vst.msk [vmem:[%s3747] sm:$0x30] %vm3742, %v3741
    %s3749 = scalar_lea.vmem [#allocation0], 498
    %3750 = vst.msk [vmem:[%s3749] sm:$0xc0] %vm3742, %v3741
    %s3752 = sshllo.u32 0, 2
    %v3754 = vld [vmem:[#allocation0] sm:%s3752]
    %s3755 = sshllo.u32 0, 2
    %3756 = vst [vmem:[%s1] sm:%s3755] %v3754
    %s3757 = scalar_lea.vmem [#allocation0], 8
    %v3758 = vld [vmem:[%s3757] sm:%s3752]
    %s3759 = sshllo.u32 0, 2
    %s3760 = scalar_lea.vmem %s1, 2
    %3761 = vst [vmem:[%s3760] sm:%s3759] %v3758
    %s3762 = scalar_lea.vmem [#allocation0], 16
    %v3763 = vld [vmem:[%s3762] sm:%s3752]
    %s3764 = sshllo.u32 0, 2
    %s3765 = smul.addr 2, 2
    %s3766 = scalar_lea.vmem %s1, %s3765
    %3767 = vst [vmem:[%s3766] sm:%s3764] %v3763
    %s3768 = scalar_lea.vmem [#allocation0], 24
    %v3769 = vld [vmem:[%s3768] sm:%s3752]
    %s3770 = sshllo.u32 0, 2
    %s3771 = smul.addr 2, 3
    %s3772 = scalar_lea.vmem %s1, %s3771
    %3773 = vst [vmem:[%s3772] sm:%s3770] %v3769
    %s3774 = scalar_lea.vmem [#allocation0], 32
    %v3775 = vld [vmem:[%s3774] sm:%s3752]
    %s3776 = sshllo.u32 0, 2
    %s3777 = smul.addr 2, 4
    %s3778 = scalar_lea.vmem %s1, %s3777
    %3779 = vst [vmem:[%s3778] sm:%s3776] %v3775
    %s3780 = scalar_lea.vmem [#allocation0], 40
    %v3781 = vld [vmem:[%s3780] sm:%s3752]
    %s3782 = sshllo.u32 0, 2
    %s3783 = smul.addr 2, 5
    %s3784 = scalar_lea.vmem %s1, %s3783
    %3785 = vst [vmem:[%s3784] sm:%s3782] %v3781
    %s3786 = scalar_lea.vmem [#allocation0], 48
    %v3787 = vld [vmem:[%s3786] sm:%s3752]
    %s3788 = sshllo.u32 0, 2
    %s3789 = smul.addr 2, 6
    %s3790 = scalar_lea.vmem %s1, %s3789
    %3791 = vst [vmem:[%s3790] sm:%s3788] %v3787
    %s3792 = scalar_lea.vmem [#allocation0], 56
    %v3793 = vld [vmem:[%s3792] sm:%s3752]
    %s3794 = sshllo.u32 0, 2
    %s3795 = smul.addr 2, 7
    %s3796 = scalar_lea.vmem %s1, %s3795
    %3797 = vst [vmem:[%s3796] sm:%s3794] %v3793
    %s3798 = scalar_lea.vmem [#allocation0], 64
    %v3799 = vld [vmem:[%s3798] sm:%s3752]
    %s3800 = sshllo.u32 0, 2
    %s3801 = smul.addr 2, 8
    %s3802 = scalar_lea.vmem %s1, %s3801
    %3803 = vst [vmem:[%s3802] sm:%s3800] %v3799
    %s3804 = scalar_lea.vmem [#allocation0], 72
    %v3805 = vld [vmem:[%s3804] sm:%s3752]
    %s3806 = sshllo.u32 0, 2
    %s3807 = smul.addr 2, 9
    %s3808 = scalar_lea.vmem %s1, %s3807
    %3809 = vst [vmem:[%s3808] sm:%s3806] %v3805
    %s3810 = scalar_lea.vmem [#allocation0], 80
    %v3811 = vld [vmem:[%s3810] sm:%s3752]
    %s3812 = sshllo.u32 0, 2
    %s3813 = smul.addr 2, 10
    %s3814 = scalar_lea.vmem %s1, %s3813
    %3815 = vst [vmem:[%s3814] sm:%s3812] %v3811
    %s3816 = scalar_lea.vmem [#allocation0], 88
    %v3817 = vld [vmem:[%s3816] sm:%s3752]
    %s3818 = sshllo.u32 0, 2
    %s3819 = smul.addr 2, 11
    %s3820 = scalar_lea.vmem %s1, %s3819
    %3821 = vst [vmem:[%s3820] sm:%s3818] %v3817
    %s3822 = scalar_lea.vmem [#allocation0], 96
    %v3823 = vld [vmem:[%s3822] sm:%s3752]
    %s3824 = sshllo.u32 0, 2
    %s3825 = smul.addr 2, 12
    %s3826 = scalar_lea.vmem %s1, %s3825
    %3827 = vst [vmem:[%s3826] sm:%s3824] %v3823
    %s3828 = scalar_lea.vmem [#allocation0], 104
    %v3829 = vld [vmem:[%s3828] sm:%s3752]
    %s3830 = sshllo.u32 0, 2
    %s3831 = smul.addr 2, 13
    %s3832 = scalar_lea.vmem %s1, %s3831
    %3833 = vst [vmem:[%s3832] sm:%s3830] %v3829
    %s3834 = scalar_lea.vmem [#allocation0], 112
    %v3835 = vld [vmem:[%s3834] sm:%s3752]
    %s3836 = sshllo.u32 0, 2
    %s3837 = smul.addr 2, 14
    %s3838 = scalar_lea.vmem %s1, %s3837
    %3839 = vst [vmem:[%s3838] sm:%s3836] %v3835
    %s3840 = scalar_lea.vmem [#allocation0], 120
    %v3841 = vld [vmem:[%s3840] sm:%s3752]
    %s3842 = sshllo.u32 0, 2
    %s3843 = smul.addr 2, 15
    %s3844 = scalar_lea.vmem %s1, %s3843
    %3845 = vst [vmem:[%s3844] sm:%s3842] %v3841
    %s3846 = scalar_lea.vmem [#allocation0], 128
    %v3847 = vld [vmem:[%s3846] sm:%s3752]
    %s3848 = sshllo.u32 0, 2
    %s3849 = smul.addr 2, 16
    %s3850 = scalar_lea.vmem %s1, %s3849
    %3851 = vst [vmem:[%s3850] sm:%s3848] %v3847
    %s3852 = scalar_lea.vmem [#allocation0], 136
    %v3853 = vld [vmem:[%s3852] sm:%s3752]
    %s3854 = sshllo.u32 0, 2
    %s3855 = smul.addr 2, 17
    %s3856 = scalar_lea.vmem %s1, %s3855
    %3857 = vst [vmem:[%s3856] sm:%s3854] %v3853
    %s3858 = scalar_lea.vmem [#allocation0], 144
    %v3859 = vld [vmem:[%s3858] sm:%s3752]
    %s3860 = sshllo.u32 0, 2
    %s3861 = smul.addr 2, 18
    %s3862 = scalar_lea.vmem %s1, %s3861
    %3863 = vst [vmem:[%s3862] sm:%s3860] %v3859
    %s3864 = scalar_lea.vmem [#allocation0], 152
    %v3865 = vld [vmem:[%s3864] sm:%s3752]
    %s3866 = sshllo.u32 0, 2
    %s3867 = smul.addr 2, 19
    %s3868 = scalar_lea.vmem %s1, %s3867
    %3869 = vst [vmem:[%s3868] sm:%s3866] %v3865
    %s3870 = scalar_lea.vmem [#allocation0], 160
    %v3871 = vld [vmem:[%s3870] sm:%s3752]
    %s3872 = sshllo.u32 0, 2
    %s3873 = smul.addr 2, 20
    %s3874 = scalar_lea.vmem %s1, %s3873
    %3875 = vst [vmem:[%s3874] sm:%s3872] %v3871
    %s3876 = scalar_lea.vmem [#allocation0], 168
    %v3877 = vld [vmem:[%s3876] sm:%s3752]
    %s3878 = sshllo.u32 0, 2
    %s3879 = smul.addr 2, 21
    %s3880 = scalar_lea.vmem %s1, %s3879
    %3881 = vst [vmem:[%s3880] sm:%s3878] %v3877
    %s3882 = scalar_lea.vmem [#allocation0], 176
    %v3883 = vld [vmem:[%s3882] sm:%s3752]
    %s3884 = sshllo.u32 0, 2
    %s3885 = smul.addr 2, 22
    %s3886 = scalar_lea.vmem %s1, %s3885
    %3887 = vst [vmem:[%s3886] sm:%s3884] %v3883
    %s3888 = scalar_lea.vmem [#allocation0], 184
    %v3889 = vld [vmem:[%s3888] sm:%s3752]
    %s3890 = sshllo.u32 0, 2
    %s3891 = smul.addr 2, 23
    %s3892 = scalar_lea.vmem %s1, %s3891
    %3893 = vst [vmem:[%s3892] sm:%s3890] %v3889
    %s3894 = scalar_lea.vmem [#allocation0], 192
    %v3895 = vld [vmem:[%s3894] sm:%s3752]
    %s3896 = sshllo.u32 0, 2
    %s3897 = smul.addr 2, 24
    %s3898 = scalar_lea.vmem %s1, %s3897
    %3899 = vst [vmem:[%s3898] sm:%s3896] %v3895
    %s3900 = scalar_lea.vmem [#allocation0], 200
    %v3901 = vld [vmem:[%s3900] sm:%s3752]
    %s3902 = sshllo.u32 0, 2
    %s3903 = smul.addr 2, 25
    %s3904 = scalar_lea.vmem %s1, %s3903
    %3905 = vst [vmem:[%s3904] sm:%s3902] %v3901
    %s3906 = scalar_lea.vmem [#allocation0], 208
    %v3907 = vld [vmem:[%s3906] sm:%s3752]
    %s3908 = sshllo.u32 0, 2
    %s3909 = smul.addr 2, 26
    %s3910 = scalar_lea.vmem %s1, %s3909
    %3911 = vst [vmem:[%s3910] sm:%s3908] %v3907
    %s3912 = scalar_lea.vmem [#allocation0], 216
    %v3913 = vld [vmem:[%s3912] sm:%s3752]
    %s3914 = sshllo.u32 0, 2
    %s3915 = smul.addr 2, 27
    %s3916 = scalar_lea.vmem %s1, %s3915
    %3917 = vst [vmem:[%s3916] sm:%s3914] %v3913
    %s3918 = scalar_lea.vmem [#allocation0], 224
    %v3919 = vld [vmem:[%s3918] sm:%s3752]
    %s3920 = sshllo.u32 0, 2
    %s3921 = smul.addr 2, 28
    %s3922 = scalar_lea.vmem %s1, %s3921
    %3923 = vst [vmem:[%s3922] sm:%s3920] %v3919
    %s3924 = scalar_lea.vmem [#allocation0], 232
    %v3925 = vld [vmem:[%s3924] sm:%s3752]
    %s3926 = sshllo.u32 0, 2
    %s3927 = smul.addr 2, 29
    %s3928 = scalar_lea.vmem %s1, %s3927
    %3929 = vst [vmem:[%s3928] sm:%s3926] %v3925
    %s3930 = scalar_lea.vmem [#allocation0], 240
    %v3931 = vld [vmem:[%s3930] sm:%s3752]
    %s3932 = sshllo.u32 0, 2
    %s3933 = smul.addr 2, 30
    %s3934 = scalar_lea.vmem %s1, %s3933
    %3935 = vst [vmem:[%s3934] sm:%s3932] %v3931
    %s3936 = scalar_lea.vmem [#allocation0], 248
    %v3937 = vld [vmem:[%s3936] sm:%s3752]
    %s3938 = sshllo.u32 0, 2
    %s3939 = smul.addr 2, 31
    %s3940 = scalar_lea.vmem %s1, %s3939
    %3941 = vst [vmem:[%s3940] sm:%s3938] %v3937
    %s3942 = scalar_lea.vmem [#allocation0], 256
    %v3943 = vld [vmem:[%s3942] sm:%s3752]
    %s3944 = sshllo.u32 0, 2
    %s3945 = smul.addr 2, 32
    %s3946 = scalar_lea.vmem %s1, %s3945
    %3947 = vst [vmem:[%s3946] sm:%s3944] %v3943
    %s3948 = scalar_lea.vmem [#allocation0], 264
    %v3949 = vld [vmem:[%s3948] sm:%s3752]
    %s3950 = sshllo.u32 0, 2
    %s3951 = smul.addr 2, 33
    %s3952 = scalar_lea.vmem %s1, %s3951
    %3953 = vst [vmem:[%s3952] sm:%s3950] %v3949
    %s3954 = scalar_lea.vmem [#allocation0], 272
    %v3955 = vld [vmem:[%s3954] sm:%s3752]
    %s3956 = sshllo.u32 0, 2
    %s3957 = smul.addr 2, 34
    %s3958 = scalar_lea.vmem %s1, %s3957
    %3959 = vst [vmem:[%s3958] sm:%s3956] %v3955
    %s3960 = scalar_lea.vmem [#allocation0], 280
    %v3961 = vld [vmem:[%s3960] sm:%s3752]
    %s3962 = sshllo.u32 0, 2
    %s3963 = smul.addr 2, 35
    %s3964 = scalar_lea.vmem %s1, %s3963
    %3965 = vst [vmem:[%s3964] sm:%s3962] %v3961
    %s3966 = scalar_lea.vmem [#allocation0], 288
    %v3967 = vld [vmem:[%s3966] sm:%s3752]
    %s3968 = sshllo.u32 0, 2
    %s3969 = smul.addr 2, 36
    %s3970 = scalar_lea.vmem %s1, %s3969
    %3971 = vst [vmem:[%s3970] sm:%s3968] %v3967
    %s3972 = scalar_lea.vmem [#allocation0], 296
    %v3973 = vld [vmem:[%s3972] sm:%s3752]
    %s3974 = sshllo.u32 0, 2
    %s3975 = smul.addr 2, 37
    %s3976 = scalar_lea.vmem %s1, %s3975
    %3977 = vst [vmem:[%s3976] sm:%s3974] %v3973
    %s3978 = scalar_lea.vmem [#allocation0], 304
    %v3979 = vld [vmem:[%s3978] sm:%s3752]
    %s3980 = sshllo.u32 0, 2
    %s3981 = smul.addr 2, 38
    %s3982 = scalar_lea.vmem %s1, %s3981
    %3983 = vst [vmem:[%s3982] sm:%s3980] %v3979
    %s3984 = scalar_lea.vmem [#allocation0], 312
    %v3985 = vld [vmem:[%s3984] sm:%s3752]
    %s3986 = sshllo.u32 0, 2
    %s3987 = smul.addr 2, 39
    %s3988 = scalar_lea.vmem %s1, %s3987
    %3989 = vst [vmem:[%s3988] sm:%s3986] %v3985
    %s3990 = scalar_lea.vmem [#allocation0], 320
    %v3991 = vld [vmem:[%s3990] sm:%s3752]
    %s3992 = sshllo.u32 0, 2
    %s3993 = smul.addr 2, 40
    %s3994 = scalar_lea.vmem %s1, %s3993
    %3995 = vst [vmem:[%s3994] sm:%s3992] %v3991
    %s3996 = scalar_lea.vmem [#allocation0], 328
    %v3997 = vld [vmem:[%s3996] sm:%s3752]
    %s3998 = sshllo.u32 0, 2
    %s3999 = smul.addr 2, 41
    %s4000 = scalar_lea.vmem %s1, %s3999
    %4001 = vst [vmem:[%s4000] sm:%s3998] %v3997
    %s4002 = scalar_lea.vmem [#allocation0], 336
    %v4003 = vld [vmem:[%s4002] sm:%s3752]
    %s4004 = sshllo.u32 0, 2
    %s4005 = smul.addr 2, 42
    %s4006 = scalar_lea.vmem %s1, %s4005
    %4007 = vst [vmem:[%s4006] sm:%s4004] %v4003
    %s4008 = scalar_lea.vmem [#allocation0], 344
    %v4009 = vld [vmem:[%s4008] sm:%s3752]
    %s4010 = sshllo.u32 0, 2
    %s4011 = smul.addr 2, 43
    %s4012 = scalar_lea.vmem %s1, %s4011
    %4013 = vst [vmem:[%s4012] sm:%s4010] %v4009
    %s4014 = scalar_lea.vmem [#allocation0], 352
    %v4015 = vld [vmem:[%s4014] sm:%s3752]
    %s4016 = sshllo.u32 0, 2
    %s4017 = smul.addr 2, 44
    %s4018 = scalar_lea.vmem %s1, %s4017
    %4019 = vst [vmem:[%s4018] sm:%s4016] %v4015
    %s4020 = scalar_lea.vmem [#allocation0], 360
    %v4021 = vld [vmem:[%s4020] sm:%s3752]
    %s4022 = sshllo.u32 0, 2
    %s4023 = smul.addr 2, 45
    %s4024 = scalar_lea.vmem %s1, %s4023
    %4025 = vst [vmem:[%s4024] sm:%s4022] %v4021
    %s4026 = scalar_lea.vmem [#allocation0], 368
    %v4027 = vld [vmem:[%s4026] sm:%s3752]
    %s4028 = sshllo.u32 0, 2
    %s4029 = smul.addr 2, 46
    %s4030 = scalar_lea.vmem %s1, %s4029
    %4031 = vst [vmem:[%s4030] sm:%s4028] %v4027
    %s4032 = scalar_lea.vmem [#allocation0], 376
    %v4033 = vld [vmem:[%s4032] sm:%s3752]
    %s4034 = sshllo.u32 0, 2
    %s4035 = smul.addr 2, 47
    %s4036 = scalar_lea.vmem %s1, %s4035
    %4037 = vst [vmem:[%s4036] sm:%s4034] %v4033
    %s4038 = scalar_lea.vmem [#allocation0], 384
    %v4039 = vld [vmem:[%s4038] sm:%s3752]
    %s4040 = sshllo.u32 0, 2
    %s4041 = smul.addr 2, 48
    %s4042 = scalar_lea.vmem %s1, %s4041
    %4043 = vst [vmem:[%s4042] sm:%s4040] %v4039
    %s4044 = scalar_lea.vmem [#allocation0], 392
    %v4045 = vld [vmem:[%s4044] sm:%s3752]
    %s4046 = sshllo.u32 0, 2
    %s4047 = smul.addr 2, 49
    %s4048 = scalar_lea.vmem %s1, %s4047
    %4049 = vst [vmem:[%s4048] sm:%s4046] %v4045
    %s4050 = scalar_lea.vmem [#allocation0], 400
    %v4051 = vld [vmem:[%s4050] sm:%s3752]
    %s4052 = sshllo.u32 0, 2
    %s4053 = smul.addr 2, 50
    %s4054 = scalar_lea.vmem %s1, %s4053
    %4055 = vst [vmem:[%s4054] sm:%s4052] %v4051
    %s4056 = scalar_lea.vmem [#allocation0], 408
    %v4057 = vld [vmem:[%s4056] sm:%s3752]
    %s4058 = sshllo.u32 0, 2
    %s4059 = smul.addr 2, 51
    %s4060 = scalar_lea.vmem %s1, %s4059
    %4061 = vst [vmem:[%s4060] sm:%s4058] %v4057
    %s4062 = scalar_lea.vmem [#allocation0], 416
    %v4063 = vld [vmem:[%s4062] sm:%s3752]
    %s4064 = sshllo.u32 0, 2
    %s4065 = smul.addr 2, 52
    %s4066 = scalar_lea.vmem %s1, %s4065
    %4067 = vst [vmem:[%s4066] sm:%s4064] %v4063
    %s4068 = scalar_lea.vmem [#allocation0], 424
    %v4069 = vld [vmem:[%s4068] sm:%s3752]
    %s4070 = sshllo.u32 0, 2
    %s4071 = smul.addr 2, 53
    %s4072 = scalar_lea.vmem %s1, %s4071
    %4073 = vst [vmem:[%s4072] sm:%s4070] %v4069
    %s4074 = scalar_lea.vmem [#allocation0], 432
    %v4075 = vld [vmem:[%s4074] sm:%s3752]
    %s4076 = sshllo.u32 0, 2
    %s4077 = smul.addr 2, 54
    %s4078 = scalar_lea.vmem %s1, %s4077
    %4079 = vst [vmem:[%s4078] sm:%s4076] %v4075
    %s4080 = scalar_lea.vmem [#allocation0], 440
    %v4081 = vld [vmem:[%s4080] sm:%s3752]
    %s4082 = sshllo.u32 0, 2
    %s4083 = smul.addr 2, 55
    %s4084 = scalar_lea.vmem %s1, %s4083
    %4085 = vst [vmem:[%s4084] sm:%s4082] %v4081
    %s4086 = scalar_lea.vmem [#allocation0], 448
    %v4087 = vld [vmem:[%s4086] sm:%s3752]
    %s4088 = sshllo.u32 0, 2
    %s4089 = smul.addr 2, 56
    %s4090 = scalar_lea.vmem %s1, %s4089
    %4091 = vst [vmem:[%s4090] sm:%s4088] %v4087
    %s4092 = scalar_lea.vmem [#allocation0], 456
    %v4093 = vld [vmem:[%s4092] sm:%s3752]
    %s4094 = sshllo.u32 0, 2
    %s4095 = smul.addr 2, 57
    %s4096 = scalar_lea.vmem %s1, %s4095
    %4097 = vst [vmem:[%s4096] sm:%s4094] %v4093
    %s4098 = scalar_lea.vmem [#allocation0], 464
    %v4099 = vld [vmem:[%s4098] sm:%s3752]
    %s4100 = sshllo.u32 0, 2
    %s4101 = smul.addr 2, 58
    %s4102 = scalar_lea.vmem %s1, %s4101
    %4103 = vst [vmem:[%s4102] sm:%s4100] %v4099
    %s4104 = scalar_lea.vmem [#allocation0], 472
    %v4105 = vld [vmem:[%s4104] sm:%s3752]
    %s4106 = sshllo.u32 0, 2
    %s4107 = smul.addr 2, 59
    %s4108 = scalar_lea.vmem %s1, %s4107
    %4109 = vst [vmem:[%s4108] sm:%s4106] %v4105
    %s4110 = scalar_lea.vmem [#allocation0], 480
    %v4111 = vld [vmem:[%s4110] sm:%s3752]
    %s4112 = sshllo.u32 0, 2
    %s4113 = smul.addr 2, 60
    %s4114 = scalar_lea.vmem %s1, %s4113
    %4115 = vst [vmem:[%s4114] sm:%s4112] %v4111
    %s4116 = scalar_lea.vmem [#allocation0], 488
    %v4117 = vld [vmem:[%s4116] sm:%s3752]
    %s4118 = sshllo.u32 0, 2
    %s4119 = smul.addr 2, 61
    %s4120 = scalar_lea.vmem %s1, %s4119
    %4121 = vst [vmem:[%s4120] sm:%s4118] %v4117
    %s4122 = scalar_lea.vmem [#allocation0], 496
    %v4123 = vld [vmem:[%s4122] sm:%s3752]
    %s4124 = sshllo.u32 0, 2
    %s4125 = smul.addr 2, 62
    %s4126 = scalar_lea.vmem %s1, %s4125
    %4127 = vst [vmem:[%s4126] sm:%s4124] %v4123
    %s4128 = scalar_lea.vmem [#allocation0], 504
    %v4129 = vld [vmem:[%s4128] sm:%s3752]
    %s4130 = sshllo.u32 0, 2
    %s4131 = smul.addr 2, 63
    %s4132 = scalar_lea.vmem %s1, %s4131
    %4133 = vst [vmem:[%s4132] sm:%s4130] %v4129

// kernel: multidim_stacking_forward.1
$region0: #{multidim_stacking_forward.1}
  #allocation0 [shape = 'u32[]', space=smem, size = 0x4, offset = 0x4, fixed_abs, tag = 'smem constant byte address 0x4 - core index']
  #allocation1 [shape = 'u32[144,128]{1,0:T(1,128)}', space=vmem, size = 0x12000, scoped, tag = 'internal scratch']
  %s0 = inlined_call_operand.vmem [shape: f32[2,8192], index: 0, kind: input, shape index: {}]
  %s1 = inlined_call_operand.hbm [shape: bf16[8192,128], index: 1, kind: input, shape index: {}]
  %s2 = inlined_call_operand.hbm [shape: f32[1,128], index: 2, kind: input, shape index: {}]
  %s3 = inlined_call_operand.vmem [shape: f32[2,128], index: 3, kind: output, shape index: {}]
  %s4 = sld [smem:[#allocation0]]
  $region34: #{multidim_stacking_forward.1} parent=0
    _
  %s6 = ssub.s32 1, %s4
  %s7 = scalar_select 0, %s6, %s4
  $region1: #{multidim_stacking_forward.1} parent=0
    #allocation2 [shape = 'u8[2097152]{0}', space=vmem, size = 0x200000, scoped, tag = 'input window, operand 1, single buffered']
    #allocation3 [shape = 's32[1]{0}', space=sflag, size = 0x4, scoped, tag = 'scoped memory for multidim_stacking_forward.1']
    #allocation4 [shape = 'u8[512]{0}', space=vmem, size = 0x400, scoped, tag = 'input window, operand 2, single buffered']
    #allocation5 [shape = 's32[1]{0}', space=sflag, size = 0x4, scoped, tag = 'scoped memory for multidim_stacking_forward.1']
    %8 = vsyncpa [#allocation3], 0
    %9 = vsyncpa [#allocation5], 0
    // Predicated region
    $region2: #{multidim_stacking_forward.1} parent=1 // pred_check
      _
    $region3: #{multidim_stacking_forward.1} parent=1 // pred_check_branch
      %11 = sbr.rel (0) target = $region5
    $region4: #{multidim_stacking_forward.1} parent=1 // pred_region
      _
    $region5: #{multidim_stacking_forward.1} parent=1 // pred_fallthru
      _
    // Predicated region
    $region6: #{multidim_stacking_forward.1} parent=1 // pred_check
      _
    $region7: #{multidim_stacking_forward.1} parent=1 // pred_check_branch
      %13 = sbr.rel (0) target = $region9
    $region8: #{multidim_stacking_forward.1} parent=1 // pred_region
      %s15 = ssub.s32 65536, 65536
      %16 = vsyncadd [#allocation3], %s15
      %s17 = sshll.u32 [#allocation2], 4
      %s18 = int_to_ptr.vmem [resolvable:$true] %s17
      %23 = dma.hbm_to_vmem [thread:$0]  %s1, 65536, %s18, [#allocation3], 64, 64, 4
    $region9: #{multidim_stacking_forward.1} parent=1 // pred_fallthru
      _
    // Predicated region
    $region10: #{multidim_stacking_forward.1} parent=1 // pred_check
      _
    $region11: #{multidim_stacking_forward.1} parent=1 // pred_check_branch
      %25 = sbr.rel (0) target = $region13
    $region12: #{multidim_stacking_forward.1} parent=1 // pred_region
      %s27 = ssub.s32 16, 16
      %28 = vsyncadd [#allocation5], %s27
      %s30 = sshll.u32 [#allocation4], 4
      %s31 = int_to_ptr.vmem [resolvable:$true] %s30
      %33 = dma.hbm_to_vmem [thread:$0]  %s2, 16, %s31, [#allocation5]
    $region13: #{multidim_stacking_forward.1} parent=1 // pred_fallthru
      _
    // Predicated region
    $region14: #{multidim_stacking_forward.1} parent=1 // pred_check
      _
    $region15: #{multidim_stacking_forward.1} parent=1 // pred_check_branch
      %35 = sbr.rel (0) target = $region17
    $region16: #{multidim_stacking_forward.1} parent=1 // pred_region
      %36 = dma.done [#allocation3], 65536
    $region17: #{multidim_stacking_forward.1} parent=1 // pred_fallthru
      _
    // Predicated region
    $region18: #{multidim_stacking_forward.1} parent=1 // pred_check
      _
    $region19: #{multidim_stacking_forward.1} parent=1 // pred_check_branch
      %38 = sbr.rel (0) target = $region21
    $region20: #{multidim_stacking_forward.1} parent=1 // pred_region
      %39 = dma.done [#allocation5], 16
    $region21: #{multidim_stacking_forward.1} parent=1 // pred_fallthru
      _
    %p41 = scmp.eq.s32.totalorder 0, 0
    // Predicated region
    $region22: #{multidim_stacking_forward.1} parent=1 // pred_check
      %p42 = pneg %p41
    $region23: #{multidim_stacking_forward.1} parent=1 // pred_check_branch
      %44 = sbr.rel (%p42) target = $region25
    $region24: #{multidim_stacking_forward.1} parent=1 // pred_region
      %v45 = vld [vmem:[#allocation4] sm:$0x1]
      %v47 = vlaneseq
      %v48 = vshrl.u32 %v47, 7
      %v49 = vsub.s32 0, %v48
      %v50 = vrot.slane %v45, %v49
      %52 = vst [vmem:[%s3] sm:$0x3] %v50
    $region25: #{multidim_stacking_forward.1} parent=1 // pred_fallthru
      _
    %v53 = vld [vmem:[%s3] sm:$0x3]
    %v54 = vld [vmem:[%s0] sm:$0xff]
    %v55 = vld [vmem:[%s0 + $0x8] sm:$0xff]
    %v56 = vld [vmem:[%s0 + $0x10] sm:$0xff]
    %v57 = vld [vmem:[%s0 + $0x18] sm:$0xff]
    %v58 = vld [vmem:[%s0 + $0x20] sm:$0xff]
    %v59 = vld [vmem:[%s0 + $0x28] sm:$0xff]
    %v60 = vld [vmem:[%s0 + $0x30] sm:$0xff]
    %v61 = vld [vmem:[%s0 + $0x38] sm:$0xff]
    %v62 = vld [vmem:[%s0 + $0x40] sm:$0xff]
    %v63 = vld [vmem:[%s0 + $0x48] sm:$0xff]
    %v64 = vld [vmem:[%s0 + $0x50] sm:$0xff]
    %v65 = vld [vmem:[%s0 + $0x58] sm:$0xff]
    %v66 = vld [vmem:[%s0 + $0x60] sm:$0xff]
    %v67 = vld [vmem:[%s0 + $0x68] sm:$0xff]
    %v68 = vld [vmem:[%s0 + $0x70] sm:$0xff]
    %v69 = vld [vmem:[%s0 + $0x78] sm:$0xff]
    %v86 = vcombine.high %v54, %v54
    %v88 = vunpack.c.l.s4 1983009808
    %v89 = vunpack.c.0.s8 %v88
    %v90 = vlaneseq
    %v91 = vshrl.u32 %v90, 7
    %v92 = vsub.s32 %v89, %v91
    %v93 = vrot.slane %v54, %v92
    %v95 = vunpack.c.l.s4 1983009808
    %v96 = vunpack.c.0.s8 %v95
    %v97 = vlaneseq
    %v98 = vshrl.u32 %v97, 7
    %v99 = vsub.s32 %v96, %v98
    %v100 = vrot.slane %v86, %v99
    %v101 = vcombine.high %v93, %v93
    %v102 = vcombine.high %v100, %v100
    %v103 = vcombine.high %v55, %v55
    %v105 = vunpack.c.l.s4 1983009808
    %v106 = vunpack.c.0.s8 %v105
    %v107 = vlaneseq
    %v108 = vshrl.u32 %v107, 7
    %v109 = vsub.s32 %v106, %v108
    %v110 = vrot.slane %v55, %v109
    %v112 = vunpack.c.l.s4 1983009808
    %v113 = vunpack.c.0.s8 %v112
    %v114 = vlaneseq
    %v115 = vshrl.u32 %v114, 7
    %v116 = vsub.s32 %v113, %v115
    %v117 = vrot.slane %v103, %v116
    %v118 = vcombine.high %v110, %v110
    %v119 = vcombine.high %v117, %v117
    %v120 = vcombine.high %v56, %v56
    %v122 = vunpack.c.l.s4 1983009808
    %v123 = vunpack.c.0.s8 %v122
    %v124 = vlaneseq
    %v125 = vshrl.u32 %v124, 7
    %v126 = vsub.s32 %v123, %v125
    %v127 = vrot.slane %v56, %v126
    %v129 = vunpack.c.l.s4 1983009808
    %v130 = vunpack.c.0.s8 %v129
    %v131 = vlaneseq
    %v132 = vshrl.u32 %v131, 7
    %v133 = vsub.s32 %v130, %v132
    %v134 = vrot.slane %v120, %v133
    %v135 = vcombine.high %v127, %v127
    %v136 = vcombine.high %v134, %v134
    %v137 = vcombine.high %v57, %v57
    %v139 = vunpack.c.l.s4 1983009808
    %v140 = vunpack.c.0.s8 %v139
    %v141 = vlaneseq
    %v142 = vshrl.u32 %v141, 7
    %v143 = vsub.s32 %v140, %v142
    %v144 = vrot.slane %v57, %v143
    %v146 = vunpack.c.l.s4 1983009808
    %v147 = vunpack.c.0.s8 %v146
    %v148 = vlaneseq
    %v149 = vshrl.u32 %v148, 7
    %v150 = vsub.s32 %v147, %v149
    %v151 = vrot.slane %v137, %v150
    %v152 = vcombine.high %v144, %v144
    %v153 = vcombine.high %v151, %v151
    %v154 = vcombine.high %v58, %v58
    %v156 = vunpack.c.l.s4 1983009808
    %v157 = vunpack.c.0.s8 %v156
    %v158 = vlaneseq
    %v159 = vshrl.u32 %v158, 7
    %v160 = vsub.s32 %v157, %v159
    %v161 = vrot.slane %v58, %v160
    %v163 = vunpack.c.l.s4 1983009808
    %v164 = vunpack.c.0.s8 %v163
    %v165 = vlaneseq
    %v166 = vshrl.u32 %v165, 7
    %v167 = vsub.s32 %v164, %v166
    %v168 = vrot.slane %v154, %v167
    %v169 = vcombine.high %v161, %v161
    %v170 = vcombine.high %v168, %v168
    %v171 = vcombine.high %v59, %v59
    %v173 = vunpack.c.l.s4 1983009808
    %v174 = vunpack.c.0.s8 %v173
    %v175 = vlaneseq
    %v176 = vshrl.u32 %v175, 7
    %v177 = vsub.s32 %v174, %v176
    %v178 = vrot.slane %v59, %v177
    %v180 = vunpack.c.l.s4 1983009808
    %v181 = vunpack.c.0.s8 %v180
    %v182 = vlaneseq
    %v183 = vshrl.u32 %v182, 7
    %v184 = vsub.s32 %v181, %v183
    %v185 = vrot.slane %v171, %v184
    %v186 = vcombine.high %v178, %v178
    %v187 = vcombine.high %v185, %v185
    %v188 = vcombine.high %v60, %v60
    %v190 = vunpack.c.l.s4 1983009808
    %v191 = vunpack.c.0.s8 %v190
    %v192 = vlaneseq
    %v193 = vshrl.u32 %v192, 7
    %v194 = vsub.s32 %v191, %v193
    %v195 = vrot.slane %v60, %v194
    %v197 = vunpack.c.l.s4 1983009808
    %v198 = vunpack.c.0.s8 %v197
    %v199 = vlaneseq
    %v200 = vshrl.u32 %v199, 7
    %v201 = vsub.s32 %v198, %v200
    %v202 = vrot.slane %v188, %v201
    %v203 = vcombine.high %v195, %v195
    %v204 = vcombine.high %v202, %v202
    %v205 = vcombine.high %v61, %v61
    %v207 = vunpack.c.l.s4 1983009808
    %v208 = vunpack.c.0.s8 %v207
    %v209 = vlaneseq
    %v210 = vshrl.u32 %v209, 7
    %v211 = vsub.s32 %v208, %v210
    %v212 = vrot.slane %v61, %v211
    %v214 = vunpack.c.l.s4 1983009808
    %v215 = vunpack.c.0.s8 %v214
    %v216 = vlaneseq
    %v217 = vshrl.u32 %v216, 7
    %v218 = vsub.s32 %v215, %v217
    %v219 = vrot.slane %v205, %v218
    %v220 = vcombine.high %v212, %v212
    %v221 = vcombine.high %v219, %v219
    %v222 = vcombine.high %v62, %v62
    %v224 = vunpack.c.l.s4 1983009808
    %v225 = vunpack.c.0.s8 %v224
    %v226 = vlaneseq
    %v227 = vshrl.u32 %v226, 7
    %v228 = vsub.s32 %v225, %v227
    %v229 = vrot.slane %v62, %v228
    %v231 = vunpack.c.l.s4 1983009808
    %v232 = vunpack.c.0.s8 %v231
    %v233 = vlaneseq
    %v234 = vshrl.u32 %v233, 7
    %v235 = vsub.s32 %v232, %v234
    %v236 = vrot.slane %v222, %v235
    %v237 = vcombine.high %v229, %v229
    %v238 = vcombine.high %v236, %v236
    %v239 = vcombine.high %v63, %v63
    %v241 = vunpack.c.l.s4 1983009808
    %v242 = vunpack.c.0.s8 %v241
    %v243 = vlaneseq
    %v244 = vshrl.u32 %v243, 7
    %v245 = vsub.s32 %v242, %v244
    %v246 = vrot.slane %v63, %v245
    %v248 = vunpack.c.l.s4 1983009808
    %v249 = vunpack.c.0.s8 %v248
    %v250 = vlaneseq
    %v251 = vshrl.u32 %v250, 7
    %v252 = vsub.s32 %v249, %v251
    %v253 = vrot.slane %v239, %v252
    %v254 = vcombine.high %v246, %v246
    %v255 = vcombine.high %v253, %v253
    %v256 = vcombine.high %v64, %v64
    %v258 = vunpack.c.l.s4 1983009808
    %v259 = vunpack.c.0.s8 %v258
    %v260 = vlaneseq
    %v261 = vshrl.u32 %v260, 7
    %v262 = vsub.s32 %v259, %v261
    %v263 = vrot.slane %v64, %v262
    %v265 = vunpack.c.l.s4 1983009808
    %v266 = vunpack.c.0.s8 %v265
    %v267 = vlaneseq
    %v268 = vshrl.u32 %v267, 7
    %v269 = vsub.s32 %v266, %v268
    %v270 = vrot.slane %v256, %v269
    %v271 = vcombine.high %v263, %v263
    %v272 = vcombine.high %v270, %v270
    %v273 = vcombine.high %v65, %v65
    %v275 = vunpack.c.l.s4 1983009808
    %v276 = vunpack.c.0.s8 %v275
    %v277 = vlaneseq
    %v278 = vshrl.u32 %v277, 7
    %v279 = vsub.s32 %v276, %v278
    %v280 = vrot.slane %v65, %v279
    %v282 = vunpack.c.l.s4 1983009808
    %v283 = vunpack.c.0.s8 %v282
    %v284 = vlaneseq
    %v285 = vshrl.u32 %v284, 7
    %v286 = vsub.s32 %v283, %v285
    %v287 = vrot.slane %v273, %v286
    %v288 = vcombine.high %v280, %v280
    %v289 = vcombine.high %v287, %v287
    %v290 = vcombine.high %v66, %v66
    %v292 = vunpack.c.l.s4 1983009808
    %v293 = vunpack.c.0.s8 %v292
    %v294 = vlaneseq
    %v295 = vshrl.u32 %v294, 7
    %v296 = vsub.s32 %v293, %v295
    %v297 = vrot.slane %v66, %v296
    %v299 = vunpack.c.l.s4 1983009808
    %v300 = vunpack.c.0.s8 %v299
    %v301 = vlaneseq
    %v302 = vshrl.u32 %v301, 7
    %v303 = vsub.s32 %v300, %v302
    %v304 = vrot.slane %v290, %v303
    %v305 = vcombine.high %v297, %v297
    %v306 = vcombine.high %v304, %v304
    %v307 = vcombine.high %v67, %v67
    %v309 = vunpack.c.l.s4 1983009808
    %v310 = vunpack.c.0.s8 %v309
    %v311 = vlaneseq
    %v312 = vshrl.u32 %v311, 7
    %v313 = vsub.s32 %v310, %v312
    %v314 = vrot.slane %v67, %v313
    %v316 = vunpack.c.l.s4 1983009808
    %v317 = vunpack.c.0.s8 %v316
    %v318 = vlaneseq
    %v319 = vshrl.u32 %v318, 7
    %v320 = vsub.s32 %v317, %v319
    %v321 = vrot.slane %v307, %v320
    %v322 = vcombine.high %v314, %v314
    %v323 = vcombine.high %v321, %v321
    %v324 = vcombine.high %v68, %v68
    %v326 = vunpack.c.l.s4 1983009808
    %v327 = vunpack.c.0.s8 %v326
    %v328 = vlaneseq
    %v329 = vshrl.u32 %v328, 7
    %v330 = vsub.s32 %v327, %v329
    %v331 = vrot.slane %v68, %v330
    %v333 = vunpack.c.l.s4 1983009808
    %v334 = vunpack.c.0.s8 %v333
    %v335 = vlaneseq
    %v336 = vshrl.u32 %v335, 7
    %v337 = vsub.s32 %v334, %v336
    %v338 = vrot.slane %v324, %v337
    %v339 = vcombine.high %v331, %v331
    %v340 = vcombine.high %v338, %v338
    %v341 = vcombine.high %v69, %v69
    %v343 = vunpack.c.l.s4 1983009808
    %v344 = vunpack.c.0.s8 %v343
    %v345 = vlaneseq
    %v346 = vshrl.u32 %v345, 7
    %v347 = vsub.s32 %v344, %v346
    %v348 = vrot.slane %v69, %v347
    %v350 = vunpack.c.l.s4 1983009808
    %v351 = vunpack.c.0.s8 %v350
    %v352 = vlaneseq
    %v353 = vshrl.u32 %v352, 7
    %v354 = vsub.s32 %v351, %v353
    %v355 = vrot.slane %v341, %v354
    %v356 = vcombine.high %v348, %v348
    %v357 = vcombine.high %v355, %v355
    %v422 = vpack.c.bf16 %v93, %v93
    %v423 = vpack.c.bf16 %v101, %v101
    %v424 = vpack.c.bf16 %v100, %v100
    %v425 = vpack.c.bf16 %v102, %v102
    %v426 = vpack.c.bf16 %v110, %v110
    %v427 = vpack.c.bf16 %v118, %v118
    %v428 = vpack.c.bf16 %v117, %v117
    %v429 = vpack.c.bf16 %v119, %v119
    %v430 = vpack.c.bf16 %v127, %v127
    %v431 = vpack.c.bf16 %v135, %v135
    %v432 = vpack.c.bf16 %v134, %v134
    %v433 = vpack.c.bf16 %v136, %v136
    %v434 = vpack.c.bf16 %v144, %v144
    %v435 = vpack.c.bf16 %v152, %v152
    %v436 = vpack.c.bf16 %v151, %v151
    %v437 = vpack.c.bf16 %v153, %v153
    %v438 = vpack.c.bf16 %v161, %v161
    %v439 = vpack.c.bf16 %v169, %v169
    %v440 = vpack.c.bf16 %v168, %v168
    %v441 = vpack.c.bf16 %v170, %v170
    %v442 = vpack.c.bf16 %v178, %v178
    %v443 = vpack.c.bf16 %v186, %v186
    %v444 = vpack.c.bf16 %v185, %v185
    %v445 = vpack.c.bf16 %v187, %v187
    %v446 = vpack.c.bf16 %v195, %v195
    %v447 = vpack.c.bf16 %v203, %v203
    %v448 = vpack.c.bf16 %v202, %v202
    %v449 = vpack.c.bf16 %v204, %v204
    %v450 = vpack.c.bf16 %v212, %v212
    %v451 = vpack.c.bf16 %v220, %v220
    %v452 = vpack.c.bf16 %v219, %v219
    %v453 = vpack.c.bf16 %v221, %v221
    %v454 = vpack.c.bf16 %v229, %v229
    %v455 = vpack.c.bf16 %v237, %v237
    %v456 = vpack.c.bf16 %v236, %v236
    %v457 = vpack.c.bf16 %v238, %v238
    %v458 = vpack.c.bf16 %v246, %v246
    %v459 = vpack.c.bf16 %v254, %v254
    %v460 = vpack.c.bf16 %v253, %v253
    %v461 = vpack.c.bf16 %v255, %v255
    %v462 = vpack.c.bf16 %v263, %v263
    %v463 = vpack.c.bf16 %v271, %v271
    %v464 = vpack.c.bf16 %v270, %v270
    %v465 = vpack.c.bf16 %v272, %v272
    %v466 = vpack.c.bf16 %v280, %v280
    %v467 = vpack.c.bf16 %v288, %v288
    %v468 = vpack.c.bf16 %v287, %v287
    %v469 = vpack.c.bf16 %v289, %v289
    %v470 = vpack.c.bf16 %v297, %v297
    %v471 = vpack.c.bf16 %v305, %v305
    %v472 = vpack.c.bf16 %v304, %v304
    %v473 = vpack.c.bf16 %v306, %v306
    %v474 = vpack.c.bf16 %v314, %v314
    %v475 = vpack.c.bf16 %v322, %v322
    %v476 = vpack.c.bf16 %v321, %v321
    %v477 = vpack.c.bf16 %v323, %v323
    %v478 = vpack.c.bf16 %v331, %v331
    %v479 = vpack.c.bf16 %v339, %v339
    %v480 = vpack.c.bf16 %v338, %v338
    %v481 = vpack.c.bf16 %v340, %v340
    %v482 = vpack.c.bf16 %v348, %v348
    %v483 = vpack.c.bf16 %v356, %v356
    %v484 = vpack.c.bf16 %v355, %v355
    %v485 = vpack.c.bf16 %v357, %v357
    %v486 = vld [vmem:[#allocation2] sm:$0xf]
    %v487 = vld [vmem:[#allocation2 + $0x4] sm:$0xf]
    %v488 = vld [vmem:[#allocation2 + $0x8] sm:$0xf]
    %v489 = vld [vmem:[#allocation2 + $0xc] sm:$0xf]
    %v490 = vld [vmem:[#allocation2 + $0x10] sm:$0xf]
    %v491 = vld [vmem:[#allocation2 + $0x14] sm:$0xf]
    %v492 = vld [vmem:[#allocation2 + $0x18] sm:$0xf]
    %v493 = vld [vmem:[#allocation2 + $0x1c] sm:$0xf]
    %v494 = vld [vmem:[#allocation2 + $0x20] sm:$0xf]
    %v495 = vld [vmem:[#allocation2 + $0x24] sm:$0xf]
    %v496 = vld [vmem:[#allocation2 + $0x28] sm:$0xf]
    %v497 = vld [vmem:[#allocation2 + $0x2c] sm:$0xf]
    %v498 = vld [vmem:[#allocation2 + $0x30] sm:$0xf]
    %v499 = vld [vmem:[#allocation2 + $0x34] sm:$0xf]
    %v500 = vld [vmem:[#allocation2 + $0x38] sm:$0xf]
    %v501 = vld [vmem:[#allocation2 + $0x3c] sm:$0xf]
    %v502 = vld [vmem:[#allocation2 + $0x40] sm:$0xf]
    %v503 = vld [vmem:[#allocation2 + $0x44] sm:$0xf]
    %v504 = vld [vmem:[#allocation2 + $0x48] sm:$0xf]
    %v505 = vld [vmem:[#allocation2 + $0x4c] sm:$0xf]
    %v506 = vld [vmem:[#allocation2 + $0x50] sm:$0xf]
    %v507 = vld [vmem:[#allocation2 + $0x54] sm:$0xf]
    %v508 = vld [vmem:[#allocation2 + $0x58] sm:$0xf]
    %v509 = vld [vmem:[#allocation2 + $0x5c] sm:$0xf]
    %v510 = vld [vmem:[#allocation2 + $0x60] sm:$0xf]
    %v511 = vld [vmem:[#allocation2 + $0x64] sm:$0xf]
    %v512 = vld [vmem:[#allocation2 + $0x68] sm:$0xf]
    %v513 = vld [vmem:[#allocation2 + $0x6c] sm:$0xf]
    %v514 = vld [vmem:[#allocation2 + $0x70] sm:$0xf]
    %v515 = vld [vmem:[#allocation2 + $0x74] sm:$0xf]
    %v516 = vld [vmem:[#allocation2 + $0x78] sm:$0xf]
    %v517 = vld [vmem:[#allocation2 + $0x7c] sm:$0xf]
    %v518 = vld [vmem:[#allocation2 + $0x80] sm:$0xf]
    %v519 = vld [vmem:[#allocation2 + $0x84] sm:$0xf]
    %v520 = vld [vmem:[#allocation2 + $0x88] sm:$0xf]
    %v521 = vld [vmem:[#allocation2 + $0x8c] sm:$0xf]
    %v522 = vld [vmem:[#allocation2 + $0x90] sm:$0xf]
    %v523 = vld [vmem:[#allocation2 + $0x94] sm:$0xf]
    %v524 = vld [vmem:[#allocation2 + $0x98] sm:$0xf]
    %v525 = vld [vmem:[#allocation2 + $0x9c] sm:$0xf]
    %v526 = vld [vmem:[#allocation2 + $0xa0] sm:$0xf]
    %v527 = vld [vmem:[#allocation2 + $0xa4] sm:$0xf]
    %v528 = vld [vmem:[#allocation2 + $0xa8] sm:$0xf]
    %v529 = vld [vmem:[#allocation2 + $0xac] sm:$0xf]
    %v530 = vld [vmem:[#allocation2 + $0xb0] sm:$0xf]
    %v531 = vld [vmem:[#allocation2 + $0xb4] sm:$0xf]
    %v532 = vld [vmem:[#allocation2 + $0xb8] sm:$0xf]
    %v533 = vld [vmem:[#allocation2 + $0xbc] sm:$0xf]
    %v534 = vld [vmem:[#allocation2 + $0xc0] sm:$0xf]
    %v535 = vld [vmem:[#allocation2 + $0xc4] sm:$0xf]
    %v536 = vld [vmem:[#allocation2 + $0xc8] sm:$0xf]
    %v537 = vld [vmem:[#allocation2 + $0xcc] sm:$0xf]
    %v538 = vld [vmem:[#allocation2 + $0xd0] sm:$0xf]
    %v539 = vld [vmem:[#allocation2 + $0xd4] sm:$0xf]
    %v540 = vld [vmem:[#allocation2 + $0xd8] sm:$0xf]
    %v541 = vld [vmem:[#allocation2 + $0xdc] sm:$0xf]
    %v542 = vld [vmem:[#allocation2 + $0xe0] sm:$0xf]
    %v543 = vld [vmem:[#allocation2 + $0xe4] sm:$0xf]
    %v544 = vld [vmem:[#allocation2 + $0xe8] sm:$0xf]
    %v545 = vld [vmem:[#allocation2 + $0xec] sm:$0xf]
    %v546 = vld [vmem:[#allocation2 + $0xf0] sm:$0xf]
    %v547 = vld [vmem:[#allocation2 + $0xf4] sm:$0xf]
    %v548 = vld [vmem:[#allocation2 + $0xf8] sm:$0xf]
    %v549 = vld [vmem:[#allocation2 + $0xfc] sm:$0xf]
    %v550 = vld [vmem:[#allocation2 + $0x100] sm:$0xf]
    %v551 = vld [vmem:[#allocation2 + $0x104] sm:$0xf]
    %v552 = vld [vmem:[#allocation2 + $0x108] sm:$0xf]
    %v553 = vld [vmem:[#allocation2 + $0x10c] sm:$0xf]
    %v554 = vld [vmem:[#allocation2 + $0x110] sm:$0xf]
    %v555 = vld [vmem:[#allocation2 + $0x114] sm:$0xf]
    %v556 = vld [vmem:[#allocation2 + $0x118] sm:$0xf]
    %v557 = vld [vmem:[#allocation2 + $0x11c] sm:$0xf]
    %v558 = vld [vmem:[#allocation2 + $0x120] sm:$0xf]
    %v559 = vld [vmem:[#allocation2 + $0x124] sm:$0xf]
    %v560 = vld [vmem:[#allocation2 + $0x128] sm:$0xf]
    %v561 = vld [vmem:[#allocation2 + $0x12c] sm:$0xf]
    %v562 = vld [vmem:[#allocation2 + $0x130] sm:$0xf]
    %v563 = vld [vmem:[#allocation2 + $0x134] sm:$0xf]
    %v564 = vld [vmem:[#allocation2 + $0x138] sm:$0xf]
    %v565 = vld [vmem:[#allocation2 + $0x13c] sm:$0xf]
    %v566 = vld [vmem:[#allocation2 + $0x140] sm:$0xf]
    %v567 = vld [vmem:[#allocation2 + $0x144] sm:$0xf]
    %v568 = vld [vmem:[#allocation2 + $0x148] sm:$0xf]
    %v569 = vld [vmem:[#allocation2 + $0x14c] sm:$0xf]
    %v570 = vld [vmem:[#allocation2 + $0x150] sm:$0xf]
    %v571 = vld [vmem:[#allocation2 + $0x154] sm:$0xf]
    %v572 = vld [vmem:[#allocation2 + $0x158] sm:$0xf]
    %v573 = vld [vmem:[#allocation2 + $0x15c] sm:$0xf]
    %v574 = vld [vmem:[#allocation2 + $0x160] sm:$0xf]
    %v575 = vld [vmem:[#allocation2 + $0x164] sm:$0xf]
    %v576 = vld [vmem:[#allocation2 + $0x168] sm:$0xf]
    %v577 = vld [vmem:[#allocation2 + $0x16c] sm:$0xf]
    %v578 = vld [vmem:[#allocation2 + $0x170] sm:$0xf]
    %v579 = vld [vmem:[#allocation2 + $0x174] sm:$0xf]
    %v580 = vld [vmem:[#allocation2 + $0x178] sm:$0xf]
    %v581 = vld [vmem:[#allocation2 + $0x17c] sm:$0xf]
    %v582 = vld [vmem:[#allocation2 + $0x180] sm:$0xf]
    %v583 = vld [vmem:[#allocation2 + $0x184] sm:$0xf]
    %v584 = vld [vmem:[#allocation2 + $0x188] sm:$0xf]
    %v585 = vld [vmem:[#allocation2 + $0x18c] sm:$0xf]
    %v586 = vld [vmem:[#allocation2 + $0x190] sm:$0xf]
    %v587 = vld [vmem:[#allocation2 + $0x194] sm:$0xf]
    %v588 = vld [vmem:[#allocation2 + $0x198] sm:$0xf]
    %v589 = vld [vmem:[#allocation2 + $0x19c] sm:$0xf]
    %v590 = vld [vmem:[#allocation2 + $0x1a0] sm:$0xf]
    %v591 = vld [vmem:[#allocation2 + $0x1a4] sm:$0xf]
    %v592 = vld [vmem:[#allocation2 + $0x1a8] sm:$0xf]
    %v593 = vld [vmem:[#allocation2 + $0x1ac] sm:$0xf]
    %v594 = vld [vmem:[#allocation2 + $0x1b0] sm:$0xf]
    %v595 = vld [vmem:[#allocation2 + $0x1b4] sm:$0xf]
    %v596 = vld [vmem:[#allocation2 + $0x1b8] sm:$0xf]
    %v597 = vld [vmem:[#allocation2 + $0x1bc] sm:$0xf]
    %v598 = vld [vmem:[#allocation2 + $0x1c0] sm:$0xf]
    %v599 = vld [vmem:[#allocation2 + $0x1c4] sm:$0xf]
    %v600 = vld [vmem:[#allocation2 + $0x1c8] sm:$0xf]
    %v601 = vld [vmem:[#allocation2 + $0x1cc] sm:$0xf]
    %v602 = vld [vmem:[#allocation2 + $0x1d0] sm:$0xf]
    %v603 = vld [vmem:[#allocation2 + $0x1d4] sm:$0xf]
    %v604 = vld [vmem:[#allocation2 + $0x1d8] sm:$0xf]
    %v605 = vld [vmem:[#allocation2 + $0x1dc] sm:$0xf]
    %v606 = vld [vmem:[#allocation2 + $0x1e0] sm:$0xf]
    %v607 = vld [vmem:[#allocation2 + $0x1e4] sm:$0xf]
    %v608 = vld [vmem:[#allocation2 + $0x1e8] sm:$0xf]
    %v609 = vld [vmem:[#allocation2 + $0x1ec] sm:$0xf]
    %v610 = vld [vmem:[#allocation2 + $0x1f0] sm:$0xf]
    %v611 = vld [vmem:[#allocation2 + $0x1f4] sm:$0xf]
    %v612 = vld [vmem:[#allocation2 + $0x1f8] sm:$0xf]
    %v613 = vld [vmem:[#allocation2 + $0x1fc] sm:$0xf]
    %v614 = vld [vmem:[#allocation2 + $0x200] sm:$0xf]
    %v615 = vld [vmem:[#allocation2 + $0x204] sm:$0xf]
    %v616 = vld [vmem:[#allocation2 + $0x208] sm:$0xf]
    %v617 = vld [vmem:[#allocation2 + $0x20c] sm:$0xf]
    %v618 = vld [vmem:[#allocation2 + $0x210] sm:$0xf]
    %v619 = vld [vmem:[#allocation2 + $0x214] sm:$0xf]
    %v620 = vld [vmem:[#allocation2 + $0x218] sm:$0xf]
    %v621 = vld [vmem:[#allocation2 + $0x21c] sm:$0xf]
    %v622 = vld [vmem:[#allocation2 + $0x220] sm:$0xf]
    %v623 = vld [vmem:[#allocation2 + $0x224] sm:$0xf]
    %v624 = vld [vmem:[#allocation2 + $0x228] sm:$0xf]
    %v625 = vld [vmem:[#allocation2 + $0x22c] sm:$0xf]
    %v626 = vld [vmem:[#allocation2 + $0x230] sm:$0xf]
    %v627 = vld [vmem:[#allocation2 + $0x234] sm:$0xf]
    %v628 = vld [vmem:[#allocation2 + $0x238] sm:$0xf]
    %v629 = vld [vmem:[#allocation2 + $0x23c] sm:$0xf]
    %v630 = vld [vmem:[#allocation2 + $0x240] sm:$0xf]
    %v631 = vld [vmem:[#allocation2 + $0x244] sm:$0xf]
    %v632 = vld [vmem:[#allocation2 + $0x248] sm:$0xf]
    %v633 = vld [vmem:[#allocation2 + $0x24c] sm:$0xf]
    %v634 = vld [vmem:[#allocation2 + $0x250] sm:$0xf]
    %v635 = vld [vmem:[#allocation2 + $0x254] sm:$0xf]
    %v636 = vld [vmem:[#allocation2 + $0x258] sm:$0xf]
    %v637 = vld [vmem:[#allocation2 + $0x25c] sm:$0xf]
    %v638 = vld [vmem:[#allocation2 + $0x260] sm:$0xf]
    %v639 = vld [vmem:[#allocation2 + $0x264] sm:$0xf]
    %v640 = vld [vmem:[#allocation2 + $0x268] sm:$0xf]
    %v641 = vld [vmem:[#allocation2 + $0x26c] sm:$0xf]
    %v642 = vld [vmem:[#allocation2 + $0x270] sm:$0xf]
    %v643 = vld [vmem:[#allocation2 + $0x274] sm:$0xf]
    %v644 = vld [vmem:[#allocation2 + $0x278] sm:$0xf]
    %v645 = vld [vmem:[#allocation2 + $0x27c] sm:$0xf]
    %v646 = vld [vmem:[#allocation2 + $0x280] sm:$0xf]
    %v647 = vld [vmem:[#allocation2 + $0x284] sm:$0xf]
    %v648 = vld [vmem:[#allocation2 + $0x288] sm:$0xf]
    %v649 = vld [vmem:[#allocation2 + $0x28c] sm:$0xf]
    %v650 = vld [vmem:[#allocation2 + $0x290] sm:$0xf]
    %v651 = vld [vmem:[#allocation2 + $0x294] sm:$0xf]
    %v652 = vld [vmem:[#allocation2 + $0x298] sm:$0xf]
    %v653 = vld [vmem:[#allocation2 + $0x29c] sm:$0xf]
    %v654 = vld [vmem:[#allocation2 + $0x2a0] sm:$0xf]
    %v655 = vld [vmem:[#allocation2 + $0x2a4] sm:$0xf]
    %v656 = vld [vmem:[#allocation2 + $0x2a8] sm:$0xf]
    %v657 = vld [vmem:[#allocation2 + $0x2ac] sm:$0xf]
    %v658 = vld [vmem:[#allocation2 + $0x2b0] sm:$0xf]
    %v659 = vld [vmem:[#allocation2 + $0x2b4] sm:$0xf]
    %v660 = vld [vmem:[#allocation2 + $0x2b8] sm:$0xf]
    %v661 = vld [vmem:[#allocation2 + $0x2bc] sm:$0xf]
    %v662 = vld [vmem:[#allocation2 + $0x2c0] sm:$0xf]
    %v663 = vld [vmem:[#allocation2 + $0x2c4] sm:$0xf]
    %v664 = vld [vmem:[#allocation2 + $0x2c8] sm:$0xf]
    %v665 = vld [vmem:[#allocation2 + $0x2cc] sm:$0xf]
    %v666 = vld [vmem:[#allocation2 + $0x2d0] sm:$0xf]
    %v667 = vld [vmem:[#allocation2 + $0x2d4] sm:$0xf]
    %v668 = vld [vmem:[#allocation2 + $0x2d8] sm:$0xf]
    %v669 = vld [vmem:[#allocation2 + $0x2dc] sm:$0xf]
    %v670 = vld [vmem:[#allocation2 + $0x2e0] sm:$0xf]
    %v671 = vld [vmem:[#allocation2 + $0x2e4] sm:$0xf]
    %v672 = vld [vmem:[#allocation2 + $0x2e8] sm:$0xf]
    %v673 = vld [vmem:[#allocation2 + $0x2ec] sm:$0xf]
    %v674 = vld [vmem:[#allocation2 + $0x2f0] sm:$0xf]
    %v675 = vld [vmem:[#allocation2 + $0x2f4] sm:$0xf]
    %v676 = vld [vmem:[#allocation2 + $0x2f8] sm:$0xf]
    %v677 = vld [vmem:[#allocation2 + $0x2fc] sm:$0xf]
    %v678 = vld [vmem:[#allocation2 + $0x300] sm:$0xf]
    %v679 = vld [vmem:[#allocation2 + $0x304] sm:$0xf]
    %v680 = vld [vmem:[#allocation2 + $0x308] sm:$0xf]
    %v681 = vld [vmem:[#allocation2 + $0x30c] sm:$0xf]
    %v682 = vld [vmem:[#allocation2 + $0x310] sm:$0xf]
    %v683 = vld [vmem:[#allocation2 + $0x314] sm:$0xf]
    %v684 = vld [vmem:[#allocation2 + $0x318] sm:$0xf]
    %v685 = vld [vmem:[#allocation2 + $0x31c] sm:$0xf]
    %v686 = vld [vmem:[#allocation2 + $0x320] sm:$0xf]
    %v687 = vld [vmem:[#allocation2 + $0x324] sm:$0xf]
    %v688 = vld [vmem:[#allocation2 + $0x328] sm:$0xf]
    %v689 = vld [vmem:[#allocation2 + $0x32c] sm:$0xf]
    %v690 = vld [vmem:[#allocation2 + $0x330] sm:$0xf]
    %v691 = vld [vmem:[#allocation2 + $0x334] sm:$0xf]
    %v692 = vld [vmem:[#allocation2 + $0x338] sm:$0xf]
    %v693 = vld [vmem:[#allocation2 + $0x33c] sm:$0xf]
    %v694 = vld [vmem:[#allocation2 + $0x340] sm:$0xf]
    %v695 = vld [vmem:[#allocation2 + $0x344] sm:$0xf]
    %v696 = vld [vmem:[#allocation2 + $0x348] sm:$0xf]
    %v697 = vld [vmem:[#allocation2 + $0x34c] sm:$0xf]
    %v698 = vld [vmem:[#allocation2 + $0x350] sm:$0xf]
    %v699 = vld [vmem:[#allocation2 + $0x354] sm:$0xf]
    %v700 = vld [vmem:[#allocation2 + $0x358] sm:$0xf]
    %v701 = vld [vmem:[#allocation2 + $0x35c] sm:$0xf]
    %v702 = vld [vmem:[#allocation2 + $0x360] sm:$0xf]
    %v703 = vld [vmem:[#allocation2 + $0x364] sm:$0xf]
    %v704 = vld [vmem:[#allocation2 + $0x368] sm:$0xf]
    %v705 = vld [vmem:[#allocation2 + $0x36c] sm:$0xf]
    %v706 = vld [vmem:[#allocation2 + $0x370] sm:$0xf]
    %v707 = vld [vmem:[#allocation2 + $0x374] sm:$0xf]
    %v708 = vld [vmem:[#allocation2 + $0x378] sm:$0xf]
    %v709 = vld [vmem:[#allocation2 + $0x37c] sm:$0xf]
    %v710 = vld [vmem:[#allocation2 + $0x380] sm:$0xf]
    %v711 = vld [vmem:[#allocation2 + $0x384] sm:$0xf]
    %v712 = vld [vmem:[#allocation2 + $0x388] sm:$0xf]
    %v713 = vld [vmem:[#allocation2 + $0x38c] sm:$0xf]
    %v714 = vld [vmem:[#allocation2 + $0x390] sm:$0xf]
    %v715 = vld [vmem:[#allocation2 + $0x394] sm:$0xf]
    %v716 = vld [vmem:[#allocation2 + $0x398] sm:$0xf]
    %v717 = vld [vmem:[#allocation2 + $0x39c] sm:$0xf]
    %v718 = vld [vmem:[#allocation2 + $0x3a0] sm:$0xf]
    %v719 = vld [vmem:[#allocation2 + $0x3a4] sm:$0xf]
    %v720 = vld [vmem:[#allocation2 + $0x3a8] sm:$0xf]
    %v721 = vld [vmem:[#allocation2 + $0x3ac] sm:$0xf]
    %v722 = vld [vmem:[#allocation2 + $0x3b0] sm:$0xf]
    %v723 = vld [vmem:[#allocation2 + $0x3b4] sm:$0xf]
    %v724 = vld [vmem:[#allocation2 + $0x3b8] sm:$0xf]
    %v725 = vld [vmem:[#allocation2 + $0x3bc] sm:$0xf]
    %v726 = vld [vmem:[#allocation2 + $0x3c0] sm:$0xf]
    %v727 = vld [vmem:[#allocation2 + $0x3c4] sm:$0xf]
    %v728 = vld [vmem:[#allocation2 + $0x3c8] sm:$0xf]
    %v729 = vld [vmem:[#allocation2 + $0x3cc] sm:$0xf]
    %v730 = vld [vmem:[#allocation2 + $0x3d0] sm:$0xf]
    %v731 = vld [vmem:[#allocation2 + $0x3d4] sm:$0xf]
    %v732 = vld [vmem:[#allocation2 + $0x3d8] sm:$0xf]
    %v733 = vld [vmem:[#allocation2 + $0x3dc] sm:$0xf]
    %v734 = vld [vmem:[#allocation2 + $0x3e0] sm:$0xf]
    %v735 = vld [vmem:[#allocation2 + $0x3e4] sm:$0xf]
    %v736 = vld [vmem:[#allocation2 + $0x3e8] sm:$0xf]
    %v737 = vld [vmem:[#allocation2 + $0x3ec] sm:$0xf]
    %v738 = vld [vmem:[#allocation2 + $0x3f0] sm:$0xf]
    %v739 = vld [vmem:[#allocation2 + $0x3f4] sm:$0xf]
    %v740 = vld [vmem:[#allocation2 + $0x3f8] sm:$0xf]
    %v741 = vld [vmem:[#allocation2 + $0x3fc] sm:$0xf]
    %v742 = vld [vmem:[#allocation2 + $0x400] sm:$0xf]
    %v743 = vld [vmem:[#allocation2 + $0x404] sm:$0xf]
    %v744 = vld [vmem:[#allocation2 + $0x408] sm:$0xf]
    %v745 = vld [vmem:[#allocation2 + $0x40c] sm:$0xf]
    %v746 = vld [vmem:[#allocation2 + $0x410] sm:$0xf]
    %v747 = vld [vmem:[#allocation2 + $0x414] sm:$0xf]
    %v748 = vld [vmem:[#allocation2 + $0x418] sm:$0xf]
    %v749 = vld [vmem:[#allocation2 + $0x41c] sm:$0xf]
    %v750 = vld [vmem:[#allocation2 + $0x420] sm:$0xf]
    %v751 = vld [vmem:[#allocation2 + $0x424] sm:$0xf]
    %v752 = vld [vmem:[#allocation2 + $0x428] sm:$0xf]
    %v753 = vld [vmem:[#allocation2 + $0x42c] sm:$0xf]
    %v754 = vld [vmem:[#allocation2 + $0x430] sm:$0xf]
    %v755 = vld [vmem:[#allocation2 + $0x434] sm:$0xf]
    %v756 = vld [vmem:[#allocation2 + $0x438] sm:$0xf]
    %v757 = vld [vmem:[#allocation2 + $0x43c] sm:$0xf]
    %v758 = vld [vmem:[#allocation2 + $0x440] sm:$0xf]
    %v759 = vld [vmem:[#allocation2 + $0x444] sm:$0xf]
    %v760 = vld [vmem:[#allocation2 + $0x448] sm:$0xf]
    %v761 = vld [vmem:[#allocation2 + $0x44c] sm:$0xf]
    %v762 = vld [vmem:[#allocation2 + $0x450] sm:$0xf]
    %v763 = vld [vmem:[#allocation2 + $0x454] sm:$0xf]
    %v764 = vld [vmem:[#allocation2 + $0x458] sm:$0xf]
    %v765 = vld [vmem:[#allocation2 + $0x45c] sm:$0xf]
    %v766 = vld [vmem:[#allocation2 + $0x460] sm:$0xf]
    %v767 = vld [vmem:[#allocation2 + $0x464] sm:$0xf]
    %v768 = vld [vmem:[#allocation2 + $0x468] sm:$0xf]
    %v769 = vld [vmem:[#allocation2 + $0x46c] sm:$0xf]
    %v770 = vld [vmem:[#allocation2 + $0x470] sm:$0xf]
    %v771 = vld [vmem:[#allocation2 + $0x474] sm:$0xf]
    %v772 = vld [vmem:[#allocation2 + $0x478] sm:$0xf]
    %v773 = vld [vmem:[#allocation2 + $0x47c] sm:$0xf]
    %v774 = vld [vmem:[#allocation2 + $0x480] sm:$0xf]
    %v775 = vld [vmem:[#allocation2 + $0x484] sm:$0xf]
    %v776 = vld [vmem:[#allocation2 + $0x488] sm:$0xf]
    %v777 = vld [vmem:[#allocation2 + $0x48c] sm:$0xf]
    %v778 = vld [vmem:[#allocation2 + $0x490] sm:$0xf]
    %v779 = vld [vmem:[#allocation2 + $0x494] sm:$0xf]
    %v780 = vld [vmem:[#allocation2 + $0x498] sm:$0xf]
    %v781 = vld [vmem:[#allocation2 + $0x49c] sm:$0xf]
    %v782 = vld [vmem:[#allocation2 + $0x4a0] sm:$0xf]
    %v783 = vld [vmem:[#allocation2 + $0x4a4] sm:$0xf]
    %v784 = vld [vmem:[#allocation2 + $0x4a8] sm:$0xf]
    %v785 = vld [vmem:[#allocation2 + $0x4ac] sm:$0xf]
    %v786 = vld [vmem:[#allocation2 + $0x4b0] sm:$0xf]
    %v787 = vld [vmem:[#allocation2 + $0x4b4] sm:$0xf]
    %v788 = vld [vmem:[#allocation2 + $0x4b8] sm:$0xf]
    %v789 = vld [vmem:[#allocation2 + $0x4bc] sm:$0xf]
    %v790 = vld [vmem:[#allocation2 + $0x4c0] sm:$0xf]
    %v791 = vld [vmem:[#allocation2 + $0x4c4] sm:$0xf]
    %v792 = vld [vmem:[#allocation2 + $0x4c8] sm:$0xf]
    %v793 = vld [vmem:[#allocation2 + $0x4cc] sm:$0xf]
    %v794 = vld [vmem:[#allocation2 + $0x4d0] sm:$0xf]
    %v795 = vld [vmem:[#allocation2 + $0x4d4] sm:$0xf]
    %v796 = vld [vmem:[#allocation2 + $0x4d8] sm:$0xf]
    %v797 = vld [vmem:[#allocation2 + $0x4dc] sm:$0xf]
    %v798 = vld [vmem:[#allocation2 + $0x4e0] sm:$0xf]
    %v799 = vld [vmem:[#allocation2 + $0x4e4] sm:$0xf]
    %v800 = vld [vmem:[#allocation2 + $0x4e8] sm:$0xf]
    %v801 = vld [vmem:[#allocation2 + $0x4ec] sm:$0xf]
    %v802 = vld [vmem:[#allocation2 + $0x4f0] sm:$0xf]
    %v803 = vld [vmem:[#allocation2 + $0x4f4] sm:$0xf]
    %v804 = vld [vmem:[#allocation2 + $0x4f8] sm:$0xf]
    %v805 = vld [vmem:[#allocation2 + $0x4fc] sm:$0xf]
    %v806 = vld [vmem:[#allocation2 + $0x500] sm:$0xf]
    %v807 = vld [vmem:[#allocation2 + $0x504] sm:$0xf]
    %v808 = vld [vmem:[#allocation2 + $0x508] sm:$0xf]
    %v809 = vld [vmem:[#allocation2 + $0x50c] sm:$0xf]
    %v810 = vld [vmem:[#allocation2 + $0x510] sm:$0xf]
    %v811 = vld [vmem:[#allocation2 + $0x514] sm:$0xf]
    %v812 = vld [vmem:[#allocation2 + $0x518] sm:$0xf]
    %v813 = vld [vmem:[#allocation2 + $0x51c] sm:$0xf]
    %v814 = vld [vmem:[#allocation2 + $0x520] sm:$0xf]
    %v815 = vld [vmem:[#allocation2 + $0x524] sm:$0xf]
    %v816 = vld [vmem:[#allocation2 + $0x528] sm:$0xf]
    %v817 = vld [vmem:[#allocation2 + $0x52c] sm:$0xf]
    %v818 = vld [vmem:[#allocation2 + $0x530] sm:$0xf]
    %v819 = vld [vmem:[#allocation2 + $0x534] sm:$0xf]
    %v820 = vld [vmem:[#allocation2 + $0x538] sm:$0xf]
    %v821 = vld [vmem:[#allocation2 + $0x53c] sm:$0xf]
    %v822 = vld [vmem:[#allocation2 + $0x540] sm:$0xf]
    %v823 = vld [vmem:[#allocation2 + $0x544] sm:$0xf]
    %v824 = vld [vmem:[#allocation2 + $0x548] sm:$0xf]
    %v825 = vld [vmem:[#allocation2 + $0x54c] sm:$0xf]
    %v826 = vld [vmem:[#allocation2 + $0x550] sm:$0xf]
    %v827 = vld [vmem:[#allocation2 + $0x554] sm:$0xf]
    %v828 = vld [vmem:[#allocation2 + $0x558] sm:$0xf]
    %v829 = vld [vmem:[#allocation2 + $0x55c] sm:$0xf]
    %v830 = vld [vmem:[#allocation2 + $0x560] sm:$0xf]
    %v831 = vld [vmem:[#allocation2 + $0x564] sm:$0xf]
    %v832 = vld [vmem:[#allocation2 + $0x568] sm:$0xf]
    %v833 = vld [vmem:[#allocation2 + $0x56c] sm:$0xf]
    %v834 = vld [vmem:[#allocation2 + $0x570] sm:$0xf]
    %v835 = vld [vmem:[#allocation2 + $0x574] sm:$0xf]
    %v836 = vld [vmem:[#allocation2 + $0x578] sm:$0xf]
    %v837 = vld [vmem:[#allocation2 + $0x57c] sm:$0xf]
    %v838 = vld [vmem:[#allocation2 + $0x580] sm:$0xf]
    %v839 = vld [vmem:[#allocation2 + $0x584] sm:$0xf]
    %v840 = vld [vmem:[#allocation2 + $0x588] sm:$0xf]
    %v841 = vld [vmem:[#allocation2 + $0x58c] sm:$0xf]
    %v842 = vld [vmem:[#allocation2 + $0x590] sm:$0xf]
    %v843 = vld [vmem:[#allocation2 + $0x594] sm:$0xf]
    %v844 = vld [vmem:[#allocation2 + $0x598] sm:$0xf]
    %v845 = vld [vmem:[#allocation2 + $0x59c] sm:$0xf]
    %v846 = vld [vmem:[#allocation2 + $0x5a0] sm:$0xf]
    %v847 = vld [vmem:[#allocation2 + $0x5a4] sm:$0xf]
    %v848 = vld [vmem:[#allocation2 + $0x5a8] sm:$0xf]
    %v849 = vld [vmem:[#allocation2 + $0x5ac] sm:$0xf]
    %v850 = vld [vmem:[#allocation2 + $0x5b0] sm:$0xf]
    %v851 = vld [vmem:[#allocation2 + $0x5b4] sm:$0xf]
    %v852 = vld [vmem:[#allocation2 + $0x5b8] sm:$0xf]
    %v853 = vld [vmem:[#allocation2 + $0x5bc] sm:$0xf]
    %v854 = vld [vmem:[#allocation2 + $0x5c0] sm:$0xf]
    %v855 = vld [vmem:[#allocation2 + $0x5c4] sm:$0xf]
    %v856 = vld [vmem:[#allocation2 + $0x5c8] sm:$0xf]
    %v857 = vld [vmem:[#allocation2 + $0x5cc] sm:$0xf]
    %v858 = vld [vmem:[#allocation2 + $0x5d0] sm:$0xf]
    %v859 = vld [vmem:[#allocation2 + $0x5d4] sm:$0xf]
    %v860 = vld [vmem:[#allocation2 + $0x5d8] sm:$0xf]
    %v861 = vld [vmem:[#allocation2 + $0x5dc] sm:$0xf]
    %v862 = vld [vmem:[#allocation2 + $0x5e0] sm:$0xf]
    %v863 = vld [vmem:[#allocation2 + $0x5e4] sm:$0xf]
    %v864 = vld [vmem:[#allocation2 + $0x5e8] sm:$0xf]
    %v865 = vld [vmem:[#allocation2 + $0x5ec] sm:$0xf]
    %v866 = vld [vmem:[#allocation2 + $0x5f0] sm:$0xf]
    %v867 = vld [vmem:[#allocation2 + $0x5f4] sm:$0xf]
    %v868 = vld [vmem:[#allocation2 + $0x5f8] sm:$0xf]
    %v869 = vld [vmem:[#allocation2 + $0x5fc] sm:$0xf]
    %v870 = vld [vmem:[#allocation2 + $0x600] sm:$0xf]
    %v871 = vld [vmem:[#allocation2 + $0x604] sm:$0xf]
    %v872 = vld [vmem:[#allocation2 + $0x608] sm:$0xf]
    %v873 = vld [vmem:[#allocation2 + $0x60c] sm:$0xf]
    %v874 = vld [vmem:[#allocation2 + $0x610] sm:$0xf]
    %v875 = vld [vmem:[#allocation2 + $0x614] sm:$0xf]
    %v876 = vld [vmem:[#allocation2 + $0x618] sm:$0xf]
    %v877 = vld [vmem:[#allocation2 + $0x61c] sm:$0xf]
    %v878 = vld [vmem:[#allocation2 + $0x620] sm:$0xf]
    %v879 = vld [vmem:[#allocation2 + $0x624] sm:$0xf]
    %v880 = vld [vmem:[#allocation2 + $0x628] sm:$0xf]
    %v881 = vld [vmem:[#allocation2 + $0x62c] sm:$0xf]
    %v882 = vld [vmem:[#allocation2 + $0x630] sm:$0xf]
    %v883 = vld [vmem:[#allocation2 + $0x634] sm:$0xf]
    %v884 = vld [vmem:[#allocation2 + $0x638] sm:$0xf]
    %v885 = vld [vmem:[#allocation2 + $0x63c] sm:$0xf]
    %v886 = vld [vmem:[#allocation2 + $0x640] sm:$0xf]
    %v887 = vld [vmem:[#allocation2 + $0x644] sm:$0xf]
    %v888 = vld [vmem:[#allocation2 + $0x648] sm:$0xf]
    %v889 = vld [vmem:[#allocation2 + $0x64c] sm:$0xf]
    %v890 = vld [vmem:[#allocation2 + $0x650] sm:$0xf]
    %v891 = vld [vmem:[#allocation2 + $0x654] sm:$0xf]
    %v892 = vld [vmem:[#allocation2 + $0x658] sm:$0xf]
    %v893 = vld [vmem:[#allocation2 + $0x65c] sm:$0xf]
    %v894 = vld [vmem:[#allocation2 + $0x660] sm:$0xf]
    %v895 = vld [vmem:[#allocation2 + $0x664] sm:$0xf]
    %v896 = vld [vmem:[#allocation2 + $0x668] sm:$0xf]
    %v897 = vld [vmem:[#allocation2 + $0x66c] sm:$0xf]
    %v898 = vld [vmem:[#allocation2 + $0x670] sm:$0xf]
    %v899 = vld [vmem:[#allocation2 + $0x674] sm:$0xf]
    %v900 = vld [vmem:[#allocation2 + $0x678] sm:$0xf]
    %v901 = vld [vmem:[#allocation2 + $0x67c] sm:$0xf]
    %v902 = vld [vmem:[#allocation2 + $0x680] sm:$0xf]
    %v903 = vld [vmem:[#allocation2 + $0x684] sm:$0xf]
    %v904 = vld [vmem:[#allocation2 + $0x688] sm:$0xf]
    %v905 = vld [vmem:[#allocation2 + $0x68c] sm:$0xf]
    %v906 = vld [vmem:[#allocation2 + $0x690] sm:$0xf]
    %v907 = vld [vmem:[#allocation2 + $0x694] sm:$0xf]
    %v908 = vld [vmem:[#allocation2 + $0x698] sm:$0xf]
    %v909 = vld [vmem:[#allocation2 + $0x69c] sm:$0xf]
    %v910 = vld [vmem:[#allocation2 + $0x6a0] sm:$0xf]
    %v911 = vld [vmem:[#allocation2 + $0x6a4] sm:$0xf]
    %v912 = vld [vmem:[#allocation2 + $0x6a8] sm:$0xf]
    %v913 = vld [vmem:[#allocation2 + $0x6ac] sm:$0xf]
    %v914 = vld [vmem:[#allocation2 + $0x6b0] sm:$0xf]
    %v915 = vld [vmem:[#allocation2 + $0x6b4] sm:$0xf]
    %v916 = vld [vmem:[#allocation2 + $0x6b8] sm:$0xf]
    %v917 = vld [vmem:[#allocation2 + $0x6bc] sm:$0xf]
    %v918 = vld [vmem:[#allocation2 + $0x6c0] sm:$0xf]
    %v919 = vld [vmem:[#allocation2 + $0x6c4] sm:$0xf]
    %v920 = vld [vmem:[#allocation2 + $0x6c8] sm:$0xf]
    %v921 = vld [vmem:[#allocation2 + $0x6cc] sm:$0xf]
    %v922 = vld [vmem:[#allocation2 + $0x6d0] sm:$0xf]
    %v923 = vld [vmem:[#allocation2 + $0x6d4] sm:$0xf]
    %v924 = vld [vmem:[#allocation2 + $0x6d8] sm:$0xf]
    %v925 = vld [vmem:[#allocation2 + $0x6dc] sm:$0xf]
    %v926 = vld [vmem:[#allocation2 + $0x6e0] sm:$0xf]
    %v927 = vld [vmem:[#allocation2 + $0x6e4] sm:$0xf]
    %v928 = vld [vmem:[#allocation2 + $0x6e8] sm:$0xf]
    %v929 = vld [vmem:[#allocation2 + $0x6ec] sm:$0xf]
    %v930 = vld [vmem:[#allocation2 + $0x6f0] sm:$0xf]
    %v931 = vld [vmem:[#allocation2 + $0x6f4] sm:$0xf]
    %v932 = vld [vmem:[#allocation2 + $0x6f8] sm:$0xf]
    %v933 = vld [vmem:[#allocation2 + $0x6fc] sm:$0xf]
    %v934 = vld [vmem:[#allocation2 + $0x700] sm:$0xf]
    %v935 = vld [vmem:[#allocation2 + $0x704] sm:$0xf]
    %v936 = vld [vmem:[#allocation2 + $0x708] sm:$0xf]
    %v937 = vld [vmem:[#allocation2 + $0x70c] sm:$0xf]
    %v938 = vld [vmem:[#allocation2 + $0x710] sm:$0xf]
    %v939 = vld [vmem:[#allocation2 + $0x714] sm:$0xf]
    %v940 = vld [vmem:[#allocation2 + $0x718] sm:$0xf]
    %v941 = vld [vmem:[#allocation2 + $0x71c] sm:$0xf]
    %v942 = vld [vmem:[#allocation2 + $0x720] sm:$0xf]
    %v943 = vld [vmem:[#allocation2 + $0x724] sm:$0xf]
    %v944 = vld [vmem:[#allocation2 + $0x728] sm:$0xf]
    %v945 = vld [vmem:[#allocation2 + $0x72c] sm:$0xf]
    %v946 = vld [vmem:[#allocation2 + $0x730] sm:$0xf]
    %v947 = vld [vmem:[#allocation2 + $0x734] sm:$0xf]
    %v948 = vld [vmem:[#allocation2 + $0x738] sm:$0xf]
    %v949 = vld [vmem:[#allocation2 + $0x73c] sm:$0xf]
    %v950 = vld [vmem:[#allocation2 + $0x740] sm:$0xf]
    %v951 = vld [vmem:[#allocation2 + $0x744] sm:$0xf]
    %v952 = vld [vmem:[#allocation2 + $0x748] sm:$0xf]
    %v953 = vld [vmem:[#allocation2 + $0x74c] sm:$0xf]
    %v954 = vld [vmem:[#allocation2 + $0x750] sm:$0xf]
    %v955 = vld [vmem:[#allocation2 + $0x754] sm:$0xf]
    %v956 = vld [vmem:[#allocation2 + $0x758] sm:$0xf]
    %v957 = vld [vmem:[#allocation2 + $0x75c] sm:$0xf]
    %v958 = vld [vmem:[#allocation2 + $0x760] sm:$0xf]
    %v959 = vld [vmem:[#allocation2 + $0x764] sm:$0xf]
    %v960 = vld [vmem:[#allocation2 + $0x768] sm:$0xf]
    %v961 = vld [vmem:[#allocation2 + $0x76c] sm:$0xf]
    %v962 = vld [vmem:[#allocation2 + $0x770] sm:$0xf]
    %v963 = vld [vmem:[#allocation2 + $0x774] sm:$0xf]
    %v964 = vld [vmem:[#allocation2 + $0x778] sm:$0xf]
    %v965 = vld [vmem:[#allocation2 + $0x77c] sm:$0xf]
    %v966 = vld [vmem:[#allocation2 + $0x780] sm:$0xf]
    %v967 = vld [vmem:[#allocation2 + $0x784] sm:$0xf]
    %v968 = vld [vmem:[#allocation2 + $0x788] sm:$0xf]
    %v969 = vld [vmem:[#allocation2 + $0x78c] sm:$0xf]
    %v970 = vld [vmem:[#allocation2 + $0x790] sm:$0xf]
    %v971 = vld [vmem:[#allocation2 + $0x794] sm:$0xf]
    %v972 = vld [vmem:[#allocation2 + $0x798] sm:$0xf]
    %v973 = vld [vmem:[#allocation2 + $0x79c] sm:$0xf]
    %v974 = vld [vmem:[#allocation2 + $0x7a0] sm:$0xf]
    %v975 = vld [vmem:[#allocation2 + $0x7a4] sm:$0xf]
    %v976 = vld [vmem:[#allocation2 + $0x7a8] sm:$0xf]
    %v977 = vld [vmem:[#allocation2 + $0x7ac] sm:$0xf]
    %v978 = vld [vmem:[#allocation2 + $0x7b0] sm:$0xf]
    %v979 = vld [vmem:[#allocation2 + $0x7b4] sm:$0xf]
    %v980 = vld [vmem:[#allocation2 + $0x7b8] sm:$0xf]
    %v981 = vld [vmem:[#allocation2 + $0x7bc] sm:$0xf]
    %v982 = vld [vmem:[#allocation2 + $0x7c0] sm:$0xf]
    %v983 = vld [vmem:[#allocation2 + $0x7c4] sm:$0xf]
    %v984 = vld [vmem:[#allocation2 + $0x7c8] sm:$0xf]
    %v985 = vld [vmem:[#allocation2 + $0x7cc] sm:$0xf]
    %v986 = vld [vmem:[#allocation2 + $0x7d0] sm:$0xf]
    %v987 = vld [vmem:[#allocation2 + $0x7d4] sm:$0xf]
    %v988 = vld [vmem:[#allocation2 + $0x7d8] sm:$0xf]
    %v989 = vld [vmem:[#allocation2 + $0x7dc] sm:$0xf]
    %v990 = vld [vmem:[#allocation2 + $0x7e0] sm:$0xf]
    %v991 = vld [vmem:[#allocation2 + $0x7e4] sm:$0xf]
    %v992 = vld [vmem:[#allocation2 + $0x7e8] sm:$0xf]
    %v993 = vld [vmem:[#allocation2 + $0x7ec] sm:$0xf]
    %v994 = vld [vmem:[#allocation2 + $0x7f0] sm:$0xf]
    %v995 = vld [vmem:[#allocation2 + $0x7f4] sm:$0xf]
    %v996 = vld [vmem:[#allocation2 + $0x7f8] sm:$0xf]
    %v997 = vld [vmem:[#allocation2 + $0x7fc] sm:$0xf]
    %v998 = vld [vmem:[#allocation2 + $0x800] sm:$0xf]
    %v999 = vld [vmem:[#allocation2 + $0x804] sm:$0xf]
    %v1000 = vld [vmem:[#allocation2 + $0x808] sm:$0xf]
    %v1001 = vld [vmem:[#allocation2 + $0x80c] sm:$0xf]
    %v1002 = vld [vmem:[#allocation2 + $0x810] sm:$0xf]
    %v1003 = vld [vmem:[#allocation2 + $0x814] sm:$0xf]
    %v1004 = vld [vmem:[#allocation2 + $0x818] sm:$0xf]
    %v1005 = vld [vmem:[#allocation2 + $0x81c] sm:$0xf]
    %v1006 = vld [vmem:[#allocation2 + $0x820] sm:$0xf]
    %v1007 = vld [vmem:[#allocation2 + $0x824] sm:$0xf]
    %v1008 = vld [vmem:[#allocation2 + $0x828] sm:$0xf]
    %v1009 = vld [vmem:[#allocation2 + $0x82c] sm:$0xf]
    %v1010 = vld [vmem:[#allocation2 + $0x830] sm:$0xf]
    %v1011 = vld [vmem:[#allocation2 + $0x834] sm:$0xf]
    %v1012 = vld [vmem:[#allocation2 + $0x838] sm:$0xf]
    %v1013 = vld [vmem:[#allocation2 + $0x83c] sm:$0xf]
    %v1014 = vld [vmem:[#allocation2 + $0x840] sm:$0xf]
    %v1015 = vld [vmem:[#allocation2 + $0x844] sm:$0xf]
    %v1016 = vld [vmem:[#allocation2 + $0x848] sm:$0xf]
    %v1017 = vld [vmem:[#allocation2 + $0x84c] sm:$0xf]
    %v1018 = vld [vmem:[#allocation2 + $0x850] sm:$0xf]
    %v1019 = vld [vmem:[#allocation2 + $0x854] sm:$0xf]
    %v1020 = vld [vmem:[#allocation2 + $0x858] sm:$0xf]
    %v1021 = vld [vmem:[#allocation2 + $0x85c] sm:$0xf]
    %v1022 = vld [vmem:[#allocation2 + $0x860] sm:$0xf]
    %v1023 = vld [vmem:[#allocation2 + $0x864] sm:$0xf]
    %v1024 = vld [vmem:[#allocation2 + $0x868] sm:$0xf]
    %v1025 = vld [vmem:[#allocation2 + $0x86c] sm:$0xf]
    %v1026 = vld [vmem:[#allocation2 + $0x870] sm:$0xf]
    %v1027 = vld [vmem:[#allocation2 + $0x874] sm:$0xf]
    %v1028 = vld [vmem:[#allocation2 + $0x878] sm:$0xf]
    %v1029 = vld [vmem:[#allocation2 + $0x87c] sm:$0xf]
    %v1030 = vld [vmem:[#allocation2 + $0x880] sm:$0xf]
    %v1031 = vld [vmem:[#allocation2 + $0x884] sm:$0xf]
    %v1032 = vld [vmem:[#allocation2 + $0x888] sm:$0xf]
    %v1033 = vld [vmem:[#allocation2 + $0x88c] sm:$0xf]
    %v1034 = vld [vmem:[#allocation2 + $0x890] sm:$0xf]
    %v1035 = vld [vmem:[#allocation2 + $0x894] sm:$0xf]
    %v1036 = vld [vmem:[#allocation2 + $0x898] sm:$0xf]
    %v1037 = vld [vmem:[#allocation2 + $0x89c] sm:$0xf]
    %v1038 = vld [vmem:[#allocation2 + $0x8a0] sm:$0xf]
    %v1039 = vld [vmem:[#allocation2 + $0x8a4] sm:$0xf]
    %v1040 = vld [vmem:[#allocation2 + $0x8a8] sm:$0xf]
    %v1041 = vld [vmem:[#allocation2 + $0x8ac] sm:$0xf]
    %v1042 = vld [vmem:[#allocation2 + $0x8b0] sm:$0xf]
    %v1043 = vld [vmem:[#allocation2 + $0x8b4] sm:$0xf]
    %v1044 = vld [vmem:[#allocation2 + $0x8b8] sm:$0xf]
    %v1045 = vld [vmem:[#allocation2 + $0x8bc] sm:$0xf]
    %v1046 = vld [vmem:[#allocation2 + $0x8c0] sm:$0xf]
    %v1047 = vld [vmem:[#allocation2 + $0x8c4] sm:$0xf]
    %v1048 = vld [vmem:[#allocation2 + $0x8c8] sm:$0xf]
    %v1049 = vld [vmem:[#allocation2 + $0x8cc] sm:$0xf]
    %v1050 = vld [vmem:[#allocation2 + $0x8d0] sm:$0xf]
    %v1051 = vld [vmem:[#allocation2 + $0x8d4] sm:$0xf]
    %v1052 = vld [vmem:[#allocation2 + $0x8d8] sm:$0xf]
    %v1053 = vld [vmem:[#allocation2 + $0x8dc] sm:$0xf]
    %v1054 = vld [vmem:[#allocation2 + $0x8e0] sm:$0xf]
    %v1055 = vld [vmem:[#allocation2 + $0x8e4] sm:$0xf]
    %v1056 = vld [vmem:[#allocation2 + $0x8e8] sm:$0xf]
    %v1057 = vld [vmem:[#allocation2 + $0x8ec] sm:$0xf]
    %v1058 = vld [vmem:[#allocation2 + $0x8f0] sm:$0xf]
    %v1059 = vld [vmem:[#allocation2 + $0x8f4] sm:$0xf]
    %v1060 = vld [vmem:[#allocation2 + $0x8f8] sm:$0xf]
    %v1061 = vld [vmem:[#allocation2 + $0x8fc] sm:$0xf]
    %v1062 = vld [vmem:[#allocation2 + $0x900] sm:$0xf]
    %v1063 = vld [vmem:[#allocation2 + $0x904] sm:$0xf]
    %v1064 = vld [vmem:[#allocation2 + $0x908] sm:$0xf]
    %v1065 = vld [vmem:[#allocation2 + $0x90c] sm:$0xf]
    %v1066 = vld [vmem:[#allocation2 + $0x910] sm:$0xf]
    %v1067 = vld [vmem:[#allocation2 + $0x914] sm:$0xf]
    %v1068 = vld [vmem:[#allocation2 + $0x918] sm:$0xf]
    %v1069 = vld [vmem:[#allocation2 + $0x91c] sm:$0xf]
    %v1070 = vld [vmem:[#allocation2 + $0x920] sm:$0xf]
    %v1071 = vld [vmem:[#allocation2 + $0x924] sm:$0xf]
    %v1072 = vld [vmem:[#allocation2 + $0x928] sm:$0xf]
    %v1073 = vld [vmem:[#allocation2 + $0x92c] sm:$0xf]
    %v1074 = vld [vmem:[#allocation2 + $0x930] sm:$0xf]
    %v1075 = vld [vmem:[#allocation2 + $0x934] sm:$0xf]
    %v1076 = vld [vmem:[#allocation2 + $0x938] sm:$0xf]
    %v1077 = vld [vmem:[#allocation2 + $0x93c] sm:$0xf]
    %v1078 = vld [vmem:[#allocation2 + $0x940] sm:$0xf]
    %v1079 = vld [vmem:[#allocation2 + $0x944] sm:$0xf]
    %v1080 = vld [vmem:[#allocation2 + $0x948] sm:$0xf]
    %v1081 = vld [vmem:[#allocation2 + $0x94c] sm:$0xf]
    %v1082 = vld [vmem:[#allocation2 + $0x950] sm:$0xf]
    %v1083 = vld [vmem:[#allocation2 + $0x954] sm:$0xf]
    %v1084 = vld [vmem:[#allocation2 + $0x958] sm:$0xf]
    %v1085 = vld [vmem:[#allocation2 + $0x95c] sm:$0xf]
    %v1086 = vld [vmem:[#allocation2 + $0x960] sm:$0xf]
    %v1087 = vld [vmem:[#allocation2 + $0x964] sm:$0xf]
    %v1088 = vld [vmem:[#allocation2 + $0x968] sm:$0xf]
    %v1089 = vld [vmem:[#allocation2 + $0x96c] sm:$0xf]
    %v1090 = vld [vmem:[#allocation2 + $0x970] sm:$0xf]
    %v1091 = vld [vmem:[#allocation2 + $0x974] sm:$0xf]
    %v1092 = vld [vmem:[#allocation2 + $0x978] sm:$0xf]
    %v1093 = vld [vmem:[#allocation2 + $0x97c] sm:$0xf]
    %v1094 = vld [vmem:[#allocation2 + $0x980] sm:$0xf]
    %v1095 = vld [vmem:[#allocation2 + $0x984] sm:$0xf]
    %v1096 = vld [vmem:[#allocation2 + $0x988] sm:$0xf]
    %v1097 = vld [vmem:[#allocation2 + $0x98c] sm:$0xf]
    %v1098 = vld [vmem:[#allocation2 + $0x990] sm:$0xf]
    %v1099 = vld [vmem:[#allocation2 + $0x994] sm:$0xf]
    %v1100 = vld [vmem:[#allocation2 + $0x998] sm:$0xf]
    %v1101 = vld [vmem:[#allocation2 + $0x99c] sm:$0xf]
    %v1102 = vld [vmem:[#allocation2 + $0x9a0] sm:$0xf]
    %v1103 = vld [vmem:[#allocation2 + $0x9a4] sm:$0xf]
    %v1104 = vld [vmem:[#allocation2 + $0x9a8] sm:$0xf]
    %v1105 = vld [vmem:[#allocation2 + $0x9ac] sm:$0xf]
    %v1106 = vld [vmem:[#allocation2 + $0x9b0] sm:$0xf]
    %v1107 = vld [vmem:[#allocation2 + $0x9b4] sm:$0xf]
    %v1108 = vld [vmem:[#allocation2 + $0x9b8] sm:$0xf]
    %v1109 = vld [vmem:[#allocation2 + $0x9bc] sm:$0xf]
    %v1110 = vld [vmem:[#allocation2 + $0x9c0] sm:$0xf]
    %v1111 = vld [vmem:[#allocation2 + $0x9c4] sm:$0xf]
    %v1112 = vld [vmem:[#allocation2 + $0x9c8] sm:$0xf]
    %v1113 = vld [vmem:[#allocation2 + $0x9cc] sm:$0xf]
    %v1114 = vld [vmem:[#allocation2 + $0x9d0] sm:$0xf]
    %v1115 = vld [vmem:[#allocation2 + $0x9d4] sm:$0xf]
    %v1116 = vld [vmem:[#allocation2 + $0x9d8] sm:$0xf]
    %v1117 = vld [vmem:[#allocation2 + $0x9dc] sm:$0xf]
    %v1118 = vld [vmem:[#allocation2 + $0x9e0] sm:$0xf]
    %v1119 = vld [vmem:[#allocation2 + $0x9e4] sm:$0xf]
    %v1120 = vld [vmem:[#allocation2 + $0x9e8] sm:$0xf]
    %v1121 = vld [vmem:[#allocation2 + $0x9ec] sm:$0xf]
    %v1122 = vld [vmem:[#allocation2 + $0x9f0] sm:$0xf]
    %v1123 = vld [vmem:[#allocation2 + $0x9f4] sm:$0xf]
    %v1124 = vld [vmem:[#allocation2 + $0x9f8] sm:$0xf]
    %v1125 = vld [vmem:[#allocation2 + $0x9fc] sm:$0xf]
    %v1126 = vld [vmem:[#allocation2 + $0xa00] sm:$0xf]
    %v1127 = vld [vmem:[#allocation2 + $0xa04] sm:$0xf]
    %v1128 = vld [vmem:[#allocation2 + $0xa08] sm:$0xf]
    %v1129 = vld [vmem:[#allocation2 + $0xa0c] sm:$0xf]
    %v1130 = vld [vmem:[#allocation2 + $0xa10] sm:$0xf]
    %v1131 = vld [vmem:[#allocation2 + $0xa14] sm:$0xf]
    %v1132 = vld [vmem:[#allocation2 + $0xa18] sm:$0xf]
    %v1133 = vld [vmem:[#allocation2 + $0xa1c] sm:$0xf]
    %v1134 = vld [vmem:[#allocation2 + $0xa20] sm:$0xf]
    %v1135 = vld [vmem:[#allocation2 + $0xa24] sm:$0xf]
    %v1136 = vld [vmem:[#allocation2 + $0xa28] sm:$0xf]
    %v1137 = vld [vmem:[#allocation2 + $0xa2c] sm:$0xf]
    %v1138 = vld [vmem:[#allocation2 + $0xa30] sm:$0xf]
    %v1139 = vld [vmem:[#allocation2 + $0xa34] sm:$0xf]
    %v1140 = vld [vmem:[#allocation2 + $0xa38] sm:$0xf]
    %v1141 = vld [vmem:[#allocation2 + $0xa3c] sm:$0xf]
    %v1142 = vld [vmem:[#allocation2 + $0xa40] sm:$0xf]
    %v1143 = vld [vmem:[#allocation2 + $0xa44] sm:$0xf]
    %v1144 = vld [vmem:[#allocation2 + $0xa48] sm:$0xf]
    %v1145 = vld [vmem:[#allocation2 + $0xa4c] sm:$0xf]
    %v1146 = vld [vmem:[#allocation2 + $0xa50] sm:$0xf]
    %v1147 = vld [vmem:[#allocation2 + $0xa54] sm:$0xf]
    %v1148 = vld [vmem:[#allocation2 + $0xa58] sm:$0xf]
    %v1149 = vld [vmem:[#allocation2 + $0xa5c] sm:$0xf]
    %v1150 = vld [vmem:[#allocation2 + $0xa60] sm:$0xf]
    %v1151 = vld [vmem:[#allocation2 + $0xa64] sm:$0xf]
    %v1152 = vld [vmem:[#allocation2 + $0xa68] sm:$0xf]
    %v1153 = vld [vmem:[#allocation2 + $0xa6c] sm:$0xf]
    %v1154 = vld [vmem:[#allocation2 + $0xa70] sm:$0xf]
    %v1155 = vld [vmem:[#allocation2 + $0xa74] sm:$0xf]
    %v1156 = vld [vmem:[#allocation2 + $0xa78] sm:$0xf]
    %v1157 = vld [vmem:[#allocation2 + $0xa7c] sm:$0xf]
    %v1158 = vld [vmem:[#allocation2 + $0xa80] sm:$0xf]
    %v1159 = vld [vmem:[#allocation2 + $0xa84] sm:$0xf]
    %v1160 = vld [vmem:[#allocation2 + $0xa88] sm:$0xf]
    %v1161 = vld [vmem:[#allocation2 + $0xa8c] sm:$0xf]
    %v1162 = vld [vmem:[#allocation2 + $0xa90] sm:$0xf]
    %v1163 = vld [vmem:[#allocation2 + $0xa94] sm:$0xf]
    %v1164 = vld [vmem:[#allocation2 + $0xa98] sm:$0xf]
    %v1165 = vld [vmem:[#allocation2 + $0xa9c] sm:$0xf]
    %v1166 = vld [vmem:[#allocation2 + $0xaa0] sm:$0xf]
    %v1167 = vld [vmem:[#allocation2 + $0xaa4] sm:$0xf]
    %v1168 = vld [vmem:[#allocation2 + $0xaa8] sm:$0xf]
    %v1169 = vld [vmem:[#allocation2 + $0xaac] sm:$0xf]
    %v1170 = vld [vmem:[#allocation2 + $0xab0] sm:$0xf]
    %v1171 = vld [vmem:[#allocation2 + $0xab4] sm:$0xf]
    %v1172 = vld [vmem:[#allocation2 + $0xab8] sm:$0xf]
    %v1173 = vld [vmem:[#allocation2 + $0xabc] sm:$0xf]
    %v1174 = vld [vmem:[#allocation2 + $0xac0] sm:$0xf]
    %v1175 = vld [vmem:[#allocation2 + $0xac4] sm:$0xf]
    %v1176 = vld [vmem:[#allocation2 + $0xac8] sm:$0xf]
    %v1177 = vld [vmem:[#allocation2 + $0xacc] sm:$0xf]
    %v1178 = vld [vmem:[#allocation2 + $0xad0] sm:$0xf]
    %v1179 = vld [vmem:[#allocation2 + $0xad4] sm:$0xf]
    %v1180 = vld [vmem:[#allocation2 + $0xad8] sm:$0xf]
    %v1181 = vld [vmem:[#allocation2 + $0xadc] sm:$0xf]
    %v1182 = vld [vmem:[#allocation2 + $0xae0] sm:$0xf]
    %v1183 = vld [vmem:[#allocation2 + $0xae4] sm:$0xf]
    %v1184 = vld [vmem:[#allocation2 + $0xae8] sm:$0xf]
    %v1185 = vld [vmem:[#allocation2 + $0xaec] sm:$0xf]
    %v1186 = vld [vmem:[#allocation2 + $0xaf0] sm:$0xf]
    %v1187 = vld [vmem:[#allocation2 + $0xaf4] sm:$0xf]
    %v1188 = vld [vmem:[#allocation2 + $0xaf8] sm:$0xf]
    %v1189 = vld [vmem:[#allocation2 + $0xafc] sm:$0xf]
    %v1190 = vld [vmem:[#allocation2 + $0xb00] sm:$0xf]
    %v1191 = vld [vmem:[#allocation2 + $0xb04] sm:$0xf]
    %v1192 = vld [vmem:[#allocation2 + $0xb08] sm:$0xf]
    %v1193 = vld [vmem:[#allocation2 + $0xb0c] sm:$0xf]
    %v1194 = vld [vmem:[#allocation2 + $0xb10] sm:$0xf]
    %v1195 = vld [vmem:[#allocation2 + $0xb14] sm:$0xf]
    %v1196 = vld [vmem:[#allocation2 + $0xb18] sm:$0xf]
    %v1197 = vld [vmem:[#allocation2 + $0xb1c] sm:$0xf]
    %v1198 = vld [vmem:[#allocation2 + $0xb20] sm:$0xf]
    %v1199 = vld [vmem:[#allocation2 + $0xb24] sm:$0xf]
    %v1200 = vld [vmem:[#allocation2 + $0xb28] sm:$0xf]
    %v1201 = vld [vmem:[#allocation2 + $0xb2c] sm:$0xf]
    %v1202 = vld [vmem:[#allocation2 + $0xb30] sm:$0xf]
    %v1203 = vld [vmem:[#allocation2 + $0xb34] sm:$0xf]
    %v1204 = vld [vmem:[#allocation2 + $0xb38] sm:$0xf]
    %v1205 = vld [vmem:[#allocation2 + $0xb3c] sm:$0xf]
    %v1206 = vld [vmem:[#allocation2 + $0xb40] sm:$0xf]
    %v1207 = vld [vmem:[#allocation2 + $0xb44] sm:$0xf]
    %v1208 = vld [vmem:[#allocation2 + $0xb48] sm:$0xf]
    %v1209 = vld [vmem:[#allocation2 + $0xb4c] sm:$0xf]
    %v1210 = vld [vmem:[#allocation2 + $0xb50] sm:$0xf]
    %v1211 = vld [vmem:[#allocation2 + $0xb54] sm:$0xf]
    %v1212 = vld [vmem:[#allocation2 + $0xb58] sm:$0xf]
    %v1213 = vld [vmem:[#allocation2 + $0xb5c] sm:$0xf]
    %v1214 = vld [vmem:[#allocation2 + $0xb60] sm:$0xf]
    %v1215 = vld [vmem:[#allocation2 + $0xb64] sm:$0xf]
    %v1216 = vld [vmem:[#allocation2 + $0xb68] sm:$0xf]
    %v1217 = vld [vmem:[#allocation2 + $0xb6c] sm:$0xf]
    %v1218 = vld [vmem:[#allocation2 + $0xb70] sm:$0xf]
    %v1219 = vld [vmem:[#allocation2 + $0xb74] sm:$0xf]
    %v1220 = vld [vmem:[#allocation2 + $0xb78] sm:$0xf]
    %v1221 = vld [vmem:[#allocation2 + $0xb7c] sm:$0xf]
    %v1222 = vld [vmem:[#allocation2 + $0xb80] sm:$0xf]
    %v1223 = vld [vmem:[#allocation2 + $0xb84] sm:$0xf]
    %v1224 = vld [vmem:[#allocation2 + $0xb88] sm:$0xf]
    %v1225 = vld [vmem:[#allocation2 + $0xb8c] sm:$0xf]
    %v1226 = vld [vmem:[#allocation2 + $0xb90] sm:$0xf]
    %v1227 = vld [vmem:[#allocation2 + $0xb94] sm:$0xf]
    %v1228 = vld [vmem:[#allocation2 + $0xb98] sm:$0xf]
    %v1229 = vld [vmem:[#allocation2 + $0xb9c] sm:$0xf]
    %v1230 = vld [vmem:[#allocation2 + $0xba0] sm:$0xf]
    %v1231 = vld [vmem:[#allocation2 + $0xba4] sm:$0xf]
    %v1232 = vld [vmem:[#allocation2 + $0xba8] sm:$0xf]
    %v1233 = vld [vmem:[#allocation2 + $0xbac] sm:$0xf]
    %v1234 = vld [vmem:[#allocation2 + $0xbb0] sm:$0xf]
    %v1235 = vld [vmem:[#allocation2 + $0xbb4] sm:$0xf]
    %v1236 = vld [vmem:[#allocation2 + $0xbb8] sm:$0xf]
    %v1237 = vld [vmem:[#allocation2 + $0xbbc] sm:$0xf]
    %v1238 = vld [vmem:[#allocation2 + $0xbc0] sm:$0xf]
    %v1239 = vld [vmem:[#allocation2 + $0xbc4] sm:$0xf]
    %v1240 = vld [vmem:[#allocation2 + $0xbc8] sm:$0xf]
    %v1241 = vld [vmem:[#allocation2 + $0xbcc] sm:$0xf]
    %v1242 = vld [vmem:[#allocation2 + $0xbd0] sm:$0xf]
    %v1243 = vld [vmem:[#allocation2 + $0xbd4] sm:$0xf]
    %v1244 = vld [vmem:[#allocation2 + $0xbd8] sm:$0xf]
    %v1245 = vld [vmem:[#allocation2 + $0xbdc] sm:$0xf]
    %v1246 = vld [vmem:[#allocation2 + $0xbe0] sm:$0xf]
    %v1247 = vld [vmem:[#allocation2 + $0xbe4] sm:$0xf]
    %v1248 = vld [vmem:[#allocation2 + $0xbe8] sm:$0xf]
    %v1249 = vld [vmem:[#allocation2 + $0xbec] sm:$0xf]
    %v1250 = vld [vmem:[#allocation2 + $0xbf0] sm:$0xf]
    %v1251 = vld [vmem:[#allocation2 + $0xbf4] sm:$0xf]
    %v1252 = vld [vmem:[#allocation2 + $0xbf8] sm:$0xf]
    %v1253 = vld [vmem:[#allocation2 + $0xbfc] sm:$0xf]
    %v1254 = vld [vmem:[#allocation2 + $0xc00] sm:$0xf]
    %v1255 = vld [vmem:[#allocation2 + $0xc04] sm:$0xf]
    %v1256 = vld [vmem:[#allocation2 + $0xc08] sm:$0xf]
    %v1257 = vld [vmem:[#allocation2 + $0xc0c] sm:$0xf]
    %v1258 = vld [vmem:[#allocation2 + $0xc10] sm:$0xf]
    %v1259 = vld [vmem:[#allocation2 + $0xc14] sm:$0xf]
    %v1260 = vld [vmem:[#allocation2 + $0xc18] sm:$0xf]
    %v1261 = vld [vmem:[#allocation2 + $0xc1c] sm:$0xf]
    %v1262 = vld [vmem:[#allocation2 + $0xc20] sm:$0xf]
    %v1263 = vld [vmem:[#allocation2 + $0xc24] sm:$0xf]
    %v1264 = vld [vmem:[#allocation2 + $0xc28] sm:$0xf]
    %v1265 = vld [vmem:[#allocation2 + $0xc2c] sm:$0xf]
    %v1266 = vld [vmem:[#allocation2 + $0xc30] sm:$0xf]
    %v1267 = vld [vmem:[#allocation2 + $0xc34] sm:$0xf]
    %v1268 = vld [vmem:[#allocation2 + $0xc38] sm:$0xf]
    %v1269 = vld [vmem:[#allocation2 + $0xc3c] sm:$0xf]
    %v1270 = vld [vmem:[#allocation2 + $0xc40] sm:$0xf]
    %v1271 = vld [vmem:[#allocation2 + $0xc44] sm:$0xf]
    %v1272 = vld [vmem:[#allocation2 + $0xc48] sm:$0xf]
    %v1273 = vld [vmem:[#allocation2 + $0xc4c] sm:$0xf]
    %v1274 = vld [vmem:[#allocation2 + $0xc50] sm:$0xf]
    %v1275 = vld [vmem:[#allocation2 + $0xc54] sm:$0xf]
    %v1276 = vld [vmem:[#allocation2 + $0xc58] sm:$0xf]
    %v1277 = vld [vmem:[#allocation2 + $0xc5c] sm:$0xf]
    %v1278 = vld [vmem:[#allocation2 + $0xc60] sm:$0xf]
    %v1279 = vld [vmem:[#allocation2 + $0xc64] sm:$0xf]
    %v1280 = vld [vmem:[#allocation2 + $0xc68] sm:$0xf]
    %v1281 = vld [vmem:[#allocation2 + $0xc6c] sm:$0xf]
    %v1282 = vld [vmem:[#allocation2 + $0xc70] sm:$0xf]
    %v1283 = vld [vmem:[#allocation2 + $0xc74] sm:$0xf]
    %v1284 = vld [vmem:[#allocation2 + $0xc78] sm:$0xf]
    %v1285 = vld [vmem:[#allocation2 + $0xc7c] sm:$0xf]
    %v1286 = vld [vmem:[#allocation2 + $0xc80] sm:$0xf]
    %v1287 = vld [vmem:[#allocation2 + $0xc84] sm:$0xf]
    %v1288 = vld [vmem:[#allocation2 + $0xc88] sm:$0xf]
    %v1289 = vld [vmem:[#allocation2 + $0xc8c] sm:$0xf]
    %v1290 = vld [vmem:[#allocation2 + $0xc90] sm:$0xf]
    %v1291 = vld [vmem:[#allocation2 + $0xc94] sm:$0xf]
    %v1292 = vld [vmem:[#allocation2 + $0xc98] sm:$0xf]
    %v1293 = vld [vmem:[#allocation2 + $0xc9c] sm:$0xf]
    %v1294 = vld [vmem:[#allocation2 + $0xca0] sm:$0xf]
    %v1295 = vld [vmem:[#allocation2 + $0xca4] sm:$0xf]
    %v1296 = vld [vmem:[#allocation2 + $0xca8] sm:$0xf]
    %v1297 = vld [vmem:[#allocation2 + $0xcac] sm:$0xf]
    %v1298 = vld [vmem:[#allocation2 + $0xcb0] sm:$0xf]
    %v1299 = vld [vmem:[#allocation2 + $0xcb4] sm:$0xf]
    %v1300 = vld [vmem:[#allocation2 + $0xcb8] sm:$0xf]
    %v1301 = vld [vmem:[#allocation2 + $0xcbc] sm:$0xf]
    %v1302 = vld [vmem:[#allocation2 + $0xcc0] sm:$0xf]
    %v1303 = vld [vmem:[#allocation2 + $0xcc4] sm:$0xf]
    %v1304 = vld [vmem:[#allocation2 + $0xcc8] sm:$0xf]
    %v1305 = vld [vmem:[#allocation2 + $0xccc] sm:$0xf]
    %v1306 = vld [vmem:[#allocation2 + $0xcd0] sm:$0xf]
    %v1307 = vld [vmem:[#allocation2 + $0xcd4] sm:$0xf]
    %v1308 = vld [vmem:[#allocation2 + $0xcd8] sm:$0xf]
    %v1309 = vld [vmem:[#allocation2 + $0xcdc] sm:$0xf]
    %v1310 = vld [vmem:[#allocation2 + $0xce0] sm:$0xf]
    %v1311 = vld [vmem:[#allocation2 + $0xce4] sm:$0xf]
    %v1312 = vld [vmem:[#allocation2 + $0xce8] sm:$0xf]
    %v1313 = vld [vmem:[#allocation2 + $0xcec] sm:$0xf]
    %v1314 = vld [vmem:[#allocation2 + $0xcf0] sm:$0xf]
    %v1315 = vld [vmem:[#allocation2 + $0xcf4] sm:$0xf]
    %v1316 = vld [vmem:[#allocation2 + $0xcf8] sm:$0xf]
    %v1317 = vld [vmem:[#allocation2 + $0xcfc] sm:$0xf]
    %v1318 = vld [vmem:[#allocation2 + $0xd00] sm:$0xf]
    %v1319 = vld [vmem:[#allocation2 + $0xd04] sm:$0xf]
    %v1320 = vld [vmem:[#allocation2 + $0xd08] sm:$0xf]
    %v1321 = vld [vmem:[#allocation2 + $0xd0c] sm:$0xf]
    %v1322 = vld [vmem:[#allocation2 + $0xd10] sm:$0xf]
    %v1323 = vld [vmem:[#allocation2 + $0xd14] sm:$0xf]
    %v1324 = vld [vmem:[#allocation2 + $0xd18] sm:$0xf]
    %v1325 = vld [vmem:[#allocation2 + $0xd1c] sm:$0xf]
    %v1326 = vld [vmem:[#allocation2 + $0xd20] sm:$0xf]
    %v1327 = vld [vmem:[#allocation2 + $0xd24] sm:$0xf]
    %v1328 = vld [vmem:[#allocation2 + $0xd28] sm:$0xf]
    %v1329 = vld [vmem:[#allocation2 + $0xd2c] sm:$0xf]
    %v1330 = vld [vmem:[#allocation2 + $0xd30] sm:$0xf]
    %v1331 = vld [vmem:[#allocation2 + $0xd34] sm:$0xf]
    %v1332 = vld [vmem:[#allocation2 + $0xd38] sm:$0xf]
    %v1333 = vld [vmem:[#allocation2 + $0xd3c] sm:$0xf]
    %v1334 = vld [vmem:[#allocation2 + $0xd40] sm:$0xf]
    %v1335 = vld [vmem:[#allocation2 + $0xd44] sm:$0xf]
    %v1336 = vld [vmem:[#allocation2 + $0xd48] sm:$0xf]
    %v1337 = vld [vmem:[#allocation2 + $0xd4c] sm:$0xf]
    %v1338 = vld [vmem:[#allocation2 + $0xd50] sm:$0xf]
    %v1339 = vld [vmem:[#allocation2 + $0xd54] sm:$0xf]
    %v1340 = vld [vmem:[#allocation2 + $0xd58] sm:$0xf]
    %v1341 = vld [vmem:[#allocation2 + $0xd5c] sm:$0xf]
    %v1342 = vld [vmem:[#allocation2 + $0xd60] sm:$0xf]
    %v1343 = vld [vmem:[#allocation2 + $0xd64] sm:$0xf]
    %v1344 = vld [vmem:[#allocation2 + $0xd68] sm:$0xf]
    %v1345 = vld [vmem:[#allocation2 + $0xd6c] sm:$0xf]
    %v1346 = vld [vmem:[#allocation2 + $0xd70] sm:$0xf]
    %v1347 = vld [vmem:[#allocation2 + $0xd74] sm:$0xf]
    %v1348 = vld [vmem:[#allocation2 + $0xd78] sm:$0xf]
    %v1349 = vld [vmem:[#allocation2 + $0xd7c] sm:$0xf]
    %v1350 = vld [vmem:[#allocation2 + $0xd80] sm:$0xf]
    %v1351 = vld [vmem:[#allocation2 + $0xd84] sm:$0xf]
    %v1352 = vld [vmem:[#allocation2 + $0xd88] sm:$0xf]
    %v1353 = vld [vmem:[#allocation2 + $0xd8c] sm:$0xf]
    %v1354 = vld [vmem:[#allocation2 + $0xd90] sm:$0xf]
    %v1355 = vld [vmem:[#allocation2 + $0xd94] sm:$0xf]
    %v1356 = vld [vmem:[#allocation2 + $0xd98] sm:$0xf]
    %v1357 = vld [vmem:[#allocation2 + $0xd9c] sm:$0xf]
    %v1358 = vld [vmem:[#allocation2 + $0xda0] sm:$0xf]
    %v1359 = vld [vmem:[#allocation2 + $0xda4] sm:$0xf]
    %v1360 = vld [vmem:[#allocation2 + $0xda8] sm:$0xf]
    %v1361 = vld [vmem:[#allocation2 + $0xdac] sm:$0xf]
    %v1362 = vld [vmem:[#allocation2 + $0xdb0] sm:$0xf]
    %v1363 = vld [vmem:[#allocation2 + $0xdb4] sm:$0xf]
    %v1364 = vld [vmem:[#allocation2 + $0xdb8] sm:$0xf]
    %v1365 = vld [vmem:[#allocation2 + $0xdbc] sm:$0xf]
    %v1366 = vld [vmem:[#allocation2 + $0xdc0] sm:$0xf]
    %v1367 = vld [vmem:[#allocation2 + $0xdc4] sm:$0xf]
    %v1368 = vld [vmem:[#allocation2 + $0xdc8] sm:$0xf]
    %v1369 = vld [vmem:[#allocation2 + $0xdcc] sm:$0xf]
    %v1370 = vld [vmem:[#allocation2 + $0xdd0] sm:$0xf]
    %v1371 = vld [vmem:[#allocation2 + $0xdd4] sm:$0xf]
    %v1372 = vld [vmem:[#allocation2 + $0xdd8] sm:$0xf]
    %v1373 = vld [vmem:[#allocation2 + $0xddc] sm:$0xf]
    %v1374 = vld [vmem:[#allocation2 + $0xde0] sm:$0xf]
    %v1375 = vld [vmem:[#allocation2 + $0xde4] sm:$0xf]
    %v1376 = vld [vmem:[#allocation2 + $0xde8] sm:$0xf]
    %v1377 = vld [vmem:[#allocation2 + $0xdec] sm:$0xf]
    %v1378 = vld [vmem:[#allocation2 + $0xdf0] sm:$0xf]
    %v1379 = vld [vmem:[#allocation2 + $0xdf4] sm:$0xf]
    %v1380 = vld [vmem:[#allocation2 + $0xdf8] sm:$0xf]
    %v1381 = vld [vmem:[#allocation2 + $0xdfc] sm:$0xf]
    %v1382 = vld [vmem:[#allocation2 + $0xe00] sm:$0xf]
    %v1383 = vld [vmem:[#allocation2 + $0xe04] sm:$0xf]
    %v1384 = vld [vmem:[#allocation2 + $0xe08] sm:$0xf]
    %v1385 = vld [vmem:[#allocation2 + $0xe0c] sm:$0xf]
    %v1386 = vld [vmem:[#allocation2 + $0xe10] sm:$0xf]
    %v1387 = vld [vmem:[#allocation2 + $0xe14] sm:$0xf]
    %v1388 = vld [vmem:[#allocation2 + $0xe18] sm:$0xf]
    %v1389 = vld [vmem:[#allocation2 + $0xe1c] sm:$0xf]
    %v1390 = vld [vmem:[#allocation2 + $0xe20] sm:$0xf]
    %v1391 = vld [vmem:[#allocation2 + $0xe24] sm:$0xf]
    %v1392 = vld [vmem:[#allocation2 + $0xe28] sm:$0xf]
    %v1393 = vld [vmem:[#allocation2 + $0xe2c] sm:$0xf]
    %v1394 = vld [vmem:[#allocation2 + $0xe30] sm:$0xf]
    %v1395 = vld [vmem:[#allocation2 + $0xe34] sm:$0xf]
    %v1396 = vld [vmem:[#allocation2 + $0xe38] sm:$0xf]
    %v1397 = vld [vmem:[#allocation2 + $0xe3c] sm:$0xf]
    %v1398 = vld [vmem:[#allocation2 + $0xe40] sm:$0xf]
    %v1399 = vld [vmem:[#allocation2 + $0xe44] sm:$0xf]
    %v1400 = vld [vmem:[#allocation2 + $0xe48] sm:$0xf]
    %v1401 = vld [vmem:[#allocation2 + $0xe4c] sm:$0xf]
    %v1402 = vld [vmem:[#allocation2 + $0xe50] sm:$0xf]
    %v1403 = vld [vmem:[#allocation2 + $0xe54] sm:$0xf]
    %v1404 = vld [vmem:[#allocation2 + $0xe58] sm:$0xf]
    %v1405 = vld [vmem:[#allocation2 + $0xe5c] sm:$0xf]
    %v1406 = vld [vmem:[#allocation2 + $0xe60] sm:$0xf]
    %v1407 = vld [vmem:[#allocation2 + $0xe64] sm:$0xf]
    %v1408 = vld [vmem:[#allocation2 + $0xe68] sm:$0xf]
    %v1409 = vld [vmem:[#allocation2 + $0xe6c] sm:$0xf]
    %v1410 = vld [vmem:[#allocation2 + $0xe70] sm:$0xf]
    %v1411 = vld [vmem:[#allocation2 + $0xe74] sm:$0xf]
    %v1412 = vld [vmem:[#allocation2 + $0xe78] sm:$0xf]
    %v1413 = vld [vmem:[#allocation2 + $0xe7c] sm:$0xf]
    %v1414 = vld [vmem:[#allocation2 + $0xe80] sm:$0xf]
    %v1415 = vld [vmem:[#allocation2 + $0xe84] sm:$0xf]
    %v1416 = vld [vmem:[#allocation2 + $0xe88] sm:$0xf]
    %v1417 = vld [vmem:[#allocation2 + $0xe8c] sm:$0xf]
    %v1418 = vld [vmem:[#allocation2 + $0xe90] sm:$0xf]
    %v1419 = vld [vmem:[#allocation2 + $0xe94] sm:$0xf]
    %v1420 = vld [vmem:[#allocation2 + $0xe98] sm:$0xf]
    %v1421 = vld [vmem:[#allocation2 + $0xe9c] sm:$0xf]
    %v1422 = vld [vmem:[#allocation2 + $0xea0] sm:$0xf]
    %v1423 = vld [vmem:[#allocation2 + $0xea4] sm:$0xf]
    %v1424 = vld [vmem:[#allocation2 + $0xea8] sm:$0xf]
    %v1425 = vld [vmem:[#allocation2 + $0xeac] sm:$0xf]
    %v1426 = vld [vmem:[#allocation2 + $0xeb0] sm:$0xf]
    %v1427 = vld [vmem:[#allocation2 + $0xeb4] sm:$0xf]
    %v1428 = vld [vmem:[#allocation2 + $0xeb8] sm:$0xf]
    %v1429 = vld [vmem:[#allocation2 + $0xebc] sm:$0xf]
    %v1430 = vld [vmem:[#allocation2 + $0xec0] sm:$0xf]
    %v1431 = vld [vmem:[#allocation2 + $0xec4] sm:$0xf]
    %v1432 = vld [vmem:[#allocation2 + $0xec8] sm:$0xf]
    %v1433 = vld [vmem:[#allocation2 + $0xecc] sm:$0xf]
    %v1434 = vld [vmem:[#allocation2 + $0xed0] sm:$0xf]
    %v1435 = vld [vmem:[#allocation2 + $0xed4] sm:$0xf]
    %v1436 = vld [vmem:[#allocation2 + $0xed8] sm:$0xf]
    %v1437 = vld [vmem:[#allocation2 + $0xedc] sm:$0xf]
    %v1438 = vld [vmem:[#allocation2 + $0xee0] sm:$0xf]
    %v1439 = vld [vmem:[#allocation2 + $0xee4] sm:$0xf]
    %v1440 = vld [vmem:[#allocation2 + $0xee8] sm:$0xf]
    %v1441 = vld [vmem:[#allocation2 + $0xeec] sm:$0xf]
    %v1442 = vld [vmem:[#allocation2 + $0xef0] sm:$0xf]
    %v1443 = vld [vmem:[#allocation2 + $0xef4] sm:$0xf]
    %v1444 = vld [vmem:[#allocation2 + $0xef8] sm:$0xf]
    %v1445 = vld [vmem:[#allocation2 + $0xefc] sm:$0xf]
    %v1446 = vld [vmem:[#allocation2 + $0xf00] sm:$0xf]
    %v1447 = vld [vmem:[#allocation2 + $0xf04] sm:$0xf]
    %v1448 = vld [vmem:[#allocation2 + $0xf08] sm:$0xf]
    %v1449 = vld [vmem:[#allocation2 + $0xf0c] sm:$0xf]
    %v1450 = vld [vmem:[#allocation2 + $0xf10] sm:$0xf]
    %v1451 = vld [vmem:[#allocation2 + $0xf14] sm:$0xf]
    %v1452 = vld [vmem:[#allocation2 + $0xf18] sm:$0xf]
    %v1453 = vld [vmem:[#allocation2 + $0xf1c] sm:$0xf]
    %v1454 = vld [vmem:[#allocation2 + $0xf20] sm:$0xf]
    %v1455 = vld [vmem:[#allocation2 + $0xf24] sm:$0xf]
    %v1456 = vld [vmem:[#allocation2 + $0xf28] sm:$0xf]
    %v1457 = vld [vmem:[#allocation2 + $0xf2c] sm:$0xf]
    %v1458 = vld [vmem:[#allocation2 + $0xf30] sm:$0xf]
    %v1459 = vld [vmem:[#allocation2 + $0xf34] sm:$0xf]
    %v1460 = vld [vmem:[#allocation2 + $0xf38] sm:$0xf]
    %v1461 = vld [vmem:[#allocation2 + $0xf3c] sm:$0xf]
    %v1462 = vld [vmem:[#allocation2 + $0xf40] sm:$0xf]
    %v1463 = vld [vmem:[#allocation2 + $0xf44] sm:$0xf]
    %v1464 = vld [vmem:[#allocation2 + $0xf48] sm:$0xf]
    %v1465 = vld [vmem:[#allocation2 + $0xf4c] sm:$0xf]
    %v1466 = vld [vmem:[#allocation2 + $0xf50] sm:$0xf]
    %v1467 = vld [vmem:[#allocation2 + $0xf54] sm:$0xf]
    %v1468 = vld [vmem:[#allocation2 + $0xf58] sm:$0xf]
    %v1469 = vld [vmem:[#allocation2 + $0xf5c] sm:$0xf]
    %v1470 = vld [vmem:[#allocation2 + $0xf60] sm:$0xf]
    %v1471 = vld [vmem:[#allocation2 + $0xf64] sm:$0xf]
    %v1472 = vld [vmem:[#allocation2 + $0xf68] sm:$0xf]
    %v1473 = vld [vmem:[#allocation2 + $0xf6c] sm:$0xf]
    %v1474 = vld [vmem:[#allocation2 + $0xf70] sm:$0xf]
    %v1475 = vld [vmem:[#allocation2 + $0xf74] sm:$0xf]
    %v1476 = vld [vmem:[#allocation2 + $0xf78] sm:$0xf]
    %v1477 = vld [vmem:[#allocation2 + $0xf7c] sm:$0xf]
    %v1478 = vld [vmem:[#allocation2 + $0xf80] sm:$0xf]
    %v1479 = vld [vmem:[#allocation2 + $0xf84] sm:$0xf]
    %v1480 = vld [vmem:[#allocation2 + $0xf88] sm:$0xf]
    %v1481 = vld [vmem:[#allocation2 + $0xf8c] sm:$0xf]
    %v1482 = vld [vmem:[#allocation2 + $0xf90] sm:$0xf]
    %v1483 = vld [vmem:[#allocation2 + $0xf94] sm:$0xf]
    %v1484 = vld [vmem:[#allocation2 + $0xf98] sm:$0xf]
    %v1485 = vld [vmem:[#allocation2 + $0xf9c] sm:$0xf]
    %v1486 = vld [vmem:[#allocation2 + $0xfa0] sm:$0xf]
    %v1487 = vld [vmem:[#allocation2 + $0xfa4] sm:$0xf]
    %v1488 = vld [vmem:[#allocation2 + $0xfa8] sm:$0xf]
    %v1489 = vld [vmem:[#allocation2 + $0xfac] sm:$0xf]
    %v1490 = vld [vmem:[#allocation2 + $0xfb0] sm:$0xf]
    %v1491 = vld [vmem:[#allocation2 + $0xfb4] sm:$0xf]
    %v1492 = vld [vmem:[#allocation2 + $0xfb8] sm:$0xf]
    %v1493 = vld [vmem:[#allocation2 + $0xfbc] sm:$0xf]
    %v1494 = vld [vmem:[#allocation2 + $0xfc0] sm:$0xf]
    %v1495 = vld [vmem:[#allocation2 + $0xfc4] sm:$0xf]
    %v1496 = vld [vmem:[#allocation2 + $0xfc8] sm:$0xf]
    %v1497 = vld [vmem:[#allocation2 + $0xfcc] sm:$0xf]
    %v1498 = vld [vmem:[#allocation2 + $0xfd0] sm:$0xf]
    %v1499 = vld [vmem:[#allocation2 + $0xfd4] sm:$0xf]
    %v1500 = vld [vmem:[#allocation2 + $0xfd8] sm:$0xf]
    %v1501 = vld [vmem:[#allocation2 + $0xfdc] sm:$0xf]
    %v1502 = vld [vmem:[#allocation2 + $0xfe0] sm:$0xf]
    %v1503 = vld [vmem:[#allocation2 + $0xfe4] sm:$0xf]
    %v1504 = vld [vmem:[#allocation2 + $0xfe8] sm:$0xf]
    %v1505 = vld [vmem:[#allocation2 + $0xfec] sm:$0xf]
    %v1506 = vld [vmem:[#allocation2 + $0xff0] sm:$0xf]
    %v1507 = vld [vmem:[#allocation2 + $0xff4] sm:$0xf]
    %v1508 = vld [vmem:[#allocation2 + $0xff8] sm:$0xf]
    %v1509 = vld [vmem:[#allocation2 + $0xffc] sm:$0xf]
    %v2534 = vunpack.c.l.b16 %v486
    %v2535 = vunpack.c.l.b16 %v487
    %v2536 = vunpack.c.l.b16 %v488
    %v2537 = vunpack.c.l.b16 %v489
    %v2538 = vunpack.c.l.b16 %v490
    %v2539 = vunpack.c.l.b16 %v491
    %v2540 = vunpack.c.l.b16 %v492
    %v2541 = vunpack.c.l.b16 %v493
    %v2542 = vunpack.c.l.b16 %v494
    %v2543 = vunpack.c.l.b16 %v495
    %v2544 = vunpack.c.l.b16 %v496
    %v2545 = vunpack.c.l.b16 %v497
    %v2546 = vunpack.c.l.b16 %v498
    %v2547 = vunpack.c.l.b16 %v499
    %v2548 = vunpack.c.l.b16 %v500
    %v2549 = vunpack.c.l.b16 %v501
    %v2550 = vunpack.c.l.b16 %v502
    %v2551 = vunpack.c.l.b16 %v503
    %v2552 = vunpack.c.l.b16 %v504
    %v2553 = vunpack.c.l.b16 %v505
    %v2554 = vunpack.c.l.b16 %v506
    %v2555 = vunpack.c.l.b16 %v507
    %v2556 = vunpack.c.l.b16 %v508
    %v2557 = vunpack.c.l.b16 %v509
    %v2558 = vunpack.c.l.b16 %v510
    %v2559 = vunpack.c.l.b16 %v511
    %v2560 = vunpack.c.l.b16 %v512
    %v2561 = vunpack.c.l.b16 %v513
    %v2562 = vunpack.c.l.b16 %v514
    %v2563 = vunpack.c.l.b16 %v515
    %v2564 = vunpack.c.l.b16 %v516
    %v2565 = vunpack.c.l.b16 %v517
    %v2566 = vunpack.c.l.b16 %v518
    %v2567 = vunpack.c.l.b16 %v519
    %v2568 = vunpack.c.l.b16 %v520
    %v2569 = vunpack.c.l.b16 %v521
    %v2570 = vunpack.c.l.b16 %v522
    %v2571 = vunpack.c.l.b16 %v523
    %v2572 = vunpack.c.l.b16 %v524
    %v2573 = vunpack.c.l.b16 %v525
    %v2574 = vunpack.c.l.b16 %v526
    %v2575 = vunpack.c.l.b16 %v527
    %v2576 = vunpack.c.l.b16 %v528
    %v2577 = vunpack.c.l.b16 %v529
    %v2578 = vunpack.c.l.b16 %v530
    %v2579 = vunpack.c.l.b16 %v531
    %v2580 = vunpack.c.l.b16 %v532
    %v2581 = vunpack.c.l.b16 %v533
    %v2582 = vunpack.c.l.b16 %v534
    %v2583 = vunpack.c.l.b16 %v535
    %v2584 = vunpack.c.l.b16 %v536
    %v2585 = vunpack.c.l.b16 %v537
    %v2586 = vunpack.c.l.b16 %v538
    %v2587 = vunpack.c.l.b16 %v539
    %v2588 = vunpack.c.l.b16 %v540
    %v2589 = vunpack.c.l.b16 %v541
    %v2590 = vunpack.c.l.b16 %v542
    %v2591 = vunpack.c.l.b16 %v543
    %v2592 = vunpack.c.l.b16 %v544
    %v2593 = vunpack.c.l.b16 %v545
    %v2594 = vunpack.c.l.b16 %v546
    %v2595 = vunpack.c.l.b16 %v547
    %v2596 = vunpack.c.l.b16 %v548
    %v2597 = vunpack.c.l.b16 %v549
    %v2598 = vunpack.c.l.b16 %v550
    %v2599 = vunpack.c.l.b16 %v551
    %v2600 = vunpack.c.l.b16 %v552
    %v2601 = vunpack.c.l.b16 %v553
    %v2602 = vunpack.c.l.b16 %v554
    %v2603 = vunpack.c.l.b16 %v555
    %v2604 = vunpack.c.l.b16 %v556
    %v2605 = vunpack.c.l.b16 %v557
    %v2606 = vunpack.c.l.b16 %v558
    %v2607 = vunpack.c.l.b16 %v559
    %v2608 = vunpack.c.l.b16 %v560
    %v2609 = vunpack.c.l.b16 %v561
    %v2610 = vunpack.c.l.b16 %v562
    %v2611 = vunpack.c.l.b16 %v563
    %v2612 = vunpack.c.l.b16 %v564
    %v2613 = vunpack.c.l.b16 %v565
    %v2614 = vunpack.c.l.b16 %v566
    %v2615 = vunpack.c.l.b16 %v567
    %v2616 = vunpack.c.l.b16 %v568
    %v2617 = vunpack.c.l.b16 %v569
    %v2618 = vunpack.c.l.b16 %v570
    %v2619 = vunpack.c.l.b16 %v571
    %v2620 = vunpack.c.l.b16 %v572
    %v2621 = vunpack.c.l.b16 %v573
    %v2622 = vunpack.c.l.b16 %v574
    %v2623 = vunpack.c.l.b16 %v575
    %v2624 = vunpack.c.l.b16 %v576
    %v2625 = vunpack.c.l.b16 %v577
    %v2626 = vunpack.c.l.b16 %v578
    %v2627 = vunpack.c.l.b16 %v579
    %v2628 = vunpack.c.l.b16 %v580
    %v2629 = vunpack.c.l.b16 %v581
    %v2630 = vunpack.c.l.b16 %v582
    %v2631 = vunpack.c.l.b16 %v583
    %v2632 = vunpack.c.l.b16 %v584
    %v2633 = vunpack.c.l.b16 %v585
    %v2634 = vunpack.c.l.b16 %v586
    %v2635 = vunpack.c.l.b16 %v587
    %v2636 = vunpack.c.l.b16 %v588
    %v2637 = vunpack.c.l.b16 %v589
    %v2638 = vunpack.c.l.b16 %v590
    %v2639 = vunpack.c.l.b16 %v591
    %v2640 = vunpack.c.l.b16 %v592
    %v2641 = vunpack.c.l.b16 %v593
    %v2642 = vunpack.c.l.b16 %v594
    %v2643 = vunpack.c.l.b16 %v595
    %v2644 = vunpack.c.l.b16 %v596
    %v2645 = vunpack.c.l.b16 %v597
    %v2646 = vunpack.c.l.b16 %v598
    %v2647 = vunpack.c.l.b16 %v599
    %v2648 = vunpack.c.l.b16 %v600
    %v2649 = vunpack.c.l.b16 %v601
    %v2650 = vunpack.c.l.b16 %v602
    %v2651 = vunpack.c.l.b16 %v603
    %v2652 = vunpack.c.l.b16 %v604
    %v2653 = vunpack.c.l.b16 %v605
    %v2654 = vunpack.c.l.b16 %v606
    %v2655 = vunpack.c.l.b16 %v607
    %v2656 = vunpack.c.l.b16 %v608
    %v2657 = vunpack.c.l.b16 %v609
    %v2658 = vunpack.c.l.b16 %v610
    %v2659 = vunpack.c.l.b16 %v611
    %v2660 = vunpack.c.l.b16 %v612
    %v2661 = vunpack.c.l.b16 %v613
    %v2662 = vunpack.c.l.b16 %v614
    %v2663 = vunpack.c.l.b16 %v615
    %v2664 = vunpack.c.l.b16 %v616
    %v2665 = vunpack.c.l.b16 %v617
    %v2666 = vunpack.c.l.b16 %v618
    %v2667 = vunpack.c.l.b16 %v619
    %v2668 = vunpack.c.l.b16 %v620
    %v2669 = vunpack.c.l.b16 %v621
    %v2670 = vunpack.c.l.b16 %v622
    %v2671 = vunpack.c.l.b16 %v623
    %v2672 = vunpack.c.l.b16 %v624
    %v2673 = vunpack.c.l.b16 %v625
    %v2674 = vunpack.c.l.b16 %v626
    %v2675 = vunpack.c.l.b16 %v627
    %v2676 = vunpack.c.l.b16 %v628
    %v2677 = vunpack.c.l.b16 %v629
    %v2678 = vunpack.c.l.b16 %v630
    %v2679 = vunpack.c.l.b16 %v631
    %v2680 = vunpack.c.l.b16 %v632
    %v2681 = vunpack.c.l.b16 %v633
    %v2682 = vunpack.c.l.b16 %v634
    %v2683 = vunpack.c.l.b16 %v635
    %v2684 = vunpack.c.l.b16 %v636
    %v2685 = vunpack.c.l.b16 %v637
    %v2686 = vunpack.c.l.b16 %v638
    %v2687 = vunpack.c.l.b16 %v639
    %v2688 = vunpack.c.l.b16 %v640
    %v2689 = vunpack.c.l.b16 %v641
    %v2690 = vunpack.c.l.b16 %v642
    %v2691 = vunpack.c.l.b16 %v643
    %v2692 = vunpack.c.l.b16 %v644
    %v2693 = vunpack.c.l.b16 %v645
    %v2694 = vunpack.c.l.b16 %v646
    %v2695 = vunpack.c.l.b16 %v647
    %v2696 = vunpack.c.l.b16 %v648
    %v2697 = vunpack.c.l.b16 %v649
    %v2698 = vunpack.c.l.b16 %v650
    %v2699 = vunpack.c.l.b16 %v651
    %v2700 = vunpack.c.l.b16 %v652
    %v2701 = vunpack.c.l.b16 %v653
    %v2702 = vunpack.c.l.b16 %v654
    %v2703 = vunpack.c.l.b16 %v655
    %v2704 = vunpack.c.l.b16 %v656
    %v2705 = vunpack.c.l.b16 %v657
    %v2706 = vunpack.c.l.b16 %v658
    %v2707 = vunpack.c.l.b16 %v659
    %v2708 = vunpack.c.l.b16 %v660
    %v2709 = vunpack.c.l.b16 %v661
    %v2710 = vunpack.c.l.b16 %v662
    %v2711 = vunpack.c.l.b16 %v663
    %v2712 = vunpack.c.l.b16 %v664
    %v2713 = vunpack.c.l.b16 %v665
    %v2714 = vunpack.c.l.b16 %v666
    %v2715 = vunpack.c.l.b16 %v667
    %v2716 = vunpack.c.l.b16 %v668
    %v2717 = vunpack.c.l.b16 %v669
    %v2718 = vunpack.c.l.b16 %v670
    %v2719 = vunpack.c.l.b16 %v671
    %v2720 = vunpack.c.l.b16 %v672
    %v2721 = vunpack.c.l.b16 %v673
    %v2722 = vunpack.c.l.b16 %v674
    %v2723 = vunpack.c.l.b16 %v675
    %v2724 = vunpack.c.l.b16 %v676
    %v2725 = vunpack.c.l.b16 %v677
    %v2726 = vunpack.c.l.b16 %v678
    %v2727 = vunpack.c.l.b16 %v679
    %v2728 = vunpack.c.l.b16 %v680
    %v2729 = vunpack.c.l.b16 %v681
    %v2730 = vunpack.c.l.b16 %v682
    %v2731 = vunpack.c.l.b16 %v683
    %v2732 = vunpack.c.l.b16 %v684
    %v2733 = vunpack.c.l.b16 %v685
    %v2734 = vunpack.c.l.b16 %v686
    %v2735 = vunpack.c.l.b16 %v687
    %v2736 = vunpack.c.l.b16 %v688
    %v2737 = vunpack.c.l.b16 %v689
    %v2738 = vunpack.c.l.b16 %v690
    %v2739 = vunpack.c.l.b16 %v691
    %v2740 = vunpack.c.l.b16 %v692
    %v2741 = vunpack.c.l.b16 %v693
    %v2742 = vunpack.c.l.b16 %v694
    %v2743 = vunpack.c.l.b16 %v695
    %v2744 = vunpack.c.l.b16 %v696
    %v2745 = vunpack.c.l.b16 %v697
    %v2746 = vunpack.c.l.b16 %v698
    %v2747 = vunpack.c.l.b16 %v699
    %v2748 = vunpack.c.l.b16 %v700
    %v2749 = vunpack.c.l.b16 %v701
    %v2750 = vunpack.c.l.b16 %v702
    %v2751 = vunpack.c.l.b16 %v703
    %v2752 = vunpack.c.l.b16 %v704
    %v2753 = vunpack.c.l.b16 %v705
    %v2754 = vunpack.c.l.b16 %v706
    %v2755 = vunpack.c.l.b16 %v707
    %v2756 = vunpack.c.l.b16 %v708
    %v2757 = vunpack.c.l.b16 %v709
    %v2758 = vunpack.c.l.b16 %v710
    %v2759 = vunpack.c.l.b16 %v711
    %v2760 = vunpack.c.l.b16 %v712
    %v2761 = vunpack.c.l.b16 %v713
    %v2762 = vunpack.c.l.b16 %v714
    %v2763 = vunpack.c.l.b16 %v715
    %v2764 = vunpack.c.l.b16 %v716
    %v2765 = vunpack.c.l.b16 %v717
    %v2766 = vunpack.c.l.b16 %v718
    %v2767 = vunpack.c.l.b16 %v719
    %v2768 = vunpack.c.l.b16 %v720
    %v2769 = vunpack.c.l.b16 %v721
    %v2770 = vunpack.c.l.b16 %v722
    %v2771 = vunpack.c.l.b16 %v723
    %v2772 = vunpack.c.l.b16 %v724
    %v2773 = vunpack.c.l.b16 %v725
    %v2774 = vunpack.c.l.b16 %v726
    %v2775 = vunpack.c.l.b16 %v727
    %v2776 = vunpack.c.l.b16 %v728
    %v2777 = vunpack.c.l.b16 %v729
    %v2778 = vunpack.c.l.b16 %v730
    %v2779 = vunpack.c.l.b16 %v731
    %v2780 = vunpack.c.l.b16 %v732
    %v2781 = vunpack.c.l.b16 %v733
    %v2782 = vunpack.c.l.b16 %v734
    %v2783 = vunpack.c.l.b16 %v735
    %v2784 = vunpack.c.l.b16 %v736
    %v2785 = vunpack.c.l.b16 %v737
    %v2786 = vunpack.c.l.b16 %v738
    %v2787 = vunpack.c.l.b16 %v739
    %v2788 = vunpack.c.l.b16 %v740
    %v2789 = vunpack.c.l.b16 %v741
    %v2790 = vunpack.c.l.b16 %v742
    %v2791 = vunpack.c.l.b16 %v743
    %v2792 = vunpack.c.l.b16 %v744
    %v2793 = vunpack.c.l.b16 %v745
    %v2794 = vunpack.c.l.b16 %v746
    %v2795 = vunpack.c.l.b16 %v747
    %v2796 = vunpack.c.l.b16 %v748
    %v2797 = vunpack.c.l.b16 %v749
    %v2798 = vunpack.c.l.b16 %v750
    %v2799 = vunpack.c.l.b16 %v751
    %v2800 = vunpack.c.l.b16 %v752
    %v2801 = vunpack.c.l.b16 %v753
    %v2802 = vunpack.c.l.b16 %v754
    %v2803 = vunpack.c.l.b16 %v755
    %v2804 = vunpack.c.l.b16 %v756
    %v2805 = vunpack.c.l.b16 %v757
    %v2806 = vunpack.c.l.b16 %v758
    %v2807 = vunpack.c.l.b16 %v759
    %v2808 = vunpack.c.l.b16 %v760
    %v2809 = vunpack.c.l.b16 %v761
    %v2810 = vunpack.c.l.b16 %v762
    %v2811 = vunpack.c.l.b16 %v763
    %v2812 = vunpack.c.l.b16 %v764
    %v2813 = vunpack.c.l.b16 %v765
    %v2814 = vunpack.c.l.b16 %v766
    %v2815 = vunpack.c.l.b16 %v767
    %v2816 = vunpack.c.l.b16 %v768
    %v2817 = vunpack.c.l.b16 %v769
    %v2818 = vunpack.c.l.b16 %v770
    %v2819 = vunpack.c.l.b16 %v771
    %v2820 = vunpack.c.l.b16 %v772
    %v2821 = vunpack.c.l.b16 %v773
    %v2822 = vunpack.c.l.b16 %v774
    %v2823 = vunpack.c.l.b16 %v775
    %v2824 = vunpack.c.l.b16 %v776
    %v2825 = vunpack.c.l.b16 %v777
    %v2826 = vunpack.c.l.b16 %v778
    %v2827 = vunpack.c.l.b16 %v779
    %v2828 = vunpack.c.l.b16 %v780
    %v2829 = vunpack.c.l.b16 %v781
    %v2830 = vunpack.c.l.b16 %v782
    %v2831 = vunpack.c.l.b16 %v783
    %v2832 = vunpack.c.l.b16 %v784
    %v2833 = vunpack.c.l.b16 %v785
    %v2834 = vunpack.c.l.b16 %v786
    %v2835 = vunpack.c.l.b16 %v787
    %v2836 = vunpack.c.l.b16 %v788
    %v2837 = vunpack.c.l.b16 %v789
    %v2838 = vunpack.c.l.b16 %v790
    %v2839 = vunpack.c.l.b16 %v791
    %v2840 = vunpack.c.l.b16 %v792
    %v2841 = vunpack.c.l.b16 %v793
    %v2842 = vunpack.c.l.b16 %v794
    %v2843 = vunpack.c.l.b16 %v795
    %v2844 = vunpack.c.l.b16 %v796
    %v2845 = vunpack.c.l.b16 %v797
    %v2846 = vunpack.c.l.b16 %v798
    %v2847 = vunpack.c.l.b16 %v799
    %v2848 = vunpack.c.l.b16 %v800
    %v2849 = vunpack.c.l.b16 %v801
    %v2850 = vunpack.c.l.b16 %v802
    %v2851 = vunpack.c.l.b16 %v803
    %v2852 = vunpack.c.l.b16 %v804
    %v2853 = vunpack.c.l.b16 %v805
    %v2854 = vunpack.c.l.b16 %v806
    %v2855 = vunpack.c.l.b16 %v807
    %v2856 = vunpack.c.l.b16 %v808
    %v2857 = vunpack.c.l.b16 %v809
    %v2858 = vunpack.c.l.b16 %v810
    %v2859 = vunpack.c.l.b16 %v811
    %v2860 = vunpack.c.l.b16 %v812
    %v2861 = vunpack.c.l.b16 %v813
    %v2862 = vunpack.c.l.b16 %v814
    %v2863 = vunpack.c.l.b16 %v815
    %v2864 = vunpack.c.l.b16 %v816
    %v2865 = vunpack.c.l.b16 %v817
    %v2866 = vunpack.c.l.b16 %v818
    %v2867 = vunpack.c.l.b16 %v819
    %v2868 = vunpack.c.l.b16 %v820
    %v2869 = vunpack.c.l.b16 %v821
    %v2870 = vunpack.c.l.b16 %v822
    %v2871 = vunpack.c.l.b16 %v823
    %v2872 = vunpack.c.l.b16 %v824
    %v2873 = vunpack.c.l.b16 %v825
    %v2874 = vunpack.c.l.b16 %v826
    %v2875 = vunpack.c.l.b16 %v827
    %v2876 = vunpack.c.l.b16 %v828
    %v2877 = vunpack.c.l.b16 %v829
    %v2878 = vunpack.c.l.b16 %v830
    %v2879 = vunpack.c.l.b16 %v831
    %v2880 = vunpack.c.l.b16 %v832
    %v2881 = vunpack.c.l.b16 %v833
    %v2882 = vunpack.c.l.b16 %v834
    %v2883 = vunpack.c.l.b16 %v835
    %v2884 = vunpack.c.l.b16 %v836
    %v2885 = vunpack.c.l.b16 %v837
    %v2886 = vunpack.c.l.b16 %v838
    %v2887 = vunpack.c.l.b16 %v839
    %v2888 = vunpack.c.l.b16 %v840
    %v2889 = vunpack.c.l.b16 %v841
    %v2890 = vunpack.c.l.b16 %v842
    %v2891 = vunpack.c.l.b16 %v843
    %v2892 = vunpack.c.l.b16 %v844
    %v2893 = vunpack.c.l.b16 %v845
    %v2894 = vunpack.c.l.b16 %v846
    %v2895 = vunpack.c.l.b16 %v847
    %v2896 = vunpack.c.l.b16 %v848
    %v2897 = vunpack.c.l.b16 %v849
    %v2898 = vunpack.c.l.b16 %v850
    %v2899 = vunpack.c.l.b16 %v851
    %v2900 = vunpack.c.l.b16 %v852
    %v2901 = vunpack.c.l.b16 %v853
    %v2902 = vunpack.c.l.b16 %v854
    %v2903 = vunpack.c.l.b16 %v855
    %v2904 = vunpack.c.l.b16 %v856
    %v2905 = vunpack.c.l.b16 %v857
    %v2906 = vunpack.c.l.b16 %v858
    %v2907 = vunpack.c.l.b16 %v859
    %v2908 = vunpack.c.l.b16 %v860
    %v2909 = vunpack.c.l.b16 %v861
    %v2910 = vunpack.c.l.b16 %v862
    %v2911 = vunpack.c.l.b16 %v863
    %v2912 = vunpack.c.l.b16 %v864
    %v2913 = vunpack.c.l.b16 %v865
    %v2914 = vunpack.c.l.b16 %v866
    %v2915 = vunpack.c.l.b16 %v867
    %v2916 = vunpack.c.l.b16 %v868
    %v2917 = vunpack.c.l.b16 %v869
    %v2918 = vunpack.c.l.b16 %v870
    %v2919 = vunpack.c.l.b16 %v871
    %v2920 = vunpack.c.l.b16 %v872
    %v2921 = vunpack.c.l.b16 %v873
    %v2922 = vunpack.c.l.b16 %v874
    %v2923 = vunpack.c.l.b16 %v875
    %v2924 = vunpack.c.l.b16 %v876
    %v2925 = vunpack.c.l.b16 %v877
    %v2926 = vunpack.c.l.b16 %v878
    %v2927 = vunpack.c.l.b16 %v879
    %v2928 = vunpack.c.l.b16 %v880
    %v2929 = vunpack.c.l.b16 %v881
    %v2930 = vunpack.c.l.b16 %v882
    %v2931 = vunpack.c.l.b16 %v883
    %v2932 = vunpack.c.l.b16 %v884
    %v2933 = vunpack.c.l.b16 %v885
    %v2934 = vunpack.c.l.b16 %v886
    %v2935 = vunpack.c.l.b16 %v887
    %v2936 = vunpack.c.l.b16 %v888
    %v2937 = vunpack.c.l.b16 %v889
    %v2938 = vunpack.c.l.b16 %v890
    %v2939 = vunpack.c.l.b16 %v891
    %v2940 = vunpack.c.l.b16 %v892
    %v2941 = vunpack.c.l.b16 %v893
    %v2942 = vunpack.c.l.b16 %v894
    %v2943 = vunpack.c.l.b16 %v895
    %v2944 = vunpack.c.l.b16 %v896
    %v2945 = vunpack.c.l.b16 %v897
    %v2946 = vunpack.c.l.b16 %v898
    %v2947 = vunpack.c.l.b16 %v899
    %v2948 = vunpack.c.l.b16 %v900
    %v2949 = vunpack.c.l.b16 %v901
    %v2950 = vunpack.c.l.b16 %v902
    %v2951 = vunpack.c.l.b16 %v903
    %v2952 = vunpack.c.l.b16 %v904
    %v2953 = vunpack.c.l.b16 %v905
    %v2954 = vunpack.c.l.b16 %v906
    %v2955 = vunpack.c.l.b16 %v907
    %v2956 = vunpack.c.l.b16 %v908
    %v2957 = vunpack.c.l.b16 %v909
    %v2958 = vunpack.c.l.b16 %v910
    %v2959 = vunpack.c.l.b16 %v911
    %v2960 = vunpack.c.l.b16 %v912
    %v2961 = vunpack.c.l.b16 %v913
    %v2962 = vunpack.c.l.b16 %v914
    %v2963 = vunpack.c.l.b16 %v915
    %v2964 = vunpack.c.l.b16 %v916
    %v2965 = vunpack.c.l.b16 %v917
    %v2966 = vunpack.c.l.b16 %v918
    %v2967 = vunpack.c.l.b16 %v919
    %v2968 = vunpack.c.l.b16 %v920
    %v2969 = vunpack.c.l.b16 %v921
    %v2970 = vunpack.c.l.b16 %v922
    %v2971 = vunpack.c.l.b16 %v923
    %v2972 = vunpack.c.l.b16 %v924
    %v2973 = vunpack.c.l.b16 %v925
    %v2974 = vunpack.c.l.b16 %v926
    %v2975 = vunpack.c.l.b16 %v927
    %v2976 = vunpack.c.l.b16 %v928
    %v2977 = vunpack.c.l.b16 %v929
    %v2978 = vunpack.c.l.b16 %v930
    %v2979 = vunpack.c.l.b16 %v931
    %v2980 = vunpack.c.l.b16 %v932
    %v2981 = vunpack.c.l.b16 %v933
    %v2982 = vunpack.c.l.b16 %v934
    %v2983 = vunpack.c.l.b16 %v935
    %v2984 = vunpack.c.l.b16 %v936
    %v2985 = vunpack.c.l.b16 %v937
    %v2986 = vunpack.c.l.b16 %v938
    %v2987 = vunpack.c.l.b16 %v939
    %v2988 = vunpack.c.l.b16 %v940
    %v2989 = vunpack.c.l.b16 %v941
    %v2990 = vunpack.c.l.b16 %v942
    %v2991 = vunpack.c.l.b16 %v943
    %v2992 = vunpack.c.l.b16 %v944
    %v2993 = vunpack.c.l.b16 %v945
    %v2994 = vunpack.c.l.b16 %v946
    %v2995 = vunpack.c.l.b16 %v947
    %v2996 = vunpack.c.l.b16 %v948
    %v2997 = vunpack.c.l.b16 %v949
    %v2998 = vunpack.c.l.b16 %v950
    %v2999 = vunpack.c.l.b16 %v951
    %v3000 = vunpack.c.l.b16 %v952
    %v3001 = vunpack.c.l.b16 %v953
    %v3002 = vunpack.c.l.b16 %v954
    %v3003 = vunpack.c.l.b16 %v955
    %v3004 = vunpack.c.l.b16 %v956
    %v3005 = vunpack.c.l.b16 %v957
    %v3006 = vunpack.c.l.b16 %v958
    %v3007 = vunpack.c.l.b16 %v959
    %v3008 = vunpack.c.l.b16 %v960
    %v3009 = vunpack.c.l.b16 %v961
    %v3010 = vunpack.c.l.b16 %v962
    %v3011 = vunpack.c.l.b16 %v963
    %v3012 = vunpack.c.l.b16 %v964
    %v3013 = vunpack.c.l.b16 %v965
    %v3014 = vunpack.c.l.b16 %v966
    %v3015 = vunpack.c.l.b16 %v967
    %v3016 = vunpack.c.l.b16 %v968
    %v3017 = vunpack.c.l.b16 %v969
    %v3018 = vunpack.c.l.b16 %v970
    %v3019 = vunpack.c.l.b16 %v971
    %v3020 = vunpack.c.l.b16 %v972
    %v3021 = vunpack.c.l.b16 %v973
    %v3022 = vunpack.c.l.b16 %v974
    %v3023 = vunpack.c.l.b16 %v975
    %v3024 = vunpack.c.l.b16 %v976
    %v3025 = vunpack.c.l.b16 %v977
    %v3026 = vunpack.c.l.b16 %v978
    %v3027 = vunpack.c.l.b16 %v979
    %v3028 = vunpack.c.l.b16 %v980
    %v3029 = vunpack.c.l.b16 %v981
    %v3030 = vunpack.c.l.b16 %v982
    %v3031 = vunpack.c.l.b16 %v983
    %v3032 = vunpack.c.l.b16 %v984
    %v3033 = vunpack.c.l.b16 %v985
    %v3034 = vunpack.c.l.b16 %v986
    %v3035 = vunpack.c.l.b16 %v987
    %v3036 = vunpack.c.l.b16 %v988
    %v3037 = vunpack.c.l.b16 %v989
    %v3038 = vunpack.c.l.b16 %v990
    %v3039 = vunpack.c.l.b16 %v991
    %v3040 = vunpack.c.l.b16 %v992
    %v3041 = vunpack.c.l.b16 %v993
    %v3042 = vunpack.c.l.b16 %v994
    %v3043 = vunpack.c.l.b16 %v995
    %v3044 = vunpack.c.l.b16 %v996
    %v3045 = vunpack.c.l.b16 %v997
    %v3046 = vunpack.c.l.b16 %v998
    %v3047 = vunpack.c.l.b16 %v999
    %v3048 = vunpack.c.l.b16 %v1000
    %v3049 = vunpack.c.l.b16 %v1001
    %v3050 = vunpack.c.l.b16 %v1002
    %v3051 = vunpack.c.l.b16 %v1003
    %v3052 = vunpack.c.l.b16 %v1004
    %v3053 = vunpack.c.l.b16 %v1005
    %v3054 = vunpack.c.l.b16 %v1006
    %v3055 = vunpack.c.l.b16 %v1007
    %v3056 = vunpack.c.l.b16 %v1008
    %v3057 = vunpack.c.l.b16 %v1009
    %v3058 = vunpack.c.l.b16 %v1010
    %v3059 = vunpack.c.l.b16 %v1011
    %v3060 = vunpack.c.l.b16 %v1012
    %v3061 = vunpack.c.l.b16 %v1013
    %v3062 = vunpack.c.l.b16 %v1014
    %v3063 = vunpack.c.l.b16 %v1015
    %v3064 = vunpack.c.l.b16 %v1016
    %v3065 = vunpack.c.l.b16 %v1017
    %v3066 = vunpack.c.l.b16 %v1018
    %v3067 = vunpack.c.l.b16 %v1019
    %v3068 = vunpack.c.l.b16 %v1020
    %v3069 = vunpack.c.l.b16 %v1021
    %v3070 = vunpack.c.l.b16 %v1022
    %v3071 = vunpack.c.l.b16 %v1023
    %v3072 = vunpack.c.l.b16 %v1024
    %v3073 = vunpack.c.l.b16 %v1025
    %v3074 = vunpack.c.l.b16 %v1026
    %v3075 = vunpack.c.l.b16 %v1027
    %v3076 = vunpack.c.l.b16 %v1028
    %v3077 = vunpack.c.l.b16 %v1029
    %v3078 = vunpack.c.l.b16 %v1030
    %v3079 = vunpack.c.l.b16 %v1031
    %v3080 = vunpack.c.l.b16 %v1032
    %v3081 = vunpack.c.l.b16 %v1033
    %v3082 = vunpack.c.l.b16 %v1034
    %v3083 = vunpack.c.l.b16 %v1035
    %v3084 = vunpack.c.l.b16 %v1036
    %v3085 = vunpack.c.l.b16 %v1037
    %v3086 = vunpack.c.l.b16 %v1038
    %v3087 = vunpack.c.l.b16 %v1039
    %v3088 = vunpack.c.l.b16 %v1040
    %v3089 = vunpack.c.l.b16 %v1041
    %v3090 = vunpack.c.l.b16 %v1042
    %v3091 = vunpack.c.l.b16 %v1043
    %v3092 = vunpack.c.l.b16 %v1044
    %v3093 = vunpack.c.l.b16 %v1045
    %v3094 = vunpack.c.l.b16 %v1046
    %v3095 = vunpack.c.l.b16 %v1047
    %v3096 = vunpack.c.l.b16 %v1048
    %v3097 = vunpack.c.l.b16 %v1049
    %v3098 = vunpack.c.l.b16 %v1050
    %v3099 = vunpack.c.l.b16 %v1051
    %v3100 = vunpack.c.l.b16 %v1052
    %v3101 = vunpack.c.l.b16 %v1053
    %v3102 = vunpack.c.l.b16 %v1054
    %v3103 = vunpack.c.l.b16 %v1055
    %v3104 = vunpack.c.l.b16 %v1056
    %v3105 = vunpack.c.l.b16 %v1057
    %v3106 = vunpack.c.l.b16 %v1058
    %v3107 = vunpack.c.l.b16 %v1059
    %v3108 = vunpack.c.l.b16 %v1060
    %v3109 = vunpack.c.l.b16 %v1061
    %v3110 = vunpack.c.l.b16 %v1062
    %v3111 = vunpack.c.l.b16 %v1063
    %v3112 = vunpack.c.l.b16 %v1064
    %v3113 = vunpack.c.l.b16 %v1065
    %v3114 = vunpack.c.l.b16 %v1066
    %v3115 = vunpack.c.l.b16 %v1067
    %v3116 = vunpack.c.l.b16 %v1068
    %v3117 = vunpack.c.l.b16 %v1069
    %v3118 = vunpack.c.l.b16 %v1070
    %v3119 = vunpack.c.l.b16 %v1071
    %v3120 = vunpack.c.l.b16 %v1072
    %v3121 = vunpack.c.l.b16 %v1073
    %v3122 = vunpack.c.l.b16 %v1074
    %v3123 = vunpack.c.l.b16 %v1075
    %v3124 = vunpack.c.l.b16 %v1076
    %v3125 = vunpack.c.l.b16 %v1077
    %v3126 = vunpack.c.l.b16 %v1078
    %v3127 = vunpack.c.l.b16 %v1079
    %v3128 = vunpack.c.l.b16 %v1080
    %v3129 = vunpack.c.l.b16 %v1081
    %v3130 = vunpack.c.l.b16 %v1082
    %v3131 = vunpack.c.l.b16 %v1083
    %v3132 = vunpack.c.l.b16 %v1084
    %v3133 = vunpack.c.l.b16 %v1085
    %v3134 = vunpack.c.l.b16 %v1086
    %v3135 = vunpack.c.l.b16 %v1087
    %v3136 = vunpack.c.l.b16 %v1088
    %v3137 = vunpack.c.l.b16 %v1089
    %v3138 = vunpack.c.l.b16 %v1090
    %v3139 = vunpack.c.l.b16 %v1091
    %v3140 = vunpack.c.l.b16 %v1092
    %v3141 = vunpack.c.l.b16 %v1093
    %v3142 = vunpack.c.l.b16 %v1094
    %v3143 = vunpack.c.l.b16 %v1095
    %v3144 = vunpack.c.l.b16 %v1096
    %v3145 = vunpack.c.l.b16 %v1097
    %v3146 = vunpack.c.l.b16 %v1098
    %v3147 = vunpack.c.l.b16 %v1099
    %v3148 = vunpack.c.l.b16 %v1100
    %v3149 = vunpack.c.l.b16 %v1101
    %v3150 = vunpack.c.l.b16 %v1102
    %v3151 = vunpack.c.l.b16 %v1103
    %v3152 = vunpack.c.l.b16 %v1104
    %v3153 = vunpack.c.l.b16 %v1105
    %v3154 = vunpack.c.l.b16 %v1106
    %v3155 = vunpack.c.l.b16 %v1107
    %v3156 = vunpack.c.l.b16 %v1108
    %v3157 = vunpack.c.l.b16 %v1109
    %v3158 = vunpack.c.l.b16 %v1110
    %v3159 = vunpack.c.l.b16 %v1111
    %v3160 = vunpack.c.l.b16 %v1112
    %v3161 = vunpack.c.l.b16 %v1113
    %v3162 = vunpack.c.l.b16 %v1114
    %v3163 = vunpack.c.l.b16 %v1115
    %v3164 = vunpack.c.l.b16 %v1116
    %v3165 = vunpack.c.l.b16 %v1117
    %v3166 = vunpack.c.l.b16 %v1118
    %v3167 = vunpack.c.l.b16 %v1119
    %v3168 = vunpack.c.l.b16 %v1120
    %v3169 = vunpack.c.l.b16 %v1121
    %v3170 = vunpack.c.l.b16 %v1122
    %v3171 = vunpack.c.l.b16 %v1123
    %v3172 = vunpack.c.l.b16 %v1124
    %v3173 = vunpack.c.l.b16 %v1125
    %v3174 = vunpack.c.l.b16 %v1126
    %v3175 = vunpack.c.l.b16 %v1127
    %v3176 = vunpack.c.l.b16 %v1128
    %v3177 = vunpack.c.l.b16 %v1129
    %v3178 = vunpack.c.l.b16 %v1130
    %v3179 = vunpack.c.l.b16 %v1131
    %v3180 = vunpack.c.l.b16 %v1132
    %v3181 = vunpack.c.l.b16 %v1133
    %v3182 = vunpack.c.l.b16 %v1134
    %v3183 = vunpack.c.l.b16 %v1135
    %v3184 = vunpack.c.l.b16 %v1136
    %v3185 = vunpack.c.l.b16 %v1137
    %v3186 = vunpack.c.l.b16 %v1138
    %v3187 = vunpack.c.l.b16 %v1139
    %v3188 = vunpack.c.l.b16 %v1140
    %v3189 = vunpack.c.l.b16 %v1141
    %v3190 = vunpack.c.l.b16 %v1142
    %v3191 = vunpack.c.l.b16 %v1143
    %v3192 = vunpack.c.l.b16 %v1144
    %v3193 = vunpack.c.l.b16 %v1145
    %v3194 = vunpack.c.l.b16 %v1146
    %v3195 = vunpack.c.l.b16 %v1147
    %v3196 = vunpack.c.l.b16 %v1148
    %v3197 = vunpack.c.l.b16 %v1149
    %v3198 = vunpack.c.l.b16 %v1150
    %v3199 = vunpack.c.l.b16 %v1151
    %v3200 = vunpack.c.l.b16 %v1152
    %v3201 = vunpack.c.l.b16 %v1153
    %v3202 = vunpack.c.l.b16 %v1154
    %v3203 = vunpack.c.l.b16 %v1155
    %v3204 = vunpack.c.l.b16 %v1156
    %v3205 = vunpack.c.l.b16 %v1157
    %v3206 = vunpack.c.l.b16 %v1158
    %v3207 = vunpack.c.l.b16 %v1159
    %v3208 = vunpack.c.l.b16 %v1160
    %v3209 = vunpack.c.l.b16 %v1161
    %v3210 = vunpack.c.l.b16 %v1162
    %v3211 = vunpack.c.l.b16 %v1163
    %v3212 = vunpack.c.l.b16 %v1164
    %v3213 = vunpack.c.l.b16 %v1165
    %v3214 = vunpack.c.l.b16 %v1166
    %v3215 = vunpack.c.l.b16 %v1167
    %v3216 = vunpack.c.l.b16 %v1168
    %v3217 = vunpack.c.l.b16 %v1169
    %v3218 = vunpack.c.l.b16 %v1170
    %v3219 = vunpack.c.l.b16 %v1171
    %v3220 = vunpack.c.l.b16 %v1172
    %v3221 = vunpack.c.l.b16 %v1173
    %v3222 = vunpack.c.l.b16 %v1174
    %v3223 = vunpack.c.l.b16 %v1175
    %v3224 = vunpack.c.l.b16 %v1176
    %v3225 = vunpack.c.l.b16 %v1177
    %v3226 = vunpack.c.l.b16 %v1178
    %v3227 = vunpack.c.l.b16 %v1179
    %v3228 = vunpack.c.l.b16 %v1180
    %v3229 = vunpack.c.l.b16 %v1181
    %v3230 = vunpack.c.l.b16 %v1182
    %v3231 = vunpack.c.l.b16 %v1183
    %v3232 = vunpack.c.l.b16 %v1184
    %v3233 = vunpack.c.l.b16 %v1185
    %v3234 = vunpack.c.l.b16 %v1186
    %v3235 = vunpack.c.l.b16 %v1187
    %v3236 = vunpack.c.l.b16 %v1188
    %v3237 = vunpack.c.l.b16 %v1189
    %v3238 = vunpack.c.l.b16 %v1190
    %v3239 = vunpack.c.l.b16 %v1191
    %v3240 = vunpack.c.l.b16 %v1192
    %v3241 = vunpack.c.l.b16 %v1193
    %v3242 = vunpack.c.l.b16 %v1194
    %v3243 = vunpack.c.l.b16 %v1195
    %v3244 = vunpack.c.l.b16 %v1196
    %v3245 = vunpack.c.l.b16 %v1197
    %v3246 = vunpack.c.l.b16 %v1198
    %v3247 = vunpack.c.l.b16 %v1199
    %v3248 = vunpack.c.l.b16 %v1200
    %v3249 = vunpack.c.l.b16 %v1201
    %v3250 = vunpack.c.l.b16 %v1202
    %v3251 = vunpack.c.l.b16 %v1203
    %v3252 = vunpack.c.l.b16 %v1204
    %v3253 = vunpack.c.l.b16 %v1205
    %v3254 = vunpack.c.l.b16 %v1206
    %v3255 = vunpack.c.l.b16 %v1207
    %v3256 = vunpack.c.l.b16 %v1208
    %v3257 = vunpack.c.l.b16 %v1209
    %v3258 = vunpack.c.l.b16 %v1210
    %v3259 = vunpack.c.l.b16 %v1211
    %v3260 = vunpack.c.l.b16 %v1212
    %v3261 = vunpack.c.l.b16 %v1213
    %v3262 = vunpack.c.l.b16 %v1214
    %v3263 = vunpack.c.l.b16 %v1215
    %v3264 = vunpack.c.l.b16 %v1216
    %v3265 = vunpack.c.l.b16 %v1217
    %v3266 = vunpack.c.l.b16 %v1218
    %v3267 = vunpack.c.l.b16 %v1219
    %v3268 = vunpack.c.l.b16 %v1220
    %v3269 = vunpack.c.l.b16 %v1221
    %v3270 = vunpack.c.l.b16 %v1222
    %v3271 = vunpack.c.l.b16 %v1223
    %v3272 = vunpack.c.l.b16 %v1224
    %v3273 = vunpack.c.l.b16 %v1225
    %v3274 = vunpack.c.l.b16 %v1226
    %v3275 = vunpack.c.l.b16 %v1227
    %v3276 = vunpack.c.l.b16 %v1228
    %v3277 = vunpack.c.l.b16 %v1229
    %v3278 = vunpack.c.l.b16 %v1230
    %v3279 = vunpack.c.l.b16 %v1231
    %v3280 = vunpack.c.l.b16 %v1232
    %v3281 = vunpack.c.l.b16 %v1233
    %v3282 = vunpack.c.l.b16 %v1234
    %v3283 = vunpack.c.l.b16 %v1235
    %v3284 = vunpack.c.l.b16 %v1236
    %v3285 = vunpack.c.l.b16 %v1237
    %v3286 = vunpack.c.l.b16 %v1238
    %v3287 = vunpack.c.l.b16 %v1239
    %v3288 = vunpack.c.l.b16 %v1240
    %v3289 = vunpack.c.l.b16 %v1241
    %v3290 = vunpack.c.l.b16 %v1242
    %v3291 = vunpack.c.l.b16 %v1243
    %v3292 = vunpack.c.l.b16 %v1244
    %v3293 = vunpack.c.l.b16 %v1245
    %v3294 = vunpack.c.l.b16 %v1246
    %v3295 = vunpack.c.l.b16 %v1247
    %v3296 = vunpack.c.l.b16 %v1248
    %v3297 = vunpack.c.l.b16 %v1249
    %v3298 = vunpack.c.l.b16 %v1250
    %v3299 = vunpack.c.l.b16 %v1251
    %v3300 = vunpack.c.l.b16 %v1252
    %v3301 = vunpack.c.l.b16 %v1253
    %v3302 = vunpack.c.l.b16 %v1254
    %v3303 = vunpack.c.l.b16 %v1255
    %v3304 = vunpack.c.l.b16 %v1256
    %v3305 = vunpack.c.l.b16 %v1257
    %v3306 = vunpack.c.l.b16 %v1258
    %v3307 = vunpack.c.l.b16 %v1259
    %v3308 = vunpack.c.l.b16 %v1260
    %v3309 = vunpack.c.l.b16 %v1261
    %v3310 = vunpack.c.l.b16 %v1262
    %v3311 = vunpack.c.l.b16 %v1263
    %v3312 = vunpack.c.l.b16 %v1264
    %v3313 = vunpack.c.l.b16 %v1265
    %v3314 = vunpack.c.l.b16 %v1266
    %v3315 = vunpack.c.l.b16 %v1267
    %v3316 = vunpack.c.l.b16 %v1268
    %v3317 = vunpack.c.l.b16 %v1269
    %v3318 = vunpack.c.l.b16 %v1270
    %v3319 = vunpack.c.l.b16 %v1271
    %v3320 = vunpack.c.l.b16 %v1272
    %v3321 = vunpack.c.l.b16 %v1273
    %v3322 = vunpack.c.l.b16 %v1274
    %v3323 = vunpack.c.l.b16 %v1275
    %v3324 = vunpack.c.l.b16 %v1276
    %v3325 = vunpack.c.l.b16 %v1277
    %v3326 = vunpack.c.l.b16 %v1278
    %v3327 = vunpack.c.l.b16 %v1279
    %v3328 = vunpack.c.l.b16 %v1280
    %v3329 = vunpack.c.l.b16 %v1281
    %v3330 = vunpack.c.l.b16 %v1282
    %v3331 = vunpack.c.l.b16 %v1283
    %v3332 = vunpack.c.l.b16 %v1284
    %v3333 = vunpack.c.l.b16 %v1285
    %v3334 = vunpack.c.l.b16 %v1286
    %v3335 = vunpack.c.l.b16 %v1287
    %v3336 = vunpack.c.l.b16 %v1288
    %v3337 = vunpack.c.l.b16 %v1289
    %v3338 = vunpack.c.l.b16 %v1290
    %v3339 = vunpack.c.l.b16 %v1291
    %v3340 = vunpack.c.l.b16 %v1292
    %v3341 = vunpack.c.l.b16 %v1293
    %v3342 = vunpack.c.l.b16 %v1294
    %v3343 = vunpack.c.l.b16 %v1295
    %v3344 = vunpack.c.l.b16 %v1296
    %v3345 = vunpack.c.l.b16 %v1297
    %v3346 = vunpack.c.l.b16 %v1298
    %v3347 = vunpack.c.l.b16 %v1299
    %v3348 = vunpack.c.l.b16 %v1300
    %v3349 = vunpack.c.l.b16 %v1301
    %v3350 = vunpack.c.l.b16 %v1302
    %v3351 = vunpack.c.l.b16 %v1303
    %v3352 = vunpack.c.l.b16 %v1304
    %v3353 = vunpack.c.l.b16 %v1305
    %v3354 = vunpack.c.l.b16 %v1306
    %v3355 = vunpack.c.l.b16 %v1307
    %v3356 = vunpack.c.l.b16 %v1308
    %v3357 = vunpack.c.l.b16 %v1309
    %v3358 = vunpack.c.l.b16 %v1310
    %v3359 = vunpack.c.l.b16 %v1311
    %v3360 = vunpack.c.l.b16 %v1312
    %v3361 = vunpack.c.l.b16 %v1313
    %v3362 = vunpack.c.l.b16 %v1314
    %v3363 = vunpack.c.l.b16 %v1315
    %v3364 = vunpack.c.l.b16 %v1316
    %v3365 = vunpack.c.l.b16 %v1317
    %v3366 = vunpack.c.l.b16 %v1318
    %v3367 = vunpack.c.l.b16 %v1319
    %v3368 = vunpack.c.l.b16 %v1320
    %v3369 = vunpack.c.l.b16 %v1321
    %v3370 = vunpack.c.l.b16 %v1322
    %v3371 = vunpack.c.l.b16 %v1323
    %v3372 = vunpack.c.l.b16 %v1324
    %v3373 = vunpack.c.l.b16 %v1325
    %v3374 = vunpack.c.l.b16 %v1326
    %v3375 = vunpack.c.l.b16 %v1327
    %v3376 = vunpack.c.l.b16 %v1328
    %v3377 = vunpack.c.l.b16 %v1329
    %v3378 = vunpack.c.l.b16 %v1330
    %v3379 = vunpack.c.l.b16 %v1331
    %v3380 = vunpack.c.l.b16 %v1332
    %v3381 = vunpack.c.l.b16 %v1333
    %v3382 = vunpack.c.l.b16 %v1334
    %v3383 = vunpack.c.l.b16 %v1335
    %v3384 = vunpack.c.l.b16 %v1336
    %v3385 = vunpack.c.l.b16 %v1337
    %v3386 = vunpack.c.l.b16 %v1338
    %v3387 = vunpack.c.l.b16 %v1339
    %v3388 = vunpack.c.l.b16 %v1340
    %v3389 = vunpack.c.l.b16 %v1341
    %v3390 = vunpack.c.l.b16 %v1342
    %v3391 = vunpack.c.l.b16 %v1343
    %v3392 = vunpack.c.l.b16 %v1344
    %v3393 = vunpack.c.l.b16 %v1345
    %v3394 = vunpack.c.l.b16 %v1346
    %v3395 = vunpack.c.l.b16 %v1347
    %v3396 = vunpack.c.l.b16 %v1348
    %v3397 = vunpack.c.l.b16 %v1349
    %v3398 = vunpack.c.l.b16 %v1350
    %v3399 = vunpack.c.l.b16 %v1351
    %v3400 = vunpack.c.l.b16 %v1352
    %v3401 = vunpack.c.l.b16 %v1353
    %v3402 = vunpack.c.l.b16 %v1354
    %v3403 = vunpack.c.l.b16 %v1355
    %v3404 = vunpack.c.l.b16 %v1356
    %v3405 = vunpack.c.l.b16 %v1357
    %v3406 = vunpack.c.l.b16 %v1358
    %v3407 = vunpack.c.l.b16 %v1359
    %v3408 = vunpack.c.l.b16 %v1360
    %v3409 = vunpack.c.l.b16 %v1361
    %v3410 = vunpack.c.l.b16 %v1362
    %v3411 = vunpack.c.l.b16 %v1363
    %v3412 = vunpack.c.l.b16 %v1364
    %v3413 = vunpack.c.l.b16 %v1365
    %v3414 = vunpack.c.l.b16 %v1366
    %v3415 = vunpack.c.l.b16 %v1367
    %v3416 = vunpack.c.l.b16 %v1368
    %v3417 = vunpack.c.l.b16 %v1369
    %v3418 = vunpack.c.l.b16 %v1370
    %v3419 = vunpack.c.l.b16 %v1371
    %v3420 = vunpack.c.l.b16 %v1372
    %v3421 = vunpack.c.l.b16 %v1373
    %v3422 = vunpack.c.l.b16 %v1374
    %v3423 = vunpack.c.l.b16 %v1375
    %v3424 = vunpack.c.l.b16 %v1376
    %v3425 = vunpack.c.l.b16 %v1377
    %v3426 = vunpack.c.l.b16 %v1378
    %v3427 = vunpack.c.l.b16 %v1379
    %v3428 = vunpack.c.l.b16 %v1380
    %v3429 = vunpack.c.l.b16 %v1381
    %v3430 = vunpack.c.l.b16 %v1382
    %v3431 = vunpack.c.l.b16 %v1383
    %v3432 = vunpack.c.l.b16 %v1384
    %v3433 = vunpack.c.l.b16 %v1385
    %v3434 = vunpack.c.l.b16 %v1386
    %v3435 = vunpack.c.l.b16 %v1387
    %v3436 = vunpack.c.l.b16 %v1388
    %v3437 = vunpack.c.l.b16 %v1389
    %v3438 = vunpack.c.l.b16 %v1390
    %v3439 = vunpack.c.l.b16 %v1391
    %v3440 = vunpack.c.l.b16 %v1392
    %v3441 = vunpack.c.l.b16 %v1393
    %v3442 = vunpack.c.l.b16 %v1394
    %v3443 = vunpack.c.l.b16 %v1395
    %v3444 = vunpack.c.l.b16 %v1396
    %v3445 = vunpack.c.l.b16 %v1397
    %v3446 = vunpack.c.l.b16 %v1398
    %v3447 = vunpack.c.l.b16 %v1399
    %v3448 = vunpack.c.l.b16 %v1400
    %v3449 = vunpack.c.l.b16 %v1401
    %v3450 = vunpack.c.l.b16 %v1402
    %v3451 = vunpack.c.l.b16 %v1403
    %v3452 = vunpack.c.l.b16 %v1404
    %v3453 = vunpack.c.l.b16 %v1405
    %v3454 = vunpack.c.l.b16 %v1406
    %v3455 = vunpack.c.l.b16 %v1407
    %v3456 = vunpack.c.l.b16 %v1408
    %v3457 = vunpack.c.l.b16 %v1409
    %v3458 = vunpack.c.l.b16 %v1410
    %v3459 = vunpack.c.l.b16 %v1411
    %v3460 = vunpack.c.l.b16 %v1412
    %v3461 = vunpack.c.l.b16 %v1413
    %v3462 = vunpack.c.l.b16 %v1414
    %v3463 = vunpack.c.l.b16 %v1415
    %v3464 = vunpack.c.l.b16 %v1416
    %v3465 = vunpack.c.l.b16 %v1417
    %v3466 = vunpack.c.l.b16 %v1418
    %v3467 = vunpack.c.l.b16 %v1419
    %v3468 = vunpack.c.l.b16 %v1420
    %v3469 = vunpack.c.l.b16 %v1421
    %v3470 = vunpack.c.l.b16 %v1422
    %v3471 = vunpack.c.l.b16 %v1423
    %v3472 = vunpack.c.l.b16 %v1424
    %v3473 = vunpack.c.l.b16 %v1425
    %v3474 = vunpack.c.l.b16 %v1426
    %v3475 = vunpack.c.l.b16 %v1427
    %v3476 = vunpack.c.l.b16 %v1428
    %v3477 = vunpack.c.l.b16 %v1429
    %v3478 = vunpack.c.l.b16 %v1430
    %v3479 = vunpack.c.l.b16 %v1431
    %v3480 = vunpack.c.l.b16 %v1432
    %v3481 = vunpack.c.l.b16 %v1433
    %v3482 = vunpack.c.l.b16 %v1434
    %v3483 = vunpack.c.l.b16 %v1435
    %v3484 = vunpack.c.l.b16 %v1436
    %v3485 = vunpack.c.l.b16 %v1437
    %v3486 = vunpack.c.l.b16 %v1438
    %v3487 = vunpack.c.l.b16 %v1439
    %v3488 = vunpack.c.l.b16 %v1440
    %v3489 = vunpack.c.l.b16 %v1441
    %v3490 = vunpack.c.l.b16 %v1442
    %v3491 = vunpack.c.l.b16 %v1443
    %v3492 = vunpack.c.l.b16 %v1444
    %v3493 = vunpack.c.l.b16 %v1445
    %v3494 = vunpack.c.l.b16 %v1446
    %v3495 = vunpack.c.l.b16 %v1447
    %v3496 = vunpack.c.l.b16 %v1448
    %v3497 = vunpack.c.l.b16 %v1449
    %v3498 = vunpack.c.l.b16 %v1450
    %v3499 = vunpack.c.l.b16 %v1451
    %v3500 = vunpack.c.l.b16 %v1452
    %v3501 = vunpack.c.l.b16 %v1453
    %v3502 = vunpack.c.l.b16 %v1454
    %v3503 = vunpack.c.l.b16 %v1455
    %v3504 = vunpack.c.l.b16 %v1456
    %v3505 = vunpack.c.l.b16 %v1457
    %v3506 = vunpack.c.l.b16 %v1458
    %v3507 = vunpack.c.l.b16 %v1459
    %v3508 = vunpack.c.l.b16 %v1460
    %v3509 = vunpack.c.l.b16 %v1461
    %v3510 = vunpack.c.l.b16 %v1462
    %v3511 = vunpack.c.l.b16 %v1463
    %v3512 = vunpack.c.l.b16 %v1464
    %v3513 = vunpack.c.l.b16 %v1465
    %v3514 = vunpack.c.l.b16 %v1466
    %v3515 = vunpack.c.l.b16 %v1467
    %v3516 = vunpack.c.l.b16 %v1468
    %v3517 = vunpack.c.l.b16 %v1469
    %v3518 = vunpack.c.l.b16 %v1470
    %v3519 = vunpack.c.l.b16 %v1471
    %v3520 = vunpack.c.l.b16 %v1472
    %v3521 = vunpack.c.l.b16 %v1473
    %v3522 = vunpack.c.l.b16 %v1474
    %v3523 = vunpack.c.l.b16 %v1475
    %v3524 = vunpack.c.l.b16 %v1476
    %v3525 = vunpack.c.l.b16 %v1477
    %v3526 = vunpack.c.l.b16 %v1478
    %v3527 = vunpack.c.l.b16 %v1479
    %v3528 = vunpack.c.l.b16 %v1480
    %v3529 = vunpack.c.l.b16 %v1481
    %v3530 = vunpack.c.l.b16 %v1482
    %v3531 = vunpack.c.l.b16 %v1483
    %v3532 = vunpack.c.l.b16 %v1484
    %v3533 = vunpack.c.l.b16 %v1485
    %v3534 = vunpack.c.l.b16 %v1486
    %v3535 = vunpack.c.l.b16 %v1487
    %v3536 = vunpack.c.l.b16 %v1488
    %v3537 = vunpack.c.l.b16 %v1489
    %v3538 = vunpack.c.l.b16 %v1490
    %v3539 = vunpack.c.l.b16 %v1491
    %v3540 = vunpack.c.l.b16 %v1492
    %v3541 = vunpack.c.l.b16 %v1493
    %v3542 = vunpack.c.l.b16 %v1494
    %v3543 = vunpack.c.l.b16 %v1495
    %v3544 = vunpack.c.l.b16 %v1496
    %v3545 = vunpack.c.l.b16 %v1497
    %v3546 = vunpack.c.l.b16 %v1498
    %v3547 = vunpack.c.l.b16 %v1499
    %v3548 = vunpack.c.l.b16 %v1500
    %v3549 = vunpack.c.l.b16 %v1501
    %v3550 = vunpack.c.l.b16 %v1502
    %v3551 = vunpack.c.l.b16 %v1503
    %v3552 = vunpack.c.l.b16 %v1504
    %v3553 = vunpack.c.l.b16 %v1505
    %v3554 = vunpack.c.l.b16 %v1506
    %v3555 = vunpack.c.l.b16 %v1507
    %v3556 = vunpack.c.l.b16 %v1508
    %v3557 = vunpack.c.l.b16 %v1509
    %v3558 = vpack.c.b16 %v2535, %v2534
    %v3559 = vpack.c.b16 %v2537, %v2536
    %v3560 = vpack.c.b16 %v2539, %v2538
    %v3561 = vpack.c.b16 %v2541, %v2540
    %v3562 = vpack.c.b16 %v2543, %v2542
    %v3563 = vpack.c.b16 %v2545, %v2544
    %v3564 = vpack.c.b16 %v2547, %v2546
    %v3565 = vpack.c.b16 %v2549, %v2548
    %v3566 = vpack.c.b16 %v2551, %v2550
    %v3567 = vpack.c.b16 %v2553, %v2552
    %v3568 = vpack.c.b16 %v2555, %v2554
    %v3569 = vpack.c.b16 %v2557, %v2556
    %v3570 = vpack.c.b16 %v2559, %v2558
    %v3571 = vpack.c.b16 %v2561, %v2560
    %v3572 = vpack.c.b16 %v2563, %v2562
    %v3573 = vpack.c.b16 %v2565, %v2564
    %v3574 = vpack.c.b16 %v2567, %v2566
    %v3575 = vpack.c.b16 %v2569, %v2568
    %v3576 = vpack.c.b16 %v2571, %v2570
    %v3577 = vpack.c.b16 %v2573, %v2572
    %v3578 = vpack.c.b16 %v2575, %v2574
    %v3579 = vpack.c.b16 %v2577, %v2576
    %v3580 = vpack.c.b16 %v2579, %v2578
    %v3581 = vpack.c.b16 %v2581, %v2580
    %v3582 = vpack.c.b16 %v2583, %v2582
    %v3583 = vpack.c.b16 %v2585, %v2584
    %v3584 = vpack.c.b16 %v2587, %v2586
    %v3585 = vpack.c.b16 %v2589, %v2588
    %v3586 = vpack.c.b16 %v2591, %v2590
    %v3587 = vpack.c.b16 %v2593, %v2592
    %v3588 = vpack.c.b16 %v2595, %v2594
    %v3589 = vpack.c.b16 %v2597, %v2596
    %v3590 = vpack.c.b16 %v2599, %v2598
    %v3591 = vpack.c.b16 %v2601, %v2600
    %v3592 = vpack.c.b16 %v2603, %v2602
    %v3593 = vpack.c.b16 %v2605, %v2604
    %v3594 = vpack.c.b16 %v2607, %v2606
    %v3595 = vpack.c.b16 %v2609, %v2608
    %v3596 = vpack.c.b16 %v2611, %v2610
    %v3597 = vpack.c.b16 %v2613, %v2612
    %v3598 = vpack.c.b16 %v2615, %v2614
    %v3599 = vpack.c.b16 %v2617, %v2616
    %v3600 = vpack.c.b16 %v2619, %v2618
    %v3601 = vpack.c.b16 %v2621, %v2620
    %v3602 = vpack.c.b16 %v2623, %v2622
    %v3603 = vpack.c.b16 %v2625, %v2624
    %v3604 = vpack.c.b16 %v2627, %v2626
    %v3605 = vpack.c.b16 %v2629, %v2628
    %v3606 = vpack.c.b16 %v2631, %v2630
    %v3607 = vpack.c.b16 %v2633, %v2632
    %v3608 = vpack.c.b16 %v2635, %v2634
    %v3609 = vpack.c.b16 %v2637, %v2636
    %v3610 = vpack.c.b16 %v2639, %v2638
    %v3611 = vpack.c.b16 %v2641, %v2640
    %v3612 = vpack.c.b16 %v2643, %v2642
    %v3613 = vpack.c.b16 %v2645, %v2644
    %v3614 = vpack.c.b16 %v2647, %v2646
    %v3615 = vpack.c.b16 %v2649, %v2648
    %v3616 = vpack.c.b16 %v2651, %v2650
    %v3617 = vpack.c.b16 %v2653, %v2652
    %v3618 = vpack.c.b16 %v2655, %v2654
    %v3619 = vpack.c.b16 %v2657, %v2656
    %v3620 = vpack.c.b16 %v2659, %v2658
    %v3621 = vpack.c.b16 %v2661, %v2660
    %v3622 = vpack.c.b16 %v2663, %v2662
    %v3623 = vpack.c.b16 %v2665, %v2664
    %v3624 = vpack.c.b16 %v2667, %v2666
    %v3625 = vpack.c.b16 %v2669, %v2668
    %v3626 = vpack.c.b16 %v2671, %v2670
    %v3627 = vpack.c.b16 %v2673, %v2672
    %v3628 = vpack.c.b16 %v2675, %v2674
    %v3629 = vpack.c.b16 %v2677, %v2676
    %v3630 = vpack.c.b16 %v2679, %v2678
    %v3631 = vpack.c.b16 %v2681, %v2680
    %v3632 = vpack.c.b16 %v2683, %v2682
    %v3633 = vpack.c.b16 %v2685, %v2684
    %v3634 = vpack.c.b16 %v2687, %v2686
    %v3635 = vpack.c.b16 %v2689, %v2688
    %v3636 = vpack.c.b16 %v2691, %v2690
    %v3637 = vpack.c.b16 %v2693, %v2692
    %v3638 = vpack.c.b16 %v2695, %v2694
    %v3639 = vpack.c.b16 %v2697, %v2696
    %v3640 = vpack.c.b16 %v2699, %v2698
    %v3641 = vpack.c.b16 %v2701, %v2700
    %v3642 = vpack.c.b16 %v2703, %v2702
    %v3643 = vpack.c.b16 %v2705, %v2704
    %v3644 = vpack.c.b16 %v2707, %v2706
    %v3645 = vpack.c.b16 %v2709, %v2708
    %v3646 = vpack.c.b16 %v2711, %v2710
    %v3647 = vpack.c.b16 %v2713, %v2712
    %v3648 = vpack.c.b16 %v2715, %v2714
    %v3649 = vpack.c.b16 %v2717, %v2716
    %v3650 = vpack.c.b16 %v2719, %v2718
    %v3651 = vpack.c.b16 %v2721, %v2720
    %v3652 = vpack.c.b16 %v2723, %v2722
    %v3653 = vpack.c.b16 %v2725, %v2724
    %v3654 = vpack.c.b16 %v2727, %v2726
    %v3655 = vpack.c.b16 %v2729, %v2728
    %v3656 = vpack.c.b16 %v2731, %v2730
    %v3657 = vpack.c.b16 %v2733, %v2732
    %v3658 = vpack.c.b16 %v2735, %v2734
    %v3659 = vpack.c.b16 %v2737, %v2736
    %v3660 = vpack.c.b16 %v2739, %v2738
    %v3661 = vpack.c.b16 %v2741, %v2740
    %v3662 = vpack.c.b16 %v2743, %v2742
    %v3663 = vpack.c.b16 %v2745, %v2744
    %v3664 = vpack.c.b16 %v2747, %v2746
    %v3665 = vpack.c.b16 %v2749, %v2748
    %v3666 = vpack.c.b16 %v2751, %v2750
    %v3667 = vpack.c.b16 %v2753, %v2752
    %v3668 = vpack.c.b16 %v2755, %v2754
    %v3669 = vpack.c.b16 %v2757, %v2756
    %v3670 = vpack.c.b16 %v2759, %v2758
    %v3671 = vpack.c.b16 %v2761, %v2760
    %v3672 = vpack.c.b16 %v2763, %v2762
    %v3673 = vpack.c.b16 %v2765, %v2764
    %v3674 = vpack.c.b16 %v2767, %v2766
    %v3675 = vpack.c.b16 %v2769, %v2768
    %v3676 = vpack.c.b16 %v2771, %v2770
    %v3677 = vpack.c.b16 %v2773, %v2772
    %v3678 = vpack.c.b16 %v2775, %v2774
    %v3679 = vpack.c.b16 %v2777, %v2776
    %v3680 = vpack.c.b16 %v2779, %v2778
    %v3681 = vpack.c.b16 %v2781, %v2780
    %v3682 = vpack.c.b16 %v2783, %v2782
    %v3683 = vpack.c.b16 %v2785, %v2784
    %v3684 = vpack.c.b16 %v2787, %v2786
    %v3685 = vpack.c.b16 %v2789, %v2788
    %v3686 = vpack.c.b16 %v2791, %v2790
    %v3687 = vpack.c.b16 %v2793, %v2792
    %v3688 = vpack.c.b16 %v2795, %v2794
    %v3689 = vpack.c.b16 %v2797, %v2796
    %v3690 = vpack.c.b16 %v2799, %v2798
    %v3691 = vpack.c.b16 %v2801, %v2800
    %v3692 = vpack.c.b16 %v2803, %v2802
    %v3693 = vpack.c.b16 %v2805, %v2804
    %v3694 = vpack.c.b16 %v2807, %v2806
    %v3695 = vpack.c.b16 %v2809, %v2808
    %v3696 = vpack.c.b16 %v2811, %v2810
    %v3697 = vpack.c.b16 %v2813, %v2812
    %v3698 = vpack.c.b16 %v2815, %v2814
    %v3699 = vpack.c.b16 %v2817, %v2816
    %v3700 = vpack.c.b16 %v2819, %v2818
    %v3701 = vpack.c.b16 %v2821, %v2820
    %v3702 = vpack.c.b16 %v2823, %v2822
    %v3703 = vpack.c.b16 %v2825, %v2824
    %v3704 = vpack.c.b16 %v2827, %v2826
    %v3705 = vpack.c.b16 %v2829, %v2828
    %v3706 = vpack.c.b16 %v2831, %v2830
    %v3707 = vpack.c.b16 %v2833, %v2832
    %v3708 = vpack.c.b16 %v2835, %v2834
    %v3709 = vpack.c.b16 %v2837, %v2836
    %v3710 = vpack.c.b16 %v2839, %v2838
    %v3711 = vpack.c.b16 %v2841, %v2840
    %v3712 = vpack.c.b16 %v2843, %v2842
    %v3713 = vpack.c.b16 %v2845, %v2844
    %v3714 = vpack.c.b16 %v2847, %v2846
    %v3715 = vpack.c.b16 %v2849, %v2848
    %v3716 = vpack.c.b16 %v2851, %v2850
    %v3717 = vpack.c.b16 %v2853, %v2852
    %v3718 = vpack.c.b16 %v2855, %v2854
    %v3719 = vpack.c.b16 %v2857, %v2856
    %v3720 = vpack.c.b16 %v2859, %v2858
    %v3721 = vpack.c.b16 %v2861, %v2860
    %v3722 = vpack.c.b16 %v2863, %v2862
    %v3723 = vpack.c.b16 %v2865, %v2864
    %v3724 = vpack.c.b16 %v2867, %v2866
    %v3725 = vpack.c.b16 %v2869, %v2868
    %v3726 = vpack.c.b16 %v2871, %v2870
    %v3727 = vpack.c.b16 %v2873, %v2872
    %v3728 = vpack.c.b16 %v2875, %v2874
    %v3729 = vpack.c.b16 %v2877, %v2876
    %v3730 = vpack.c.b16 %v2879, %v2878
    %v3731 = vpack.c.b16 %v2881, %v2880
    %v3732 = vpack.c.b16 %v2883, %v2882
    %v3733 = vpack.c.b16 %v2885, %v2884
    %v3734 = vpack.c.b16 %v2887, %v2886
    %v3735 = vpack.c.b16 %v2889, %v2888
    %v3736 = vpack.c.b16 %v2891, %v2890
    %v3737 = vpack.c.b16 %v2893, %v2892
    %v3738 = vpack.c.b16 %v2895, %v2894
    %v3739 = vpack.c.b16 %v2897, %v2896
    %v3740 = vpack.c.b16 %v2899, %v2898
    %v3741 = vpack.c.b16 %v2901, %v2900
    %v3742 = vpack.c.b16 %v2903, %v2902
    %v3743 = vpack.c.b16 %v2905, %v2904
    %v3744 = vpack.c.b16 %v2907, %v2906
    %v3745 = vpack.c.b16 %v2909, %v2908
    %v3746 = vpack.c.b16 %v2911, %v2910
    %v3747 = vpack.c.b16 %v2913, %v2912
    %v3748 = vpack.c.b16 %v2915, %v2914
    %v3749 = vpack.c.b16 %v2917, %v2916
    %v3750 = vpack.c.b16 %v2919, %v2918
    %v3751 = vpack.c.b16 %v2921, %v2920
    %v3752 = vpack.c.b16 %v2923, %v2922
    %v3753 = vpack.c.b16 %v2925, %v2924
    %v3754 = vpack.c.b16 %v2927, %v2926
    %v3755 = vpack.c.b16 %v2929, %v2928
    %v3756 = vpack.c.b16 %v2931, %v2930
    %v3757 = vpack.c.b16 %v2933, %v2932
    %v3758 = vpack.c.b16 %v2935, %v2934
    %v3759 = vpack.c.b16 %v2937, %v2936
    %v3760 = vpack.c.b16 %v2939, %v2938
    %v3761 = vpack.c.b16 %v2941, %v2940
    %v3762 = vpack.c.b16 %v2943, %v2942
    %v3763 = vpack.c.b16 %v2945, %v2944
    %v3764 = vpack.c.b16 %v2947, %v2946
    %v3765 = vpack.c.b16 %v2949, %v2948
    %v3766 = vpack.c.b16 %v2951, %v2950
    %v3767 = vpack.c.b16 %v2953, %v2952
    %v3768 = vpack.c.b16 %v2955, %v2954
    %v3769 = vpack.c.b16 %v2957, %v2956
    %v3770 = vpack.c.b16 %v2959, %v2958
    %v3771 = vpack.c.b16 %v2961, %v2960
    %v3772 = vpack.c.b16 %v2963, %v2962
    %v3773 = vpack.c.b16 %v2965, %v2964
    %v3774 = vpack.c.b16 %v2967, %v2966
    %v3775 = vpack.c.b16 %v2969, %v2968
    %v3776 = vpack.c.b16 %v2971, %v2970
    %v3777 = vpack.c.b16 %v2973, %v2972
    %v3778 = vpack.c.b16 %v2975, %v2974
    %v3779 = vpack.c.b16 %v2977, %v2976
    %v3780 = vpack.c.b16 %v2979, %v2978
    %v3781 = vpack.c.b16 %v2981, %v2980
    %v3782 = vpack.c.b16 %v2983, %v2982
    %v3783 = vpack.c.b16 %v2985, %v2984
    %v3784 = vpack.c.b16 %v2987, %v2986
    %v3785 = vpack.c.b16 %v2989, %v2988
    %v3786 = vpack.c.b16 %v2991, %v2990
    %v3787 = vpack.c.b16 %v2993, %v2992
    %v3788 = vpack.c.b16 %v2995, %v2994
    %v3789 = vpack.c.b16 %v2997, %v2996
    %v3790 = vpack.c.b16 %v2999, %v2998
    %v3791 = vpack.c.b16 %v3001, %v3000
    %v3792 = vpack.c.b16 %v3003, %v3002
    %v3793 = vpack.c.b16 %v3005, %v3004
    %v3794 = vpack.c.b16 %v3007, %v3006
    %v3795 = vpack.c.b16 %v3009, %v3008
    %v3796 = vpack.c.b16 %v3011, %v3010
    %v3797 = vpack.c.b16 %v3013, %v3012
    %v3798 = vpack.c.b16 %v3015, %v3014
    %v3799 = vpack.c.b16 %v3017, %v3016
    %v3800 = vpack.c.b16 %v3019, %v3018
    %v3801 = vpack.c.b16 %v3021, %v3020
    %v3802 = vpack.c.b16 %v3023, %v3022
    %v3803 = vpack.c.b16 %v3025, %v3024
    %v3804 = vpack.c.b16 %v3027, %v3026
    %v3805 = vpack.c.b16 %v3029, %v3028
    %v3806 = vpack.c.b16 %v3031, %v3030
    %v3807 = vpack.c.b16 %v3033, %v3032
    %v3808 = vpack.c.b16 %v3035, %v3034
    %v3809 = vpack.c.b16 %v3037, %v3036
    %v3810 = vpack.c.b16 %v3039, %v3038
    %v3811 = vpack.c.b16 %v3041, %v3040
    %v3812 = vpack.c.b16 %v3043, %v3042
    %v3813 = vpack.c.b16 %v3045, %v3044
    %v3814 = vpack.c.b16 %v3047, %v3046
    %v3815 = vpack.c.b16 %v3049, %v3048
    %v3816 = vpack.c.b16 %v3051, %v3050
    %v3817 = vpack.c.b16 %v3053, %v3052
    %v3818 = vpack.c.b16 %v3055, %v3054
    %v3819 = vpack.c.b16 %v3057, %v3056
    %v3820 = vpack.c.b16 %v3059, %v3058
    %v3821 = vpack.c.b16 %v3061, %v3060
    %v3822 = vpack.c.b16 %v3063, %v3062
    %v3823 = vpack.c.b16 %v3065, %v3064
    %v3824 = vpack.c.b16 %v3067, %v3066
    %v3825 = vpack.c.b16 %v3069, %v3068
    %v3826 = vpack.c.b16 %v3071, %v3070
    %v3827 = vpack.c.b16 %v3073, %v3072
    %v3828 = vpack.c.b16 %v3075, %v3074
    %v3829 = vpack.c.b16 %v3077, %v3076
    %v3830 = vpack.c.b16 %v3079, %v3078
    %v3831 = vpack.c.b16 %v3081, %v3080
    %v3832 = vpack.c.b16 %v3083, %v3082
    %v3833 = vpack.c.b16 %v3085, %v3084
    %v3834 = vpack.c.b16 %v3087, %v3086
    %v3835 = vpack.c.b16 %v3089, %v3088
    %v3836 = vpack.c.b16 %v3091, %v3090
    %v3837 = vpack.c.b16 %v3093, %v3092
    %v3838 = vpack.c.b16 %v3095, %v3094
    %v3839 = vpack.c.b16 %v3097, %v3096
    %v3840 = vpack.c.b16 %v3099, %v3098
    %v3841 = vpack.c.b16 %v3101, %v3100
    %v3842 = vpack.c.b16 %v3103, %v3102
    %v3843 = vpack.c.b16 %v3105, %v3104
    %v3844 = vpack.c.b16 %v3107, %v3106
    %v3845 = vpack.c.b16 %v3109, %v3108
    %v3846 = vpack.c.b16 %v3111, %v3110
    %v3847 = vpack.c.b16 %v3113, %v3112
    %v3848 = vpack.c.b16 %v3115, %v3114
    %v3849 = vpack.c.b16 %v3117, %v3116
    %v3850 = vpack.c.b16 %v3119, %v3118
    %v3851 = vpack.c.b16 %v3121, %v3120
    %v3852 = vpack.c.b16 %v3123, %v3122
    %v3853 = vpack.c.b16 %v3125, %v3124
    %v3854 = vpack.c.b16 %v3127, %v3126
    %v3855 = vpack.c.b16 %v3129, %v3128
    %v3856 = vpack.c.b16 %v3131, %v3130
    %v3857 = vpack.c.b16 %v3133, %v3132
    %v3858 = vpack.c.b16 %v3135, %v3134
    %v3859 = vpack.c.b16 %v3137, %v3136
    %v3860 = vpack.c.b16 %v3139, %v3138
    %v3861 = vpack.c.b16 %v3141, %v3140
    %v3862 = vpack.c.b16 %v3143, %v3142
    %v3863 = vpack.c.b16 %v3145, %v3144
    %v3864 = vpack.c.b16 %v3147, %v3146
    %v3865 = vpack.c.b16 %v3149, %v3148
    %v3866 = vpack.c.b16 %v3151, %v3150
    %v3867 = vpack.c.b16 %v3153, %v3152
    %v3868 = vpack.c.b16 %v3155, %v3154
    %v3869 = vpack.c.b16 %v3157, %v3156
    %v3870 = vpack.c.b16 %v3159, %v3158
    %v3871 = vpack.c.b16 %v3161, %v3160
    %v3872 = vpack.c.b16 %v3163, %v3162
    %v3873 = vpack.c.b16 %v3165, %v3164
    %v3874 = vpack.c.b16 %v3167, %v3166
    %v3875 = vpack.c.b16 %v3169, %v3168
    %v3876 = vpack.c.b16 %v3171, %v3170
    %v3877 = vpack.c.b16 %v3173, %v3172
    %v3878 = vpack.c.b16 %v3175, %v3174
    %v3879 = vpack.c.b16 %v3177, %v3176
    %v3880 = vpack.c.b16 %v3179, %v3178
    %v3881 = vpack.c.b16 %v3181, %v3180
    %v3882 = vpack.c.b16 %v3183, %v3182
    %v3883 = vpack.c.b16 %v3185, %v3184
    %v3884 = vpack.c.b16 %v3187, %v3186
    %v3885 = vpack.c.b16 %v3189, %v3188
    %v3886 = vpack.c.b16 %v3191, %v3190
    %v3887 = vpack.c.b16 %v3193, %v3192
    %v3888 = vpack.c.b16 %v3195, %v3194
    %v3889 = vpack.c.b16 %v3197, %v3196
    %v3890 = vpack.c.b16 %v3199, %v3198
    %v3891 = vpack.c.b16 %v3201, %v3200
    %v3892 = vpack.c.b16 %v3203, %v3202
    %v3893 = vpack.c.b16 %v3205, %v3204
    %v3894 = vpack.c.b16 %v3207, %v3206
    %v3895 = vpack.c.b16 %v3209, %v3208
    %v3896 = vpack.c.b16 %v3211, %v3210
    %v3897 = vpack.c.b16 %v3213, %v3212
    %v3898 = vpack.c.b16 %v3215, %v3214
    %v3899 = vpack.c.b16 %v3217, %v3216
    %v3900 = vpack.c.b16 %v3219, %v3218
    %v3901 = vpack.c.b16 %v3221, %v3220
    %v3902 = vpack.c.b16 %v3223, %v3222
    %v3903 = vpack.c.b16 %v3225, %v3224
    %v3904 = vpack.c.b16 %v3227, %v3226
    %v3905 = vpack.c.b16 %v3229, %v3228
    %v3906 = vpack.c.b16 %v3231, %v3230
    %v3907 = vpack.c.b16 %v3233, %v3232
    %v3908 = vpack.c.b16 %v3235, %v3234
    %v3909 = vpack.c.b16 %v3237, %v3236
    %v3910 = vpack.c.b16 %v3239, %v3238
    %v3911 = vpack.c.b16 %v3241, %v3240
    %v3912 = vpack.c.b16 %v3243, %v3242
    %v3913 = vpack.c.b16 %v3245, %v3244
    %v3914 = vpack.c.b16 %v3247, %v3246
    %v3915 = vpack.c.b16 %v3249, %v3248
    %v3916 = vpack.c.b16 %v3251, %v3250
    %v3917 = vpack.c.b16 %v3253, %v3252
    %v3918 = vpack.c.b16 %v3255, %v3254
    %v3919 = vpack.c.b16 %v3257, %v3256
    %v3920 = vpack.c.b16 %v3259, %v3258
    %v3921 = vpack.c.b16 %v3261, %v3260
    %v3922 = vpack.c.b16 %v3263, %v3262
    %v3923 = vpack.c.b16 %v3265, %v3264
    %v3924 = vpack.c.b16 %v3267, %v3266
    %v3925 = vpack.c.b16 %v3269, %v3268
    %v3926 = vpack.c.b16 %v3271, %v3270
    %v3927 = vpack.c.b16 %v3273, %v3272
    %v3928 = vpack.c.b16 %v3275, %v3274
    %v3929 = vpack.c.b16 %v3277, %v3276
    %v3930 = vpack.c.b16 %v3279, %v3278
    %v3931 = vpack.c.b16 %v3281, %v3280
    %v3932 = vpack.c.b16 %v3283, %v3282
    %v3933 = vpack.c.b16 %v3285, %v3284
    %v3934 = vpack.c.b16 %v3287, %v3286
    %v3935 = vpack.c.b16 %v3289, %v3288
    %v3936 = vpack.c.b16 %v3291, %v3290
    %v3937 = vpack.c.b16 %v3293, %v3292
    %v3938 = vpack.c.b16 %v3295, %v3294
    %v3939 = vpack.c.b16 %v3297, %v3296
    %v3940 = vpack.c.b16 %v3299, %v3298
    %v3941 = vpack.c.b16 %v3301, %v3300
    %v3942 = vpack.c.b16 %v3303, %v3302
    %v3943 = vpack.c.b16 %v3305, %v3304
    %v3944 = vpack.c.b16 %v3307, %v3306
    %v3945 = vpack.c.b16 %v3309, %v3308
    %v3946 = vpack.c.b16 %v3311, %v3310
    %v3947 = vpack.c.b16 %v3313, %v3312
    %v3948 = vpack.c.b16 %v3315, %v3314
    %v3949 = vpack.c.b16 %v3317, %v3316
    %v3950 = vpack.c.b16 %v3319, %v3318
    %v3951 = vpack.c.b16 %v3321, %v3320
    %v3952 = vpack.c.b16 %v3323, %v3322
    %v3953 = vpack.c.b16 %v3325, %v3324
    %v3954 = vpack.c.b16 %v3327, %v3326
    %v3955 = vpack.c.b16 %v3329, %v3328
    %v3956 = vpack.c.b16 %v3331, %v3330
    %v3957 = vpack.c.b16 %v3333, %v3332
    %v3958 = vpack.c.b16 %v3335, %v3334
    %v3959 = vpack.c.b16 %v3337, %v3336
    %v3960 = vpack.c.b16 %v3339, %v3338
    %v3961 = vpack.c.b16 %v3341, %v3340
    %v3962 = vpack.c.b16 %v3343, %v3342
    %v3963 = vpack.c.b16 %v3345, %v3344
    %v3964 = vpack.c.b16 %v3347, %v3346
    %v3965 = vpack.c.b16 %v3349, %v3348
    %v3966 = vpack.c.b16 %v3351, %v3350
    %v3967 = vpack.c.b16 %v3353, %v3352
    %v3968 = vpack.c.b16 %v3355, %v3354
    %v3969 = vpack.c.b16 %v3357, %v3356
    %v3970 = vpack.c.b16 %v3359, %v3358
    %v3971 = vpack.c.b16 %v3361, %v3360
    %v3972 = vpack.c.b16 %v3363, %v3362
    %v3973 = vpack.c.b16 %v3365, %v3364
    %v3974 = vpack.c.b16 %v3367, %v3366
    %v3975 = vpack.c.b16 %v3369, %v3368
    %v3976 = vpack.c.b16 %v3371, %v3370
    %v3977 = vpack.c.b16 %v3373, %v3372
    %v3978 = vpack.c.b16 %v3375, %v3374
    %v3979 = vpack.c.b16 %v3377, %v3376
    %v3980 = vpack.c.b16 %v3379, %v3378
    %v3981 = vpack.c.b16 %v3381, %v3380
    %v3982 = vpack.c.b16 %v3383, %v3382
    %v3983 = vpack.c.b16 %v3385, %v3384
    %v3984 = vpack.c.b16 %v3387, %v3386
    %v3985 = vpack.c.b16 %v3389, %v3388
    %v3986 = vpack.c.b16 %v3391, %v3390
    %v3987 = vpack.c.b16 %v3393, %v3392
    %v3988 = vpack.c.b16 %v3395, %v3394
    %v3989 = vpack.c.b16 %v3397, %v3396
    %v3990 = vpack.c.b16 %v3399, %v3398
    %v3991 = vpack.c.b16 %v3401, %v3400
    %v3992 = vpack.c.b16 %v3403, %v3402
    %v3993 = vpack.c.b16 %v3405, %v3404
    %v3994 = vpack.c.b16 %v3407, %v3406
    %v3995 = vpack.c.b16 %v3409, %v3408
    %v3996 = vpack.c.b16 %v3411, %v3410
    %v3997 = vpack.c.b16 %v3413, %v3412
    %v3998 = vpack.c.b16 %v3415, %v3414
    %v3999 = vpack.c.b16 %v3417, %v3416
    %v4000 = vpack.c.b16 %v3419, %v3418
    %v4001 = vpack.c.b16 %v3421, %v3420
    %v4002 = vpack.c.b16 %v3423, %v3422
    %v4003 = vpack.c.b16 %v3425, %v3424
    %v4004 = vpack.c.b16 %v3427, %v3426
    %v4005 = vpack.c.b16 %v3429, %v3428
    %v4006 = vpack.c.b16 %v3431, %v3430
    %v4007 = vpack.c.b16 %v3433, %v3432
    %v4008 = vpack.c.b16 %v3435, %v3434
    %v4009 = vpack.c.b16 %v3437, %v3436
    %v4010 = vpack.c.b16 %v3439, %v3438
    %v4011 = vpack.c.b16 %v3441, %v3440
    %v4012 = vpack.c.b16 %v3443, %v3442
    %v4013 = vpack.c.b16 %v3445, %v3444
    %v4014 = vpack.c.b16 %v3447, %v3446
    %v4015 = vpack.c.b16 %v3449, %v3448
    %v4016 = vpack.c.b16 %v3451, %v3450
    %v4017 = vpack.c.b16 %v3453, %v3452
    %v4018 = vpack.c.b16 %v3455, %v3454
    %v4019 = vpack.c.b16 %v3457, %v3456
    %v4020 = vpack.c.b16 %v3459, %v3458
    %v4021 = vpack.c.b16 %v3461, %v3460
    %v4022 = vpack.c.b16 %v3463, %v3462
    %v4023 = vpack.c.b16 %v3465, %v3464
    %v4024 = vpack.c.b16 %v3467, %v3466
    %v4025 = vpack.c.b16 %v3469, %v3468
    %v4026 = vpack.c.b16 %v3471, %v3470
    %v4027 = vpack.c.b16 %v3473, %v3472
    %v4028 = vpack.c.b16 %v3475, %v3474
    %v4029 = vpack.c.b16 %v3477, %v3476
    %v4030 = vpack.c.b16 %v3479, %v3478
    %v4031 = vpack.c.b16 %v3481, %v3480
    %v4032 = vpack.c.b16 %v3483, %v3482
    %v4033 = vpack.c.b16 %v3485, %v3484
    %v4034 = vpack.c.b16 %v3487, %v3486
    %v4035 = vpack.c.b16 %v3489, %v3488
    %v4036 = vpack.c.b16 %v3491, %v3490
    %v4037 = vpack.c.b16 %v3493, %v3492
    %v4038 = vpack.c.b16 %v3495, %v3494
    %v4039 = vpack.c.b16 %v3497, %v3496
    %v4040 = vpack.c.b16 %v3499, %v3498
    %v4041 = vpack.c.b16 %v3501, %v3500
    %v4042 = vpack.c.b16 %v3503, %v3502
    %v4043 = vpack.c.b16 %v3505, %v3504
    %v4044 = vpack.c.b16 %v3507, %v3506
    %v4045 = vpack.c.b16 %v3509, %v3508
    %v4046 = vpack.c.b16 %v3511, %v3510
    %v4047 = vpack.c.b16 %v3513, %v3512
    %v4048 = vpack.c.b16 %v3515, %v3514
    %v4049 = vpack.c.b16 %v3517, %v3516
    %v4050 = vpack.c.b16 %v3519, %v3518
    %v4051 = vpack.c.b16 %v3521, %v3520
    %v4052 = vpack.c.b16 %v3523, %v3522
    %v4053 = vpack.c.b16 %v3525, %v3524
    %v4054 = vpack.c.b16 %v3527, %v3526
    %v4055 = vpack.c.b16 %v3529, %v3528
    %v4056 = vpack.c.b16 %v3531, %v3530
    %v4057 = vpack.c.b16 %v3533, %v3532
    %v4058 = vpack.c.b16 %v3535, %v3534
    %v4059 = vpack.c.b16 %v3537, %v3536
    %v4060 = vpack.c.b16 %v3539, %v3538
    %v4061 = vpack.c.b16 %v3541, %v3540
    %v4062 = vpack.c.b16 %v3543, %v3542
    %v4063 = vpack.c.b16 %v3545, %v3544
    %v4064 = vpack.c.b16 %v3547, %v3546
    %v4065 = vpack.c.b16 %v3549, %v3548
    %v4066 = vpack.c.b16 %v3551, %v3550
    %v4067 = vpack.c.b16 %v3553, %v3552
    %v4068 = vpack.c.b16 %v3555, %v3554
    %v4069 = vpack.c.b16 %v3557, %v3556
    %4582 = vmatprep.subr.bf16.mxu0 0
    %4583 = vmatpush1.bf16.msra.mxu0 %v3558
    %4584 = vmatprep.subr.bf16.mxu0 0
    %4585 = vmatpush1.bf16.msra.mxu0 %v3559
    %4586 = vmatprep.subr.bf16.mxu0 0
    %4587 = vmatpush1.bf16.msra.mxu0 %v3560
    %4588 = vmatprep.subr.bf16.mxu0 0
    %4589 = vmatpush1.bf16.msra.mxu0 %v3561
    %4590 = vmatprep.subr.bf16.mxu0 0
    %4591 = vmatpush1.bf16.msra.mxu0 %v3562
    %4592 = vmatprep.subr.bf16.mxu0 0
    %4593 = vmatpush1.bf16.msra.mxu0 %v3563
    %4594 = vmatprep.subr.bf16.mxu0 0
    %4595 = vmatpush1.bf16.msra.mxu0 %v3564
    %4596 = vmatprep.subr.bf16.mxu0 0
    %4597 = vmatpush1.bf16.msra.mxu0 %v3565
    %4598 = vmatprep.subr.bf16.mxu0 0
    %4599 = vmatpush1.bf16.msra.mxu0 %v3566
    %4600 = vmatprep.subr.bf16.mxu0 0
    %4601 = vmatpush1.bf16.msra.mxu0 %v3567
    %4602 = vmatprep.subr.bf16.mxu0 0
    %4603 = vmatpush1.bf16.msra.mxu0 %v3568
    %4604 = vmatprep.subr.bf16.mxu0 0
    %4605 = vmatpush1.bf16.msra.mxu0 %v3569
    %4606 = vmatprep.subr.bf16.mxu0 0
    %4607 = vmatpush1.bf16.msra.mxu0 %v3570
    %4608 = vmatprep.subr.bf16.mxu0 0
    %4609 = vmatpush1.bf16.msra.mxu0 %v3571
    %4610 = vmatprep.subr.bf16.mxu0 0
    %4611 = vmatpush1.bf16.msra.mxu0 %v3572
    %4612 = vmatprep.subr.bf16.mxu0 0
    %4613 = vmatpush1.bf16.msra.mxu0 %v3573
    %4614 = vmatprep.mubr.bf16.mxu0 %v423
    %4615 = vmatmul.mubr.bf16.gmra.mrb[0].mxu0 %v422
    %v4616 = vpop.f32.mrb[0].mxu0
    %v4617 = vadd.f32 0.0, %v4616
    %v4618 = vpop.f32.mrb[0].mxu0
    %v4619 = vpop.f32.mrb[0].mxu0
    %v4620 = vpop.f32.mrb[0].mxu0
    %4621 = vdwg.mxu0
    %4622 = vmatprep.subr.bf16.mxu0 0
    %4623 = vmatpush1.bf16.msra.mxu0 %v3574
    %4624 = vmatprep.subr.bf16.mxu0 0
    %4625 = vmatpush1.bf16.msra.mxu0 %v3575
    %4626 = vmatprep.subr.bf16.mxu0 0
    %4627 = vmatpush1.bf16.msra.mxu0 %v3576
    %4628 = vmatprep.subr.bf16.mxu0 0
    %4629 = vmatpush1.bf16.msra.mxu0 %v3577
    %4630 = vmatprep.subr.bf16.mxu0 0
    %4631 = vmatpush1.bf16.msra.mxu0 %v3578
    %4632 = vmatprep.subr.bf16.mxu0 0
    %4633 = vmatpush1.bf16.msra.mxu0 %v3579
    %4634 = vmatprep.subr.bf16.mxu0 0
    %4635 = vmatpush1.bf16.msra.mxu0 %v3580
    %4636 = vmatprep.subr.bf16.mxu0 0
    %4637 = vmatpush1.bf16.msra.mxu0 %v3581
    %4638 = vmatprep.subr.bf16.mxu0 0
    %4639 = vmatpush1.bf16.msra.mxu0 %v3582
    %4640 = vmatprep.subr.bf16.mxu0 0
    %4641 = vmatpush1.bf16.msra.mxu0 %v3583
    %4642 = vmatprep.subr.bf16.mxu0 0
    %4643 = vmatpush1.bf16.msra.mxu0 %v3584
    %4644 = vmatprep.subr.bf16.mxu0 0
    %4645 = vmatpush1.bf16.msra.mxu0 %v3585
    %4646 = vmatprep.subr.bf16.mxu0 0
    %4647 = vmatpush1.bf16.msra.mxu0 %v3586
    %4648 = vmatprep.subr.bf16.mxu0 0
    %4649 = vmatpush1.bf16.msra.mxu0 %v3587
    %4650 = vmatprep.subr.bf16.mxu0 0
    %4651 = vmatpush1.bf16.msra.mxu0 %v3588
    %4652 = vmatprep.subr.bf16.mxu0 0
    %4653 = vmatpush1.bf16.msra.mxu0 %v3589
    %4654 = vmatprep.mubr.bf16.mxu0 %v425
    %4655 = vmatmul.mubr.bf16.gmra.mrb[0].mxu0 %v424
    %v4656 = vpop.f32.mrb[0].mxu0
    %v4657 = vadd.f32 %v4617, %v4656
    %v4658 = vpop.f32.mrb[0].mxu0
    %v4659 = vpop.f32.mrb[0].mxu0
    %v4660 = vpop.f32.mrb[0].mxu0
    %4661 = vdwg.mxu0
    %4662 = vmatprep.subr.bf16.mxu0 0
    %4663 = vmatpush1.bf16.msra.mxu0 %v3590
    %4664 = vmatprep.subr.bf16.mxu0 0
    %4665 = vmatpush1.bf16.msra.mxu0 %v3591
    %4666 = vmatprep.subr.bf16.mxu0 0
    %4667 = vmatpush1.bf16.msra.mxu0 %v3592
    %4668 = vmatprep.subr.bf16.mxu0 0
    %4669 = vmatpush1.bf16.msra.mxu0 %v3593
    %4670 = vmatprep.subr.bf16.mxu0 0
    %4671 = vmatpush1.bf16.msra.mxu0 %v3594
    %4672 = vmatprep.subr.bf16.mxu0 0
    %4673 = vmatpush1.bf16.msra.mxu0 %v3595
    %4674 = vmatprep.subr.bf16.mxu0 0
    %4675 = vmatpush1.bf16.msra.mxu0 %v3596
    %4676 = vmatprep.subr.bf16.mxu0 0
    %4677 = vmatpush1.bf16.msra.mxu0 %v3597
    %4678 = vmatprep.subr.bf16.mxu0 0
    %4679 = vmatpush1.bf16.msra.mxu0 %v3598
    %4680 = vmatprep.subr.bf16.mxu0 0
    %4681 = vmatpush1.bf16.msra.mxu0 %v3599
    %4682 = vmatprep.subr.bf16.mxu0 0
    %4683 = vmatpush1.bf16.msra.mxu0 %v3600
    %4684 = vmatprep.subr.bf16.mxu0 0
    %4685 = vmatpush1.bf16.msra.mxu0 %v3601
    %4686 = vmatprep.subr.bf16.mxu0 0
    %4687 = vmatpush1.bf16.msra.mxu0 %v3602
    %4688 = vmatprep.subr.bf16.mxu0 0
    %4689 = vmatpush1.bf16.msra.mxu0 %v3603
    %4690 = vmatprep.subr.bf16.mxu0 0
    %4691 = vmatpush1.bf16.msra.mxu0 %v3604
    %4692 = vmatprep.subr.bf16.mxu0 0
    %4693 = vmatpush1.bf16.msra.mxu0 %v3605
    %4694 = vmatprep.mubr.bf16.mxu0 %v427
    %4695 = vmatmul.mubr.bf16.gmra.mrb[0].mxu0 %v426
    %v4696 = vpop.f32.mrb[0].mxu0
    %v4697 = vadd.f32 %v4657, %v4696
    %v4698 = vpop.f32.mrb[0].mxu0
    %v4699 = vpop.f32.mrb[0].mxu0
    %v4700 = vpop.f32.mrb[0].mxu0
    %4701 = vdwg.mxu0
    %4702 = vmatprep.subr.bf16.mxu0 0
    %4703 = vmatpush1.bf16.msra.mxu0 %v3606
    %4704 = vmatprep.subr.bf16.mxu0 0
    %4705 = vmatpush1.bf16.msra.mxu0 %v3607
    %4706 = vmatprep.subr.bf16.mxu0 0
    %4707 = vmatpush1.bf16.msra.mxu0 %v3608
    %4708 = vmatprep.subr.bf16.mxu0 0
    %4709 = vmatpush1.bf16.msra.mxu0 %v3609
    %4710 = vmatprep.subr.bf16.mxu0 0
    %4711 = vmatpush1.bf16.msra.mxu0 %v3610
    %4712 = vmatprep.subr.bf16.mxu0 0
    %4713 = vmatpush1.bf16.msra.mxu0 %v3611
    %4714 = vmatprep.subr.bf16.mxu0 0
    %4715 = vmatpush1.bf16.msra.mxu0 %v3612
    %4716 = vmatprep.subr.bf16.mxu0 0
    %4717 = vmatpush1.bf16.msra.mxu0 %v3613
    %4718 = vmatprep.subr.bf16.mxu0 0
    %4719 = vmatpush1.bf16.msra.mxu0 %v3614
    %4720 = vmatprep.subr.bf16.mxu0 0
    %4721 = vmatpush1.bf16.msra.mxu0 %v3615
    %4722 = vmatprep.subr.bf16.mxu0 0
    %4723 = vmatpush1.bf16.msra.mxu0 %v3616
    %4724 = vmatprep.subr.bf16.mxu0 0
    %4725 = vmatpush1.bf16.msra.mxu0 %v3617
    %4726 = vmatprep.subr.bf16.mxu0 0
    %4727 = vmatpush1.bf16.msra.mxu0 %v3618
    %4728 = vmatprep.subr.bf16.mxu0 0
    %4729 = vmatpush1.bf16.msra.mxu0 %v3619
    %4730 = vmatprep.subr.bf16.mxu0 0
    %4731 = vmatpush1.bf16.msra.mxu0 %v3620
    %4732 = vmatprep.subr.bf16.mxu0 0
    %4733 = vmatpush1.bf16.msra.mxu0 %v3621
    %4734 = vmatprep.mubr.bf16.mxu0 %v429
    %4735 = vmatmul.mubr.bf16.gmra.mrb[0].mxu0 %v428
    %v4736 = vpop.f32.mrb[0].mxu0
    %v4737 = vadd.f32 %v4697, %v4736
    %v4738 = vpop.f32.mrb[0].mxu0
    %v4739 = vpop.f32.mrb[0].mxu0
    %v4740 = vpop.f32.mrb[0].mxu0
    %4741 = vdwg.mxu0
    %4742 = vmatprep.subr.bf16.mxu0 0
    %4743 = vmatpush1.bf16.msra.mxu0 %v3622
    %4744 = vmatprep.subr.bf16.mxu0 0
    %4745 = vmatpush1.bf16.msra.mxu0 %v3623
    %4746 = vmatprep.subr.bf16.mxu0 0
    %4747 = vmatpush1.bf16.msra.mxu0 %v3624
    %4748 = vmatprep.subr.bf16.mxu0 0
    %4749 = vmatpush1.bf16.msra.mxu0 %v3625
    %4750 = vmatprep.subr.bf16.mxu0 0
    %4751 = vmatpush1.bf16.msra.mxu0 %v3626
    %4752 = vmatprep.subr.bf16.mxu0 0
    %4753 = vmatpush1.bf16.msra.mxu0 %v3627
    %4754 = vmatprep.subr.bf16.mxu0 0
    %4755 = vmatpush1.bf16.msra.mxu0 %v3628
    %4756 = vmatprep.subr.bf16.mxu0 0
    %4757 = vmatpush1.bf16.msra.mxu0 %v3629
    %4758 = vmatprep.subr.bf16.mxu0 0
    %4759 = vmatpush1.bf16.msra.mxu0 %v3630
    %4760 = vmatprep.subr.bf16.mxu0 0
    %4761 = vmatpush1.bf16.msra.mxu0 %v3631
    %4762 = vmatprep.subr.bf16.mxu0 0
    %4763 = vmatpush1.bf16.msra.mxu0 %v3632
    %4764 = vmatprep.subr.bf16.mxu0 0
    %4765 = vmatpush1.bf16.msra.mxu0 %v3633
    %4766 = vmatprep.subr.bf16.mxu0 0
    %4767 = vmatpush1.bf16.msra.mxu0 %v3634
    %4768 = vmatprep.subr.bf16.mxu0 0
    %4769 = vmatpush1.bf16.msra.mxu0 %v3635
    %4770 = vmatprep.subr.bf16.mxu0 0
    %4771 = vmatpush1.bf16.msra.mxu0 %v3636
    %4772 = vmatprep.subr.bf16.mxu0 0
    %4773 = vmatpush1.bf16.msra.mxu0 %v3637
    %4774 = vmatprep.mubr.bf16.mxu0 %v431
    %4775 = vmatmul.mubr.bf16.gmra.mrb[0].mxu0 %v430
    %v4776 = vpop.f32.mrb[0].mxu0
    %v4777 = vadd.f32 %v4737, %v4776
    %v4778 = vpop.f32.mrb[0].mxu0
    %v4779 = vpop.f32.mrb[0].mxu0
    %v4780 = vpop.f32.mrb[0].mxu0
    %4781 = vdwg.mxu0
    %4782 = vmatprep.subr.bf16.mxu0 0
    %4783 = vmatpush1.bf16.msra.mxu0 %v3638
    %4784 = vmatprep.subr.bf16.mxu0 0
    %4785 = vmatpush1.bf16.msra.mxu0 %v3639
    %4786 = vmatprep.subr.bf16.mxu0 0
    %4787 = vmatpush1.bf16.msra.mxu0 %v3640
    %4788 = vmatprep.subr.bf16.mxu0 0
    %4789 = vmatpush1.bf16.msra.mxu0 %v3641
    %4790 = vmatprep.subr.bf16.mxu0 0
    %4791 = vmatpush1.bf16.msra.mxu0 %v3642
    %4792 = vmatprep.subr.bf16.mxu0 0
    %4793 = vmatpush1.bf16.msra.mxu0 %v3643
    %4794 = vmatprep.subr.bf16.mxu0 0
    %4795 = vmatpush1.bf16.msra.mxu0 %v3644
    %4796 = vmatprep.subr.bf16.mxu0 0
    %4797 = vmatpush1.bf16.msra.mxu0 %v3645
    %4798 = vmatprep.subr.bf16.mxu0 0
    %4799 = vmatpush1.bf16.msra.mxu0 %v3646
    %4800 = vmatprep.subr.bf16.mxu0 0
    %4801 = vmatpush1.bf16.msra.mxu0 %v3647
    %4802 = vmatprep.subr.bf16.mxu0 0
    %4803 = vmatpush1.bf16.msra.mxu0 %v3648
    %4804 = vmatprep.subr.bf16.mxu0 0
    %4805 = vmatpush1.bf16.msra.mxu0 %v3649
    %4806 = vmatprep.subr.bf16.mxu0 0
    %4807 = vmatpush1.bf16.msra.mxu0 %v3650
    %4808 = vmatprep.subr.bf16.mxu0 0
    %4809 = vmatpush1.bf16.msra.mxu0 %v3651
    %4810 = vmatprep.subr.bf16.mxu0 0
    %4811 = vmatpush1.bf16.msra.mxu0 %v3652
    %4812 = vmatprep.subr.bf16.mxu0 0
    %4813 = vmatpush1.bf16.msra.mxu0 %v3653
    %4814 = vmatprep.mubr.bf16.mxu0 %v433
    %4815 = vmatmul.mubr.bf16.gmra.mrb[0].mxu0 %v432
    %v4816 = vpop.f32.mrb[0].mxu0
    %v4817 = vadd.f32 %v4777, %v4816
    %v4818 = vpop.f32.mrb[0].mxu0
    %v4819 = vpop.f32.mrb[0].mxu0
    %v4820 = vpop.f32.mrb[0].mxu0
    %4821 = vdwg.mxu0
    %4822 = vmatprep.subr.bf16.mxu0 0
    %4823 = vmatpush1.bf16.msra.mxu0 %v3654
    %4824 = vmatprep.subr.bf16.mxu0 0
    %4825 = vmatpush1.bf16.msra.mxu0 %v3655
    %4826 = vmatprep.subr.bf16.mxu0 0
    %4827 = vmatpush1.bf16.msra.mxu0 %v3656
    %4828 = vmatprep.subr.bf16.mxu0 0
    %4829 = vmatpush1.bf16.msra.mxu0 %v3657
    %4830 = vmatprep.subr.bf16.mxu0 0
    %4831 = vmatpush1.bf16.msra.mxu0 %v3658
    %4832 = vmatprep.subr.bf16.mxu0 0
    %4833 = vmatpush1.bf16.msra.mxu0 %v3659
    %4834 = vmatprep.subr.bf16.mxu0 0
    %4835 = vmatpush1.bf16.msra.mxu0 %v3660
    %4836 = vmatprep.subr.bf16.mxu0 0
    %4837 = vmatpush1.bf16.msra.mxu0 %v3661
    %4838 = vmatprep.subr.bf16.mxu0 0
    %4839 = vmatpush1.bf16.msra.mxu0 %v3662
    %4840 = vmatprep.subr.bf16.mxu0 0
    %4841 = vmatpush1.bf16.msra.mxu0 %v3663
    %4842 = vmatprep.subr.bf16.mxu0 0
    %4843 = vmatpush1.bf16.msra.mxu0 %v3664
    %4844 = vmatprep.subr.bf16.mxu0 0
    %4845 = vmatpush1.bf16.msra.mxu0 %v3665
    %4846 = vmatprep.subr.bf16.mxu0 0
    %4847 = vmatpush1.bf16.msra.mxu0 %v3666
    %4848 = vmatprep.subr.bf16.mxu0 0
    %4849 = vmatpush1.bf16.msra.mxu0 %v3667
    %4850 = vmatprep.subr.bf16.mxu0 0
    %4851 = vmatpush1.bf16.msra.mxu0 %v3668
    %4852 = vmatprep.subr.bf16.mxu0 0
    %4853 = vmatpush1.bf16.msra.mxu0 %v3669
    %4854 = vmatprep.mubr.bf16.mxu0 %v435
    %4855 = vmatmul.mubr.bf16.gmra.mrb[0].mxu0 %v434
    %v4856 = vpop.f32.mrb[0].mxu0
    %v4857 = vadd.f32 %v4817, %v4856
    %v4858 = vpop.f32.mrb[0].mxu0
    %v4859 = vpop.f32.mrb[0].mxu0
    %v4860 = vpop.f32.mrb[0].mxu0
    %4861 = vdwg.mxu0
    %4862 = vmatprep.subr.bf16.mxu0 0
    %4863 = vmatpush1.bf16.msra.mxu0 %v3670
    %4864 = vmatprep.subr.bf16.mxu0 0
    %4865 = vmatpush1.bf16.msra.mxu0 %v3671
    %4866 = vmatprep.subr.bf16.mxu0 0
    %4867 = vmatpush1.bf16.msra.mxu0 %v3672
    %4868 = vmatprep.subr.bf16.mxu0 0
    %4869 = vmatpush1.bf16.msra.mxu0 %v3673
    %4870 = vmatprep.subr.bf16.mxu0 0
    %4871 = vmatpush1.bf16.msra.mxu0 %v3674
    %4872 = vmatprep.subr.bf16.mxu0 0
    %4873 = vmatpush1.bf16.msra.mxu0 %v3675
    %4874 = vmatprep.subr.bf16.mxu0 0
    %4875 = vmatpush1.bf16.msra.mxu0 %v3676
    %4876 = vmatprep.subr.bf16.mxu0 0
    %4877 = vmatpush1.bf16.msra.mxu0 %v3677
    %4878 = vmatprep.subr.bf16.mxu0 0
    %4879 = vmatpush1.bf16.msra.mxu0 %v3678
    %4880 = vmatprep.subr.bf16.mxu0 0
    %4881 = vmatpush1.bf16.msra.mxu0 %v3679
    %4882 = vmatprep.subr.bf16.mxu0 0
    %4883 = vmatpush1.bf16.msra.mxu0 %v3680
    %4884 = vmatprep.subr.bf16.mxu0 0
    %4885 = vmatpush1.bf16.msra.mxu0 %v3681
    %4886 = vmatprep.subr.bf16.mxu0 0
    %4887 = vmatpush1.bf16.msra.mxu0 %v3682
    %4888 = vmatprep.subr.bf16.mxu0 0
    %4889 = vmatpush1.bf16.msra.mxu0 %v3683
    %4890 = vmatprep.subr.bf16.mxu0 0
    %4891 = vmatpush1.bf16.msra.mxu0 %v3684
    %4892 = vmatprep.subr.bf16.mxu0 0
    %4893 = vmatpush1.bf16.msra.mxu0 %v3685
    %4894 = vmatprep.mubr.bf16.mxu0 %v437
    %4895 = vmatmul.mubr.bf16.gmra.mrb[0].mxu0 %v436
    %v4896 = vpop.f32.mrb[0].mxu0
    %v4897 = vadd.f32 %v4857, %v4896
    %v4898 = vpop.f32.mrb[0].mxu0
    %v4899 = vpop.f32.mrb[0].mxu0
    %v4900 = vpop.f32.mrb[0].mxu0
    %4901 = vdwg.mxu0
    %4902 = vmatprep.subr.bf16.mxu0 0
    %4903 = vmatpush1.bf16.msra.mxu0 %v3686
    %4904 = vmatprep.subr.bf16.mxu0 0
    %4905 = vmatpush1.bf16.msra.mxu0 %v3687
    %4906 = vmatprep.subr.bf16.mxu0 0
    %4907 = vmatpush1.bf16.msra.mxu0 %v3688
    %4908 = vmatprep.subr.bf16.mxu0 0
    %4909 = vmatpush1.bf16.msra.mxu0 %v3689
    %4910 = vmatprep.subr.bf16.mxu0 0
    %4911 = vmatpush1.bf16.msra.mxu0 %v3690
    %4912 = vmatprep.subr.bf16.mxu0 0
    %4913 = vmatpush1.bf16.msra.mxu0 %v3691
    %4914 = vmatprep.subr.bf16.mxu0 0
    %4915 = vmatpush1.bf16.msra.mxu0 %v3692
    %4916 = vmatprep.subr.bf16.mxu0 0
    %4917 = vmatpush1.bf16.msra.mxu0 %v3693
    %4918 = vmatprep.subr.bf16.mxu0 0
    %4919 = vmatpush1.bf16.msra.mxu0 %v3694
    %4920 = vmatprep.subr.bf16.mxu0 0
    %4921 = vmatpush1.bf16.msra.mxu0 %v3695
    %4922 = vmatprep.subr.bf16.mxu0 0
    %4923 = vmatpush1.bf16.msra.mxu0 %v3696
    %4924 = vmatprep.subr.bf16.mxu0 0
    %4925 = vmatpush1.bf16.msra.mxu0 %v3697
    %4926 = vmatprep.subr.bf16.mxu0 0
    %4927 = vmatpush1.bf16.msra.mxu0 %v3698
    %4928 = vmatprep.subr.bf16.mxu0 0
    %4929 = vmatpush1.bf16.msra.mxu0 %v3699
    %4930 = vmatprep.subr.bf16.mxu0 0
    %4931 = vmatpush1.bf16.msra.mxu0 %v3700
    %4932 = vmatprep.subr.bf16.mxu0 0
    %4933 = vmatpush1.bf16.msra.mxu0 %v3701
    %4934 = vmatprep.mubr.bf16.mxu0 %v439
    %4935 = vmatmul.mubr.bf16.gmra.mrb[0].mxu0 %v438
    %v4936 = vpop.f32.mrb[0].mxu0
    %v4937 = vadd.f32 %v4897, %v4936
    %v4938 = vpop.f32.mrb[0].mxu0
    %v4939 = vpop.f32.mrb[0].mxu0
    %v4940 = vpop.f32.mrb[0].mxu0
    %4941 = vdwg.mxu0
    %4942 = vmatprep.subr.bf16.mxu0 0
    %4943 = vmatpush1.bf16.msra.mxu0 %v3702
    %4944 = vmatprep.subr.bf16.mxu0 0
    %4945 = vmatpush1.bf16.msra.mxu0 %v3703
    %4946 = vmatprep.subr.bf16.mxu0 0
    %4947 = vmatpush1.bf16.msra.mxu0 %v3704
    %4948 = vmatprep.subr.bf16.mxu0 0
    %4949 = vmatpush1.bf16.msra.mxu0 %v3705
    %4950 = vmatprep.subr.bf16.mxu0 0
    %4951 = vmatpush1.bf16.msra.mxu0 %v3706
    %4952 = vmatprep.subr.bf16.mxu0 0
    %4953 = vmatpush1.bf16.msra.mxu0 %v3707
    %4954 = vmatprep.subr.bf16.mxu0 0
    %4955 = vmatpush1.bf16.msra.mxu0 %v3708
    %4956 = vmatprep.subr.bf16.mxu0 0
    %4957 = vmatpush1.bf16.msra.mxu0 %v3709
    %4958 = vmatprep.subr.bf16.mxu0 0
    %4959 = vmatpush1.bf16.msra.mxu0 %v3710
    %4960 = vmatprep.subr.bf16.mxu0 0
    %4961 = vmatpush1.bf16.msra.mxu0 %v3711
    %4962 = vmatprep.subr.bf16.mxu0 0
    %4963 = vmatpush1.bf16.msra.mxu0 %v3712
    %4964 = vmatprep.subr.bf16.mxu0 0
    %4965 = vmatpush1.bf16.msra.mxu0 %v3713
    %4966 = vmatprep.subr.bf16.mxu0 0
    %4967 = vmatpush1.bf16.msra.mxu0 %v3714
    %4968 = vmatprep.subr.bf16.mxu0 0
    %4969 = vmatpush1.bf16.msra.mxu0 %v3715
    %4970 = vmatprep.subr.bf16.mxu0 0
    %4971 = vmatpush1.bf16.msra.mxu0 %v3716
    %4972 = vmatprep.subr.bf16.mxu0 0
    %4973 = vmatpush1.bf16.msra.mxu0 %v3717
    %4974 = vmatprep.mubr.bf16.mxu0 %v441
    %4975 = vmatmul.mubr.bf16.gmra.mrb[0].mxu0 %v440
    %v4976 = vpop.f32.mrb[0].mxu0
    %v4977 = vadd.f32 %v4937, %v4976
    %v4978 = vpop.f32.mrb[0].mxu0
    %v4979 = vpop.f32.mrb[0].mxu0
    %v4980 = vpop.f32.mrb[0].mxu0
    %4981 = vdwg.mxu0
    %4982 = vmatprep.subr.bf16.mxu0 0
    %4983 = vmatpush1.bf16.msra.mxu0 %v3718
    %4984 = vmatprep.subr.bf16.mxu0 0
    %4985 = vmatpush1.bf16.msra.mxu0 %v3719
    %4986 = vmatprep.subr.bf16.mxu0 0
    %4987 = vmatpush1.bf16.msra.mxu0 %v3720
    %4988 = vmatprep.subr.bf16.mxu0 0
    %4989 = vmatpush1.bf16.msra.mxu0 %v3721
    %4990 = vmatprep.subr.bf16.mxu0 0
    %4991 = vmatpush1.bf16.msra.mxu0 %v3722
    %4992 = vmatprep.subr.bf16.mxu0 0
    %4993 = vmatpush1.bf16.msra.mxu0 %v3723
    %4994 = vmatprep.subr.bf16.mxu0 0
    %4995 = vmatpush1.bf16.msra.mxu0 %v3724
    %4996 = vmatprep.subr.bf16.mxu0 0
    %4997 = vmatpush1.bf16.msra.mxu0 %v3725
    %4998 = vmatprep.subr.bf16.mxu0 0
    %4999 = vmatpush1.bf16.msra.mxu0 %v3726
    %5000 = vmatprep.subr.bf16.mxu0 0
    %5001 = vmatpush1.bf16.msra.mxu0 %v3727
    %5002 = vmatprep.subr.bf16.mxu0 0
    %5003 = vmatpush1.bf16.msra.mxu0 %v3728
    %5004 = vmatprep.subr.bf16.mxu0 0
    %5005 = vmatpush1.bf16.msra.mxu0 %v3729
    %5006 = vmatprep.subr.bf16.mxu0 0
    %5007 = vmatpush1.bf16.msra.mxu0 %v3730
    %5008 = vmatprep.subr.bf16.mxu0 0
    %5009 = vmatpush1.bf16.msra.mxu0 %v3731
    %5010 = vmatprep.subr.bf16.mxu0 0
    %5011 = vmatpush1.bf16.msra.mxu0 %v3732
    %5012 = vmatprep.subr.bf16.mxu0 0
    %5013 = vmatpush1.bf16.msra.mxu0 %v3733
    %5014 = vmatprep.mubr.bf16.mxu0 %v443
    %5015 = vmatmul.mubr.bf16.gmra.mrb[0].mxu0 %v442
    %v5016 = vpop.f32.mrb[0].mxu0
    %v5017 = vadd.f32 %v4977, %v5016
    %v5018 = vpop.f32.mrb[0].mxu0
    %v5019 = vpop.f32.mrb[0].mxu0
    %v5020 = vpop.f32.mrb[0].mxu0
    %5021 = vdwg.mxu0
    %5022 = vmatprep.subr.bf16.mxu0 0
    %5023 = vmatpush1.bf16.msra.mxu0 %v3734
    %5024 = vmatprep.subr.bf16.mxu0 0
    %5025 = vmatpush1.bf16.msra.mxu0 %v3735
    %5026 = vmatprep.subr.bf16.mxu0 0
    %5027 = vmatpush1.bf16.msra.mxu0 %v3736
    %5028 = vmatprep.subr.bf16.mxu0 0
    %5029 = vmatpush1.bf16.msra.mxu0 %v3737
    %5030 = vmatprep.subr.bf16.mxu0 0
    %5031 = vmatpush1.bf16.msra.mxu0 %v3738
    %5032 = vmatprep.subr.bf16.mxu0 0
    %5033 = vmatpush1.bf16.msra.mxu0 %v3739
    %5034 = vmatprep.subr.bf16.mxu0 0
    %5035 = vmatpush1.bf16.msra.mxu0 %v3740
    %5036 = vmatprep.subr.bf16.mxu0 0
    %5037 = vmatpush1.bf16.msra.mxu0 %v3741
    %5038 = vmatprep.subr.bf16.mxu0 0
    %5039 = vmatpush1.bf16.msra.mxu0 %v3742
    %5040 = vmatprep.subr.bf16.mxu0 0
    %5041 = vmatpush1.bf16.msra.mxu0 %v3743
    %5042 = vmatprep.subr.bf16.mxu0 0
    %5043 = vmatpush1.bf16.msra.mxu0 %v3744
    %5044 = vmatprep.subr.bf16.mxu0 0
    %5045 = vmatpush1.bf16.msra.mxu0 %v3745
    %5046 = vmatprep.subr.bf16.mxu0 0
    %5047 = vmatpush1.bf16.msra.mxu0 %v3746
    %5048 = vmatprep.subr.bf16.mxu0 0
    %5049 = vmatpush1.bf16.msra.mxu0 %v3747
    %5050 = vmatprep.subr.bf16.mxu0 0
    %5051 = vmatpush1.bf16.msra.mxu0 %v3748
    %5052 = vmatprep.subr.bf16.mxu0 0
    %5053 = vmatpush1.bf16.msra.mxu0 %v3749
    %5054 = vmatprep.mubr.bf16.mxu0 %v445
    %5055 = vmatmul.mubr.bf16.gmra.mrb[0].mxu0 %v444
    %v5056 = vpop.f32.mrb[0].mxu0
    %v5057 = vadd.f32 %v5017, %v5056
    %v5058 = vpop.f32.mrb[0].mxu0
    %v5059 = vpop.f32.mrb[0].mxu0
    %v5060 = vpop.f32.mrb[0].mxu0
    %5061 = vdwg.mxu0
    %5062 = vmatprep.subr.bf16.mxu0 0
    %5063 = vmatpush1.bf16.msra.mxu0 %v3750
    %5064 = vmatprep.subr.bf16.mxu0 0
    %5065 = vmatpush1.bf16.msra.mxu0 %v3751
    %5066 = vmatprep.subr.bf16.mxu0 0
    %5067 = vmatpush1.bf16.msra.mxu0 %v3752
    %5068 = vmatprep.subr.bf16.mxu0 0
    %5069 = vmatpush1.bf16.msra.mxu0 %v3753
    %5070 = vmatprep.subr.bf16.mxu0 0
    %5071 = vmatpush1.bf16.msra.mxu0 %v3754
    %5072 = vmatprep.subr.bf16.mxu0 0
    %5073 = vmatpush1.bf16.msra.mxu0 %v3755
    %5074 = vmatprep.subr.bf16.mxu0 0
    %5075 = vmatpush1.bf16.msra.mxu0 %v3756
    %5076 = vmatprep.subr.bf16.mxu0 0
    %5077 = vmatpush1.bf16.msra.mxu0 %v3757
    %5078 = vmatprep.subr.bf16.mxu0 0
    %5079 = vmatpush1.bf16.msra.mxu0 %v3758
    %5080 = vmatprep.subr.bf16.mxu0 0
    %5081 = vmatpush1.bf16.msra.mxu0 %v3759
    %5082 = vmatprep.subr.bf16.mxu0 0
    %5083 = vmatpush1.bf16.msra.mxu0 %v3760
    %5084 = vmatprep.subr.bf16.mxu0 0
    %5085 = vmatpush1.bf16.msra.mxu0 %v3761
    %5086 = vmatprep.subr.bf16.mxu0 0
    %5087 = vmatpush1.bf16.msra.mxu0 %v3762
    %5088 = vmatprep.subr.bf16.mxu0 0
    %5089 = vmatpush1.bf16.msra.mxu0 %v3763
    %5090 = vmatprep.subr.bf16.mxu0 0
    %5091 = vmatpush1.bf16.msra.mxu0 %v3764
    %5092 = vmatprep.subr.bf16.mxu0 0
    %5093 = vmatpush1.bf16.msra.mxu0 %v3765
    %5094 = vmatprep.mubr.bf16.mxu0 %v447
    %5095 = vmatmul.mubr.bf16.gmra.mrb[0].mxu0 %v446
    %v5096 = vpop.f32.mrb[0].mxu0
    %v5097 = vadd.f32 %v5057, %v5096
    %v5098 = vpop.f32.mrb[0].mxu0
    %v5099 = vpop.f32.mrb[0].mxu0
    %v5100 = vpop.f32.mrb[0].mxu0
    %5101 = vdwg.mxu0
    %5102 = vmatprep.subr.bf16.mxu0 0
    %5103 = vmatpush1.bf16.msra.mxu0 %v3766
    %5104 = vmatprep.subr.bf16.mxu0 0
    %5105 = vmatpush1.bf16.msra.mxu0 %v3767
    %5106 = vmatprep.subr.bf16.mxu0 0
    %5107 = vmatpush1.bf16.msra.mxu0 %v3768
    %5108 = vmatprep.subr.bf16.mxu0 0
    %5109 = vmatpush1.bf16.msra.mxu0 %v3769
    %5110 = vmatprep.subr.bf16.mxu0 0
    %5111 = vmatpush1.bf16.msra.mxu0 %v3770
    %5112 = vmatprep.subr.bf16.mxu0 0
    %5113 = vmatpush1.bf16.msra.mxu0 %v3771
    %5114 = vmatprep.subr.bf16.mxu0 0
    %5115 = vmatpush1.bf16.msra.mxu0 %v3772
    %5116 = vmatprep.subr.bf16.mxu0 0
    %5117 = vmatpush1.bf16.msra.mxu0 %v3773
    %5118 = vmatprep.subr.bf16.mxu0 0
    %5119 = vmatpush1.bf16.msra.mxu0 %v3774
    %5120 = vmatprep.subr.bf16.mxu0 0
    %5121 = vmatpush1.bf16.msra.mxu0 %v3775
    %5122 = vmatprep.subr.bf16.mxu0 0
    %5123 = vmatpush1.bf16.msra.mxu0 %v3776
    %5124 = vmatprep.subr.bf16.mxu0 0
    %5125 = vmatpush1.bf16.msra.mxu0 %v3777
    %5126 = vmatprep.subr.bf16.mxu0 0
    %5127 = vmatpush1.bf16.msra.mxu0 %v3778
    %5128 = vmatprep.subr.bf16.mxu0 0
    %5129 = vmatpush1.bf16.msra.mxu0 %v3779
    %5130 = vmatprep.subr.bf16.mxu0 0
    %5131 = vmatpush1.bf16.msra.mxu0 %v3780
    %5132 = vmatprep.subr.bf16.mxu0 0
    %5133 = vmatpush1.bf16.msra.mxu0 %v3781
    %5134 = vmatprep.mubr.bf16.mxu0 %v449
    %5135 = vmatmul.mubr.bf16.gmra.mrb[0].mxu0 %v448
    %v5136 = vpop.f32.mrb[0].mxu0
    %v5137 = vadd.f32 %v5097, %v5136
    %v5138 = vpop.f32.mrb[0].mxu0
    %v5139 = vpop.f32.mrb[0].mxu0
    %v5140 = vpop.f32.mrb[0].mxu0
    %5141 = vdwg.mxu0
    %5142 = vmatprep.subr.bf16.mxu0 0
    %5143 = vmatpush1.bf16.msra.mxu0 %v3782
    %5144 = vmatprep.subr.bf16.mxu0 0
    %5145 = vmatpush1.bf16.msra.mxu0 %v3783
    %5146 = vmatprep.subr.bf16.mxu0 0
    %5147 = vmatpush1.bf16.msra.mxu0 %v3784
    %5148 = vmatprep.subr.bf16.mxu0 0
    %5149 = vmatpush1.bf16.msra.mxu0 %v3785
    %5150 = vmatprep.subr.bf16.mxu0 0
    %5151 = vmatpush1.bf16.msra.mxu0 %v3786
    %5152 = vmatprep.subr.bf16.mxu0 0
    %5153 = vmatpush1.bf16.msra.mxu0 %v3787
    %5154 = vmatprep.subr.bf16.mxu0 0
    %5155 = vmatpush1.bf16.msra.mxu0 %v3788
    %5156 = vmatprep.subr.bf16.mxu0 0
    %5157 = vmatpush1.bf16.msra.mxu0 %v3789
    %5158 = vmatprep.subr.bf16.mxu0 0
    %5159 = vmatpush1.bf16.msra.mxu0 %v3790
    %5160 = vmatprep.subr.bf16.mxu0 0
    %5161 = vmatpush1.bf16.msra.mxu0 %v3791
    %5162 = vmatprep.subr.bf16.mxu0 0
    %5163 = vmatpush1.bf16.msra.mxu0 %v3792
    %5164 = vmatprep.subr.bf16.mxu0 0
    %5165 = vmatpush1.bf16.msra.mxu0 %v3793
    %5166 = vmatprep.subr.bf16.mxu0 0
    %5167 = vmatpush1.bf16.msra.mxu0 %v3794
    %5168 = vmatprep.subr.bf16.mxu0 0
    %5169 = vmatpush1.bf16.msra.mxu0 %v3795
    %5170 = vmatprep.subr.bf16.mxu0 0
    %5171 = vmatpush1.bf16.msra.mxu0 %v3796
    %5172 = vmatprep.subr.bf16.mxu0 0
    %5173 = vmatpush1.bf16.msra.mxu0 %v3797
    %5174 = vmatprep.mubr.bf16.mxu0 %v451
    %5175 = vmatmul.mubr.bf16.gmra.mrb[0].mxu0 %v450
    %v5176 = vpop.f32.mrb[0].mxu0
    %v5177 = vadd.f32 %v5137, %v5176
    %v5178 = vpop.f32.mrb[0].mxu0
    %v5179 = vpop.f32.mrb[0].mxu0
    %v5180 = vpop.f32.mrb[0].mxu0
    %5181 = vdwg.mxu0
    %5182 = vmatprep.subr.bf16.mxu0 0
    %5183 = vmatpush1.bf16.msra.mxu0 %v3798
    %5184 = vmatprep.subr.bf16.mxu0 0
    %5185 = vmatpush1.bf16.msra.mxu0 %v3799
    %5186 = vmatprep.subr.bf16.mxu0 0
    %5187 = vmatpush1.bf16.msra.mxu0 %v3800
    %5188 = vmatprep.subr.bf16.mxu0 0
    %5189 = vmatpush1.bf16.msra.mxu0 %v3801
    %5190 = vmatprep.subr.bf16.mxu0 0
    %5191 = vmatpush1.bf16.msra.mxu0 %v3802
    %5192 = vmatprep.subr.bf16.mxu0 0
    %5193 = vmatpush1.bf16.msra.mxu0 %v3803
    %5194 = vmatprep.subr.bf16.mxu0 0
    %5195 = vmatpush1.bf16.msra.mxu0 %v3804
    %5196 = vmatprep.subr.bf16.mxu0 0
    %5197 = vmatpush1.bf16.msra.mxu0 %v3805
    %5198 = vmatprep.subr.bf16.mxu0 0
    %5199 = vmatpush1.bf16.msra.mxu0 %v3806
    %5200 = vmatprep.subr.bf16.mxu0 0
    %5201 = vmatpush1.bf16.msra.mxu0 %v3807
    %5202 = vmatprep.subr.bf16.mxu0 0
    %5203 = vmatpush1.bf16.msra.mxu0 %v3808
    %5204 = vmatprep.subr.bf16.mxu0 0
    %5205 = vmatpush1.bf16.msra.mxu0 %v3809
    %5206 = vmatprep.subr.bf16.mxu0 0
    %5207 = vmatpush1.bf16.msra.mxu0 %v3810
    %5208 = vmatprep.subr.bf16.mxu0 0
    %5209 = vmatpush1.bf16.msra.mxu0 %v3811
    %5210 = vmatprep.subr.bf16.mxu0 0
    %5211 = vmatpush1.bf16.msra.mxu0 %v3812
    %5212 = vmatprep.subr.bf16.mxu0 0
    %5213 = vmatpush1.bf16.msra.mxu0 %v3813
    %5214 = vmatprep.mubr.bf16.mxu0 %v453
    %5215 = vmatmul.mubr.bf16.gmra.mrb[0].mxu0 %v452
    %v5216 = vpop.f32.mrb[0].mxu0
    %v5217 = vadd.f32 %v5177, %v5216
    %v5218 = vpop.f32.mrb[0].mxu0
    %v5219 = vpop.f32.mrb[0].mxu0
    %v5220 = vpop.f32.mrb[0].mxu0
    %5221 = vdwg.mxu0
    %5222 = vmatprep.subr.bf16.mxu0 0
    %5223 = vmatpush1.bf16.msra.mxu0 %v3814
    %5224 = vmatprep.subr.bf16.mxu0 0
    %5225 = vmatpush1.bf16.msra.mxu0 %v3815
    %5226 = vmatprep.subr.bf16.mxu0 0
    %5227 = vmatpush1.bf16.msra.mxu0 %v3816
    %5228 = vmatprep.subr.bf16.mxu0 0
    %5229 = vmatpush1.bf16.msra.mxu0 %v3817
    %5230 = vmatprep.subr.bf16.mxu0 0
    %5231 = vmatpush1.bf16.msra.mxu0 %v3818
    %5232 = vmatprep.subr.bf16.mxu0 0
    %5233 = vmatpush1.bf16.msra.mxu0 %v3819
    %5234 = vmatprep.subr.bf16.mxu0 0
    %5235 = vmatpush1.bf16.msra.mxu0 %v3820
    %5236 = vmatprep.subr.bf16.mxu0 0
    %5237 = vmatpush1.bf16.msra.mxu0 %v3821
    %5238 = vmatprep.subr.bf16.mxu0 0
    %5239 = vmatpush1.bf16.msra.mxu0 %v3822
    %5240 = vmatprep.subr.bf16.mxu0 0
    %5241 = vmatpush1.bf16.msra.mxu0 %v3823
    %5242 = vmatprep.subr.bf16.mxu0 0
    %5243 = vmatpush1.bf16.msra.mxu0 %v3824
    %5244 = vmatprep.subr.bf16.mxu0 0
    %5245 = vmatpush1.bf16.msra.mxu0 %v3825
    %5246 = vmatprep.subr.bf16.mxu0 0
    %5247 = vmatpush1.bf16.msra.mxu0 %v3826
    %5248 = vmatprep.subr.bf16.mxu0 0
    %5249 = vmatpush1.bf16.msra.mxu0 %v3827
    %5250 = vmatprep.subr.bf16.mxu0 0
    %5251 = vmatpush1.bf16.msra.mxu0 %v3828
    %5252 = vmatprep.subr.bf16.mxu0 0
    %5253 = vmatpush1.bf16.msra.mxu0 %v3829
    %5254 = vmatprep.mubr.bf16.mxu0 %v455
    %5255 = vmatmul.mubr.bf16.gmra.mrb[0].mxu0 %v454
    %v5256 = vpop.f32.mrb[0].mxu0
    %v5257 = vadd.f32 %v5217, %v5256
    %v5258 = vpop.f32.mrb[0].mxu0
    %v5259 = vpop.f32.mrb[0].mxu0
    %v5260 = vpop.f32.mrb[0].mxu0
    %5261 = vdwg.mxu0
    %5262 = vmatprep.subr.bf16.mxu0 0
    %5263 = vmatpush1.bf16.msra.mxu0 %v3830
    %5264 = vmatprep.subr.bf16.mxu0 0
    %5265 = vmatpush1.bf16.msra.mxu0 %v3831
    %5266 = vmatprep.subr.bf16.mxu0 0
    %5267 = vmatpush1.bf16.msra.mxu0 %v3832
    %5268 = vmatprep.subr.bf16.mxu0 0
    %5269 = vmatpush1.bf16.msra.mxu0 %v3833
    %5270 = vmatprep.subr.bf16.mxu0 0
    %5271 = vmatpush1.bf16.msra.mxu0 %v3834
    %5272 = vmatprep.subr.bf16.mxu0 0
    %5273 = vmatpush1.bf16.msra.mxu0 %v3835
    %5274 = vmatprep.subr.bf16.mxu0 0
    %5275 = vmatpush1.bf16.msra.mxu0 %v3836
    %5276 = vmatprep.subr.bf16.mxu0 0
    %5277 = vmatpush1.bf16.msra.mxu0 %v3837
    %5278 = vmatprep.subr.bf16.mxu0 0
    %5279 = vmatpush1.bf16.msra.mxu0 %v3838
    %5280 = vmatprep.subr.bf16.mxu0 0
    %5281 = vmatpush1.bf16.msra.mxu0 %v3839
    %5282 = vmatprep.subr.bf16.mxu0 0
    %5283 = vmatpush1.bf16.msra.mxu0 %v3840
    %5284 = vmatprep.subr.bf16.mxu0 0
    %5285 = vmatpush1.bf16.msra.mxu0 %v3841
    %5286 = vmatprep.subr.bf16.mxu0 0
    %5287 = vmatpush1.bf16.msra.mxu0 %v3842
    %5288 = vmatprep.subr.bf16.mxu0 0
    %5289 = vmatpush1.bf16.msra.mxu0 %v3843
    %5290 = vmatprep.subr.bf16.mxu0 0
    %5291 = vmatpush1.bf16.msra.mxu0 %v3844
    %5292 = vmatprep.subr.bf16.mxu0 0
    %5293 = vmatpush1.bf16.msra.mxu0 %v3845
    %5294 = vmatprep.mubr.bf16.mxu0 %v457
    %5295 = vmatmul.mubr.bf16.gmra.mrb[0].mxu0 %v456
    %v5296 = vpop.f32.mrb[0].mxu0
    %v5297 = vadd.f32 %v5257, %v5296
    %v5298 = vpop.f32.mrb[0].mxu0
    %v5299 = vpop.f32.mrb[0].mxu0
    %v5300 = vpop.f32.mrb[0].mxu0
    %5301 = vdwg.mxu0
    %5302 = vmatprep.subr.bf16.mxu0 0
    %5303 = vmatpush1.bf16.msra.mxu0 %v3846
    %5304 = vmatprep.subr.bf16.mxu0 0
    %5305 = vmatpush1.bf16.msra.mxu0 %v3847
    %5306 = vmatprep.subr.bf16.mxu0 0
    %5307 = vmatpush1.bf16.msra.mxu0 %v3848
    %5308 = vmatprep.subr.bf16.mxu0 0
    %5309 = vmatpush1.bf16.msra.mxu0 %v3849
    %5310 = vmatprep.subr.bf16.mxu0 0
    %5311 = vmatpush1.bf16.msra.mxu0 %v3850
    %5312 = vmatprep.subr.bf16.mxu0 0
    %5313 = vmatpush1.bf16.msra.mxu0 %v3851
    %5314 = vmatprep.subr.bf16.mxu0 0
    %5315 = vmatpush1.bf16.msra.mxu0 %v3852
    %5316 = vmatprep.subr.bf16.mxu0 0
    %5317 = vmatpush1.bf16.msra.mxu0 %v3853
    %5318 = vmatprep.subr.bf16.mxu0 0
    %5319 = vmatpush1.bf16.msra.mxu0 %v3854
    %5320 = vmatprep.subr.bf16.mxu0 0
    %5321 = vmatpush1.bf16.msra.mxu0 %v3855
    %5322 = vmatprep.subr.bf16.mxu0 0
    %5323 = vmatpush1.bf16.msra.mxu0 %v3856
    %5324 = vmatprep.subr.bf16.mxu0 0
    %5325 = vmatpush1.bf16.msra.mxu0 %v3857
    %5326 = vmatprep.subr.bf16.mxu0 0
    %5327 = vmatpush1.bf16.msra.mxu0 %v3858
    %5328 = vmatprep.subr.bf16.mxu0 0
    %5329 = vmatpush1.bf16.msra.mxu0 %v3859
    %5330 = vmatprep.subr.bf16.mxu0 0
    %5331 = vmatpush1.bf16.msra.mxu0 %v3860
    %5332 = vmatprep.subr.bf16.mxu0 0
    %5333 = vmatpush1.bf16.msra.mxu0 %v3861
    %5334 = vmatprep.mubr.bf16.mxu0 %v459
    %5335 = vmatmul.mubr.bf16.gmra.mrb[0].mxu0 %v458
    %v5336 = vpop.f32.mrb[0].mxu0
    %v5337 = vadd.f32 %v5297, %v5336
    %v5338 = vpop.f32.mrb[0].mxu0
    %v5339 = vpop.f32.mrb[0].mxu0
    %v5340 = vpop.f32.mrb[0].mxu0
    %5341 = vdwg.mxu0
    %5342 = vmatprep.subr.bf16.mxu0 0
    %5343 = vmatpush1.bf16.msra.mxu0 %v3862
    %5344 = vmatprep.subr.bf16.mxu0 0
    %5345 = vmatpush1.bf16.msra.mxu0 %v3863
    %5346 = vmatprep.subr.bf16.mxu0 0
    %5347 = vmatpush1.bf16.msra.mxu0 %v3864
    %5348 = vmatprep.subr.bf16.mxu0 0
    %5349 = vmatpush1.bf16.msra.mxu0 %v3865
    %5350 = vmatprep.subr.bf16.mxu0 0
    %5351 = vmatpush1.bf16.msra.mxu0 %v3866
    %5352 = vmatprep.subr.bf16.mxu0 0
    %5353 = vmatpush1.bf16.msra.mxu0 %v3867
    %5354 = vmatprep.subr.bf16.mxu0 0
    %5355 = vmatpush1.bf16.msra.mxu0 %v3868
    %5356 = vmatprep.subr.bf16.mxu0 0
    %5357 = vmatpush1.bf16.msra.mxu0 %v3869
    %5358 = vmatprep.subr.bf16.mxu0 0
    %5359 = vmatpush1.bf16.msra.mxu0 %v3870
    %5360 = vmatprep.subr.bf16.mxu0 0
    %5361 = vmatpush1.bf16.msra.mxu0 %v3871
    %5362 = vmatprep.subr.bf16.mxu0 0
    %5363 = vmatpush1.bf16.msra.mxu0 %v3872
    %5364 = vmatprep.subr.bf16.mxu0 0
    %5365 = vmatpush1.bf16.msra.mxu0 %v3873
    %5366 = vmatprep.subr.bf16.mxu0 0
    %5367 = vmatpush1.bf16.msra.mxu0 %v3874
    %5368 = vmatprep.subr.bf16.mxu0 0
    %5369 = vmatpush1.bf16.msra.mxu0 %v3875
    %5370 = vmatprep.subr.bf16.mxu0 0
    %5371 = vmatpush1.bf16.msra.mxu0 %v3876
    %5372 = vmatprep.subr.bf16.mxu0 0
    %5373 = vmatpush1.bf16.msra.mxu0 %v3877
    %5374 = vmatprep.mubr.bf16.mxu0 %v461
    %5375 = vmatmul.mubr.bf16.gmra.mrb[0].mxu0 %v460
    %v5376 = vpop.f32.mrb[0].mxu0
    %v5377 = vadd.f32 %v5337, %v5376
    %v5378 = vpop.f32.mrb[0].mxu0
    %v5379 = vpop.f32.mrb[0].mxu0
    %v5380 = vpop.f32.mrb[0].mxu0
    %5381 = vdwg.mxu0
    %5382 = vmatprep.subr.bf16.mxu0 0
    %5383 = vmatpush1.bf16.msra.mxu0 %v3878
    %5384 = vmatprep.subr.bf16.mxu0 0
    %5385 = vmatpush1.bf16.msra.mxu0 %v3879
    %5386 = vmatprep.subr.bf16.mxu0 0
    %5387 = vmatpush1.bf16.msra.mxu0 %v3880
    %5388 = vmatprep.subr.bf16.mxu0 0
    %5389 = vmatpush1.bf16.msra.mxu0 %v3881
    %5390 = vmatprep.subr.bf16.mxu0 0
    %5391 = vmatpush1.bf16.msra.mxu0 %v3882
    %5392 = vmatprep.subr.bf16.mxu0 0
    %5393 = vmatpush1.bf16.msra.mxu0 %v3883
    %5394 = vmatprep.subr.bf16.mxu0 0
    %5395 = vmatpush1.bf16.msra.mxu0 %v3884
    %5396 = vmatprep.subr.bf16.mxu0 0
    %5397 = vmatpush1.bf16.msra.mxu0 %v3885
    %5398 = vmatprep.subr.bf16.mxu0 0
    %5399 = vmatpush1.bf16.msra.mxu0 %v3886
    %5400 = vmatprep.subr.bf16.mxu0 0
    %5401 = vmatpush1.bf16.msra.mxu0 %v3887
    %5402 = vmatprep.subr.bf16.mxu0 0
    %5403 = vmatpush1.bf16.msra.mxu0 %v3888
    %5404 = vmatprep.subr.bf16.mxu0 0
    %5405 = vmatpush1.bf16.msra.mxu0 %v3889
    %5406 = vmatprep.subr.bf16.mxu0 0
    %5407 = vmatpush1.bf16.msra.mxu0 %v3890
    %5408 = vmatprep.subr.bf16.mxu0 0
    %5409 = vmatpush1.bf16.msra.mxu0 %v3891
    %5410 = vmatprep.subr.bf16.mxu0 0
    %5411 = vmatpush1.bf16.msra.mxu0 %v3892
    %5412 = vmatprep.subr.bf16.mxu0 0
    %5413 = vmatpush1.bf16.msra.mxu0 %v3893
    %5414 = vmatprep.mubr.bf16.mxu0 %v463
    %5415 = vmatmul.mubr.bf16.gmra.mrb[0].mxu0 %v462
    %v5416 = vpop.f32.mrb[0].mxu0
    %v5417 = vadd.f32 %v5377, %v5416
    %v5418 = vpop.f32.mrb[0].mxu0
    %v5419 = vpop.f32.mrb[0].mxu0
    %v5420 = vpop.f32.mrb[0].mxu0
    %5421 = vdwg.mxu0
    %5422 = vmatprep.subr.bf16.mxu0 0
    %5423 = vmatpush1.bf16.msra.mxu0 %v3894
    %5424 = vmatprep.subr.bf16.mxu0 0
    %5425 = vmatpush1.bf16.msra.mxu0 %v3895
    %5426 = vmatprep.subr.bf16.mxu0 0
    %5427 = vmatpush1.bf16.msra.mxu0 %v3896
    %5428 = vmatprep.subr.bf16.mxu0 0
    %5429 = vmatpush1.bf16.msra.mxu0 %v3897
    %5430 = vmatprep.subr.bf16.mxu0 0
    %5431 = vmatpush1.bf16.msra.mxu0 %v3898
    %5432 = vmatprep.subr.bf16.mxu0 0
    %5433 = vmatpush1.bf16.msra.mxu0 %v3899
    %5434 = vmatprep.subr.bf16.mxu0 0
    %5435 = vmatpush1.bf16.msra.mxu0 %v3900
    %5436 = vmatprep.subr.bf16.mxu0 0
    %5437 = vmatpush1.bf16.msra.mxu0 %v3901
    %5438 = vmatprep.subr.bf16.mxu0 0
    %5439 = vmatpush1.bf16.msra.mxu0 %v3902
    %5440 = vmatprep.subr.bf16.mxu0 0
    %5441 = vmatpush1.bf16.msra.mxu0 %v3903
    %5442 = vmatprep.subr.bf16.mxu0 0
    %5443 = vmatpush1.bf16.msra.mxu0 %v3904
    %5444 = vmatprep.subr.bf16.mxu0 0
    %5445 = vmatpush1.bf16.msra.mxu0 %v3905
    %5446 = vmatprep.subr.bf16.mxu0 0
    %5447 = vmatpush1.bf16.msra.mxu0 %v3906
    %5448 = vmatprep.subr.bf16.mxu0 0
    %5449 = vmatpush1.bf16.msra.mxu0 %v3907
    %5450 = vmatprep.subr.bf16.mxu0 0
    %5451 = vmatpush1.bf16.msra.mxu0 %v3908
    %5452 = vmatprep.subr.bf16.mxu0 0
    %5453 = vmatpush1.bf16.msra.mxu0 %v3909
    %5454 = vmatprep.mubr.bf16.mxu0 %v465
    %5455 = vmatmul.mubr.bf16.gmra.mrb[0].mxu0 %v464
    %v5456 = vpop.f32.mrb[0].mxu0
    %v5457 = vadd.f32 %v5417, %v5456
    %v5458 = vpop.f32.mrb[0].mxu0
    %v5459 = vpop.f32.mrb[0].mxu0
    %v5460 = vpop.f32.mrb[0].mxu0
    %5461 = vdwg.mxu0
    %5462 = vmatprep.subr.bf16.mxu0 0
    %5463 = vmatpush1.bf16.msra.mxu0 %v3910
    %5464 = vmatprep.subr.bf16.mxu0 0
    %5465 = vmatpush1.bf16.msra.mxu0 %v3911
    %5466 = vmatprep.subr.bf16.mxu0 0
    %5467 = vmatpush1.bf16.msra.mxu0 %v3912
    %5468 = vmatprep.subr.bf16.mxu0 0
    %5469 = vmatpush1.bf16.msra.mxu0 %v3913
    %5470 = vmatprep.subr.bf16.mxu0 0
    %5471 = vmatpush1.bf16.msra.mxu0 %v3914
    %5472 = vmatprep.subr.bf16.mxu0 0
    %5473 = vmatpush1.bf16.msra.mxu0 %v3915
    %5474 = vmatprep.subr.bf16.mxu0 0
    %5475 = vmatpush1.bf16.msra.mxu0 %v3916
    %5476 = vmatprep.subr.bf16.mxu0 0
    %5477 = vmatpush1.bf16.msra.mxu0 %v3917
    %5478 = vmatprep.subr.bf16.mxu0 0
    %5479 = vmatpush1.bf16.msra.mxu0 %v3918
    %5480 = vmatprep.subr.bf16.mxu0 0
    %5481 = vmatpush1.bf16.msra.mxu0 %v3919
    %5482 = vmatprep.subr.bf16.mxu0 0
    %5483 = vmatpush1.bf16.msra.mxu0 %v3920
    %5484 = vmatprep.subr.bf16.mxu0 0
    %5485 = vmatpush1.bf16.msra.mxu0 %v3921
    %5486 = vmatprep.subr.bf16.mxu0 0
    %5487 = vmatpush1.bf16.msra.mxu0 %v3922
    %5488 = vmatprep.subr.bf16.mxu0 0
    %5489 = vmatpush1.bf16.msra.mxu0 %v3923
    %5490 = vmatprep.subr.bf16.mxu0 0
    %5491 = vmatpush1.bf16.msra.mxu0 %v3924
    %5492 = vmatprep.subr.bf16.mxu0 0
    %5493 = vmatpush1.bf16.msra.mxu0 %v3925
    %5494 = vmatprep.mubr.bf16.mxu0 %v467
    %5495 = vmatmul.mubr.bf16.gmra.mrb[0].mxu0 %v466
    %v5496 = vpop.f32.mrb[0].mxu0
    %v5497 = vadd.f32 %v5457, %v5496
    %v5498 = vpop.f32.mrb[0].mxu0
    %v5499 = vpop.f32.mrb[0].mxu0
    %v5500 = vpop.f32.mrb[0].mxu0
    %5501 = vdwg.mxu0
    %5502 = vmatprep.subr.bf16.mxu0 0
    %5503 = vmatpush1.bf16.msra.mxu0 %v3926
    %5504 = vmatprep.subr.bf16.mxu0 0
    %5505 = vmatpush1.bf16.msra.mxu0 %v3927
    %5506 = vmatprep.subr.bf16.mxu0 0
    %5507 = vmatpush1.bf16.msra.mxu0 %v3928
    %5508 = vmatprep.subr.bf16.mxu0 0
    %5509 = vmatpush1.bf16.msra.mxu0 %v3929
    %5510 = vmatprep.subr.bf16.mxu0 0
    %5511 = vmatpush1.bf16.msra.mxu0 %v3930
    %5512 = vmatprep.subr.bf16.mxu0 0
    %5513 = vmatpush1.bf16.msra.mxu0 %v3931
    %5514 = vmatprep.subr.bf16.mxu0 0
    %5515 = vmatpush1.bf16.msra.mxu0 %v3932
    %5516 = vmatprep.subr.bf16.mxu0 0
    %5517 = vmatpush1.bf16.msra.mxu0 %v3933
    %5518 = vmatprep.subr.bf16.mxu0 0
    %5519 = vmatpush1.bf16.msra.mxu0 %v3934
    %5520 = vmatprep.subr.bf16.mxu0 0
    %5521 = vmatpush1.bf16.msra.mxu0 %v3935
    %5522 = vmatprep.subr.bf16.mxu0 0
    %5523 = vmatpush1.bf16.msra.mxu0 %v3936
    %5524 = vmatprep.subr.bf16.mxu0 0
    %5525 = vmatpush1.bf16.msra.mxu0 %v3937
    %5526 = vmatprep.subr.bf16.mxu0 0
    %5527 = vmatpush1.bf16.msra.mxu0 %v3938
    %5528 = vmatprep.subr.bf16.mxu0 0
    %5529 = vmatpush1.bf16.msra.mxu0 %v3939
    %5530 = vmatprep.subr.bf16.mxu0 0
    %5531 = vmatpush1.bf16.msra.mxu0 %v3940
    %5532 = vmatprep.subr.bf16.mxu0 0
    %5533 = vmatpush1.bf16.msra.mxu0 %v3941
    %5534 = vmatprep.mubr.bf16.mxu0 %v469
    %5535 = vmatmul.mubr.bf16.gmra.mrb[0].mxu0 %v468
    %v5536 = vpop.f32.mrb[0].mxu0
    %v5537 = vadd.f32 %v5497, %v5536
    %v5538 = vpop.f32.mrb[0].mxu0
    %v5539 = vpop.f32.mrb[0].mxu0
    %v5540 = vpop.f32.mrb[0].mxu0
    %5541 = vdwg.mxu0
    %5542 = vmatprep.subr.bf16.mxu0 0
    %5543 = vmatpush1.bf16.msra.mxu0 %v3942
    %5544 = vmatprep.subr.bf16.mxu0 0
    %5545 = vmatpush1.bf16.msra.mxu0 %v3943
    %5546 = vmatprep.subr.bf16.mxu0 0
    %5547 = vmatpush1.bf16.msra.mxu0 %v3944
    %5548 = vmatprep.subr.bf16.mxu0 0
    %5549 = vmatpush1.bf16.msra.mxu0 %v3945
    %5550 = vmatprep.subr.bf16.mxu0 0
    %5551 = vmatpush1.bf16.msra.mxu0 %v3946
    %5552 = vmatprep.subr.bf16.mxu0 0
    %5553 = vmatpush1.bf16.msra.mxu0 %v3947
    %5554 = vmatprep.subr.bf16.mxu0 0
    %5555 = vmatpush1.bf16.msra.mxu0 %v3948
    %5556 = vmatprep.subr.bf16.mxu0 0
    %5557 = vmatpush1.bf16.msra.mxu0 %v3949
    %5558 = vmatprep.subr.bf16.mxu0 0
    %5559 = vmatpush1.bf16.msra.mxu0 %v3950
    %5560 = vmatprep.subr.bf16.mxu0 0
    %5561 = vmatpush1.bf16.msra.mxu0 %v3951
    %5562 = vmatprep.subr.bf16.mxu0 0
    %5563 = vmatpush1.bf16.msra.mxu0 %v3952
    %5564 = vmatprep.subr.bf16.mxu0 0
    %5565 = vmatpush1.bf16.msra.mxu0 %v3953
    %5566 = vmatprep.subr.bf16.mxu0 0
    %5567 = vmatpush1.bf16.msra.mxu0 %v3954
    %5568 = vmatprep.subr.bf16.mxu0 0
    %5569 = vmatpush1.bf16.msra.mxu0 %v3955
    %5570 = vmatprep.subr.bf16.mxu0 0
    %5571 = vmatpush1.bf16.msra.mxu0 %v3956
    %5572 = vmatprep.subr.bf16.mxu0 0
    %5573 = vmatpush1.bf16.msra.mxu0 %v3957
    %5574 = vmatprep.mubr.bf16.mxu0 %v471
    %5575 = vmatmul.mubr.bf16.gmra.mrb[0].mxu0 %v470
    %v5576 = vpop.f32.mrb[0].mxu0
    %v5577 = vadd.f32 %v5537, %v5576
    %v5578 = vpop.f32.mrb[0].mxu0
    %v5579 = vpop.f32.mrb[0].mxu0
    %v5580 = vpop.f32.mrb[0].mxu0
    %5581 = vdwg.mxu0
    %5582 = vmatprep.subr.bf16.mxu0 0
    %5583 = vmatpush1.bf16.msra.mxu0 %v3958
    %5584 = vmatprep.subr.bf16.mxu0 0
    %5585 = vmatpush1.bf16.msra.mxu0 %v3959
    %5586 = vmatprep.subr.bf16.mxu0 0
    %5587 = vmatpush1.bf16.msra.mxu0 %v3960
    %5588 = vmatprep.subr.bf16.mxu0 0
    %5589 = vmatpush1.bf16.msra.mxu0 %v3961
    %5590 = vmatprep.subr.bf16.mxu0 0
    %5591 = vmatpush1.bf16.msra.mxu0 %v3962
    %5592 = vmatprep.subr.bf16.mxu0 0
    %5593 = vmatpush1.bf16.msra.mxu0 %v3963
    %5594 = vmatprep.subr.bf16.mxu0 0
    %5595 = vmatpush1.bf16.msra.mxu0 %v3964
    %5596 = vmatprep.subr.bf16.mxu0 0
    %5597 = vmatpush1.bf16.msra.mxu0 %v3965
    %5598 = vmatprep.subr.bf16.mxu0 0
    %5599 = vmatpush1.bf16.msra.mxu0 %v3966
    %5600 = vmatprep.subr.bf16.mxu0 0
    %5601 = vmatpush1.bf16.msra.mxu0 %v3967
    %5602 = vmatprep.subr.bf16.mxu0 0
    %5603 = vmatpush1.bf16.msra.mxu0 %v3968
    %5604 = vmatprep.subr.bf16.mxu0 0
    %5605 = vmatpush1.bf16.msra.mxu0 %v3969
    %5606 = vmatprep.subr.bf16.mxu0 0
    %5607 = vmatpush1.bf16.msra.mxu0 %v3970
    %5608 = vmatprep.subr.bf16.mxu0 0
    %5609 = vmatpush1.bf16.msra.mxu0 %v3971
    %5610 = vmatprep.subr.bf16.mxu0 0
    %5611 = vmatpush1.bf16.msra.mxu0 %v3972
    %5612 = vmatprep.subr.bf16.mxu0 0
    %5613 = vmatpush1.bf16.msra.mxu0 %v3973
    %5614 = vmatprep.mubr.bf16.mxu0 %v473
    %5615 = vmatmul.mubr.bf16.gmra.mrb[0].mxu0 %v472
    %v5616 = vpop.f32.mrb[0].mxu0
    %v5617 = vadd.f32 %v5577, %v5616
    %v5618 = vpop.f32.mrb[0].mxu0
    %v5619 = vpop.f32.mrb[0].mxu0
    %v5620 = vpop.f32.mrb[0].mxu0
    %5621 = vdwg.mxu0
    %5622 = vmatprep.subr.bf16.mxu0 0
    %5623 = vmatpush1.bf16.msra.mxu0 %v3974
    %5624 = vmatprep.subr.bf16.mxu0 0
    %5625 = vmatpush1.bf16.msra.mxu0 %v3975
    %5626 = vmatprep.subr.bf16.mxu0 0
    %5627 = vmatpush1.bf16.msra.mxu0 %v3976
    %5628 = vmatprep.subr.bf16.mxu0 0
    %5629 = vmatpush1.bf16.msra.mxu0 %v3977
    %5630 = vmatprep.subr.bf16.mxu0 0
    %5631 = vmatpush1.bf16.msra.mxu0 %v3978
    %5632 = vmatprep.subr.bf16.mxu0 0
    %5633 = vmatpush1.bf16.msra.mxu0 %v3979
    %5634 = vmatprep.subr.bf16.mxu0 0
    %5635 = vmatpush1.bf16.msra.mxu0 %v3980
    %5636 = vmatprep.subr.bf16.mxu0 0
    %5637 = vmatpush1.bf16.msra.mxu0 %v3981
    %5638 = vmatprep.subr.bf16.mxu0 0
    %5639 = vmatpush1.bf16.msra.mxu0 %v3982
    %5640 = vmatprep.subr.bf16.mxu0 0
    %5641 = vmatpush1.bf16.msra.mxu0 %v3983
    %5642 = vmatprep.subr.bf16.mxu0 0
    %5643 = vmatpush1.bf16.msra.mxu0 %v3984
    %5644 = vmatprep.subr.bf16.mxu0 0
    %5645 = vmatpush1.bf16.msra.mxu0 %v3985
    %5646 = vmatprep.subr.bf16.mxu0 0
    %5647 = vmatpush1.bf16.msra.mxu0 %v3986
    %5648 = vmatprep.subr.bf16.mxu0 0
    %5649 = vmatpush1.bf16.msra.mxu0 %v3987
    %5650 = vmatprep.subr.bf16.mxu0 0
    %5651 = vmatpush1.bf16.msra.mxu0 %v3988
    %5652 = vmatprep.subr.bf16.mxu0 0
    %5653 = vmatpush1.bf16.msra.mxu0 %v3989
    %5654 = vmatprep.mubr.bf16.mxu0 %v475
    %5655 = vmatmul.mubr.bf16.gmra.mrb[0].mxu0 %v474
    %v5656 = vpop.f32.mrb[0].mxu0
    %v5657 = vadd.f32 %v5617, %v5656
    %v5658 = vpop.f32.mrb[0].mxu0
    %v5659 = vpop.f32.mrb[0].mxu0
    %v5660 = vpop.f32.mrb[0].mxu0
    %5661 = vdwg.mxu0
    %5662 = vmatprep.subr.bf16.mxu0 0
    %5663 = vmatpush1.bf16.msra.mxu0 %v3990
    %5664 = vmatprep.subr.bf16.mxu0 0
    %5665 = vmatpush1.bf16.msra.mxu0 %v3991
    %5666 = vmatprep.subr.bf16.mxu0 0
    %5667 = vmatpush1.bf16.msra.mxu0 %v3992
    %5668 = vmatprep.subr.bf16.mxu0 0
    %5669 = vmatpush1.bf16.msra.mxu0 %v3993
    %5670 = vmatprep.subr.bf16.mxu0 0
    %5671 = vmatpush1.bf16.msra.mxu0 %v3994
    %5672 = vmatprep.subr.bf16.mxu0 0
    %5673 = vmatpush1.bf16.msra.mxu0 %v3995
    %5674 = vmatprep.subr.bf16.mxu0 0
    %5675 = vmatpush1.bf16.msra.mxu0 %v3996
    %5676 = vmatprep.subr.bf16.mxu0 0
    %5677 = vmatpush1.bf16.msra.mxu0 %v3997
    %5678 = vmatprep.subr.bf16.mxu0 0
    %5679 = vmatpush1.bf16.msra.mxu0 %v3998
    %5680 = vmatprep.subr.bf16.mxu0 0
    %5681 = vmatpush1.bf16.msra.mxu0 %v3999
    %5682 = vmatprep.subr.bf16.mxu0 0
    %5683 = vmatpush1.bf16.msra.mxu0 %v4000
    %5684 = vmatprep.subr.bf16.mxu0 0
    %5685 = vmatpush1.bf16.msra.mxu0 %v4001
    %5686 = vmatprep.subr.bf16.mxu0 0
    %5687 = vmatpush1.bf16.msra.mxu0 %v4002
    %5688 = vmatprep.subr.bf16.mxu0 0
    %5689 = vmatpush1.bf16.msra.mxu0 %v4003
    %5690 = vmatprep.subr.bf16.mxu0 0
    %5691 = vmatpush1.bf16.msra.mxu0 %v4004
    %5692 = vmatprep.subr.bf16.mxu0 0
    %5693 = vmatpush1.bf16.msra.mxu0 %v4005
    %5694 = vmatprep.mubr.bf16.mxu0 %v477
    %5695 = vmatmul.mubr.bf16.gmra.mrb[0].mxu0 %v476
    %v5696 = vpop.f32.mrb[0].mxu0
    %v5697 = vadd.f32 %v5657, %v5696
    %v5698 = vpop.f32.mrb[0].mxu0
    %v5699 = vpop.f32.mrb[0].mxu0
    %v5700 = vpop.f32.mrb[0].mxu0
    %5701 = vdwg.mxu0
    %5702 = vmatprep.subr.bf16.mxu0 0
    %5703 = vmatpush1.bf16.msra.mxu0 %v4006
    %5704 = vmatprep.subr.bf16.mxu0 0
    %5705 = vmatpush1.bf16.msra.mxu0 %v4007
    %5706 = vmatprep.subr.bf16.mxu0 0
    %5707 = vmatpush1.bf16.msra.mxu0 %v4008
    %5708 = vmatprep.subr.bf16.mxu0 0
    %5709 = vmatpush1.bf16.msra.mxu0 %v4009
    %5710 = vmatprep.subr.bf16.mxu0 0
    %5711 = vmatpush1.bf16.msra.mxu0 %v4010
    %5712 = vmatprep.subr.bf16.mxu0 0
    %5713 = vmatpush1.bf16.msra.mxu0 %v4011
    %5714 = vmatprep.subr.bf16.mxu0 0
    %5715 = vmatpush1.bf16.msra.mxu0 %v4012
    %5716 = vmatprep.subr.bf16.mxu0 0
    %5717 = vmatpush1.bf16.msra.mxu0 %v4013
    %5718 = vmatprep.subr.bf16.mxu0 0
    %5719 = vmatpush1.bf16.msra.mxu0 %v4014
    %5720 = vmatprep.subr.bf16.mxu0 0
    %5721 = vmatpush1.bf16.msra.mxu0 %v4015
    %5722 = vmatprep.subr.bf16.mxu0 0
    %5723 = vmatpush1.bf16.msra.mxu0 %v4016
    %5724 = vmatprep.subr.bf16.mxu0 0
    %5725 = vmatpush1.bf16.msra.mxu0 %v4017
    %5726 = vmatprep.subr.bf16.mxu0 0
    %5727 = vmatpush1.bf16.msra.mxu0 %v4018
    %5728 = vmatprep.subr.bf16.mxu0 0
    %5729 = vmatpush1.bf16.msra.mxu0 %v4019
    %5730 = vmatprep.subr.bf16.mxu0 0
    %5731 = vmatpush1.bf16.msra.mxu0 %v4020
    %5732 = vmatprep.subr.bf16.mxu0 0
    %5733 = vmatpush1.bf16.msra.mxu0 %v4021
    %5734 = vmatprep.mubr.bf16.mxu0 %v479
    %5735 = vmatmul.mubr.bf16.gmra.mrb[0].mxu0 %v478
    %v5736 = vpop.f32.mrb[0].mxu0
    %v5737 = vadd.f32 %v5697, %v5736
    %v5738 = vpop.f32.mrb[0].mxu0
    %v5739 = vpop.f32.mrb[0].mxu0
    %v5740 = vpop.f32.mrb[0].mxu0
    %5741 = vdwg.mxu0
    %5742 = vmatprep.subr.bf16.mxu0 0
    %5743 = vmatpush1.bf16.msra.mxu0 %v4022
    %5744 = vmatprep.subr.bf16.mxu0 0
    %5745 = vmatpush1.bf16.msra.mxu0 %v4023
    %5746 = vmatprep.subr.bf16.mxu0 0
    %5747 = vmatpush1.bf16.msra.mxu0 %v4024
    %5748 = vmatprep.subr.bf16.mxu0 0
    %5749 = vmatpush1.bf16.msra.mxu0 %v4025
    %5750 = vmatprep.subr.bf16.mxu0 0
    %5751 = vmatpush1.bf16.msra.mxu0 %v4026
    %5752 = vmatprep.subr.bf16.mxu0 0
    %5753 = vmatpush1.bf16.msra.mxu0 %v4027
    %5754 = vmatprep.subr.bf16.mxu0 0
    %5755 = vmatpush1.bf16.msra.mxu0 %v4028
    %5756 = vmatprep.subr.bf16.mxu0 0
    %5757 = vmatpush1.bf16.msra.mxu0 %v4029
    %5758 = vmatprep.subr.bf16.mxu0 0
    %5759 = vmatpush1.bf16.msra.mxu0 %v4030
    %5760 = vmatprep.subr.bf16.mxu0 0
    %5761 = vmatpush1.bf16.msra.mxu0 %v4031
    %5762 = vmatprep.subr.bf16.mxu0 0
    %5763 = vmatpush1.bf16.msra.mxu0 %v4032
    %5764 = vmatprep.subr.bf16.mxu0 0
    %5765 = vmatpush1.bf16.msra.mxu0 %v4033
    %5766 = vmatprep.subr.bf16.mxu0 0
    %5767 = vmatpush1.bf16.msra.mxu0 %v4034
    %5768 = vmatprep.subr.bf16.mxu0 0
    %5769 = vmatpush1.bf16.msra.mxu0 %v4035
    %5770 = vmatprep.subr.bf16.mxu0 0
    %5771 = vmatpush1.bf16.msra.mxu0 %v4036
    %5772 = vmatprep.subr.bf16.mxu0 0
    %5773 = vmatpush1.bf16.msra.mxu0 %v4037
    %5774 = vmatprep.mubr.bf16.mxu0 %v481
    %5775 = vmatmul.mubr.bf16.gmra.mrb[0].mxu0 %v480
    %v5776 = vpop.f32.mrb[0].mxu0
    %v5777 = vadd.f32 %v5737, %v5776
    %v5778 = vpop.f32.mrb[0].mxu0
    %v5779 = vpop.f32.mrb[0].mxu0
    %v5780 = vpop.f32.mrb[0].mxu0
    %5781 = vdwg.mxu0
    %5782 = vmatprep.subr.bf16.mxu0 0
    %5783 = vmatpush1.bf16.msra.mxu0 %v4038
    %5784 = vmatprep.subr.bf16.mxu0 0
    %5785 = vmatpush1.bf16.msra.mxu0 %v4039
    %5786 = vmatprep.subr.bf16.mxu0 0
    %5787 = vmatpush1.bf16.msra.mxu0 %v4040
    %5788 = vmatprep.subr.bf16.mxu0 0
    %5789 = vmatpush1.bf16.msra.mxu0 %v4041
    %5790 = vmatprep.subr.bf16.mxu0 0
    %5791 = vmatpush1.bf16.msra.mxu0 %v4042
    %5792 = vmatprep.subr.bf16.mxu0 0
    %5793 = vmatpush1.bf16.msra.mxu0 %v4043
    %5794 = vmatprep.subr.bf16.mxu0 0
    %5795 = vmatpush1.bf16.msra.mxu0 %v4044
    %5796 = vmatprep.subr.bf16.mxu0 0
    %5797 = vmatpush1.bf16.msra.mxu0 %v4045
    %5798 = vmatprep.subr.bf16.mxu0 0
    %5799 = vmatpush1.bf16.msra.mxu0 %v4046
    %5800 = vmatprep.subr.bf16.mxu0 0
    %5801 = vmatpush1.bf16.msra.mxu0 %v4047
    %5802 = vmatprep.subr.bf16.mxu0 0
    %5803 = vmatpush1.bf16.msra.mxu0 %v4048
    %5804 = vmatprep.subr.bf16.mxu0 0
    %5805 = vmatpush1.bf16.msra.mxu0 %v4049
    %5806 = vmatprep.subr.bf16.mxu0 0
    %5807 = vmatpush1.bf16.msra.mxu0 %v4050
    %5808 = vmatprep.subr.bf16.mxu0 0
    %5809 = vmatpush1.bf16.msra.mxu0 %v4051
    %5810 = vmatprep.subr.bf16.mxu0 0
    %5811 = vmatpush1.bf16.msra.mxu0 %v4052
    %5812 = vmatprep.subr.bf16.mxu0 0
    %5813 = vmatpush1.bf16.msra.mxu0 %v4053
    %5814 = vmatprep.mubr.bf16.mxu0 %v483
    %5815 = vmatmul.mubr.bf16.gmra.mrb[0].mxu0 %v482
    %v5816 = vpop.f32.mrb[0].mxu0
    %v5817 = vadd.f32 %v5777, %v5816
    %v5818 = vpop.f32.mrb[0].mxu0
    %v5819 = vpop.f32.mrb[0].mxu0
    %v5820 = vpop.f32.mrb[0].mxu0
    %5821 = vdwg.mxu0
    %5822 = vmatprep.subr.bf16.mxu0 0
    %5823 = vmatpush1.bf16.msra.mxu0 %v4054
    %5824 = vmatprep.subr.bf16.mxu0 0
    %5825 = vmatpush1.bf16.msra.mxu0 %v4055
    %5826 = vmatprep.subr.bf16.mxu0 0
    %5827 = vmatpush1.bf16.msra.mxu0 %v4056
    %5828 = vmatprep.subr.bf16.mxu0 0
    %5829 = vmatpush1.bf16.msra.mxu0 %v4057
    %5830 = vmatprep.subr.bf16.mxu0 0
    %5831 = vmatpush1.bf16.msra.mxu0 %v4058
    %5832 = vmatprep.subr.bf16.mxu0 0
    %5833 = vmatpush1.bf16.msra.mxu0 %v4059
    %5834 = vmatprep.subr.bf16.mxu0 0
    %5835 = vmatpush1.bf16.msra.mxu0 %v4060
    %5836 = vmatprep.subr.bf16.mxu0 0
    %5837 = vmatpush1.bf16.msra.mxu0 %v4061
    %5838 = vmatprep.subr.bf16.mxu0 0
    %5839 = vmatpush1.bf16.msra.mxu0 %v4062
    %5840 = vmatprep.subr.bf16.mxu0 0
    %5841 = vmatpush1.bf16.msra.mxu0 %v4063
    %5842 = vmatprep.subr.bf16.mxu0 0
    %5843 = vmatpush1.bf16.msra.mxu0 %v4064
    %5844 = vmatprep.subr.bf16.mxu0 0
    %5845 = vmatpush1.bf16.msra.mxu0 %v4065
    %5846 = vmatprep.subr.bf16.mxu0 0
    %5847 = vmatpush1.bf16.msra.mxu0 %v4066
    %5848 = vmatprep.subr.bf16.mxu0 0
    %5849 = vmatpush1.bf16.msra.mxu0 %v4067
    %5850 = vmatprep.subr.bf16.mxu0 0
    %5851 = vmatpush1.bf16.msra.mxu0 %v4068
    %5852 = vmatprep.subr.bf16.mxu0 0
    %5853 = vmatpush1.bf16.msra.mxu0 %v4069
    %5854 = vmatprep.mubr.bf16.mxu0 %v485
    %5855 = vmatmul.mubr.bf16.gmra.mrb[0].mxu0 %v484
    %v5856 = vpop.f32.mrb[0].mxu0
    %v5857 = vadd.f32 %v5817, %v5856
    %v5858 = vpop.f32.mrb[0].mxu0
    %v5859 = vpop.f32.mrb[0].mxu0
    %v5860 = vpop.f32.mrb[0].mxu0
    %5861 = vdwg.mxu0
    %v5862 = vadd.f32 %v53, %v5857
    %5863 = vst [vmem:[%s3] sm:$0x3] %v5862
    // Predicated region
    $region26: #{multidim_stacking_forward.1} parent=1 // pred_check
      _
    $region27: #{multidim_stacking_forward.1} parent=1 // pred_check_branch
      %5865 = sbr.rel (0) target = $region29
    $region28: #{multidim_stacking_forward.1} parent=1 // pred_region
      _
    $region29: #{multidim_stacking_forward.1} parent=1 // pred_fallthru
      _
    // Predicated region
    $region30: #{multidim_stacking_forward.1} parent=1 // pred_check
      _
    $region31: #{multidim_stacking_forward.1} parent=1 // pred_check_branch
      %5867 = sbr.rel (0) target = $region33
    $region32: #{multidim_stacking_forward.1} parent=1 // pred_region
      _
    $region33: #{multidim_stacking_forward.1} parent=1 // pred_fallthru
      _
    %5868 = vsyncpa [#allocation3], 1
    %5869 = vsyncpa [#allocation5], 1

</llo_original>
